<compile_context>
chip_gen: v7x
topology: tpu7x:2x2x1
jax: 0.10.0
libtpu: 0.0.40
codegen_flags: <defaults>
</compile_context>

<pallas_src>
import functools

import jax
import jax.numpy as jnp
from jax.experimental import pallas as pl
from jax.experimental.pallas import tpu as pltpu

EPS = 1e-6
VMEM_LIMIT = 32 * 1024 * 1024  # explicit scoped-VMEM budget (>= defaults on v5e/v6e/v7x)


def _pick_rows_tile(total, target):
    """Largest divisor of `total` <= target that is a multiple of 8 (fallback: total)."""
    for d in range(min(total, target), 7, -1):
        if total % d == 0 and d % 8 == 0:
            return d
    return total


def _pick_channel_tile(c, target=128):
    if c > target and c % target == 0:
        return target
    return c


# ---------------------------------------------------------------------------
# Pass 1: BN1 batch statistics of h = x @ W1 + b1, streamed over M row tiles.
# Per-step partial sums are written to per-step blocks (parallel / megacore safe).
# ---------------------------------------------------------------------------
def bn1_stats_kernel(x_ref, w1_ref, b1_ref, ssum_ref, ssq_ref):
    h = jnp.dot(x_ref[...], w1_ref[...],
                preferred_element_type=jnp.float32) + b1_ref[...]
    s = jnp.sum(h, axis=0, keepdims=True)
    q = jnp.sum(h * h, axis=0, keepdims=True)
    ssum_ref[...] = jnp.broadcast_to(s, ssum_ref.shape)
    ssq_ref[...] = jnp.broadcast_to(q, ssq_ref.shape)


# ---------------------------------------------------------------------------
# Pass 2: (conv1 + BN1 folded) -> leaky_relu -> conv2, fused 2x2 max-pool epilogue,
# plus per-step partial BN2 statistics of the un-pooled z.
# Inputs are the even/odd-H row views; the W parity pair sits in the lane dim (2*Cin).
# ---------------------------------------------------------------------------
def main_kernel(xe_ref, xo_ref, w1_ref, b1_ref, w2_ref, b2_ref, g2_ref,
                pooled_ref, ssum_ref, ssq_ref, *, cin, act_learn):
    w1 = w1_ref[...]                      # (Cin, Cin)   BN1-folded
    w2 = w2_ref[...]                      # (Cin, Cout)
    b1 = b1_ref[...]                      # (1, Cin)     BN1-folded
    b2 = b2_ref[...]                      # (1, Cout)
    xe = xe_ref[...]                      # (tm, 2*Cin)  h-even rows
    xo = xo_ref[...]                      # (tm, 2*Cin)  h-odd rows

    def branch(xpart):
        hn = jnp.dot(xpart, w1, preferred_element_type=jnp.float32) + b1
        a = jnp.where(hn >= 0.0, hn, act_learn * hn)          # leaky_relu(act_learn)
        return jnp.dot(a.astype(w2.dtype), w2,
                       preferred_element_type=jnp.float32) + b2

    z00 = branch(xe[:, :cin])             # (h even, w even)
    z01 = branch(xe[:, cin:])             # (h even, w odd)
    z10 = branch(xo[:, :cin])             # (h odd,  w even)
    z11 = branch(xo[:, cin:])             # (h odd,  w odd)

    zmax = jnp.maximum(jnp.maximum(z00, z01), jnp.maximum(z10, z11))
    zmin = jnp.minimum(jnp.minimum(z00, z01), jnp.minimum(z10, z11))
    # MaxPool2d(2) of BN2(z): max where gamma2 >= 0, min otherwise
    # (BN2's per-channel affine itself is applied in pass 3 once its stats are known).
    pooled_ref[...] = jnp.where(g2_ref[...] >= 0.0, zmax, zmin)

    # Combine the four parity contributions on the VPU first so only two
    # cross-sublane (XLU) reductions are needed per grid step.
    s = jnp.sum((z00 + z01) + (z10 + z11), axis=0, keepdims=True)
    q = jnp.sum((z00 * z00 + z01 * z01) + (z10 * z10 + z11 * z11),
                axis=0, keepdims=True)
    ssum_ref[...] = jnp.broadcast_to(s, ssum_ref.shape)
    ssq_ref[...] = jnp.broadcast_to(q, ssq_ref.shape)


# ---------------------------------------------------------------------------
# Pass 3: BN2 affine -> ReLU -> depthwise KxK conv (pad=act_num) -> BN3.
# Channel-tiled; everything is per-channel independent so BN3 batch stats are
# computed entirely within one grid step.
# ---------------------------------------------------------------------------
def act_dw_kernel(y_ref, s2_ref, t2_ref, w_ref, g_ref, be_ref, o_ref, pad_ref,
                  *, act_num, wl):
    zn = y_ref[...] * s2_ref[...] + t2_ref[...]        # BN2 affine (already pooled)
    r = jnp.maximum(zn, 0.0)                           # ReLU
    n, hp, wp, cb = r.shape
    p = act_num
    k = 2 * p + 1

    # zero-filled, sublane-aligned padded buffer (re-zeroed every grid step so the
    # halo is valid regardless of megacore grid sharding / stale scratch contents)
    pad_ref[...] = jnp.zeros_like(pad_ref)
    pad_ref[:, p:p + hp, wl:wl + wp, :] = r

    wdw = w_ref[...]                                   # (k*k, cb), vreg-resident
    # depthwise KxK conv: k*k shifted MACs, 4 partial accumulators for ILP
    accs = [jnp.zeros((n, hp, wp, cb), jnp.float32) for _ in range(4)]
    for u in range(k):
        for v in range(k):
            t = u * k + v
            tap = pad_ref[:, u:u + hp, wl - p + v: wl - p + v + wp, :]
            accs[t % 4] = accs[t % 4] + tap * wdw[t]
    acc = (accs[0] + accs[1]) + (accs[2] + accs[3])

    # BN3, training-mode batch statistics (biased variance) per channel
    cnt = float(n * hp * wp)

    def _mean(x):
        s = jnp.sum(x, axis=2, keepdims=True)
        s = jnp.sum(s, axis=1, keepdims=True)
        s = jnp.sum(s, axis=0, keepdims=True)
        return s / cnt

    mu = _mean(acc)
    d = acc - mu
    var = _mean(d * d)
    o_ref[...] = g_ref[...] * d * jax.lax.rsqrt(var + EPS) + be_ref[...]


# ---------------------------------------------------------------------------
# Wrapper: layout glue (transposes / free reshapes), tile selection and the tiny
# per-channel algebra that folds BN1 into the first matmul.
# ---------------------------------------------------------------------------
def block_forward(x_nchw, params, act_num=3, act_learn=1.0,
                  matmul_dtype=jnp.float32):
    f32 = jnp.float32
    N, Cin, H, W = x_nchw.shape
    if H % 2 or W % 2:
        raise ValueError("MaxPool2d(2) path assumes even H and W")
    Cout = params["w2"].shape[0]
    Hp, Wp = H // 2, W // 2
    M = N * H * W
    M4 = N * Hp * Wp

    # TODO(synk): keep activations NHWC across stacked Blocks to drop this transpose.
    x_nhwc = jnp.transpose(x_nchw, (0, 2, 3, 1)).astype(f32)     # (N, H, W, Cin)
    x_flat = x_nhwc.reshape(M, Cin)

    w1t = params["w1"][:, :, 0, 0].T.astype(f32)                 # (Cin, Cin)
    w2t = params["w2"][:, :, 0, 0].T.astype(f32)                 # (Cin, Cout)
    b1 = params["b1"].astype(f32)
    g1 = params["g1"].astype(f32)
    be1 = params["be1"].astype(f32)
    b2 = params["b2"].astype(f32)
    g2 = params["g2"].astype(f32)
    be2 = params["be2"].astype(f32)

    # ---------------- pass 1: BN1 batch stats of h = x @ W1 + b1 ----------------
    tm1 = _pick_rows_tile(M, 1024)
    n1 = M // tm1
    s1sum, s1sq = pl.pallas_call(
        bn1_stats_kernel,
        grid=(n1,),
        in_specs=[pl.BlockSpec((tm1, Cin), lambda i: (i, 0)),
                  pl.BlockSpec((Cin, Cin), lambda i: (0, 0)),
                  pl.BlockSpec((1, Cin), lambda i: (0, 0))],
        out_specs=[pl.BlockSpec((8, Cin), lambda i: (i, 0)),
                   pl.BlockSpec((8, Cin), lambda i: (i, 0))],
        out_shape=[jax.ShapeDtypeStruct((8 * n1, Cin), f32),
                   jax.ShapeDtypeStruct((8 * n1, Cin), f32)],
        compiler_params=pltpu.CompilerParams(
            dimension_semantics=("parallel",), vmem_limit_bytes=VMEM_LIMIT),
    )(x_flat, w1t, b1.reshape(1, Cin))

    sum_h = s1sum.reshape(n1, 8, Cin)[:, 0, :].sum(axis=0)
    sum_h2 = s1sq.reshape(n1, 8, Cin)[:, 0, :].sum(axis=0)
    m1 = sum_h / M
    v1 = jnp.maximum(sum_h2 / M - m1 * m1, 0.0)
    s1 = g1 * jax.lax.rsqrt(v1 + EPS)
    # fold conv1 bias + BN1 affine into the first matmul: hn = x @ w1f + b1f
    w1f = (w1t * s1[None, :]).astype(matmul_dtype)
    b1f = (s1 * (b1 - m1) + be1).reshape(1, Cin)

    # ------------- pass 2: fused matmuls + BN2 stats + 2x2 max-pool -------------
    # Even / odd H rows; the W-parity pair sits side by side in the lane dim (2*Cin).
    x_ev = x_nhwc[:, 0::2].reshape(M4, 2 * Cin).astype(matmul_dtype)
    x_od = x_nhwc[:, 1::2].reshape(M4, 2 * Cin).astype(matmul_dtype)

    tm2 = _pick_rows_tile(M4, 512)
    n2 = M4 // tm2
    pooled, s2sum, s2sq = pl.pallas_call(
        functools.partial(main_kernel, cin=Cin, act_learn=float(act_learn)),
        grid=(n2,),
        in_specs=[pl.BlockSpec((tm2, 2 * Cin), lambda i: (i, 0)),
                  pl.BlockSpec((tm2, 2 * Cin), lambda i: (i, 0)),
                  pl.BlockSpec((Cin, Cin), lambda i: (0, 0)),
                  pl.BlockSpec((1, Cin), lambda i: (0, 0)),
                  pl.BlockSpec((Cin, Cout), lambda i: (0, 0)),
                  pl.BlockSpec((1, Cout), lambda i: (0, 0)),
                  pl.BlockSpec((1, Cout), lambda i: (0, 0))],
        out_specs=[pl.BlockSpec((tm2, Cout), lambda i: (i, 0)),
                   pl.BlockSpec((8, Cout), lambda i: (i, 0)),
                   pl.BlockSpec((8, Cout), lambda i: (i, 0))],
        out_shape=[jax.ShapeDtypeStruct((M4, Cout), f32),
                   jax.ShapeDtypeStruct((8 * n2, Cout), f32),
                   jax.ShapeDtypeStruct((8 * n2, Cout), f32)],
        compiler_params=pltpu.CompilerParams(
            dimension_semantics=("parallel",), vmem_limit_bytes=VMEM_LIMIT),
    )(x_ev, x_od, w1f, b1f, w2t.astype(matmul_dtype),
      b2.reshape(1, Cout), g2.reshape(1, Cout))

    sum_z = s2sum.reshape(n2, 8, Cout)[:, 0, :].sum(axis=0)
    sum_z2 = s2sq.reshape(n2, 8, Cout)[:, 0, :].sum(axis=0)
    m2 = sum_z / M
    v2 = jnp.maximum(sum_z2 / M - m2 * m2, 0.0)
    s2 = g2 * jax.lax.rsqrt(v2 + EPS)
    t2 = be2 - m2 * s2

    pooled_nhwc = pooled.reshape(N, Hp, Wp, Cout)

    # ------- pass 3: BN2 affine -> ReLU -> depthwise conv -> BN3 (channel tiles) -------
    K = 2 * act_num + 1
    wdw = jnp.transpose(params["w_act"][:, 0, :, :], (1, 2, 0)).reshape(K * K, Cout)
    wdw = wdw.astype(f32)
    g3 = params["g_act"].astype(f32).reshape(1, Cout)
    be3 = params["be_act"].astype(f32).reshape(1, Cout)

    cb = _pick_channel_tile(Cout, 128)
    wl = ((act_num + 7) // 8) * 8            # sublane-aligned interior W offset
    wpad = wl + Wp + act_num

    out_nhwc = pl.pallas_call(
        functools.partial(act_dw_kernel, act_num=act_num, wl=wl),
        grid=(Cout // cb,),
        in_specs=[pl.BlockSpec((N, Hp, Wp, cb), lambda c: (0, 0, 0, c)),
                  pl.BlockSpec((1, cb), lambda c: (0, c)),
                  pl.BlockSpec((1, cb), lambda c: (0, c)),
                  pl.BlockSpec((K * K, cb), lambda c: (0, c)),
                  pl.BlockSpec((1, cb), lambda c: (0, c)),
                  pl.BlockSpec((1, cb), lambda c: (0, c))],
        out_specs=pl.BlockSpec((N, Hp, Wp, cb), lambda c: (0, 0, 0, c)),
        out_shape=jax.ShapeDtypeStruct((N, Hp, Wp, Cout), f32),
        scratch_shapes=[pltpu.VMEM((N, Hp + 2 * act_num, wpad, cb), f32)],
        compiler_params=pltpu.CompilerParams(
            dimension_semantics=("parallel",), vmem_limit_bytes=VMEM_LIMIT),
    )(pooled_nhwc, s2.reshape(1, Cout), t2.reshape(1, Cout), wdw, g3, be3)

    return jnp.transpose(out_nhwc, (0, 3, 1, 2))                 # back to NCHW


# ---------------------------------------------------------------------------
# Plain-JAX reference (straight transcription of the PyTorch module) for self-check.
# ---------------------------------------------------------------------------
def _reference(x_nchw, params, act_num=3, act_learn=1.0):
    f32 = jnp.float32
    x = jnp.transpose(x_nchw, (0, 2, 3, 1)).astype(f32)
    N, H, W, _ = x.shape
    Hp, Wp = H // 2, W // 2

    def bn(t, g, b):
        ax = tuple(range(t.ndim - 1))
        m = jnp.mean(t, axis=ax)
        v = jnp.mean((t - m) ** 2, axis=ax)
        return g * (t - m) * jax.lax.rsqrt(v + EPS) + b

    h = jnp.einsum("nhwc,cd->nhwd", x, params["w1"][:, :, 0, 0].T.astype(f32)) + params["b1"]
    h = bn(h, params["g1"], params["be1"])
    h = jnp.where(h >= 0, h, act_learn * h)
    z = jnp.einsum("nhwc,cd->nhwd", h, params["w2"][:, :, 0, 0].T.astype(f32)) + params["b2"]
    z = bn(z, params["g2"], params["be2"])
    zp = jnp.max(z.reshape(N, Hp, 2, Wp, 2, -1), axis=(2, 4))
    r = jnp.maximum(zp, 0.0)
    K = 2 * act_num + 1
    p = act_num
    rp = jnp.pad(r, ((0, 0), (p, p), (p, p), (0, 0)))
    acc = jnp.zeros_like(r)
    for u in range(K):
        for v in range(K):
            acc = acc + rp[:, u:u + Hp, v:v + Wp, :] * params["w_act"][:, 0, u, v]
    d = bn(acc, params["g_act"], params["be_act"])
    return jnp.transpose(d, (0, 3, 1, 2))


if __name__ == "__main__":
    N, dim, dim_out, H, W = 2, 4, 8, 16, 16
    act_num = 3

    key = jax.random.PRNGKey(0)
    ks = jax.random.split(key, 6)
    x = jax.random.normal(ks[0], (N, dim, H, W), jnp.float32)

    # Deterministic synthetic parameters matching the module's shapes.
    # BN affine params use PyTorch defaults (gamma=1, beta=0); running stats are
    # irrelevant since a freshly-constructed module runs BN in training mode.
    params = {
        "w1": jax.random.normal(ks[1], (dim, dim, 1, 1), jnp.float32) * 0.2,
        "b1": jax.random.normal(ks[2], (dim,), jnp.float32) * 0.1,
        "g1": jnp.ones((dim,), jnp.float32),
        "be1": jnp.zeros((dim,), jnp.float32),
        "w2": jax.random.normal(ks[3], (dim_out, dim, 1, 1), jnp.float32) * 0.2,
        "b2": jax.random.normal(ks[4], (dim_out,), jnp.float32) * 0.1,
        "g2": jnp.ones((dim_out,), jnp.float32),
        "be2": jnp.zeros((dim_out,), jnp.float32),
        # activation.weight ~ trunc_normal(std=0.02)
        "w_act": jax.random.normal(
            ks[5], (dim_out, 1, 2 * act_num + 1, 2 * act_num + 1), jnp.float32) * 0.02,
        "g_act": jnp.ones((dim_out,), jnp.float32),
        "be_act": jnp.zeros((dim_out,), jnp.float32),
    }

    fwd = jax.jit(lambda xx: block_forward(xx, params, act_num=act_num))
    out = fwd(x)
    jax.block_until_ready(out)
    assert out.shape == (N, dim_out, H // 2, W // 2), out.shape
    assert jnp.all(jnp.isfinite(out))

    ref = _reference(x, params, act_num=act_num)
    err = float(jnp.max(jnp.abs(out - ref)))
    assert err < 3e-3, f"max abs error vs reference: {err}"

    print("KERNEL_OK")
</pallas_src>

<mosaic_0001>
module attributes {stable_mosaic.version = 11 : i64} {
  func.func @bn1_stats_kernel(%arg0: i32, %arg1: memref<512x4xf32, #tpu.memory_space<vmem>>, %arg2: memref<4x4xf32, #tpu.memory_space<vmem>>, %arg3: memref<1x4xf32, #tpu.memory_space<vmem>>, %arg4: memref<8x4xf32, #tpu.memory_space<vmem>>, %arg5: memref<8x4xf32, #tpu.memory_space<vmem>>) attributes {dimension_semantics = [#tpu.dimension_semantics<parallel>], iteration_bounds = array<i64: 1>, scalar_prefetch = 0 : i64, scratch_operands = 0 : i64, tpu.core_type = #tpu.core_type<tc>, window_params = [{transform_indices = @transform_0, window_bounds = array<i64: 512, 4>}, {pipeline_mode = #tpu.pipeline_mode<synchronous>, transform_indices = @transform_1, window_bounds = array<i64: 4, 4>}, {pipeline_mode = #tpu.pipeline_mode<synchronous>, transform_indices = @transform_2, window_bounds = array<i64: 1, 4>}, {transform_indices = @transform_3, window_bounds = array<i64: 8, 4>}, {transform_indices = @transform_4, window_bounds = array<i64: 8, 4>}]} {
    %c0 = arith.constant 0 : index
    %c0_0 = arith.constant 0 : index
    %0 = vector.load %arg1[%c0, %c0_0] : memref<512x4xf32, #tpu.memory_space<vmem>>, vector<512x4xf32>
    %c0_1 = arith.constant 0 : index
    %c0_2 = arith.constant 0 : index
    %1 = vector.load %arg2[%c0_1, %c0_2] : memref<4x4xf32, #tpu.memory_space<vmem>>, vector<4x4xf32>
    %cst = arith.constant dense<0.000000e+00> : vector<512x4xf32>
    %2 = tpu.matmul %0, %1, %cst {dimension_numbers = #tpu.dot_dimension_numbers<[1], [0], [0], [1], [0, 0, 1, 1], [], []>} : vector<512x4xf32>, vector<4x4xf32>, vector<512x4xf32> -> vector<512x4xf32>
    %c0_3 = arith.constant 0 : index
    %c0_4 = arith.constant 0 : index
    %3 = vector.load %arg3[%c0_3, %c0_4] : memref<1x4xf32, #tpu.memory_space<vmem>>, vector<1x4xf32>
    %4 = vector.broadcast %3 : vector<1x4xf32> to vector<512x4xf32>
    %5 = arith.addf %2, %4 : vector<512x4xf32>
    %cst_5 = arith.constant dense<0.000000e+00> : vector<4xf32>
    %6 = vector.multi_reduction <add>, %5, %cst_5 [0] : vector<512x4xf32> to vector<4xf32>
    %7 = vector.shape_cast %6 : vector<4xf32> to vector<1x4xf32>
    %8 = arith.mulf %5, %5 : vector<512x4xf32>
    %cst_6 = arith.constant dense<0.000000e+00> : vector<4xf32>
    %9 = vector.multi_reduction <add>, %8, %cst_6 [0] : vector<512x4xf32> to vector<4xf32>
    %10 = vector.shape_cast %9 : vector<4xf32> to vector<1x4xf32>
    %11 = vector.shape_cast %7 : vector<1x4xf32> to vector<1x4xf32>
    %12 = vector.broadcast %11 : vector<1x4xf32> to vector<8x4xf32>
    %c0_7 = arith.constant 0 : index
    %c0_8 = arith.constant 0 : index
    %13 = vector.load %arg4[%c0_7, %c0_8] : memref<8x4xf32, #tpu.memory_space<vmem>>, vector<8x4xf32>
    tpu.vector_store %arg4[%c0_7, %c0_8], %12 {strides = array<i32>} : memref<8x4xf32, #tpu.memory_space<vmem>>, vector<8x4xf32>,
    %14 = vector.shape_cast %10 : vector<1x4xf32> to vector<1x4xf32>
    %15 = vector.broadcast %14 : vector<1x4xf32> to vector<8x4xf32>
    %c0_9 = arith.constant 0 : index
    %c0_10 = arith.constant 0 : index
    %16 = vector.load %arg5[%c0_9, %c0_10] : memref<8x4xf32, #tpu.memory_space<vmem>>, vector<8x4xf32>
    tpu.vector_store %arg5[%c0_9, %c0_10], %15 {strides = array<i32>} : memref<8x4xf32, #tpu.memory_space<vmem>>, vector<8x4xf32>,
    return
  }
  func.func @transform_0(%arg0: i32) -> (i32, i32) {
    %c0_i32 = arith.constant 0 : i32
    %c0_i32_0 = arith.constant 0 : i32
    return %arg0, %c0_i32 : i32, i32
  }
  func.func @transform_1(%arg0: i32) -> (i32, i32) {
    %c0_i32 = arith.constant 0 : i32
    %c0_i32_0 = arith.constant 0 : i32
    %c0_i32_1 = arith.constant 0 : i32
    return %c0_i32, %c0_i32_0 : i32, i32
  }
  func.func @transform_2(%arg0: i32) -> (i32, i32) {
    %c0_i32 = arith.constant 0 : i32
    %c0_i32_0 = arith.constant 0 : i32
    %c0_i32_1 = arith.constant 0 : i32
    return %c0_i32, %c0_i32_0 : i32, i32
  }
  func.func @transform_3(%arg0: i32) -> (i32, i32) {
    %c0_i32 = arith.constant 0 : i32
    %c0_i32_0 = arith.constant 0 : i32
    return %arg0, %c0_i32 : i32, i32
  }
  func.func @transform_4(%arg0: i32) -> (i32, i32) {
    %c0_i32 = arith.constant 0 : i32
    %c0_i32_0 = arith.constant 0 : i32
    return %arg0, %c0_i32 : i32, i32
  }
}

module attributes {stable_mosaic.version = 11 : i64} {
  func.func @main_kernel(%arg0: i32, %arg1: memref<128x8xf32, #tpu.memory_space<vmem>>, %arg2: memref<128x8xf32, #tpu.memory_space<vmem>>, %arg3: memref<4x4xf32, #tpu.memory_space<vmem>>, %arg4: memref<1x4xf32, #tpu.memory_space<vmem>>, %arg5: memref<4x8xf32, #tpu.memory_space<vmem>>, %arg6: memref<1x8xf32, #tpu.memory_space<vmem>>, %arg7: memref<1x8xf32, #tpu.memory_space<vmem>>, %arg8: memref<128x8xf32, #tpu.memory_space<vmem>>, %arg9: memref<8x8xf32, #tpu.memory_space<vmem>>, %arg10: memref<8x8xf32, #tpu.memory_space<vmem>>) attributes {dimension_semantics = [#tpu.dimension_semantics<parallel>], iteration_bounds = array<i64: 1>, scalar_prefetch = 0 : i64, scratch_operands = 0 : i64, tpu.core_type = #tpu.core_type<tc>, window_params = [{transform_indices = @transform_0, window_bounds = array<i64: 128, 8>}, {transform_indices = @transform_1, window_bounds = array<i64: 128, 8>}, {pipeline_mode = #tpu.pipeline_mode<synchronous>, transform_indices = @transform_2, window_bounds = array<i64: 4, 4>}, {pipeline_mode = #tpu.pipeline_mode<synchronous>, transform_indices = @transform_3, window_bounds = array<i64: 1, 4>}, {pipeline_mode = #tpu.pipeline_mode<synchronous>, transform_indices = @transform_4, window_bounds = array<i64: 4, 8>}, {pipeline_mode = #tpu.pipeline_mode<synchronous>, transform_indices = @transform_5, window_bounds = array<i64: 1, 8>}, {pipeline_mode = #tpu.pipeline_mode<synchronous>, transform_indices = @transform_6, window_bounds = array<i64: 1, 8>}, {transform_indices = @transform_7, window_bounds = array<i64: 128, 8>}, {transform_indices = @transform_8, window_bounds = array<i64: 8, 8>}, {transform_indices = @transform_9, window_bounds = array<i64: 8, 8>}]} {
    %c0 = arith.constant 0 : index
    %c0_0 = arith.constant 0 : index
    %0 = vector.load %arg3[%c0, %c0_0] : memref<4x4xf32, #tpu.memory_space<vmem>>, vector<4x4xf32>
    %c0_1 = arith.constant 0 : index
    %c0_2 = arith.constant 0 : index
    %1 = vector.load %arg5[%c0_1, %c0_2] : memref<4x8xf32, #tpu.memory_space<vmem>>, vector<4x8xf32>
    %c0_3 = arith.constant 0 : index
    %c0_4 = arith.constant 0 : index
    %2 = vector.load %arg4[%c0_3, %c0_4] : memref<1x4xf32, #tpu.memory_space<vmem>>, vector<1x4xf32>
    %c0_5 = arith.constant 0 : index
    %c0_6 = arith.constant 0 : index
    %3 = vector.load %arg6[%c0_5, %c0_6] : memref<1x8xf32, #tpu.memory_space<vmem>>, vector<1x8xf32>
    %c0_7 = arith.constant 0 : index
    %c0_8 = arith.constant 0 : index
    %4 = vector.load %arg1[%c0_7, %c0_8] : memref<128x8xf32, #tpu.memory_space<vmem>>, vector<128x8xf32>
    %c0_9 = arith.constant 0 : index
    %c0_10 = arith.constant 0 : index
    %5 = vector.load %arg2[%c0_9, %c0_10] : memref<128x8xf32, #tpu.memory_space<vmem>>, vector<128x8xf32>
    %6 = vector.extract_strided_slice %4 {offsets = [0, 0], sizes = [128, 4], strides = [1, 1]} : vector<128x8xf32> to vector<128x4xf32>
    %cst = arith.constant dense<0.000000e+00> : vector<128x4xf32>
    %7 = tpu.matmul %6, %0, %cst {dimension_numbers = #tpu.dot_dimension_numbers<[1], [0], [0], [1], [0, 0, 1, 1], [], []>} : vector<128x4xf32>, vector<4x4xf32>, vector<128x4xf32> -> vector<128x4xf32>
    %8 = vector.broadcast %2 : vector<1x4xf32> to vector<128x4xf32>
    %9 = arith.addf %7, %8 : vector<128x4xf32>
    %cst_11 = arith.constant 0.000000e+00 : f32
    %10 = vector.broadcast %cst_11 : f32 to vector<128x4xf32>
    %11 = arith.cmpf oge, %9, %10 : vector<128x4xf32>
    %cst_12 = arith.constant 1.000000e+00 : f32
    %12 = vector.broadcast %cst_12 : f32 to vector<128x4xf32>
    %13 = arith.mulf %12, %9 : vector<128x4xf32>
    %14 = arith.select %11, %9, %13 : vector<128x4xi1>, vector<128x4xf32>
    %cst_13 = arith.constant dense<0.000000e+00> : vector<128x8xf32>
    %15 = tpu.matmul %14, %1, %cst_13 {dimension_numbers = #tpu.dot_dimension_numbers<[1], [0], [0], [1], [0, 0, 1, 1], [], []>} : vector<128x4xf32>, vector<4x8xf32>, vector<128x8xf32> -> vector<128x8xf32>
    %16 = vector.broadcast %3 : vector<1x8xf32> to vector<128x8xf32>
    %17 = arith.addf %15, %16 : vector<128x8xf32>
    %18 = vector.extract_strided_slice %4 {offsets = [0, 4], sizes = [128, 4], strides = [1, 1]} : vector<128x8xf32> to vector<128x4xf32>
    %cst_14 = arith.constant dense<0.000000e+00> : vector<128x4xf32>
    %19 = tpu.matmul %18, %0, %cst_14 {dimension_numbers = #tpu.dot_dimension_numbers<[1], [0], [0], [1], [0, 0, 1, 1], [], []>} : vector<128x4xf32>, vector<4x4xf32>, vector<128x4xf32> -> vector<128x4xf32>
    %20 = vector.broadcast %2 : vector<1x4xf32> to vector<128x4xf32>
    %21 = arith.addf %19, %20 : vector<128x4xf32>
    %cst_15 = arith.constant 0.000000e+00 : f32
    %22 = vector.broadcast %cst_15 : f32 to vector<128x4xf32>
    %23 = arith.cmpf oge, %21, %22 : vector<128x4xf32>
    %cst_16 = arith.constant 1.000000e+00 : f32
    %24 = vector.broadcast %cst_16 : f32 to vector<128x4xf32>
    %25 = arith.mulf %24, %21 : vector<128x4xf32>
    %26 = arith.select %23, %21, %25 : vector<128x4xi1>, vector<128x4xf32>
    %cst_17 = arith.constant dense<0.000000e+00> : vector<128x8xf32>
    %27 = tpu.matmul %26, %1, %cst_17 {dimension_numbers = #tpu.dot_dimension_numbers<[1], [0], [0], [1], [0, 0, 1, 1], [], []>} : vector<128x4xf32>, vector<4x8xf32>, vector<128x8xf32> -> vector<128x8xf32>
    %28 = vector.broadcast %3 : vector<1x8xf32> to vector<128x8xf32>
    %29 = arith.addf %27, %28 : vector<128x8xf32>
    %30 = vector.extract_strided_slice %5 {offsets = [0, 0], sizes = [128, 4], strides = [1, 1]} : vector<128x8xf32> to vector<128x4xf32>
    %cst_18 = arith.constant dense<0.000000e+00> : vector<128x4xf32>
    %31 = tpu.matmul %30, %0, %cst_18 {dimension_numbers = #tpu.dot_dimension_numbers<[1], [0], [0], [1], [0, 0, 1, 1], [], []>} : vector<128x4xf32>, vector<4x4xf32>, vector<128x4xf32> -> vector<128x4xf32>
    %32 = vector.broadcast %2 : vector<1x4xf32> to vector<128x4xf32>
    %33 = arith.addf %31, %32 : vector<128x4xf32>
    %cst_19 = arith.constant 0.000000e+00 : f32
    %34 = vector.broadcast %cst_19 : f32 to vector<128x4xf32>
    %35 = arith.cmpf oge, %33, %34 : vector<128x4xf32>
    %cst_20 = arith.constant 1.000000e+00 : f32
    %36 = vector.broadcast %cst_20 : f32 to vector<128x4xf32>
    %37 = arith.mulf %36, %33 : vector<128x4xf32>
    %38 = arith.select %35, %33, %37 : vector<128x4xi1>, vector<128x4xf32>
    %cst_21 = arith.constant dense<0.000000e+00> : vector<128x8xf32>
    %39 = tpu.matmul %38, %1, %cst_21 {dimension_numbers = #tpu.dot_dimension_numbers<[1], [0], [0], [1], [0, 0, 1, 1], [], []>} : vector<128x4xf32>, vector<4x8xf32>, vector<128x8xf32> -> vector<128x8xf32>
    %40 = vector.broadcast %3 : vector<1x8xf32> to vector<128x8xf32>
    %41 = arith.addf %39, %40 : vector<128x8xf32>
    %42 = vector.extract_strided_slice %5 {offsets = [0, 4], sizes = [128, 4], strides = [1, 1]} : vector<128x8xf32> to vector<128x4xf32>
    %cst_22 = arith.constant dense<0.000000e+00> : vector<128x4xf32>
    %43 = tpu.matmul %42, %0, %cst_22 {dimension_numbers = #tpu.dot_dimension_numbers<[1], [0], [0], [1], [0, 0, 1, 1], [], []>} : vector<128x4xf32>, vector<4x4xf32>, vector<128x4xf32> -> vector<128x4xf32>
    %44 = vector.broadcast %2 : vector<1x4xf32> to vector<128x4xf32>
    %45 = arith.addf %43, %44 : vector<128x4xf32>
    %cst_23 = arith.constant 0.000000e+00 : f32
    %46 = vector.broadcast %cst_23 : f32 to vector<128x4xf32>
    %47 = arith.cmpf oge, %45, %46 : vector<128x4xf32>
    %cst_24 = arith.constant 1.000000e+00 : f32
    %48 = vector.broadcast %cst_24 : f32 to vector<128x4xf32>
    %49 = arith.mulf %48, %45 : vector<128x4xf32>
    %50 = arith.select %47, %45, %49 : vector<128x4xi1>, vector<128x4xf32>
    %cst_25 = arith.constant dense<0.000000e+00> : vector<128x8xf32>
    %51 = tpu.matmul %50, %1, %cst_25 {dimension_numbers = #tpu.dot_dimension_numbers<[1], [0], [0], [1], [0, 0, 1, 1], [], []>} : vector<128x4xf32>, vector<4x8xf32>, vector<128x8xf32> -> vector<128x8xf32>
    %52 = vector.broadcast %3 : vector<1x8xf32> to vector<128x8xf32>
    %53 = arith.addf %51, %52 : vector<128x8xf32>
    %54 = arith.maximumf %17, %29 : vector<128x8xf32>
    %55 = arith.maximumf %41, %53 : vector<128x8xf32>
    %56 = arith.maximumf %54, %55 : vector<128x8xf32>
    %57 = arith.minimumf %17, %29 : vector<128x8xf32>
    %58 = arith.minimumf %41, %53 : vector<128x8xf32>
    %59 = arith.minimumf %57, %58 : vector<128x8xf32>
    %c0_26 = arith.constant 0 : index
    %c0_27 = arith.constant 0 : index
    %60 = vector.load %arg7[%c0_26, %c0_27] : memref<1x8xf32, #tpu.memory_space<vmem>>, vector<1x8xf32>
    %cst_28 = arith.constant 0.000000e+00 : f32
    %61 = vector.broadcast %cst_28 : f32 to vector<1x8xf32>
    %62 = arith.cmpf oge, %60, %61 : vector<1x8xf32>
    %63 = vector.shape_cast %62 : vector<1x8xi1> to vector<1x8xi1>
    %64 = vector.broadcast %63 : vector<1x8xi1> to vector<128x8xi1>
    %65 = arith.select %64, %56, %59 : vector<128x8xi1>, vector<128x8xf32>
    %c0_29 = arith.constant 0 : index
    %c0_30 = arith.constant 0 : index
    %66 = vector.load %arg8[%c0_29, %c0_30] : memref<128x8xf32, #tpu.memory_space<vmem>>, vector<128x8xf32>
    tpu.vector_store %arg8[%c0_29, %c0_30], %65 {strides = array<i32>} : memref<128x8xf32, #tpu.memory_space<vmem>>, vector<128x8xf32>,
    %67 = arith.addf %17, %29 : vector<128x8xf32>
    %68 = arith.addf %41, %53 : vector<128x8xf32>
    %69 = arith.addf %67, %68 : vector<128x8xf32>
    %cst_31 = arith.constant dense<0.000000e+00> : vector<8xf32>
    %70 = vector.multi_reduction <add>, %69, %cst_31 [0] : vector<128x8xf32> to vector<8xf32>
    %71 = vector.shape_cast %70 : vector<8xf32> to vector<1x8xf32>
    %72 = arith.mulf %17, %17 : vector<128x8xf32>
    %73 = arith.mulf %29, %29 : vector<128x8xf32>
    %74 = arith.addf %72, %73 : vector<128x8xf32>
    %75 = arith.mulf %41, %41 : vector<128x8xf32>
    %76 = arith.mulf %53, %53 : vector<128x8xf32>
    %77 = arith.addf %75, %76 : vector<128x8xf32>
    %78 = arith.addf %74, %77 : vector<128x8xf32>
    %cst_32 = arith.constant dense<0.000000e+00> : vector<8xf32>
    %79 = vector.multi_reduction <add>, %78, %cst_32 [0] : vector<128x8xf32> to vector<8xf32>
    %80 = vector.shape_cast %79 : vector<8xf32> to vector<1x8xf32>
    %81 = vector.shape_cast %71 : vector<1x8xf32> to vector<1x8xf32>
    %82 = vector.broadcast %81 : vector<1x8xf32> to vector<8x8xf32>
    %c0_33 = arith.constant 0 : index
    %c0_34 = arith.constant 0 : index
    %83 = vector.load %arg9[%c0_33, %c0_34] : memref<8x8xf32, #tpu.memory_space<vmem>>, vector<8x8xf32>
    tpu.vector_store %arg9[%c0_33, %c0_34], %82 {strides = array<i32>} : memref<8x8xf32, #tpu.memory_space<vmem>>, vector<8x8xf32>,
    %84 = vector.shape_cast %80 : vector<1x8xf32> to vector<1x8xf32>
    %85 = vector.broadcast %84 : vector<1x8xf32> to vector<8x8xf32>
    %c0_35 = arith.constant 0 : index
    %c0_36 = arith.constant 0 : index
    %86 = vector.load %arg10[%c0_35, %c0_36] : memref<8x8xf32, #tpu.memory_space<vmem>>, vector<8x8xf32>
    tpu.vector_store %arg10[%c0_35, %c0_36], %85 {strides = array<i32>} : memref<8x8xf32, #tpu.memory_space<vmem>>, vector<8x8xf32>,
    return
  }
  func.func @transform_0(%arg0: i32) -> (i32, i32) {
    %c0_i32 = arith.constant 0 : i32
    %c0_i32_0 = arith.constant 0 : i32
    return %arg0, %c0_i32 : i32, i32
  }
  func.func @transform_1(%arg0: i32) -> (i32, i32) {
    %c0_i32 = arith.constant 0 : i32
    %c0_i32_0 = arith.constant 0 : i32
    return %arg0, %c0_i32 : i32, i32
  }
  func.func @transform_2(%arg0: i32) -> (i32, i32) {
    %c0_i32 = arith.constant 0 : i32
    %c0_i32_0 = arith.constant 0 : i32
    %c0_i32_1 = arith.constant 0 : i32
    return %c0_i32, %c0_i32_0 : i32, i32
  }
  func.func @transform_3(%arg0: i32) -> (i32, i32) {
    %c0_i32 = arith.constant 0 : i32
    %c0_i32_0 = arith.constant 0 : i32
    %c0_i32_1 = arith.constant 0 : i32
    return %c0_i32, %c0_i32_0 : i32, i32
  }
  func.func @transform_4(%arg0: i32) -> (i32, i32) {
    %c0_i32 = arith.constant 0 : i32
    %c0_i32_0 = arith.constant 0 : i32
    %c0_i32_1 = arith.constant 0 : i32
    return %c0_i32, %c0_i32_0 : i32, i32
  }
  func.func @transform_5(%arg0: i32) -> (i32, i32) {
    %c0_i32 = arith.constant 0 : i32
    %c0_i32_0 = arith.constant 0 : i32
    %c0_i32_1 = arith.constant 0 : i32
    return %c0_i32, %c0_i32_0 : i32, i32
  }
  func.func @transform_6(%arg0: i32) -> (i32, i32) {
    %c0_i32 = arith.constant 0 : i32
    %c0_i32_0 = arith.constant 0 : i32
    %c0_i32_1 = arith.constant 0 : i32
    return %c0_i32, %c0_i32_0 : i32, i32
  }
  func.func @transform_7(%arg0: i32) -> (i32, i32) {
    %c0_i32 = arith.constant 0 : i32
    %c0_i32_0 = arith.constant 0 : i32
    return %arg0, %c0_i32 : i32, i32
  }
  func.func @transform_8(%arg0: i32) -> (i32, i32) {
    %c0_i32 = arith.constant 0 : i32
    %c0_i32_0 = arith.constant 0 : i32
    return %arg0, %c0_i32 : i32, i32
  }
  func.func @transform_9(%arg0: i32) -> (i32, i32) {
    %c0_i32 = arith.constant 0 : i32
    %c0_i32_0 = arith.constant 0 : i32
    return %arg0, %c0_i32 : i32, i32
  }
}

module attributes {stable_mosaic.version = 11 : i64} {
  func.func @act_dw_kernel(%arg0: i32, %arg1: memref<2x8x8x8xf32, #tpu.memory_space<vmem>>, %arg2: memref<1x8xf32, #tpu.memory_space<vmem>>, %arg3: memref<1x8xf32, #tpu.memory_space<vmem>>, %arg4: memref<49x8xf32, #tpu.memory_space<vmem>>, %arg5: memref<1x8xf32, #tpu.memory_space<vmem>>, %arg6: memref<1x8xf32, #tpu.memory_space<vmem>>, %arg7: memref<2x8x8x8xf32, #tpu.memory_space<vmem>>, %arg8: memref<2x14x19x8xf32, #tpu.memory_space<vmem>>) attributes {dimension_semantics = [#tpu.dimension_semantics<parallel>], iteration_bounds = array<i64: 1>, scalar_prefetch = 0 : i64, scratch_operands = 1 : i64, tpu.core_type = #tpu.core_type<tc>, window_params = [{transform_indices = @transform_0, window_bounds = array<i64: 2, 8, 8, 8>}, {transform_indices = @transform_1, window_bounds = array<i64: 1, 8>}, {transform_indices = @transform_2, window_bounds = array<i64: 1, 8>}, {transform_indices = @transform_3, window_bounds = array<i64: 49, 8>}, {transform_indices = @transform_4, window_bounds = array<i64: 1, 8>}, {transform_indices = @transform_5, window_bounds = array<i64: 1, 8>}, {transform_indices = @transform_6, window_bounds = array<i64: 2, 8, 8, 8>}]} {
    %c0 = arith.constant 0 : index
    %c0_0 = arith.constant 0 : index
    %c0_1 = arith.constant 0 : index
    %c0_2 = arith.constant 0 : index
    %0 = vector.load %arg1[%c0, %c0_0, %c0_1, %c0_2] : memref<2x8x8x8xf32, #tpu.memory_space<vmem>>, vector<2x8x8x8xf32>
    %c0_3 = arith.constant 0 : index
    %c0_4 = arith.constant 0 : index
    %1 = vector.load %arg2[%c0_3, %c0_4] : memref<1x8xf32, #tpu.memory_space<vmem>>, vector<1x8xf32>
    %2 = vector.shape_cast %1 : vector<1x8xf32> to vector<1x1x1x8xf32>
    %3 = vector.broadcast %2 : vector<1x1x1x8xf32> to vector<2x8x8x8xf32>
    %4 = arith.mulf %0, %3 : vector<2x8x8x8xf32>
    %c0_5 = arith.constant 0 : index
    %c0_6 = arith.constant 0 : index
    %5 = vector.load %arg3[%c0_5, %c0_6] : memref<1x8xf32, #tpu.memory_space<vmem>>, vector<1x8xf32>
    %6 = vector.shape_cast %5 : vector<1x8xf32> to vector<1x1x1x8xf32>
    %7 = vector.broadcast %6 : vector<1x1x1x8xf32> to vector<2x8x8x8xf32>
    %8 = arith.addf %4, %7 : vector<2x8x8x8xf32>
    %cst = arith.constant 0.000000e+00 : f32
    %9 = vector.broadcast %cst : f32 to vector<2x8x8x8xf32>
    %10 = arith.maximumf %8, %9 : vector<2x8x8x8xf32>
    %cst_7 = arith.constant 0.000000e+00 : f32
    %11 = vector.broadcast %cst_7 : f32 to vector<2x14x19x8xf32>
    %c0_8 = arith.constant 0 : index
    %c0_9 = arith.constant 0 : index
    %c0_10 = arith.constant 0 : index
    %c0_11 = arith.constant 0 : index
    %12 = vector.load %arg8[%c0_8, %c0_9, %c0_10, %c0_11] : memref<2x14x19x8xf32, #tpu.memory_space<vmem>>, vector<2x14x19x8xf32>
    tpu.vector_store %arg8[%c0_8, %c0_9, %c0_10, %c0_11], %11 {strides = array<i32>} : memref<2x14x19x8xf32, #tpu.memory_space<vmem>>, vector<2x14x19x8xf32>,
    %c0_12 = arith.constant 0 : index
    %c3 = arith.constant 3 : index
    %c8 = arith.constant 8 : index
    %c0_13 = arith.constant 0 : index
    %13 = vector.load %arg8[%c0_12, %c3, %c8, %c0_13] : memref<2x14x19x8xf32, #tpu.memory_space<vmem>>, vector<2x8x8x8xf32>
    tpu.vector_store %arg8[%c0_12, %c3, %c8, %c0_13], %10 {strides = array<i32>} : memref<2x14x19x8xf32, #tpu.memory_space<vmem>>, vector<2x8x8x8xf32>,
    %c0_14 = arith.constant 0 : index
    %c0_15 = arith.constant 0 : index
    %14 = vector.load %arg4[%c0_14, %c0_15] : memref<49x8xf32, #tpu.memory_space<vmem>>, vector<49x8xf32>
    %cst_16 = arith.constant 0.000000e+00 : f32
    %15 = vector.broadcast %cst_16 : f32 to vector<2x8x8x8xf32>
    %cst_17 = arith.constant 0.000000e+00 : f32
    %16 = vector.broadcast %cst_17 : f32 to vector<2x8x8x8xf32>
    %cst_18 = arith.constant 0.000000e+00 : f32
    %17 = vector.broadcast %cst_18 : f32 to vector<2x8x8x8xf32>
    %cst_19 = arith.constant 0.000000e+00 : f32
    %18 = vector.broadcast %cst_19 : f32 to vector<2x8x8x8xf32>
    %c0_20 = arith.constant 0 : index
    %c0_21 = arith.constant 0 : index
    %c5 = arith.constant 5 : index
    %c0_22 = arith.constant 0 : index
    %19 = vector.load %arg8[%c0_20, %c0_21, %c5, %c0_22] : memref<2x14x19x8xf32, #tpu.memory_space<vmem>>, vector<2x8x8x8xf32>
    %20 = vector.extract_strided_slice %14 {offsets = [0, 0], sizes = [1, 8], strides = [1, 1]} : vector<49x8xf32> to vector<1x8xf32>
    %21 = vector.shape_cast %20 : vector<1x8xf32> to vector<8xf32>
    %22 = vector.shape_cast %21 : vector<8xf32> to vector<1x1x1x8xf32>
    %23 = vector.broadcast %22 : vector<1x1x1x8xf32> to vector<2x8x8x8xf32>
    %24 = arith.mulf %19, %23 : vector<2x8x8x8xf32>
    %25 = arith.addf %15, %24 : vector<2x8x8x8xf32>
    %c0_23 = arith.constant 0 : index
    %c0_24 = arith.constant 0 : index
    %c6 = arith.constant 6 : index
    %c0_25 = arith.constant 0 : index
    %26 = vector.load %arg8[%c0_23, %c0_24, %c6, %c0_25] : memref<2x14x19x8xf32, #tpu.memory_space<vmem>>, vector<2x8x8x8xf32>
    %27 = vector.extract_strided_slice %14 {offsets = [1, 0], sizes = [1, 8], strides = [1, 1]} : vector<49x8xf32> to vector<1x8xf32>
    %28 = vector.shape_cast %27 : vector<1x8xf32> to vector<8xf32>
    %29 = vector.shape_cast %28 : vector<8xf32> to vector<1x1x1x8xf32>
    %30 = vector.broadcast %29 : vector<1x1x1x8xf32> to vector<2x8x8x8xf32>
    %31 = arith.mulf %26, %30 : vector<2x8x8x8xf32>
    %32 = arith.addf %16, %31 : vector<2x8x8x8xf32>
    %c0_26 = arith.constant 0 : index
    %c0_27 = arith.constant 0 : index
    %c7 = arith.constant 7 : index
    %c0_28 = arith.constant 0 : index
    %33 = vector.load %arg8[%c0_26, %c0_27, %c7, %c0_28] : memref<2x14x19x8xf32, #tpu.memory_space<vmem>>, vector<2x8x8x8xf32>
    %34 = vector.extract_strided_slice %14 {offsets = [2, 0], sizes = [1, 8], strides = [1, 1]} : vector<49x8xf32> to vector<1x8xf32>
    %35 = vector.shape_cast %34 : vector<1x8xf32> to vector<8xf32>
    %36 = vector.shape_cast %35 : vector<8xf32> to vector<1x1x1x8xf32>
    %37 = vector.broadcast %36 : vector<1x1x1x8xf32> to vector<2x8x8x8xf32>
    %38 = arith.mulf %33, %37 : vector<2x8x8x8xf32>
    %39 = arith.addf %17, %38 : vector<2x8x8x8xf32>
    %c0_29 = arith.constant 0 : index
    %c0_30 = arith.constant 0 : index
    %c8_31 = arith.constant 8 : index
    %c0_32 = arith.constant 0 : index
    %40 = vector.load %arg8[%c0_29, %c0_30, %c8_31, %c0_32] : memref<2x14x19x8xf32, #tpu.memory_space<vmem>>, vector<2x8x8x8xf32>
    %41 = vector.extract_strided_slice %14 {offsets = [3, 0], sizes = [1, 8], strides = [1, 1]} : vector<49x8xf32> to vector<1x8xf32>
    %42 = vector.shape_cast %41 : vector<1x8xf32> to vector<8xf32>
    %43 = vector.shape_cast %42 : vector<8xf32> to vector<1x1x1x8xf32>
    %44 = vector.broadcast %43 : vector<1x1x1x8xf32> to vector<2x8x8x8xf32>
    %45 = arith.mulf %40, %44 : vector<2x8x8x8xf32>
    %46 = arith.addf %18, %45 : vector<2x8x8x8xf32>
    %c0_33 = arith.constant 0 : index
    %c0_34 = arith.constant 0 : index
    %c9 = arith.constant 9 : index
    %c0_35 = arith.constant 0 : index
    %47 = vector.load %arg8[%c0_33, %c0_34, %c9, %c0_35] : memref<2x14x19x8xf32, #tpu.memory_space<vmem>>, vector<2x8x8x8xf32>
    %48 = vector.extract_strided_slice %14 {offsets = [4, 0], sizes = [1, 8], strides = [1, 1]} : vector<49x8xf32> to vector<1x8xf32>
    %49 = vector.shape_cast %48 : vector<1x8xf32> to vector<8xf32>
    %50 = vector.shape_cast %49 : vector<8xf32> to vector<1x1x1x8xf32>
    %51 = vector.broadcast %50 : vector<1x1x1x8xf32> to vector<2x8x8x8xf32>
    %52 = arith.mulf %47, %51 : vector<2x8x8x8xf32>
    %53 = arith.addf %25, %52 : vector<2x8x8x8xf32>
    %c0_36 = arith.constant 0 : index
    %c0_37 = arith.constant 0 : index
    %c10 = arith.constant 10 : index
    %c0_38 = arith.constant 0 : index
    %54 = vector.load %arg8[%c0_36, %c0_37, %c10, %c0_38] : memref<2x14x19x8xf32, #tpu.memory_space<vmem>>, vector<2x8x8x8xf32>
    %55 = vector.extract_strided_slice %14 {offsets = [5, 0], sizes = [1, 8], strides = [1, 1]} : vector<49x8xf32> to vector<1x8xf32>
    %56 = vector.shape_cast %55 : vector<1x8xf32> to vector<8xf32>
    %57 = vector.shape_cast %56 : vector<8xf32> to vector<1x1x1x8xf32>
    %58 = vector.broadcast %57 : vector<1x1x1x8xf32> to vector<2x8x8x8xf32>
    %59 = arith.mulf %54, %58 : vector<2x8x8x8xf32>
    %60 = arith.addf %32, %59 : vector<2x8x8x8xf32>
    %c0_39 = arith.constant 0 : index
    %c0_40 = arith.constant 0 : index
    %c11 = arith.constant 11 : index
    %c0_41 = arith.constant 0 : index
    %61 = vector.load %arg8[%c0_39, %c0_40, %c11, %c0_41] : memref<2x14x19x8xf32, #tpu.memory_space<vmem>>, vector<2x8x8x8xf32>
    %62 = vector.extract_strided_slice %14 {offsets = [6, 0], sizes = [1, 8], strides = [1, 1]} : vector<49x8xf32> to vector<1x8xf32>
    %63 = vector.shape_cast %62 : vector<1x8xf32> to vector<8xf32>
    %64 = vector.shape_cast %63 : vector<8xf32> to vector<1x1x1x8xf32>
    %65 = vector.broadcast %64 : vector<1x1x1x8xf32> to vector<2x8x8x8xf32>
    %66 = arith.mulf %61, %65 : vector<2x8x8x8xf32>
    %67 = arith.addf %39, %66 : vector<2x8x8x8xf32>
    %c0_42 = arith.constant 0 : index
    %c1 = arith.constant 1 : index
    %c5_43 = arith.constant 5 : index
    %c0_44 = arith.constant 0 : index
    %68 = vector.load %arg8[%c0_42, %c1, %c5_43, %c0_44] : memref<2x14x19x8xf32, #tpu.memory_space<vmem>>, vector<2x8x8x8xf32>
    %69 = vector.extract_strided_slice %14 {offsets = [7, 0], sizes = [1, 8], strides = [1, 1]} : vector<49x8xf32> to vector<1x8xf32>
    %70 = vector.shape_cast %69 : vector<1x8xf32> to vector<8xf32>
    %71 = vector.shape_cast %70 : vector<8xf32> to vector<1x1x1x8xf32>
    %72 = vector.broadcast %71 : vector<1x1x1x8xf32> to vector<2x8x8x8xf32>
    %73 = arith.mulf %68, %72 : vector<2x8x8x8xf32>
    %74 = arith.addf %46, %73 : vector<2x8x8x8xf32>
    %c0_45 = arith.constant 0 : index
    %c1_46 = arith.constant 1 : index
    %c6_47 = arith.constant 6 : index
    %c0_48 = arith.constant 0 : index
    %75 = vector.load %arg8[%c0_45, %c1_46, %c6_47, %c0_48] : memref<2x14x19x8xf32, #tpu.memory_space<vmem>>, vector<2x8x8x8xf32>
    %76 = vector.extract_strided_slice %14 {offsets = [8, 0], sizes = [1, 8], strides = [1, 1]} : vector<49x8xf32> to vector<1x8xf32>
    %77 = vector.shape_cast %76 : vector<1x8xf32> to vector<8xf32>
    %78 = vector.shape_cast %77 : vector<8xf32> to vector<1x1x1x8xf32>
    %79 = vector.broadcast %78 : vector<1x1x1x8xf32> to vector<2x8x8x8xf32>
    %80 = arith.mulf %75, %79 : vector<2x8x8x8xf32>
    %81 = arith.addf %53, %80 : vector<2x8x8x8xf32>
    %c0_49 = arith.constant 0 : index
    %c1_50 = arith.constant 1 : index
    %c7_51 = arith.constant 7 : index
    %c0_52 = arith.constant 0 : index
    %82 = vector.load %arg8[%c0_49, %c1_50, %c7_51, %c0_52] : memref<2x14x19x8xf32, #tpu.memory_space<vmem>>, vector<2x8x8x8xf32>
    %83 = vector.extract_strided_slice %14 {offsets = [9, 0], sizes = [1, 8], strides = [1, 1]} : vector<49x8xf32> to vector<1x8xf32>
    %84 = vector.shape_cast %83 : vector<1x8xf32> to vector<8xf32>
    %85 = vector.shape_cast %84 : vector<8xf32> to vector<1x1x1x8xf32>
    %86 = vector.broadcast %85 : vector<1x1x1x8xf32> to vector<2x8x8x8xf32>
    %87 = arith.mulf %82, %86 : vector<2x8x8x8xf32>
    %88 = arith.addf %60, %87 : vector<2x8x8x8xf32>
    %c0_53 = arith.constant 0 : index
    %c1_54 = arith.constant 1 : index
    %c8_55 = arith.constant 8 : index
    %c0_56 = arith.constant 0 : index
    %89 = vector.load %arg8[%c0_53, %c1_54, %c8_55, %c0_56] : memref<2x14x19x8xf32, #tpu.memory_space<vmem>>, vector<2x8x8x8xf32>
    %90 = vector.extract_strided_slice %14 {offsets = [10, 0], sizes = [1, 8], strides = [1, 1]} : vector<49x8xf32> to vector<1x8xf32>
    %91 = vector.shape_cast %90 : vector<1x8xf32> to vector<8xf32>
    %92 = vector.shape_cast %91 : vector<8xf32> to vector<1x1x1x8xf32>
    %93 = vector.broadcast %92 : vector<1x1x1x8xf32> to vector<2x8x8x8xf32>
    %94 = arith.mulf %89, %93 : vector<2x8x8x8xf32>
    %95 = arith.addf %67, %94 : vector<2x8x8x8xf32>
    %c0_57 = arith.constant 0 : index
    %c1_58 = arith.constant 1 : index
    %c9_59 = arith.constant 9 : index
    %c0_60 = arith.constant 0 : index
    %96 = vector.load %arg8[%c0_57, %c1_58, %c9_59, %c0_60] : memref<2x14x19x8xf32, #tpu.memory_space<vmem>>, vector<2x8x8x8xf32>
    %97 = vector.extract_strided_slice %14 {offsets = [11, 0], sizes = [1, 8], strides = [1, 1]} : vector<49x8xf32> to vector<1x8xf32>
    %98 = vector.shape_cast %97 : vector<1x8xf32> to vector<8xf32>
    %99 = vector.shape_cast %98 : vector<8xf32> to vector<1x1x1x8xf32>
    %100 = vector.broadcast %99 : vector<1x1x1x8xf32> to vector<2x8x8x8xf32>
    %101 = arith.mulf %96, %100 : vector<2x8x8x8xf32>
    %102 = arith.addf %74, %101 : vector<2x8x8x8xf32>
    %c0_61 = arith.constant 0 : index
    %c1_62 = arith.constant 1 : index
    %c10_63 = arith.constant 10 : index
    %c0_64 = arith.constant 0 : index
    %103 = vector.load %arg8[%c0_61, %c1_62, %c10_63, %c0_64] : memref<2x14x19x8xf32, #tpu.memory_space<vmem>>, vector<2x8x8x8xf32>
    %104 = vector.extract_strided_slice %14 {offsets = [12, 0], sizes = [1, 8], strides = [1, 1]} : vector<49x8xf32> to vector<1x8xf32>
    %105 = vector.shape_cast %104 : vector<1x8xf32> to vector<8xf32>
    %106 = vector.shape_cast %105 : vector<8xf32> to vector<1x1x1x8xf32>
    %107 = vector.broadcast %106 : vector<1x1x1x8xf32> to vector<2x8x8x8xf32>
    %108 = arith.mulf %103, %107 : vector<2x8x8x8xf32>
    %109 = arith.addf %81, %108 : vector<2x8x8x8xf32>
    %c0_65 = arith.constant 0 : index
    %c1_66 = arith.constant 1 : index
    %c11_67 = arith.constant 11 : index
    %c0_68 = arith.constant 0 : index
    %110 = vector.load %arg8[%c0_65, %c1_66, %c11_67, %c0_68] : memref<2x14x19x8xf32, #tpu.memory_space<vmem>>, vector<2x8x8x8xf32>
    %111 = vector.extract_strided_slice %14 {offsets = [13, 0], sizes = [1, 8], strides = [1, 1]} : vector<49x8xf32> to vector<1x8xf32>
    %112 = vector.shape_cast %111 : vector<1x8xf32> to vector<8xf32>
    %113 = vector.shape_cast %112 : vector<8xf32> to vector<1x1x1x8xf32>
    %114 = vector.broadcast %113 : vector<1x1x1x8xf32> to vector<2x8x8x8xf32>
    %115 = arith.mulf %110, %114 : vector<2x8x8x8xf32>
    %116 = arith.addf %88, %115 : vector<2x8x8x8xf32>
    %c0_69 = arith.constant 0 : index
    %c2 = arith.constant 2 : index
    %c5_70 = arith.constant 5 : index
    %c0_71 = arith.constant 0 : index
    %117 = vector.load %arg8[%c0_69, %c2, %c5_70, %c0_71] : memref<2x14x19x8xf32, #tpu.memory_space<vmem>>, vector<2x8x8x8xf32>
    %118 = vector.extract_strided_slice %14 {offsets = [14, 0], sizes = [1, 8], strides = [1, 1]} : vector<49x8xf32> to vector<1x8xf32>
    %119 = vector.shape_cast %118 : vector<1x8xf32> to vector<8xf32>
    %120 = vector.shape_cast %119 : vector<8xf32> to vector<1x1x1x8xf32>
    %121 = vector.broadcast %120 : vector<1x1x1x8xf32> to vector<2x8x8x8xf32>
    %122 = arith.mulf %117, %121 : vector<2x8x8x8xf32>
    %123 = arith.addf %95, %122 : vector<2x8x8x8xf32>
    %c0_72 = arith.constant 0 : index
    %c2_73 = arith.constant 2 : index
    %c6_74 = arith.constant 6 : index
    %c0_75 = arith.constant 0 : index
    %124 = vector.load %arg8[%c0_72, %c2_73, %c6_74, %c0_75] : memref<2x14x19x8xf32, #tpu.memory_space<vmem>>, vector<2x8x8x8xf32>
    %125 = vector.extract_strided_slice %14 {offsets = [15, 0], sizes = [1, 8], strides = [1, 1]} : vector<49x8xf32> to vector<1x8xf32>
    %126 = vector.shape_cast %125 : vector<1x8xf32> to vector<8xf32>
    %127 = vector.shape_cast %126 : vector<8xf32> to vector<1x1x1x8xf32>
    %128 = vector.broadcast %127 : vector<1x1x1x8xf32> to vector<2x8x8x8xf32>
    %129 = arith.mulf %124, %128 : vector<2x8x8x8xf32>
    %130 = arith.addf %102, %129 : vector<2x8x8x8xf32>
    %c0_76 = arith.constant 0 : index
    %c2_77 = arith.constant 2 : index
    %c7_78 = arith.constant 7 : index
    %c0_79 = arith.constant 0 : index
    %131 = vector.load %arg8[%c0_76, %c2_77, %c7_78, %c0_79] : memref<2x14x19x8xf32, #tpu.memory_space<vmem>>, vector<2x8x8x8xf32>
    %132 = vector.extract_strided_slice %14 {offsets = [16, 0], sizes = [1, 8], strides = [1, 1]} : vector<49x8xf32> to vector<1x8xf32>
    %133 = vector.shape_cast %132 : vector<1x8xf32> to vector<8xf32>
    %134 = vector.shape_cast %133 : vector<8xf32> to vector<1x1x1x8xf32>
    %135 = vector.broadcast %134 : vector<1x1x1x8xf32> to vector<2x8x8x8xf32>
    %136 = arith.mulf %131, %135 : vector<2x8x8x8xf32>
    %137 = arith.addf %109, %136 : vector<2x8x8x8xf32>
    %c0_80 = arith.constant 0 : index
    %c2_81 = arith.constant 2 : index
    %c8_82 = arith.constant 8 : index
    %c0_83 = arith.constant 0 : index
    %138 = vector.load %arg8[%c0_80, %c2_81, %c8_82, %c0_83] : memref<2x14x19x8xf32, #tpu.memory_space<vmem>>, vector<2x8x8x8xf32>
    %139 = vector.extract_strided_slice %14 {offsets = [17, 0], sizes = [1, 8], strides = [1, 1]} : vector<49x8xf32> to vector<1x8xf32>
    %140 = vector.shape_cast %139 : vector<1x8xf32> to vector<8xf32>
    %141 = vector.shape_cast %140 : vector<8xf32> to vector<1x1x1x8xf32>
    %142 = vector.broadcast %141 : vector<1x1x1x8xf32> to vector<2x8x8x8xf32>
    %143 = arith.mulf %138, %142 : vector<2x8x8x8xf32>
    %144 = arith.addf %116, %143 : vector<2x8x8x8xf32>
    %c0_84 = arith.constant 0 : index
    %c2_85 = arith.constant 2 : index
    %c9_86 = arith.constant 9 : index
    %c0_87 = arith.constant 0 : index
    %145 = vector.load %arg8[%c0_84, %c2_85, %c9_86, %c0_87] : memref<2x14x19x8xf32, #tpu.memory_space<vmem>>, vector<2x8x8x8xf32>
    %146 = vector.extract_strided_slice %14 {offsets = [18, 0], sizes = [1, 8], strides = [1, 1]} : vector<49x8xf32> to vector<1x8xf32>
    %147 = vector.shape_cast %146 : vector<1x8xf32> to vector<8xf32>
    %148 = vector.shape_cast %147 : vector<8xf32> to vector<1x1x1x8xf32>
    %149 = vector.broadcast %148 : vector<1x1x1x8xf32> to vector<2x8x8x8xf32>
    %150 = arith.mulf %145, %149 : vector<2x8x8x8xf32>
    %151 = arith.addf %123, %150 : vector<2x8x8x8xf32>
    %c0_88 = arith.constant 0 : index
    %c2_89 = arith.constant 2 : index
    %c10_90 = arith.constant 10 : index
    %c0_91 = arith.constant 0 : index
    %152 = vector.load %arg8[%c0_88, %c2_89, %c10_90, %c0_91] : memref<2x14x19x8xf32, #tpu.memory_space<vmem>>, vector<2x8x8x8xf32>
    %153 = vector.extract_strided_slice %14 {offsets = [19, 0], sizes = [1, 8], strides = [1, 1]} : vector<49x8xf32> to vector<1x8xf32>
    %154 = vector.shape_cast %153 : vector<1x8xf32> to vector<8xf32>
    %155 = vector.shape_cast %154 : vector<8xf32> to vector<1x1x1x8xf32>
    %156 = vector.broadcast %155 : vector<1x1x1x8xf32> to vector<2x8x8x8xf32>
    %157 = arith.mulf %152, %156 : vector<2x8x8x8xf32>
    %158 = arith.addf %130, %157 : vector<2x8x8x8xf32>
    %c0_92 = arith.constant 0 : index
    %c2_93 = arith.constant 2 : index
    %c11_94 = arith.constant 11 : index
    %c0_95 = arith.constant 0 : index
    %159 = vector.load %arg8[%c0_92, %c2_93, %c11_94, %c0_95] : memref<2x14x19x8xf32, #tpu.memory_space<vmem>>, vector<2x8x8x8xf32>
    %160 = vector.extract_strided_slice %14 {offsets = [20, 0], sizes = [1, 8], strides = [1, 1]} : vector<49x8xf32> to vector<1x8xf32>
    %161 = vector.shape_cast %160 : vector<1x8xf32> to vector<8xf32>
    %162 = vector.shape_cast %161 : vector<8xf32> to vector<1x1x1x8xf32>
    %163 = vector.broadcast %162 : vector<1x1x1x8xf32> to vector<2x8x8x8xf32>
    %164 = arith.mulf %159, %163 : vector<2x8x8x8xf32>
    %165 = arith.addf %137, %164 : vector<2x8x8x8xf32>
    %c0_96 = arith.constant 0 : index
    %c3_97 = arith.constant 3 : index
    %c5_98 = arith.constant 5 : index
    %c0_99 = arith.constant 0 : index
    %166 = vector.load %arg8[%c0_96, %c3_97, %c5_98, %c0_99] : memref<2x14x19x8xf32, #tpu.memory_space<vmem>>, vector<2x8x8x8xf32>
    %167 = vector.extract_strided_slice %14 {offsets = [21, 0], sizes = [1, 8], strides = [1, 1]} : vector<49x8xf32> to vector<1x8xf32>
    %168 = vector.shape_cast %167 : vector<1x8xf32> to vector<8xf32>
    %169 = vector.shape_cast %168 : vector<8xf32> to vector<1x1x1x8xf32>
    %170 = vector.broadcast %169 : vector<1x1x1x8xf32> to vector<2x8x8x8xf32>
    %171 = arith.mulf %166, %170 : vector<2x8x8x8xf32>
    %172 = arith.addf %144, %171 : vector<2x8x8x8xf32>
    %c0_100 = arith.constant 0 : index
    %c3_101 = arith.constant 3 : index
    %c6_102 = arith.constant 6 : index
    %c0_103 = arith.constant 0 : index
    %173 = vector.load %arg8[%c0_100, %c3_101, %c6_102, %c0_103] : memref<2x14x19x8xf32, #tpu.memory_space<vmem>>, vector<2x8x8x8xf32>
    %174 = vector.extract_strided_slice %14 {offsets = [22, 0], sizes = [1, 8], strides = [1, 1]} : vector<49x8xf32> to vector<1x8xf32>
    %175 = vector.shape_cast %174 : vector<1x8xf32> to vector<8xf32>
    %176 = vector.shape_cast %175 : vector<8xf32> to vector<1x1x1x8xf32>
    %177 = vector.broadcast %176 : vector<1x1x1x8xf32> to vector<2x8x8x8xf32>
    %178 = arith.mulf %173, %177 : vector<2x8x8x8xf32>
    %179 = arith.addf %151, %178 : vector<2x8x8x8xf32>
    %c0_104 = arith.constant 0 : index
    %c3_105 = arith.constant 3 : index
    %c7_106 = arith.constant 7 : index
    %c0_107 = arith.constant 0 : index
    %180 = vector.load %arg8[%c0_104, %c3_105, %c7_106, %c0_107] : memref<2x14x19x8xf32, #tpu.memory_space<vmem>>, vector<2x8x8x8xf32>
    %181 = vector.extract_strided_slice %14 {offsets = [23, 0], sizes = [1, 8], strides = [1, 1]} : vector<49x8xf32> to vector<1x8xf32>
    %182 = vector.shape_cast %181 : vector<1x8xf32> to vector<8xf32>
    %183 = vector.shape_cast %182 : vector<8xf32> to vector<1x1x1x8xf32>
    %184 = vector.broadcast %183 : vector<1x1x1x8xf32> to vector<2x8x8x8xf32>
    %185 = arith.mulf %180, %184 : vector<2x8x8x8xf32>
    %186 = arith.addf %158, %185 : vector<2x8x8x8xf32>
    %c0_108 = arith.constant 0 : index
    %c3_109 = arith.constant 3 : index
    %c8_110 = arith.constant 8 : index
    %c0_111 = arith.constant 0 : index
    %187 = vector.load %arg8[%c0_108, %c3_109, %c8_110, %c0_111] : memref<2x14x19x8xf32, #tpu.memory_space<vmem>>, vector<2x8x8x8xf32>
    %188 = vector.extract_strided_slice %14 {offsets = [24, 0], sizes = [1, 8], strides = [1, 1]} : vector<49x8xf32> to vector<1x8xf32>
    %189 = vector.shape_cast %188 : vector<1x8xf32> to vector<8xf32>
    %190 = vector.shape_cast %189 : vector<8xf32> to vector<1x1x1x8xf32>
    %191 = vector.broadcast %190 : vector<1x1x1x8xf32> to vector<2x8x8x8xf32>
    %192 = arith.mulf %187, %191 : vector<2x8x8x8xf32>
    %193 = arith.addf %165, %192 : vector<2x8x8x8xf32>
    %c0_112 = arith.constant 0 : index
    %c3_113 = arith.constant 3 : index
    %c9_114 = arith.constant 9 : index
    %c0_115 = arith.constant 0 : index
    %194 = vector.load %arg8[%c0_112, %c3_113, %c9_114, %c0_115] : memref<2x14x19x8xf32, #tpu.memory_space<vmem>>, vector<2x8x8x8xf32>
    %195 = vector.extract_strided_slice %14 {offsets = [25, 0], sizes = [1, 8], strides = [1, 1]} : vector<49x8xf32> to vector<1x8xf32>
    %196 = vector.shape_cast %195 : vector<1x8xf32> to vector<8xf32>
    %197 = vector.shape_cast %196 : vector<8xf32> to vector<1x1x1x8xf32>
    %198 = vector.broadcast %197 : vector<1x1x1x8xf32> to vector<2x8x8x8xf32>
    %199 = arith.mulf %194, %198 : vector<2x8x8x8xf32>
    %200 = arith.addf %172, %199 : vector<2x8x8x8xf32>
    %c0_116 = arith.constant 0 : index
    %c3_117 = arith.constant 3 : index
    %c10_118 = arith.constant 10 : index
    %c0_119 = arith.constant 0 : index
    %201 = vector.load %arg8[%c0_116, %c3_117, %c10_118, %c0_119] : memref<2x14x19x8xf32, #tpu.memory_space<vmem>>, vector<2x8x8x8xf32>
    %202 = vector.extract_strided_slice %14 {offsets = [26, 0], sizes = [1, 8], strides = [1, 1]} : vector<49x8xf32> to vector<1x8xf32>
    %203 = vector.shape_cast %202 : vector<1x8xf32> to vector<8xf32>
    %204 = vector.shape_cast %203 : vector<8xf32> to vector<1x1x1x8xf32>
    %205 = vector.broadcast %204 : vector<1x1x1x8xf32> to vector<2x8x8x8xf32>
    %206 = arith.mulf %201, %205 : vector<2x8x8x8xf32>
    %207 = arith.addf %179, %206 : vector<2x8x8x8xf32>
    %c0_120 = arith.constant 0 : index
    %c3_121 = arith.constant 3 : index
    %c11_122 = arith.constant 11 : index
    %c0_123 = arith.constant 0 : index
    %208 = vector.load %arg8[%c0_120, %c3_121, %c11_122, %c0_123] : memref<2x14x19x8xf32, #tpu.memory_space<vmem>>, vector<2x8x8x8xf32>
    %209 = vector.extract_strided_slice %14 {offsets = [27, 0], sizes = [1, 8], strides = [1, 1]} : vector<49x8xf32> to vector<1x8xf32>
    %210 = vector.shape_cast %209 : vector<1x8xf32> to vector<8xf32>
    %211 = vector.shape_cast %210 : vector<8xf32> to vector<1x1x1x8xf32>
    %212 = vector.broadcast %211 : vector<1x1x1x8xf32> to vector<2x8x8x8xf32>
    %213 = arith.mulf %208, %212 : vector<2x8x8x8xf32>
    %214 = arith.addf %186, %213 : vector<2x8x8x8xf32>
    %c0_124 = arith.constant 0 : index
    %c4 = arith.constant 4 : index
    %c5_125 = arith.constant 5 : index
    %c0_126 = arith.constant 0 : index
    %215 = vector.load %arg8[%c0_124, %c4, %c5_125, %c0_126] : memref<2x14x19x8xf32, #tpu.memory_space<vmem>>, vector<2x8x8x8xf32>
    %216 = vector.extract_strided_slice %14 {offsets = [28, 0], sizes = [1, 8], strides = [1, 1]} : vector<49x8xf32> to vector<1x8xf32>
    %217 = vector.shape_cast %216 : vector<1x8xf32> to vector<8xf32>
    %218 = vector.shape_cast %217 : vector<8xf32> to vector<1x1x1x8xf32>
    %219 = vector.broadcast %218 : vector<1x1x1x8xf32> to vector<2x8x8x8xf32>
    %220 = arith.mulf %215, %219 : vector<2x8x8x8xf32>
    %221 = arith.addf %193, %220 : vector<2x8x8x8xf32>
    %c0_127 = arith.constant 0 : index
    %c4_128 = arith.constant 4 : index
    %c6_129 = arith.constant 6 : index
    %c0_130 = arith.constant 0 : index
    %222 = vector.load %arg8[%c0_127, %c4_128, %c6_129, %c0_130] : memref<2x14x19x8xf32, #tpu.memory_space<vmem>>, vector<2x8x8x8xf32>
    %223 = vector.extract_strided_slice %14 {offsets = [29, 0], sizes = [1, 8], strides = [1, 1]} : vector<49x8xf32> to vector<1x8xf32>
    %224 = vector.shape_cast %223 : vector<1x8xf32> to vector<8xf32>
    %225 = vector.shape_cast %224 : vector<8xf32> to vector<1x1x1x8xf32>
    %226 = vector.broadcast %225 : vector<1x1x1x8xf32> to vector<2x8x8x8xf32>
    %227 = arith.mulf %222, %226 : vector<2x8x8x8xf32>
    %228 = arith.addf %200, %227 : vector<2x8x8x8xf32>
    %c0_131 = arith.constant 0 : index
    %c4_132 = arith.constant 4 : index
    %c7_133 = arith.constant 7 : index
    %c0_134 = arith.constant 0 : index
    %229 = vector.load %arg8[%c0_131, %c4_132, %c7_133, %c0_134] : memref<2x14x19x8xf32, #tpu.memory_space<vmem>>, vector<2x8x8x8xf32>
    %230 = vector.extract_strided_slice %14 {offsets = [30, 0], sizes = [1, 8], strides = [1, 1]} : vector<49x8xf32> to vector<1x8xf32>
    %231 = vector.shape_cast %230 : vector<1x8xf32> to vector<8xf32>
    %232 = vector.shape_cast %231 : vector<8xf32> to vector<1x1x1x8xf32>
    %233 = vector.broadcast %232 : vector<1x1x1x8xf32> to vector<2x8x8x8xf32>
    %234 = arith.mulf %229, %233 : vector<2x8x8x8xf32>
    %235 = arith.addf %207, %234 : vector<2x8x8x8xf32>
    %c0_135 = arith.constant 0 : index
    %c4_136 = arith.constant 4 : index
    %c8_137 = arith.constant 8 : index
    %c0_138 = arith.constant 0 : index
    %236 = vector.load %arg8[%c0_135, %c4_136, %c8_137, %c0_138] : memref<2x14x19x8xf32, #tpu.memory_space<vmem>>, vector<2x8x8x8xf32>
    %237 = vector.extract_strided_slice %14 {offsets = [31, 0], sizes = [1, 8], strides = [1, 1]} : vector<49x8xf32> to vector<1x8xf32>
    %238 = vector.shape_cast %237 : vector<1x8xf32> to vector<8xf32>
    %239 = vector.shape_cast %238 : vector<8xf32> to vector<1x1x1x8xf32>
    %240 = vector.broadcast %239 : vector<1x1x1x8xf32> to vector<2x8x8x8xf32>
    %241 = arith.mulf %236, %240 : vector<2x8x8x8xf32>
    %242 = arith.addf %214, %241 : vector<2x8x8x8xf32>
    %c0_139 = arith.constant 0 : index
    %c4_140 = arith.constant 4 : index
    %c9_141 = arith.constant 9 : index
    %c0_142 = arith.constant 0 : index
    %243 = vector.load %arg8[%c0_139, %c4_140, %c9_141, %c0_142] : memref<2x14x19x8xf32, #tpu.memory_space<vmem>>, vector<2x8x8x8xf32>
    %244 = vector.extract_strided_slice %14 {offsets = [32, 0], sizes = [1, 8], strides = [1, 1]} : vector<49x8xf32> to vector<1x8xf32>
    %245 = vector.shape_cast %244 : vector<1x8xf32> to vector<8xf32>
    %246 = vector.shape_cast %245 : vector<8xf32> to vector<1x1x1x8xf32>
    %247 = vector.broadcast %246 : vector<1x1x1x8xf32> to vector<2x8x8x8xf32>
    %248 = arith.mulf %243, %247 : vector<2x8x8x8xf32>
    %249 = arith.addf %221, %248 : vector<2x8x8x8xf32>
    %c0_143 = arith.constant 0 : index
    %c4_144 = arith.constant 4 : index
    %c10_145 = arith.constant 10 : index
    %c0_146 = arith.constant 0 : index
    %250 = vector.load %arg8[%c0_143, %c4_144, %c10_145, %c0_146] : memref<2x14x19x8xf32, #tpu.memory_space<vmem>>, vector<2x8x8x8xf32>
    %251 = vector.extract_strided_slice %14 {offsets = [33, 0], sizes = [1, 8], strides = [1, 1]} : vector<49x8xf32> to vector<1x8xf32>
    %252 = vector.shape_cast %251 : vector<1x8xf32> to vector<8xf32>
    %253 = vector.shape_cast %252 : vector<8xf32> to vector<1x1x1x8xf32>
    %254 = vector.broadcast %253 : vector<1x1x1x8xf32> to vector<2x8x8x8xf32>
    %255 = arith.mulf %250, %254 : vector<2x8x8x8xf32>
    %256 = arith.addf %228, %255 : vector<2x8x8x8xf32>
    %c0_147 = arith.constant 0 : index
    %c4_148 = arith.constant 4 : index
    %c11_149 = arith.constant 11 : index
    %c0_150 = arith.constant 0 : index
    %257 = vector.load %arg8[%c0_147, %c4_148, %c11_149, %c0_150] : memref<2x14x19x8xf32, #tpu.memory_space<vmem>>, vector<2x8x8x8xf32>
    %258 = vector.extract_strided_slice %14 {offsets = [34, 0], sizes = [1, 8], strides = [1, 1]} : vector<49x8xf32> to vector<1x8xf32>
    %259 = vector.shape_cast %258 : vector<1x8xf32> to vector<8xf32>
    %260 = vector.shape_cast %259 : vector<8xf32> to vector<1x1x1x8xf32>
    %261 = vector.broadcast %260 : vector<1x1x1x8xf32> to vector<2x8x8x8xf32>
    %262 = arith.mulf %257, %261 : vector<2x8x8x8xf32>
    %263 = arith.addf %235, %262 : vector<2x8x8x8xf32>
    %c0_151 = arith.constant 0 : index
    %c5_152 = arith.constant 5 : index
    %c5_153 = arith.constant 5 : index
    %c0_154 = arith.constant 0 : index
    %264 = vector.load %arg8[%c0_151, %c5_152, %c5_153, %c0_154] : memref<2x14x19x8xf32, #tpu.memory_space<vmem>>, vector<2x8x8x8xf32>
    %265 = vector.extract_strided_slice %14 {offsets = [35, 0], sizes = [1, 8], strides = [1, 1]} : vector<49x8xf32> to vector<1x8xf32>
    %266 = vector.shape_cast %265 : vector<1x8xf32> to vector<8xf32>
    %267 = vector.shape_cast %266 : vector<8xf32> to vector<1x1x1x8xf32>
    %268 = vector.broadcast %267 : vector<1x1x1x8xf32> to vector<2x8x8x8xf32>
    %269 = arith.mulf %264, %268 : vector<2x8x8x8xf32>
    %270 = arith.addf %242, %269 : vector<2x8x8x8xf32>
    %c0_155 = arith.constant 0 : index
    %c5_156 = arith.constant 5 : index
    %c6_157 = arith.constant 6 : index
    %c0_158 = arith.constant 0 : index
    %271 = vector.load %arg8[%c0_155, %c5_156, %c6_157, %c0_158] : memref<2x14x19x8xf32, #tpu.memory_space<vmem>>, vector<2x8x8x8xf32>
    %272 = vector.extract_strided_slice %14 {offsets = [36, 0], sizes = [1, 8], strides = [1, 1]} : vector<49x8xf32> to vector<1x8xf32>
    %273 = vector.shape_cast %272 : vector<1x8xf32> to vector<8xf32>
    %274 = vector.shape_cast %273 : vector<8xf32> to vector<1x1x1x8xf32>
    %275 = vector.broadcast %274 : vector<1x1x1x8xf32> to vector<2x8x8x8xf32>
    %276 = arith.mulf %271, %275 : vector<2x8x8x8xf32>
    %277 = arith.addf %249, %276 : vector<2x8x8x8xf32>
    %c0_159 = arith.constant 0 : index
    %c5_160 = arith.constant 5 : index
    %c7_161 = arith.constant 7 : index
    %c0_162 = arith.constant 0 : index
    %278 = vector.load %arg8[%c0_159, %c5_160, %c7_161, %c0_162] : memref<2x14x19x8xf32, #tpu.memory_space<vmem>>, vector<2x8x8x8xf32>
    %279 = vector.extract_strided_slice %14 {offsets = [37, 0], sizes = [1, 8], strides = [1, 1]} : vector<49x8xf32> to vector<1x8xf32>
    %280 = vector.shape_cast %279 : vector<1x8xf32> to vector<8xf32>
    %281 = vector.shape_cast %280 : vector<8xf32> to vector<1x1x1x8xf32>
    %282 = vector.broadcast %281 : vector<1x1x1x8xf32> to vector<2x8x8x8xf32>
    %283 = arith.mulf %278, %282 : vector<2x8x8x8xf32>
    %284 = arith.addf %256, %283 : vector<2x8x8x8xf32>
    %c0_163 = arith.constant 0 : index
    %c5_164 = arith.constant 5 : index
    %c8_165 = arith.constant 8 : index
    %c0_166 = arith.constant 0 : index
    %285 = vector.load %arg8[%c0_163, %c5_164, %c8_165, %c0_166] : memref<2x14x19x8xf32, #tpu.memory_space<vmem>>, vector<2x8x8x8xf32>
    %286 = vector.extract_strided_slice %14 {offsets = [38, 0], sizes = [1, 8], strides = [1, 1]} : vector<49x8xf32> to vector<1x8xf32>
    %287 = vector.shape_cast %286 : vector<1x8xf32> to vector<8xf32>
    %288 = vector.shape_cast %287 : vector<8xf32> to vector<1x1x1x8xf32>
    %289 = vector.broadcast %288 : vector<1x1x1x8xf32> to vector<2x8x8x8xf32>
    %290 = arith.mulf %285, %289 : vector<2x8x8x8xf32>
    %291 = arith.addf %263, %290 : vector<2x8x8x8xf32>
    %c0_167 = arith.constant 0 : index
    %c5_168 = arith.constant 5 : index
    %c9_169 = arith.constant 9 : index
    %c0_170 = arith.constant 0 : index
    %292 = vector.load %arg8[%c0_167, %c5_168, %c9_169, %c0_170] : memref<2x14x19x8xf32, #tpu.memory_space<vmem>>, vector<2x8x8x8xf32>
    %293 = vector.extract_strided_slice %14 {offsets = [39, 0], sizes = [1, 8], strides = [1, 1]} : vector<49x8xf32> to vector<1x8xf32>
    %294 = vector.shape_cast %293 : vector<1x8xf32> to vector<8xf32>
    %295 = vector.shape_cast %294 : vector<8xf32> to vector<1x1x1x8xf32>
    %296 = vector.broadcast %295 : vector<1x1x1x8xf32> to vector<2x8x8x8xf32>
    %297 = arith.mulf %292, %296 : vector<2x8x8x8xf32>
    %298 = arith.addf %270, %297 : vector<2x8x8x8xf32>
    %c0_171 = arith.constant 0 : index
    %c5_172 = arith.constant 5 : index
    %c10_173 = arith.constant 10 : index
    %c0_174 = arith.constant 0 : index
    %299 = vector.load %arg8[%c0_171, %c5_172, %c10_173, %c0_174] : memref<2x14x19x8xf32, #tpu.memory_space<vmem>>, vector<2x8x8x8xf32>
    %300 = vector.extract_strided_slice %14 {offsets = [40, 0], sizes = [1, 8], strides = [1, 1]} : vector<49x8xf32> to vector<1x8xf32>
    %301 = vector.shape_cast %300 : vector<1x8xf32> to vector<8xf32>
    %302 = vector.shape_cast %301 : vector<8xf32> to vector<1x1x1x8xf32>
    %303 = vector.broadcast %302 : vector<1x1x1x8xf32> to vector<2x8x8x8xf32>
    %304 = arith.mulf %299, %303 : vector<2x8x8x8xf32>
    %305 = arith.addf %277, %304 : vector<2x8x8x8xf32>
    %c0_175 = arith.constant 0 : index
    %c5_176 = arith.constant 5 : index
    %c11_177 = arith.constant 11 : index
    %c0_178 = arith.constant 0 : index
    %306 = vector.load %arg8[%c0_175, %c5_176, %c11_177, %c0_178] : memref<2x14x19x8xf32, #tpu.memory_space<vmem>>, vector<2x8x8x8xf32>
    %307 = vector.extract_strided_slice %14 {offsets = [41, 0], sizes = [1, 8], strides = [1, 1]} : vector<49x8xf32> to vector<1x8xf32>
    %308 = vector.shape_cast %307 : vector<1x8xf32> to vector<8xf32>
    %309 = vector.shape_cast %308 : vector<8xf32> to vector<1x1x1x8xf32>
    %310 = vector.broadcast %309 : vector<1x1x1x8xf32> to vector<2x8x8x8xf32>
    %311 = arith.mulf %306, %310 : vector<2x8x8x8xf32>
    %312 = arith.addf %284, %311 : vector<2x8x8x8xf32>
    %c0_179 = arith.constant 0 : index
    %c6_180 = arith.constant 6 : index
    %c5_181 = arith.constant 5 : index
    %c0_182 = arith.constant 0 : index
    %313 = vector.load %arg8[%c0_179, %c6_180, %c5_181, %c0_182] : memref<2x14x19x8xf32, #tpu.memory_space<vmem>>, vector<2x8x8x8xf32>
    %314 = vector.extract_strided_slice %14 {offsets = [42, 0], sizes = [1, 8], strides = [1, 1]} : vector<49x8xf32> to vector<1x8xf32>
    %315 = vector.shape_cast %314 : vector<1x8xf32> to vector<8xf32>
    %316 = vector.shape_cast %315 : vector<8xf32> to vector<1x1x1x8xf32>
    %317 = vector.broadcast %316 : vector<1x1x1x8xf32> to vector<2x8x8x8xf32>
    %318 = arith.mulf %313, %317 : vector<2x8x8x8xf32>
    %319 = arith.addf %291, %318 : vector<2x8x8x8xf32>
    %c0_183 = arith.constant 0 : index
    %c6_184 = arith.constant 6 : index
    %c6_185 = arith.constant 6 : index
    %c0_186 = arith.constant 0 : index
    %320 = vector.load %arg8[%c0_183, %c6_184, %c6_185, %c0_186] : memref<2x14x19x8xf32, #tpu.memory_space<vmem>>, vector<2x8x8x8xf32>
    %321 = vector.extract_strided_slice %14 {offsets = [43, 0], sizes = [1, 8], strides = [1, 1]} : vector<49x8xf32> to vector<1x8xf32>
    %322 = vector.shape_cast %321 : vector<1x8xf32> to vector<8xf32>
    %323 = vector.shape_cast %322 : vector<8xf32> to vector<1x1x1x8xf32>
    %324 = vector.broadcast %323 : vector<1x1x1x8xf32> to vector<2x8x8x8xf32>
    %325 = arith.mulf %320, %324 : vector<2x8x8x8xf32>
    %326 = arith.addf %298, %325 : vector<2x8x8x8xf32>
    %c0_187 = arith.constant 0 : index
    %c6_188 = arith.constant 6 : index
    %c7_189 = arith.constant 7 : index
    %c0_190 = arith.constant 0 : index
    %327 = vector.load %arg8[%c0_187, %c6_188, %c7_189, %c0_190] : memref<2x14x19x8xf32, #tpu.memory_space<vmem>>, vector<2x8x8x8xf32>
    %328 = vector.extract_strided_slice %14 {offsets = [44, 0], sizes = [1, 8], strides = [1, 1]} : vector<49x8xf32> to vector<1x8xf32>
    %329 = vector.shape_cast %328 : vector<1x8xf32> to vector<8xf32>
    %330 = vector.shape_cast %329 : vector<8xf32> to vector<1x1x1x8xf32>
    %331 = vector.broadcast %330 : vector<1x1x1x8xf32> to vector<2x8x8x8xf32>
    %332 = arith.mulf %327, %331 : vector<2x8x8x8xf32>
    %333 = arith.addf %305, %332 : vector<2x8x8x8xf32>
    %c0_191 = arith.constant 0 : index
    %c6_192 = arith.constant 6 : index
    %c8_193 = arith.constant 8 : index
    %c0_194 = arith.constant 0 : index
    %334 = vector.load %arg8[%c0_191, %c6_192, %c8_193, %c0_194] : memref<2x14x19x8xf32, #tpu.memory_space<vmem>>, vector<2x8x8x8xf32>
    %335 = vector.extract_strided_slice %14 {offsets = [45, 0], sizes = [1, 8], strides = [1, 1]} : vector<49x8xf32> to vector<1x8xf32>
    %336 = vector.shape_cast %335 : vector<1x8xf32> to vector<8xf32>
    %337 = vector.shape_cast %336 : vector<8xf32> to vector<1x1x1x8xf32>
    %338 = vector.broadcast %337 : vector<1x1x1x8xf32> to vector<2x8x8x8xf32>
    %339 = arith.mulf %334, %338 : vector<2x8x8x8xf32>
    %340 = arith.addf %312, %339 : vector<2x8x8x8xf32>
    %c0_195 = arith.constant 0 : index
    %c6_196 = arith.constant 6 : index
    %c9_197 = arith.constant 9 : index
    %c0_198 = arith.constant 0 : index
    %341 = vector.load %arg8[%c0_195, %c6_196, %c9_197, %c0_198] : memref<2x14x19x8xf32, #tpu.memory_space<vmem>>, vector<2x8x8x8xf32>
    %342 = vector.extract_strided_slice %14 {offsets = [46, 0], sizes = [1, 8], strides = [1, 1]} : vector<49x8xf32> to vector<1x8xf32>
    %343 = vector.shape_cast %342 : vector<1x8xf32> to vector<8xf32>
    %344 = vector.shape_cast %343 : vector<8xf32> to vector<1x1x1x8xf32>
    %345 = vector.broadcast %344 : vector<1x1x1x8xf32> to vector<2x8x8x8xf32>
    %346 = arith.mulf %341, %345 : vector<2x8x8x8xf32>
    %347 = arith.addf %319, %346 : vector<2x8x8x8xf32>
    %c0_199 = arith.constant 0 : index
    %c6_200 = arith.constant 6 : index
    %c10_201 = arith.constant 10 : index
    %c0_202 = arith.constant 0 : index
    %348 = vector.load %arg8[%c0_199, %c6_200, %c10_201, %c0_202] : memref<2x14x19x8xf32, #tpu.memory_space<vmem>>, vector<2x8x8x8xf32>
    %349 = vector.extract_strided_slice %14 {offsets = [47, 0], sizes = [1, 8], strides = [1, 1]} : vector<49x8xf32> to vector<1x8xf32>
    %350 = vector.shape_cast %349 : vector<1x8xf32> to vector<8xf32>
    %351 = vector.shape_cast %350 : vector<8xf32> to vector<1x1x1x8xf32>
    %352 = vector.broadcast %351 : vector<1x1x1x8xf32> to vector<2x8x8x8xf32>
    %353 = arith.mulf %348, %352 : vector<2x8x8x8xf32>
    %354 = arith.addf %326, %353 : vector<2x8x8x8xf32>
    %c0_203 = arith.constant 0 : index
    %c6_204 = arith.constant 6 : index
    %c11_205 = arith.constant 11 : index
    %c0_206 = arith.constant 0 : index
    %355 = vector.load %arg8[%c0_203, %c6_204, %c11_205, %c0_206] : memref<2x14x19x8xf32, #tpu.memory_space<vmem>>, vector<2x8x8x8xf32>
    %356 = vector.extract_strided_slice %14 {offsets = [48, 0], sizes = [1, 8], strides = [1, 1]} : vector<49x8xf32> to vector<1x8xf32>
    %357 = vector.shape_cast %356 : vector<1x8xf32> to vector<8xf32>
    %358 = vector.shape_cast %357 : vector<8xf32> to vector<1x1x1x8xf32>
    %359 = vector.broadcast %358 : vector<1x1x1x8xf32> to vector<2x8x8x8xf32>
    %360 = arith.mulf %355, %359 : vector<2x8x8x8xf32>
    %361 = arith.addf %333, %360 : vector<2x8x8x8xf32>
    %362 = arith.addf %361, %340 : vector<2x8x8x8xf32>
    %363 = arith.addf %347, %354 : vector<2x8x8x8xf32>
    %364 = arith.addf %362, %363 : vector<2x8x8x8xf32>
    %cst_207 = arith.constant dense<0.000000e+00> : vector<2x8x8xf32>
    %365 = vector.multi_reduction <add>, %364, %cst_207 [2] : vector<2x8x8x8xf32> to vector<2x8x8xf32>
    %366 = vector.shape_cast %365 : vector<2x8x8xf32> to vector<2x8x1x8xf32>
    %cst_208 = arith.constant dense<0.000000e+00> : vector<2x1x8xf32>
    %367 = vector.multi_reduction <add>, %366, %cst_208 [1] : vector<2x8x1x8xf32> to vector<2x1x8xf32>
    %368 = vector.shape_cast %367 : vector<2x1x8xf32> to vector<2x1x1x8xf32>
    %cst_209 = arith.constant dense<0.000000e+00> : vector<1x1x8xf32>
    %369 = vector.multi_reduction <add>, %368, %cst_209 [0] : vector<2x1x1x8xf32> to vector<1x1x8xf32>
    %370 = vector.shape_cast %369 : vector<1x1x8xf32> to vector<1x1x1x8xf32>
    %cst_210 = arith.constant 1.280000e+02 : f32
    %371 = vector.broadcast %cst_210 : f32 to vector<1x1x1x8xf32>
    %372 = arith.divf %370, %371 : vector<1x1x1x8xf32>
    %373 = vector.broadcast %372 : vector<1x1x1x8xf32> to vector<2x8x8x8xf32>
    %374 = arith.subf %364, %373 : vector<2x8x8x8xf32>
    %375 = arith.mulf %374, %374 : vector<2x8x8x8xf32>
    %cst_211 = arith.constant dense<0.000000e+00> : vector<2x8x8xf32>
    %376 = vector.multi_reduction <add>, %375, %cst_211 [2] : vector<2x8x8x8xf32> to vector<2x8x8xf32>
    %377 = vector.shape_cast %376 : vector<2x8x8xf32> to vector<2x8x1x8xf32>
    %cst_212 = arith.constant dense<0.000000e+00> : vector<2x1x8xf32>
    %378 = vector.multi_reduction <add>, %377, %cst_212 [1] : vector<2x8x1x8xf32> to vector<2x1x8xf32>
    %379 = vector.shape_cast %378 : vector<2x1x8xf32> to vector<2x1x1x8xf32>
    %cst_213 = arith.constant dense<0.000000e+00> : vector<1x1x8xf32>
    %380 = vector.multi_reduction <add>, %379, %cst_213 [0] : vector<2x1x1x8xf32> to vector<1x1x8xf32>
    %381 = vector.shape_cast %380 : vector<1x1x8xf32> to vector<1x1x1x8xf32>
    %cst_214 = arith.constant 1.280000e+02 : f32
    %382 = vector.broadcast %cst_214 : f32 to vector<1x1x1x8xf32>
    %383 = arith.divf %381, %382 : vector<1x1x1x8xf32>
    %c0_215 = arith.constant 0 : index
    %c0_216 = arith.constant 0 : index
    %384 = vector.load %arg5[%c0_215, %c0_216] : memref<1x8xf32, #tpu.memory_space<vmem>>, vector<1x8xf32>
    %385 = vector.shape_cast %384 : vector<1x8xf32> to vector<1x1x1x8xf32>
    %386 = vector.broadcast %385 : vector<1x1x1x8xf32> to vector<2x8x8x8xf32>
    %387 = arith.mulf %386, %374 : vector<2x8x8x8xf32>
    %cst_217 = arith.constant 9.99999997E-7 : f32
    %388 = vector.broadcast %cst_217 : f32 to vector<1x1x1x8xf32>
    %389 = arith.addf %383, %388 : vector<1x1x1x8xf32>
    %390 = math.rsqrt %389 : vector<1x1x1x8xf32>
    %391 = vector.broadcast %390 : vector<1x1x1x8xf32> to vector<2x8x8x8xf32>
    %392 = arith.mulf %387, %391 : vector<2x8x8x8xf32>
    %c0_218 = arith.constant 0 : index
    %c0_219 = arith.constant 0 : index
    %393 = vector.load %arg6[%c0_218, %c0_219] : memref<1x8xf32, #tpu.memory_space<vmem>>, vector<1x8xf32>
    %394 = vector.shape_cast %393 : vector<1x8xf32> to vector<1x1x1x8xf32>
    %395 = vector.broadcast %394 : vector<1x1x1x8xf32> to vector<2x8x8x8xf32>
    %396 = arith.addf %392, %395 : vector<2x8x8x8xf32>
    %c0_220 = arith.constant 0 : index
    %c0_221 = arith.constant 0 : index
    %c0_222 = arith.constant 0 : index
    %c0_223 = arith.constant 0 : index
    %397 = vector.load %arg7[%c0_220, %c0_221, %c0_222, %c0_223] : memref<2x8x8x8xf32, #tpu.memory_space<vmem>>, vector<2x8x8x8xf32>
    tpu.vector_store %arg7[%c0_220, %c0_221, %c0_222, %c0_223], %396 {strides = array<i32>} : memref<2x8x8x8xf32, #tpu.memory_space<vmem>>, vector<2x8x8x8xf32>,
    return
  }
  func.func @transform_0(%arg0: i32) -> (i32, i32, i32, i32) {
    %c0_i32 = arith.constant 0 : i32
    %c0_i32_0 = arith.constant 0 : i32
    %c0_i32_1 = arith.constant 0 : i32
    %c0_i32_2 = arith.constant 0 : i32
    return %c0_i32, %c0_i32_0, %c0_i32_1, %arg0 : i32, i32, i32, i32
  }
  func.func @transform_1(%arg0: i32) -> (i32, i32) {
    %c0_i32 = arith.constant 0 : i32
    %c0_i32_0 = arith.constant 0 : i32
    return %c0_i32, %arg0 : i32, i32
  }
  func.func @transform_2(%arg0: i32) -> (i32, i32) {
    %c0_i32 = arith.constant 0 : i32
    %c0_i32_0 = arith.constant 0 : i32
    return %c0_i32, %arg0 : i32, i32
  }
  func.func @transform_3(%arg0: i32) -> (i32, i32) {
    %c0_i32 = arith.constant 0 : i32
    %c0_i32_0 = arith.constant 0 : i32
    return %c0_i32, %arg0 : i32, i32
  }
  func.func @transform_4(%arg0: i32) -> (i32, i32) {
    %c0_i32 = arith.constant 0 : i32
    %c0_i32_0 = arith.constant 0 : i32
    return %c0_i32, %arg0 : i32, i32
  }
  func.func @transform_5(%arg0: i32) -> (i32, i32) {
    %c0_i32 = arith.constant 0 : i32
    %c0_i32_0 = arith.constant 0 : i32
    return %c0_i32, %arg0 : i32, i32
  }
  func.func @transform_6(%arg0: i32) -> (i32, i32, i32, i32) {
    %c0_i32 = arith.constant 0 : i32
    %c0_i32_0 = arith.constant 0 : i32
    %c0_i32_1 = arith.constant 0 : i32
    %c0_i32_2 = arith.constant 0 : i32
    return %c0_i32, %c0_i32_0, %c0_i32_1, %arg0 : i32, i32, i32, i32
  }
}

</mosaic_0001>

<llo_original>
// kernel: _lambda_.3
$region0: #{_lambda_.3}
  #allocation0 [shape = 'u32[]', space=smem, size = 0x4, offset = 0x4, fixed_abs, tag = 'smem constant byte address 0x4 - core index']
  #allocation1 [shape = 'u32[144,128]{1,0:T(1,128)}', space=vmem, size = 0x12000, scoped, tag = 'internal scratch']
  %s0 = inlined_call_operand.vmem [shape: f32[512,4], index: 0, kind: input, shape index: {}]
  %s1 = inlined_call_operand.vmem [shape: f32[4,4], index: 1, kind: input, shape index: {}]
  %s2 = inlined_call_operand.vmem [shape: f32[1,4], index: 2, kind: input, shape index: {}]
  %s3 = inlined_call_operand.vmem [shape: f32[8,4], index: 3, kind: output, shape index: {0}]
  %s4 = inlined_call_operand.vmem [shape: f32[8,4], index: 4, kind: output, shape index: {1}]
  %5 = xla_tuple %s3, %s4
  %s6 = sld [smem:[#allocation0]]
  $region30: #{_lambda_.3} parent=0
    _
  %s8 = ssub.s32 1, %s6
  %s9 = scalar_select 0, %s8, %s6
  // Predicated region
  $region2: #{_lambda_.3} parent=0 // pred_check
    _
  $region3: #{_lambda_.3} parent=0 // pred_check_branch
    %11 = sbr.rel (0) target = $region5
  $region4: #{_lambda_.3} parent=0 // pred_region
    _
  $region5: #{_lambda_.3} parent=0 // pred_fallthru
    _
  // Predicated region
  $region6: #{_lambda_.3} parent=0 // pred_check
    _
  $region7: #{_lambda_.3} parent=0 // pred_check_branch
    %13 = sbr.rel (0) target = $region9
  $region8: #{_lambda_.3} parent=0 // pred_region
    _
  $region9: #{_lambda_.3} parent=0 // pred_fallthru
    _
  // Predicated region
  $region10: #{_lambda_.3} parent=0 // pred_check
    _
  $region11: #{_lambda_.3} parent=0 // pred_check_branch
    %15 = sbr.rel (0) target = $region13
  $region12: #{_lambda_.3} parent=0 // pred_region
    _
  $region13: #{_lambda_.3} parent=0 // pred_fallthru
    _
  %v16 = vld [vmem:[%s0] sm:$0xff]
  %v17 = vld [vmem:[%s0 + $0x8] sm:$0xff]
  %v18 = vld [vmem:[%s0 + $0x10] sm:$0xff]
  %v19 = vld [vmem:[%s0 + $0x18] sm:$0xff]
  %v20 = vld [vmem:[%s0 + $0x20] sm:$0xff]
  %v21 = vld [vmem:[%s0 + $0x28] sm:$0xff]
  %v22 = vld [vmem:[%s0 + $0x30] sm:$0xff]
  %v23 = vld [vmem:[%s0 + $0x38] sm:$0xff]
  %v24 = vld [vmem:[%s0 + $0x40] sm:$0xff]
  %v25 = vld [vmem:[%s0 + $0x48] sm:$0xff]
  %v26 = vld [vmem:[%s0 + $0x50] sm:$0xff]
  %v27 = vld [vmem:[%s0 + $0x58] sm:$0xff]
  %v28 = vld [vmem:[%s0 + $0x60] sm:$0xff]
  %v29 = vld [vmem:[%s0 + $0x68] sm:$0xff]
  %v30 = vld [vmem:[%s0 + $0x70] sm:$0xff]
  %v31 = vld [vmem:[%s0 + $0x78] sm:$0xff]
  %v32 = vld [vmem:[%s0 + $0x80] sm:$0xff]
  %v33 = vld [vmem:[%s0 + $0x88] sm:$0xff]
  %v34 = vld [vmem:[%s0 + $0x90] sm:$0xff]
  %v35 = vld [vmem:[%s0 + $0x98] sm:$0xff]
  %v36 = vld [vmem:[%s0 + $0xa0] sm:$0xff]
  %v37 = vld [vmem:[%s0 + $0xa8] sm:$0xff]
  %v38 = vld [vmem:[%s0 + $0xb0] sm:$0xff]
  %v39 = vld [vmem:[%s0 + $0xb8] sm:$0xff]
  %v40 = vld [vmem:[%s0 + $0xc0] sm:$0xff]
  %v41 = vld [vmem:[%s0 + $0xc8] sm:$0xff]
  %v42 = vld [vmem:[%s0 + $0xd0] sm:$0xff]
  %v43 = vld [vmem:[%s0 + $0xd8] sm:$0xff]
  %v44 = vld [vmem:[%s0 + $0xe0] sm:$0xff]
  %v45 = vld [vmem:[%s0 + $0xe8] sm:$0xff]
  %v46 = vld [vmem:[%s0 + $0xf0] sm:$0xff]
  %v47 = vld [vmem:[%s0 + $0xf8] sm:$0xff]
  %v48 = vld [vmem:[%s0 + $0x100] sm:$0xff]
  %v49 = vld [vmem:[%s0 + $0x108] sm:$0xff]
  %v50 = vld [vmem:[%s0 + $0x110] sm:$0xff]
  %v51 = vld [vmem:[%s0 + $0x118] sm:$0xff]
  %v52 = vld [vmem:[%s0 + $0x120] sm:$0xff]
  %v53 = vld [vmem:[%s0 + $0x128] sm:$0xff]
  %v54 = vld [vmem:[%s0 + $0x130] sm:$0xff]
  %v55 = vld [vmem:[%s0 + $0x138] sm:$0xff]
  %v56 = vld [vmem:[%s0 + $0x140] sm:$0xff]
  %v57 = vld [vmem:[%s0 + $0x148] sm:$0xff]
  %v58 = vld [vmem:[%s0 + $0x150] sm:$0xff]
  %v59 = vld [vmem:[%s0 + $0x158] sm:$0xff]
  %v60 = vld [vmem:[%s0 + $0x160] sm:$0xff]
  %v61 = vld [vmem:[%s0 + $0x168] sm:$0xff]
  %v62 = vld [vmem:[%s0 + $0x170] sm:$0xff]
  %v63 = vld [vmem:[%s0 + $0x178] sm:$0xff]
  %v64 = vld [vmem:[%s0 + $0x180] sm:$0xff]
  %v65 = vld [vmem:[%s0 + $0x188] sm:$0xff]
  %v66 = vld [vmem:[%s0 + $0x190] sm:$0xff]
  %v67 = vld [vmem:[%s0 + $0x198] sm:$0xff]
  %v68 = vld [vmem:[%s0 + $0x1a0] sm:$0xff]
  %v69 = vld [vmem:[%s0 + $0x1a8] sm:$0xff]
  %v70 = vld [vmem:[%s0 + $0x1b0] sm:$0xff]
  %v71 = vld [vmem:[%s0 + $0x1b8] sm:$0xff]
  %v72 = vld [vmem:[%s0 + $0x1c0] sm:$0xff]
  %v73 = vld [vmem:[%s0 + $0x1c8] sm:$0xff]
  %v74 = vld [vmem:[%s0 + $0x1d0] sm:$0xff]
  %v75 = vld [vmem:[%s0 + $0x1d8] sm:$0xff]
  %v76 = vld [vmem:[%s0 + $0x1e0] sm:$0xff]
  %v77 = vld [vmem:[%s0 + $0x1e8] sm:$0xff]
  %v78 = vld [vmem:[%s0 + $0x1f0] sm:$0xff]
  %v79 = vld [vmem:[%s0 + $0x1f8] sm:$0xff]
  %v80 = vld [vmem:[%s1] sm:$0xf]
  %v81 = vld [vmem:[%s2] sm:$0x1]
  %v83 = vlaneseq
  %v84 = vshrl.u32 %v83, 7
  %v85 = vsub.s32 0, %v84
  %v86 = vrot.slane %v81, %v85
  %vm88 = vcmask 31744
  %v90 = vsel %vm88, %v16, 0
  %v93 = vsel %vm88, %v17, 0
  %v96 = vsel %vm88, %v18, 0
  %v99 = vsel %vm88, %v19, 0
  %v102 = vsel %vm88, %v20, 0
  %v105 = vsel %vm88, %v21, 0
  %v108 = vsel %vm88, %v22, 0
  %v111 = vsel %vm88, %v23, 0
  %v114 = vsel %vm88, %v24, 0
  %v117 = vsel %vm88, %v25, 0
  %v120 = vsel %vm88, %v26, 0
  %v123 = vsel %vm88, %v27, 0
  %v126 = vsel %vm88, %v28, 0
  %v129 = vsel %vm88, %v29, 0
  %v132 = vsel %vm88, %v30, 0
  %v135 = vsel %vm88, %v31, 0
  %v138 = vsel %vm88, %v32, 0
  %v141 = vsel %vm88, %v33, 0
  %v144 = vsel %vm88, %v34, 0
  %v147 = vsel %vm88, %v35, 0
  %v150 = vsel %vm88, %v36, 0
  %v153 = vsel %vm88, %v37, 0
  %v156 = vsel %vm88, %v38, 0
  %v159 = vsel %vm88, %v39, 0
  %v162 = vsel %vm88, %v40, 0
  %v165 = vsel %vm88, %v41, 0
  %v168 = vsel %vm88, %v42, 0
  %v171 = vsel %vm88, %v43, 0
  %v174 = vsel %vm88, %v44, 0
  %v177 = vsel %vm88, %v45, 0
  %v180 = vsel %vm88, %v46, 0
  %v183 = vsel %vm88, %v47, 0
  %v186 = vsel %vm88, %v48, 0
  %v189 = vsel %vm88, %v49, 0
  %v192 = vsel %vm88, %v50, 0
  %v195 = vsel %vm88, %v51, 0
  %v198 = vsel %vm88, %v52, 0
  %v201 = vsel %vm88, %v53, 0
  %v204 = vsel %vm88, %v54, 0
  %v207 = vsel %vm88, %v55, 0
  %v210 = vsel %vm88, %v56, 0
  %v213 = vsel %vm88, %v57, 0
  %v216 = vsel %vm88, %v58, 0
  %v219 = vsel %vm88, %v59, 0
  %v222 = vsel %vm88, %v60, 0
  %v225 = vsel %vm88, %v61, 0
  %v228 = vsel %vm88, %v62, 0
  %v231 = vsel %vm88, %v63, 0
  %v234 = vsel %vm88, %v64, 0
  %v237 = vsel %vm88, %v65, 0
  %v240 = vsel %vm88, %v66, 0
  %v243 = vsel %vm88, %v67, 0
  %v246 = vsel %vm88, %v68, 0
  %v249 = vsel %vm88, %v69, 0
  %v252 = vsel %vm88, %v70, 0
  %v255 = vsel %vm88, %v71, 0
  %v258 = vsel %vm88, %v72, 0
  %v261 = vsel %vm88, %v73, 0
  %v264 = vsel %vm88, %v74, 0
  %v267 = vsel %vm88, %v75, 0
  %v270 = vsel %vm88, %v76, 0
  %v273 = vsel %vm88, %v77, 0
  %v276 = vsel %vm88, %v78, 0
  %v279 = vsel %vm88, %v79, 0
  %vm281 = vcmask 1043456
  %v283 = vsel %vm281, %v80, 0
  %285 = vmatprep.subr.mxu0 0.0
  %286 = vmatpush1.msra.mxu0 %v283
  %287 = vmatprep.subr.mxu0 0.0
  %288 = vmatpush1.msra.mxu0 0.0
  %289 = vmatprep.subr.mxu0 0.0
  %290 = vmatpush1.msra.mxu0 0.0
  %291 = vmatprep.subr.mxu0 0.0
  %292 = vmatpush1.msra.mxu0 0.0
  %293 = vmatprep.subr.mxu0 0.0
  %294 = vmatpush1.msra.mxu0 0.0
  %295 = vmatprep.subr.mxu0 0.0
  %296 = vmatpush1.msra.mxu0 0.0
  %297 = vmatprep.subr.mxu0 0.0
  %298 = vmatpush1.msra.mxu0 0.0
  %299 = vmatprep.subr.mxu0 0.0
  %300 = vmatpush1.msra.mxu0 0.0
  %301 = vmatprep.subr.mxu0 0.0
  %302 = vmatpush1.msra.mxu0 0.0
  %303 = vmatprep.subr.mxu0 0.0
  %304 = vmatpush1.msra.mxu0 0.0
  %305 = vmatprep.subr.mxu0 0.0
  %306 = vmatpush1.msra.mxu0 0.0
  %307 = vmatprep.subr.mxu0 0.0
  %308 = vmatpush1.msra.mxu0 0.0
  %309 = vmatprep.subr.mxu0 0.0
  %310 = vmatpush1.msra.mxu0 0.0
  %311 = vmatprep.subr.mxu0 0.0
  %312 = vmatpush1.msra.mxu0 0.0
  %313 = vmatprep.subr.mxu0 0.0
  %314 = vmatpush1.msra.mxu0 0.0
  %315 = vmatprep.subr.mxu0 0.0
  %316 = vmatpush1.msra.mxu0 0.0
  %317 = vmatprep.subr.mxu0 0.0
  %318 = vmatpush1.msra.mxu0 0.0
  %319 = vmatprep.subr.mxu0 0.0
  %320 = vmatpush1.msra.mxu0 0.0
  %321 = vmatprep.subr.mxu0 0.0
  %322 = vmatpush1.msra.mxu0 0.0
  %323 = vmatprep.subr.mxu0 0.0
  %324 = vmatpush1.msra.mxu0 0.0
  %325 = vmatprep.subr.mxu0 0.0
  %326 = vmatpush1.msra.mxu0 0.0
  %327 = vmatprep.subr.mxu0 0.0
  %328 = vmatpush1.msra.mxu0 0.0
  %329 = vmatprep.subr.mxu0 0.0
  %330 = vmatpush1.msra.mxu0 0.0
  %331 = vmatprep.subr.mxu0 0.0
  %332 = vmatpush1.msra.mxu0 0.0
  %333 = vmatprep.subr.mxu0 0.0
  %334 = vmatpush1.msra.mxu0 0.0
  %335 = vmatprep.subr.mxu0 0.0
  %336 = vmatpush1.msra.mxu0 0.0
  %337 = vmatprep.subr.mxu0 0.0
  %338 = vmatpush1.msra.mxu0 0.0
  %339 = vmatprep.subr.mxu0 0.0
  %340 = vmatpush1.msra.mxu0 0.0
  %341 = vmatprep.subr.mxu0 0.0
  %342 = vmatpush1.msra.mxu0 0.0
  %343 = vmatprep.subr.mxu0 0.0
  %344 = vmatpush1.msra.mxu0 0.0
  %345 = vmatprep.subr.mxu0 0.0
  %346 = vmatpush1.msra.mxu0 0.0
  %347 = vmatprep.subr.mxu0 0.0
  %348 = vmatpush1.msra.mxu0 0.0
  %349 = vmatprep.mubr.f32.mxu0 0.0
  %350 = vmatmul.mubr.f32.gmra.mrb[0].mxu0 %v90
  %v351 = vpop.f32.mrb[0].mxu0
  %v352 = vadd.f32 %v86, %v351
  %v353 = vpop.f32.mrb[0].mxu0
  %354 = vmatprep.mubr.f32.mxu0 0.0
  %355 = vmatmul.mubr.f32.gmra.mrb[0].mxu0 %v93
  %v356 = vpop.f32.mrb[0].mxu0
  %v357 = vadd.f32 %v86, %v356
  %v358 = vpop.f32.mrb[0].mxu0
  %359 = vmatprep.mubr.f32.mxu0 0.0
  %360 = vmatmul.mubr.f32.gmra.mrb[0].mxu0 %v96
  %v361 = vpop.f32.mrb[0].mxu0
  %v362 = vadd.f32 %v86, %v361
  %v363 = vpop.f32.mrb[0].mxu0
  %364 = vmatprep.mubr.f32.mxu0 0.0
  %365 = vmatmul.mubr.f32.gmra.mrb[0].mxu0 %v99
  %v366 = vpop.f32.mrb[0].mxu0
  %v367 = vadd.f32 %v86, %v366
  %v368 = vpop.f32.mrb[0].mxu0
  %369 = vmatprep.mubr.f32.mxu0 0.0
  %370 = vmatmul.mubr.f32.gmra.mrb[0].mxu0 %v102
  %v371 = vpop.f32.mrb[0].mxu0
  %v372 = vadd.f32 %v86, %v371
  %v373 = vpop.f32.mrb[0].mxu0
  %374 = vmatprep.mubr.f32.mxu0 0.0
  %375 = vmatmul.mubr.f32.gmra.mrb[0].mxu0 %v105
  %v376 = vpop.f32.mrb[0].mxu0
  %v377 = vadd.f32 %v86, %v376
  %v378 = vpop.f32.mrb[0].mxu0
  %379 = vmatprep.mubr.f32.mxu0 0.0
  %380 = vmatmul.mubr.f32.gmra.mrb[0].mxu0 %v108
  %v381 = vpop.f32.mrb[0].mxu0
  %v382 = vadd.f32 %v86, %v381
  %v383 = vpop.f32.mrb[0].mxu0
  %384 = vmatprep.mubr.f32.mxu0 0.0
  %385 = vmatmul.mubr.f32.gmra.mrb[0].mxu0 %v111
  %v386 = vpop.f32.mrb[0].mxu0
  %v387 = vadd.f32 %v86, %v386
  %v388 = vpop.f32.mrb[0].mxu0
  %389 = vmatprep.mubr.f32.mxu0 0.0
  %390 = vmatmul.mubr.f32.gmra.mrb[0].mxu0 %v114
  %v391 = vpop.f32.mrb[0].mxu0
  %v392 = vadd.f32 %v86, %v391
  %v393 = vpop.f32.mrb[0].mxu0
  %394 = vmatprep.mubr.f32.mxu0 0.0
  %395 = vmatmul.mubr.f32.gmra.mrb[0].mxu0 %v117
  %v396 = vpop.f32.mrb[0].mxu0
  %v397 = vadd.f32 %v86, %v396
  %v398 = vpop.f32.mrb[0].mxu0
  %399 = vmatprep.mubr.f32.mxu0 0.0
  %400 = vmatmul.mubr.f32.gmra.mrb[0].mxu0 %v120
  %v401 = vpop.f32.mrb[0].mxu0
  %v402 = vadd.f32 %v86, %v401
  %v403 = vpop.f32.mrb[0].mxu0
  %404 = vmatprep.mubr.f32.mxu0 0.0
  %405 = vmatmul.mubr.f32.gmra.mrb[0].mxu0 %v123
  %v406 = vpop.f32.mrb[0].mxu0
  %v407 = vadd.f32 %v86, %v406
  %v408 = vpop.f32.mrb[0].mxu0
  %409 = vmatprep.mubr.f32.mxu0 0.0
  %410 = vmatmul.mubr.f32.gmra.mrb[0].mxu0 %v126
  %v411 = vpop.f32.mrb[0].mxu0
  %v412 = vadd.f32 %v86, %v411
  %v413 = vpop.f32.mrb[0].mxu0
  %414 = vmatprep.mubr.f32.mxu0 0.0
  %415 = vmatmul.mubr.f32.gmra.mrb[0].mxu0 %v129
  %v416 = vpop.f32.mrb[0].mxu0
  %v417 = vadd.f32 %v86, %v416
  %v418 = vpop.f32.mrb[0].mxu0
  %419 = vmatprep.mubr.f32.mxu0 0.0
  %420 = vmatmul.mubr.f32.gmra.mrb[0].mxu0 %v132
  %v421 = vpop.f32.mrb[0].mxu0
  %v422 = vadd.f32 %v86, %v421
  %v423 = vpop.f32.mrb[0].mxu0
  %424 = vmatprep.mubr.f32.mxu0 0.0
  %425 = vmatmul.mubr.f32.gmra.mrb[0].mxu0 %v135
  %v426 = vpop.f32.mrb[0].mxu0
  %v427 = vadd.f32 %v86, %v426
  %v428 = vpop.f32.mrb[0].mxu0
  %429 = vmatprep.mubr.f32.mxu0 0.0
  %430 = vmatmul.mubr.f32.gmra.mrb[0].mxu0 %v138
  %v431 = vpop.f32.mrb[0].mxu0
  %v432 = vadd.f32 %v86, %v431
  %v433 = vpop.f32.mrb[0].mxu0
  %434 = vmatprep.mubr.f32.mxu0 0.0
  %435 = vmatmul.mubr.f32.gmra.mrb[0].mxu0 %v141
  %v436 = vpop.f32.mrb[0].mxu0
  %v437 = vadd.f32 %v86, %v436
  %v438 = vpop.f32.mrb[0].mxu0
  %439 = vmatprep.mubr.f32.mxu0 0.0
  %440 = vmatmul.mubr.f32.gmra.mrb[0].mxu0 %v144
  %v441 = vpop.f32.mrb[0].mxu0
  %v442 = vadd.f32 %v86, %v441
  %v443 = vpop.f32.mrb[0].mxu0
  %444 = vmatprep.mubr.f32.mxu0 0.0
  %445 = vmatmul.mubr.f32.gmra.mrb[0].mxu0 %v147
  %v446 = vpop.f32.mrb[0].mxu0
  %v447 = vadd.f32 %v86, %v446
  %v448 = vpop.f32.mrb[0].mxu0
  %449 = vmatprep.mubr.f32.mxu0 0.0
  %450 = vmatmul.mubr.f32.gmra.mrb[0].mxu0 %v150
  %v451 = vpop.f32.mrb[0].mxu0
  %v452 = vadd.f32 %v86, %v451
  %v453 = vpop.f32.mrb[0].mxu0
  %454 = vmatprep.mubr.f32.mxu0 0.0
  %455 = vmatmul.mubr.f32.gmra.mrb[0].mxu0 %v153
  %v456 = vpop.f32.mrb[0].mxu0
  %v457 = vadd.f32 %v86, %v456
  %v458 = vpop.f32.mrb[0].mxu0
  %459 = vmatprep.mubr.f32.mxu0 0.0
  %460 = vmatmul.mubr.f32.gmra.mrb[0].mxu0 %v156
  %v461 = vpop.f32.mrb[0].mxu0
  %v462 = vadd.f32 %v86, %v461
  %v463 = vpop.f32.mrb[0].mxu0
  %464 = vmatprep.mubr.f32.mxu0 0.0
  %465 = vmatmul.mubr.f32.gmra.mrb[0].mxu0 %v159
  %v466 = vpop.f32.mrb[0].mxu0
  %v467 = vadd.f32 %v86, %v466
  %v468 = vpop.f32.mrb[0].mxu0
  %469 = vmatprep.mubr.f32.mxu0 0.0
  %470 = vmatmul.mubr.f32.gmra.mrb[0].mxu0 %v162
  %v471 = vpop.f32.mrb[0].mxu0
  %v472 = vadd.f32 %v86, %v471
  %v473 = vpop.f32.mrb[0].mxu0
  %474 = vmatprep.mubr.f32.mxu0 0.0
  %475 = vmatmul.mubr.f32.gmra.mrb[0].mxu0 %v165
  %v476 = vpop.f32.mrb[0].mxu0
  %v477 = vadd.f32 %v86, %v476
  %v478 = vpop.f32.mrb[0].mxu0
  %479 = vmatprep.mubr.f32.mxu0 0.0
  %480 = vmatmul.mubr.f32.gmra.mrb[0].mxu0 %v168
  %v481 = vpop.f32.mrb[0].mxu0
  %v482 = vadd.f32 %v86, %v481
  %v483 = vpop.f32.mrb[0].mxu0
  %484 = vmatprep.mubr.f32.mxu0 0.0
  %485 = vmatmul.mubr.f32.gmra.mrb[0].mxu0 %v171
  %v486 = vpop.f32.mrb[0].mxu0
  %v487 = vadd.f32 %v86, %v486
  %v488 = vpop.f32.mrb[0].mxu0
  %489 = vmatprep.mubr.f32.mxu0 0.0
  %490 = vmatmul.mubr.f32.gmra.mrb[0].mxu0 %v174
  %v491 = vpop.f32.mrb[0].mxu0
  %v492 = vadd.f32 %v86, %v491
  %v493 = vpop.f32.mrb[0].mxu0
  %494 = vmatprep.mubr.f32.mxu0 0.0
  %495 = vmatmul.mubr.f32.gmra.mrb[0].mxu0 %v177
  %v496 = vpop.f32.mrb[0].mxu0
  %v497 = vadd.f32 %v86, %v496
  %v498 = vpop.f32.mrb[0].mxu0
  %499 = vmatprep.mubr.f32.mxu0 0.0
  %500 = vmatmul.mubr.f32.gmra.mrb[0].mxu0 %v180
  %v501 = vpop.f32.mrb[0].mxu0
  %v502 = vadd.f32 %v86, %v501
  %v503 = vpop.f32.mrb[0].mxu0
  %504 = vmatprep.mubr.f32.mxu0 0.0
  %505 = vmatmul.mubr.f32.gmra.mrb[0].mxu0 %v183
  %v506 = vpop.f32.mrb[0].mxu0
  %v507 = vadd.f32 %v86, %v506
  %v508 = vpop.f32.mrb[0].mxu0
  %509 = vmatprep.mubr.f32.mxu0 0.0
  %510 = vmatmul.mubr.f32.gmra.mrb[0].mxu0 %v186
  %v511 = vpop.f32.mrb[0].mxu0
  %v512 = vadd.f32 %v86, %v511
  %v513 = vpop.f32.mrb[0].mxu0
  %514 = vmatprep.mubr.f32.mxu0 0.0
  %515 = vmatmul.mubr.f32.gmra.mrb[0].mxu0 %v189
  %v516 = vpop.f32.mrb[0].mxu0
  %v517 = vadd.f32 %v86, %v516
  %v518 = vpop.f32.mrb[0].mxu0
  %519 = vmatprep.mubr.f32.mxu0 0.0
  %520 = vmatmul.mubr.f32.gmra.mrb[0].mxu0 %v192
  %v521 = vpop.f32.mrb[0].mxu0
  %v522 = vadd.f32 %v86, %v521
  %v523 = vpop.f32.mrb[0].mxu0
  %524 = vmatprep.mubr.f32.mxu0 0.0
  %525 = vmatmul.mubr.f32.gmra.mrb[0].mxu0 %v195
  %v526 = vpop.f32.mrb[0].mxu0
  %v527 = vadd.f32 %v86, %v526
  %v528 = vpop.f32.mrb[0].mxu0
  %529 = vmatprep.mubr.f32.mxu0 0.0
  %530 = vmatmul.mubr.f32.gmra.mrb[0].mxu0 %v198
  %v531 = vpop.f32.mrb[0].mxu0
  %v532 = vadd.f32 %v86, %v531
  %v533 = vpop.f32.mrb[0].mxu0
  %534 = vmatprep.mubr.f32.mxu0 0.0
  %535 = vmatmul.mubr.f32.gmra.mrb[0].mxu0 %v201
  %v536 = vpop.f32.mrb[0].mxu0
  %v537 = vadd.f32 %v86, %v536
  %v538 = vpop.f32.mrb[0].mxu0
  %539 = vmatprep.mubr.f32.mxu0 0.0
  %540 = vmatmul.mubr.f32.gmra.mrb[0].mxu0 %v204
  %v541 = vpop.f32.mrb[0].mxu0
  %v542 = vadd.f32 %v86, %v541
  %v543 = vpop.f32.mrb[0].mxu0
  %544 = vmatprep.mubr.f32.mxu0 0.0
  %545 = vmatmul.mubr.f32.gmra.mrb[0].mxu0 %v207
  %v546 = vpop.f32.mrb[0].mxu0
  %v547 = vadd.f32 %v86, %v546
  %v548 = vpop.f32.mrb[0].mxu0
  %549 = vmatprep.mubr.f32.mxu0 0.0
  %550 = vmatmul.mubr.f32.gmra.mrb[0].mxu0 %v210
  %v551 = vpop.f32.mrb[0].mxu0
  %v552 = vadd.f32 %v86, %v551
  %v553 = vpop.f32.mrb[0].mxu0
  %554 = vmatprep.mubr.f32.mxu0 0.0
  %555 = vmatmul.mubr.f32.gmra.mrb[0].mxu0 %v213
  %v556 = vpop.f32.mrb[0].mxu0
  %v557 = vadd.f32 %v86, %v556
  %v558 = vpop.f32.mrb[0].mxu0
  %559 = vmatprep.mubr.f32.mxu0 0.0
  %560 = vmatmul.mubr.f32.gmra.mrb[0].mxu0 %v216
  %v561 = vpop.f32.mrb[0].mxu0
  %v562 = vadd.f32 %v86, %v561
  %v563 = vpop.f32.mrb[0].mxu0
  %564 = vmatprep.mubr.f32.mxu0 0.0
  %565 = vmatmul.mubr.f32.gmra.mrb[0].mxu0 %v219
  %v566 = vpop.f32.mrb[0].mxu0
  %v567 = vadd.f32 %v86, %v566
  %v568 = vpop.f32.mrb[0].mxu0
  %569 = vmatprep.mubr.f32.mxu0 0.0
  %570 = vmatmul.mubr.f32.gmra.mrb[0].mxu0 %v222
  %v571 = vpop.f32.mrb[0].mxu0
  %v572 = vadd.f32 %v86, %v571
  %v573 = vpop.f32.mrb[0].mxu0
  %574 = vmatprep.mubr.f32.mxu0 0.0
  %575 = vmatmul.mubr.f32.gmra.mrb[0].mxu0 %v225
  %v576 = vpop.f32.mrb[0].mxu0
  %v577 = vadd.f32 %v86, %v576
  %v578 = vpop.f32.mrb[0].mxu0
  %579 = vmatprep.mubr.f32.mxu0 0.0
  %580 = vmatmul.mubr.f32.gmra.mrb[0].mxu0 %v228
  %v581 = vpop.f32.mrb[0].mxu0
  %v582 = vadd.f32 %v86, %v581
  %v583 = vpop.f32.mrb[0].mxu0
  %584 = vmatprep.mubr.f32.mxu0 0.0
  %585 = vmatmul.mubr.f32.gmra.mrb[0].mxu0 %v231
  %v586 = vpop.f32.mrb[0].mxu0
  %v587 = vadd.f32 %v86, %v586
  %v588 = vpop.f32.mrb[0].mxu0
  %589 = vmatprep.mubr.f32.mxu0 0.0
  %590 = vmatmul.mubr.f32.gmra.mrb[0].mxu0 %v234
  %v591 = vpop.f32.mrb[0].mxu0
  %v592 = vadd.f32 %v86, %v591
  %v593 = vpop.f32.mrb[0].mxu0
  %594 = vmatprep.mubr.f32.mxu0 0.0
  %595 = vmatmul.mubr.f32.gmra.mrb[0].mxu0 %v237
  %v596 = vpop.f32.mrb[0].mxu0
  %v597 = vadd.f32 %v86, %v596
  %v598 = vpop.f32.mrb[0].mxu0
  %599 = vmatprep.mubr.f32.mxu0 0.0
  %600 = vmatmul.mubr.f32.gmra.mrb[0].mxu0 %v240
  %v601 = vpop.f32.mrb[0].mxu0
  %v602 = vadd.f32 %v86, %v601
  %v603 = vpop.f32.mrb[0].mxu0
  %604 = vmatprep.mubr.f32.mxu0 0.0
  %605 = vmatmul.mubr.f32.gmra.mrb[0].mxu0 %v243
  %v606 = vpop.f32.mrb[0].mxu0
  %v607 = vadd.f32 %v86, %v606
  %v608 = vpop.f32.mrb[0].mxu0
  %609 = vmatprep.mubr.f32.mxu0 0.0
  %610 = vmatmul.mubr.f32.gmra.mrb[0].mxu0 %v246
  %v611 = vpop.f32.mrb[0].mxu0
  %v612 = vadd.f32 %v86, %v611
  %v613 = vpop.f32.mrb[0].mxu0
  %614 = vmatprep.mubr.f32.mxu0 0.0
  %615 = vmatmul.mubr.f32.gmra.mrb[0].mxu0 %v249
  %v616 = vpop.f32.mrb[0].mxu0
  %v617 = vadd.f32 %v86, %v616
  %v618 = vpop.f32.mrb[0].mxu0
  %619 = vmatprep.mubr.f32.mxu0 0.0
  %620 = vmatmul.mubr.f32.gmra.mrb[0].mxu0 %v252
  %v621 = vpop.f32.mrb[0].mxu0
  %v622 = vadd.f32 %v86, %v621
  %v623 = vpop.f32.mrb[0].mxu0
  %624 = vmatprep.mubr.f32.mxu0 0.0
  %625 = vmatmul.mubr.f32.gmra.mrb[0].mxu0 %v255
  %v626 = vpop.f32.mrb[0].mxu0
  %v627 = vadd.f32 %v86, %v626
  %v628 = vpop.f32.mrb[0].mxu0
  %629 = vmatprep.mubr.f32.mxu0 0.0
  %630 = vmatmul.mubr.f32.gmra.mrb[0].mxu0 %v258
  %v631 = vpop.f32.mrb[0].mxu0
  %v632 = vadd.f32 %v86, %v631
  %v633 = vpop.f32.mrb[0].mxu0
  %634 = vmatprep.mubr.f32.mxu0 0.0
  %635 = vmatmul.mubr.f32.gmra.mrb[0].mxu0 %v261
  %v636 = vpop.f32.mrb[0].mxu0
  %v637 = vadd.f32 %v86, %v636
  %v638 = vpop.f32.mrb[0].mxu0
  %639 = vmatprep.mubr.f32.mxu0 0.0
  %640 = vmatmul.mubr.f32.gmra.mrb[0].mxu0 %v264
  %v641 = vpop.f32.mrb[0].mxu0
  %v642 = vadd.f32 %v86, %v641
  %v643 = vpop.f32.mrb[0].mxu0
  %644 = vmatprep.mubr.f32.mxu0 0.0
  %645 = vmatmul.mubr.f32.gmra.mrb[0].mxu0 %v267
  %v646 = vpop.f32.mrb[0].mxu0
  %v647 = vadd.f32 %v86, %v646
  %v648 = vpop.f32.mrb[0].mxu0
  %649 = vmatprep.mubr.f32.mxu0 0.0
  %650 = vmatmul.mubr.f32.gmra.mrb[0].mxu0 %v270
  %v651 = vpop.f32.mrb[0].mxu0
  %v652 = vadd.f32 %v86, %v651
  %v653 = vpop.f32.mrb[0].mxu0
  %654 = vmatprep.mubr.f32.mxu0 0.0
  %655 = vmatmul.mubr.f32.gmra.mrb[0].mxu0 %v273
  %v656 = vpop.f32.mrb[0].mxu0
  %v657 = vadd.f32 %v86, %v656
  %v658 = vpop.f32.mrb[0].mxu0
  %659 = vmatprep.mubr.f32.mxu0 0.0
  %660 = vmatmul.mubr.f32.gmra.mrb[0].mxu0 %v276
  %v661 = vpop.f32.mrb[0].mxu0
  %v662 = vadd.f32 %v86, %v661
  %v663 = vpop.f32.mrb[0].mxu0
  %664 = vmatprep.mubr.f32.mxu0 0.0
  %665 = vmatmul.mubr.f32.gmra.mrb[0].mxu0 %v279
  %v666 = vpop.f32.mrb[0].mxu0
  %v667 = vadd.f32 %v86, %v666
  %v668 = vpop.f32.mrb[0].mxu0
  %669 = vdwg.mxu0
  %v670 = vsel %vm88, %v352, 0.0
  %v671 = vsel %vm88, %v357, 0.0
  %v672 = vadd.f32 %v670, %v671
  %v673 = vsel %vm88, %v362, 0.0
  %v674 = vadd.f32 %v672, %v673
  %v675 = vsel %vm88, %v367, 0.0
  %v676 = vadd.f32 %v674, %v675
  %v677 = vsel %vm88, %v372, 0.0
  %v678 = vadd.f32 %v676, %v677
  %v679 = vsel %vm88, %v377, 0.0
  %v680 = vadd.f32 %v678, %v679
  %v681 = vsel %vm88, %v382, 0.0
  %v682 = vadd.f32 %v680, %v681
  %v683 = vsel %vm88, %v387, 0.0
  %v684 = vadd.f32 %v682, %v683
  %v685 = vsel %vm88, %v392, 0.0
  %v686 = vadd.f32 %v684, %v685
  %v687 = vsel %vm88, %v397, 0.0
  %v688 = vadd.f32 %v686, %v687
  %v689 = vsel %vm88, %v402, 0.0
  %v690 = vadd.f32 %v688, %v689
  %v691 = vsel %vm88, %v407, 0.0
  %v692 = vadd.f32 %v690, %v691
  %v693 = vsel %vm88, %v412, 0.0
  %v694 = vadd.f32 %v692, %v693
  %v695 = vsel %vm88, %v417, 0.0
  %v696 = vadd.f32 %v694, %v695
  %v697 = vsel %vm88, %v422, 0.0
  %v698 = vadd.f32 %v696, %v697
  %v699 = vsel %vm88, %v427, 0.0
  %v700 = vadd.f32 %v698, %v699
  %v701 = vsel %vm88, %v432, 0.0
  %v702 = vadd.f32 %v700, %v701
  %v703 = vsel %vm88, %v437, 0.0
  %v704 = vadd.f32 %v702, %v703
  %v705 = vsel %vm88, %v442, 0.0
  %v706 = vadd.f32 %v704, %v705
  %v707 = vsel %vm88, %v447, 0.0
  %v708 = vadd.f32 %v706, %v707
  %v709 = vsel %vm88, %v452, 0.0
  %v710 = vadd.f32 %v708, %v709
  %v711 = vsel %vm88, %v457, 0.0
  %v712 = vadd.f32 %v710, %v711
  %v713 = vsel %vm88, %v462, 0.0
  %v714 = vadd.f32 %v712, %v713
  %v715 = vsel %vm88, %v467, 0.0
  %v716 = vadd.f32 %v714, %v715
  %v717 = vsel %vm88, %v472, 0.0
  %v718 = vadd.f32 %v716, %v717
  %v719 = vsel %vm88, %v477, 0.0
  %v720 = vadd.f32 %v718, %v719
  %v721 = vsel %vm88, %v482, 0.0
  %v722 = vadd.f32 %v720, %v721
  %v723 = vsel %vm88, %v487, 0.0
  %v724 = vadd.f32 %v722, %v723
  %v725 = vsel %vm88, %v492, 0.0
  %v726 = vadd.f32 %v724, %v725
  %v727 = vsel %vm88, %v497, 0.0
  %v728 = vadd.f32 %v726, %v727
  %v729 = vsel %vm88, %v502, 0.0
  %v730 = vadd.f32 %v728, %v729
  %v731 = vsel %vm88, %v507, 0.0
  %v732 = vadd.f32 %v730, %v731
  %v733 = vsel %vm88, %v512, 0.0
  %v734 = vadd.f32 %v732, %v733
  %v735 = vsel %vm88, %v517, 0.0
  %v736 = vadd.f32 %v734, %v735
  %v737 = vsel %vm88, %v522, 0.0
  %v738 = vadd.f32 %v736, %v737
  %v739 = vsel %vm88, %v527, 0.0
  %v740 = vadd.f32 %v738, %v739
  %v741 = vsel %vm88, %v532, 0.0
  %v742 = vadd.f32 %v740, %v741
  %v743 = vsel %vm88, %v537, 0.0
  %v744 = vadd.f32 %v742, %v743
  %v745 = vsel %vm88, %v542, 0.0
  %v746 = vadd.f32 %v744, %v745
  %v747 = vsel %vm88, %v547, 0.0
  %v748 = vadd.f32 %v746, %v747
  %v749 = vsel %vm88, %v552, 0.0
  %v750 = vadd.f32 %v748, %v749
  %v751 = vsel %vm88, %v557, 0.0
  %v752 = vadd.f32 %v750, %v751
  %v753 = vsel %vm88, %v562, 0.0
  %v754 = vadd.f32 %v752, %v753
  %v755 = vsel %vm88, %v567, 0.0
  %v756 = vadd.f32 %v754, %v755
  %v757 = vsel %vm88, %v572, 0.0
  %v758 = vadd.f32 %v756, %v757
  %v759 = vsel %vm88, %v577, 0.0
  %v760 = vadd.f32 %v758, %v759
  %v761 = vsel %vm88, %v582, 0.0
  %v762 = vadd.f32 %v760, %v761
  %v763 = vsel %vm88, %v587, 0.0
  %v764 = vadd.f32 %v762, %v763
  %v765 = vsel %vm88, %v592, 0.0
  %v766 = vadd.f32 %v764, %v765
  %v767 = vsel %vm88, %v597, 0.0
  %v768 = vadd.f32 %v766, %v767
  %v769 = vsel %vm88, %v602, 0.0
  %v770 = vadd.f32 %v768, %v769
  %v771 = vsel %vm88, %v607, 0.0
  %v772 = vadd.f32 %v770, %v771
  %v773 = vsel %vm88, %v612, 0.0
  %v774 = vadd.f32 %v772, %v773
  %v775 = vsel %vm88, %v617, 0.0
  %v776 = vadd.f32 %v774, %v775
  %v777 = vsel %vm88, %v622, 0.0
  %v778 = vadd.f32 %v776, %v777
  %v779 = vsel %vm88, %v627, 0.0
  %v780 = vadd.f32 %v778, %v779
  %v781 = vsel %vm88, %v632, 0.0
  %v782 = vadd.f32 %v780, %v781
  %v783 = vsel %vm88, %v637, 0.0
  %v784 = vadd.f32 %v782, %v783
  %v785 = vsel %vm88, %v642, 0.0
  %v786 = vadd.f32 %v784, %v785
  %v787 = vsel %vm88, %v647, 0.0
  %v788 = vadd.f32 %v786, %v787
  %v789 = vsel %vm88, %v652, 0.0
  %v790 = vadd.f32 %v788, %v789
  %v791 = vsel %vm88, %v657, 0.0
  %v792 = vadd.f32 %v790, %v791
  %v793 = vsel %vm88, %v662, 0.0
  %v794 = vadd.f32 %v792, %v793
  %v795 = vsel %vm88, %v667, 0.0
  %v796 = vadd.f32 %v794, %v795
  %v797 = vrot.slane %v796, 4
  %v798 = vadd.f32 %v796, %v797
  %v799 = vrot.slane %v798, 2
  %v800 = vadd.f32 %v798, %v799
  %v801 = vrot.slane %v800, 1
  %v802 = vadd.f32 %v800, %v801
  %v803 = vmul.f32 %v352, %v352
  %v804 = vmul.f32 %v357, %v357
  %v805 = vmul.f32 %v362, %v362
  %v806 = vmul.f32 %v367, %v367
  %v807 = vmul.f32 %v372, %v372
  %v808 = vmul.f32 %v377, %v377
  %v809 = vmul.f32 %v382, %v382
  %v810 = vmul.f32 %v387, %v387
  %v811 = vmul.f32 %v392, %v392
  %v812 = vmul.f32 %v397, %v397
  %v813 = vmul.f32 %v402, %v402
  %v814 = vmul.f32 %v407, %v407
  %v815 = vmul.f32 %v412, %v412
  %v816 = vmul.f32 %v417, %v417
  %v817 = vmul.f32 %v422, %v422
  %v818 = vmul.f32 %v427, %v427
  %v819 = vmul.f32 %v432, %v432
  %v820 = vmul.f32 %v437, %v437
  %v821 = vmul.f32 %v442, %v442
  %v822 = vmul.f32 %v447, %v447
  %v823 = vmul.f32 %v452, %v452
  %v824 = vmul.f32 %v457, %v457
  %v825 = vmul.f32 %v462, %v462
  %v826 = vmul.f32 %v467, %v467
  %v827 = vmul.f32 %v472, %v472
  %v828 = vmul.f32 %v477, %v477
  %v829 = vmul.f32 %v482, %v482
  %v830 = vmul.f32 %v487, %v487
  %v831 = vmul.f32 %v492, %v492
  %v832 = vmul.f32 %v497, %v497
  %v833 = vmul.f32 %v502, %v502
  %v834 = vmul.f32 %v507, %v507
  %v835 = vmul.f32 %v512, %v512
  %v836 = vmul.f32 %v517, %v517
  %v837 = vmul.f32 %v522, %v522
  %v838 = vmul.f32 %v527, %v527
  %v839 = vmul.f32 %v532, %v532
  %v840 = vmul.f32 %v537, %v537
  %v841 = vmul.f32 %v542, %v542
  %v842 = vmul.f32 %v547, %v547
  %v843 = vmul.f32 %v552, %v552
  %v844 = vmul.f32 %v557, %v557
  %v845 = vmul.f32 %v562, %v562
  %v846 = vmul.f32 %v567, %v567
  %v847 = vmul.f32 %v572, %v572
  %v848 = vmul.f32 %v577, %v577
  %v849 = vmul.f32 %v582, %v582
  %v850 = vmul.f32 %v587, %v587
  %v851 = vmul.f32 %v592, %v592
  %v852 = vmul.f32 %v597, %v597
  %v853 = vmul.f32 %v602, %v602
  %v854 = vmul.f32 %v607, %v607
  %v855 = vmul.f32 %v612, %v612
  %v856 = vmul.f32 %v617, %v617
  %v857 = vmul.f32 %v622, %v622
  %v858 = vmul.f32 %v627, %v627
  %v859 = vmul.f32 %v632, %v632
  %v860 = vmul.f32 %v637, %v637
  %v861 = vmul.f32 %v642, %v642
  %v862 = vmul.f32 %v647, %v647
  %v863 = vmul.f32 %v652, %v652
  %v864 = vmul.f32 %v657, %v657
  %v865 = vmul.f32 %v662, %v662
  %v866 = vmul.f32 %v667, %v667
  %v867 = vsel %vm88, %v803, 0.0
  %v868 = vsel %vm88, %v804, 0.0
  %v869 = vadd.f32 %v867, %v868
  %v870 = vsel %vm88, %v805, 0.0
  %v871 = vadd.f32 %v869, %v870
  %v872 = vsel %vm88, %v806, 0.0
  %v873 = vadd.f32 %v871, %v872
  %v874 = vsel %vm88, %v807, 0.0
  %v875 = vadd.f32 %v873, %v874
  %v876 = vsel %vm88, %v808, 0.0
  %v877 = vadd.f32 %v875, %v876
  %v878 = vsel %vm88, %v809, 0.0
  %v879 = vadd.f32 %v877, %v878
  %v880 = vsel %vm88, %v810, 0.0
  %v881 = vadd.f32 %v879, %v880
  %v882 = vsel %vm88, %v811, 0.0
  %v883 = vadd.f32 %v881, %v882
  %v884 = vsel %vm88, %v812, 0.0
  %v885 = vadd.f32 %v883, %v884
  %v886 = vsel %vm88, %v813, 0.0
  %v887 = vadd.f32 %v885, %v886
  %v888 = vsel %vm88, %v814, 0.0
  %v889 = vadd.f32 %v887, %v888
  %v890 = vsel %vm88, %v815, 0.0
  %v891 = vadd.f32 %v889, %v890
  %v892 = vsel %vm88, %v816, 0.0
  %v893 = vadd.f32 %v891, %v892
  %v894 = vsel %vm88, %v817, 0.0
  %v895 = vadd.f32 %v893, %v894
  %v896 = vsel %vm88, %v818, 0.0
  %v897 = vadd.f32 %v895, %v896
  %v898 = vsel %vm88, %v819, 0.0
  %v899 = vadd.f32 %v897, %v898
  %v900 = vsel %vm88, %v820, 0.0
  %v901 = vadd.f32 %v899, %v900
  %v902 = vsel %vm88, %v821, 0.0
  %v903 = vadd.f32 %v901, %v902
  %v904 = vsel %vm88, %v822, 0.0
  %v905 = vadd.f32 %v903, %v904
  %v906 = vsel %vm88, %v823, 0.0
  %v907 = vadd.f32 %v905, %v906
  %v908 = vsel %vm88, %v824, 0.0
  %v909 = vadd.f32 %v907, %v908
  %v910 = vsel %vm88, %v825, 0.0
  %v911 = vadd.f32 %v909, %v910
  %v912 = vsel %vm88, %v826, 0.0
  %v913 = vadd.f32 %v911, %v912
  %v914 = vsel %vm88, %v827, 0.0
  %v915 = vadd.f32 %v913, %v914
  %v916 = vsel %vm88, %v828, 0.0
  %v917 = vadd.f32 %v915, %v916
  %v918 = vsel %vm88, %v829, 0.0
  %v919 = vadd.f32 %v917, %v918
  %v920 = vsel %vm88, %v830, 0.0
  %v921 = vadd.f32 %v919, %v920
  %v922 = vsel %vm88, %v831, 0.0
  %v923 = vadd.f32 %v921, %v922
  %v924 = vsel %vm88, %v832, 0.0
  %v925 = vadd.f32 %v923, %v924
  %v926 = vsel %vm88, %v833, 0.0
  %v927 = vadd.f32 %v925, %v926
  %v928 = vsel %vm88, %v834, 0.0
  %v929 = vadd.f32 %v927, %v928
  %v930 = vsel %vm88, %v835, 0.0
  %v931 = vadd.f32 %v929, %v930
  %v932 = vsel %vm88, %v836, 0.0
  %v933 = vadd.f32 %v931, %v932
  %v934 = vsel %vm88, %v837, 0.0
  %v935 = vadd.f32 %v933, %v934
  %v936 = vsel %vm88, %v838, 0.0
  %v937 = vadd.f32 %v935, %v936
  %v938 = vsel %vm88, %v839, 0.0
  %v939 = vadd.f32 %v937, %v938
  %v940 = vsel %vm88, %v840, 0.0
  %v941 = vadd.f32 %v939, %v940
  %v942 = vsel %vm88, %v841, 0.0
  %v943 = vadd.f32 %v941, %v942
  %v944 = vsel %vm88, %v842, 0.0
  %v945 = vadd.f32 %v943, %v944
  %v946 = vsel %vm88, %v843, 0.0
  %v947 = vadd.f32 %v945, %v946
  %v948 = vsel %vm88, %v844, 0.0
  %v949 = vadd.f32 %v947, %v948
  %v950 = vsel %vm88, %v845, 0.0
  %v951 = vadd.f32 %v949, %v950
  %v952 = vsel %vm88, %v846, 0.0
  %v953 = vadd.f32 %v951, %v952
  %v954 = vsel %vm88, %v847, 0.0
  %v955 = vadd.f32 %v953, %v954
  %v956 = vsel %vm88, %v848, 0.0
  %v957 = vadd.f32 %v955, %v956
  %v958 = vsel %vm88, %v849, 0.0
  %v959 = vadd.f32 %v957, %v958
  %v960 = vsel %vm88, %v850, 0.0
  %v961 = vadd.f32 %v959, %v960
  %v962 = vsel %vm88, %v851, 0.0
  %v963 = vadd.f32 %v961, %v962
  %v964 = vsel %vm88, %v852, 0.0
  %v965 = vadd.f32 %v963, %v964
  %v966 = vsel %vm88, %v853, 0.0
  %v967 = vadd.f32 %v965, %v966
  %v968 = vsel %vm88, %v854, 0.0
  %v969 = vadd.f32 %v967, %v968
  %v970 = vsel %vm88, %v855, 0.0
  %v971 = vadd.f32 %v969, %v970
  %v972 = vsel %vm88, %v856, 0.0
  %v973 = vadd.f32 %v971, %v972
  %v974 = vsel %vm88, %v857, 0.0
  %v975 = vadd.f32 %v973, %v974
  %v976 = vsel %vm88, %v858, 0.0
  %v977 = vadd.f32 %v975, %v976
  %v978 = vsel %vm88, %v859, 0.0
  %v979 = vadd.f32 %v977, %v978
  %v980 = vsel %vm88, %v860, 0.0
  %v981 = vadd.f32 %v979, %v980
  %v982 = vsel %vm88, %v861, 0.0
  %v983 = vadd.f32 %v981, %v982
  %v984 = vsel %vm88, %v862, 0.0
  %v985 = vadd.f32 %v983, %v984
  %v986 = vsel %vm88, %v863, 0.0
  %v987 = vadd.f32 %v985, %v986
  %v988 = vsel %vm88, %v864, 0.0
  %v989 = vadd.f32 %v987, %v988
  %v990 = vsel %vm88, %v865, 0.0
  %v991 = vadd.f32 %v989, %v990
  %v992 = vsel %vm88, %v866, 0.0
  %v993 = vadd.f32 %v991, %v992
  %v994 = vrot.slane %v993, 4
  %v995 = vadd.f32 %v993, %v994
  %v996 = vrot.slane %v995, 2
  %v997 = vadd.f32 %v995, %v996
  %v998 = vrot.slane %v997, 1
  %v999 = vadd.f32 %v997, %v998
  %1000 = vst.msk [vmem:[%s3] sm:$0xff] %vm88, %v802
  %1001 = vst.msk [vmem:[%s4] sm:$0xff] %vm88, %v999
  // Predicated region
  $region14: #{_lambda_.3} parent=0 // pred_check
    _
  $region15: #{_lambda_.3} parent=0 // pred_check_branch
    %1003 = sbr.rel (0) target = $region17
  $region16: #{_lambda_.3} parent=0 // pred_region
    _
  $region17: #{_lambda_.3} parent=0 // pred_fallthru
    _
  // Predicated region
  $region18: #{_lambda_.3} parent=0 // pred_check
    _
  $region19: #{_lambda_.3} parent=0 // pred_check_branch
    %1005 = sbr.rel (0) target = $region21
  $region20: #{_lambda_.3} parent=0 // pred_region
    _
  $region21: #{_lambda_.3} parent=0 // pred_fallthru
    _
  // Predicated region
  $region22: #{_lambda_.3} parent=0 // pred_check
    _
  $region23: #{_lambda_.3} parent=0 // pred_check_branch
    %1007 = sbr.rel (0) target = $region25
  $region24: #{_lambda_.3} parent=0 // pred_region
    _
  $region25: #{_lambda_.3} parent=0 // pred_fallthru
    _
  // Predicated region
  $region26: #{_lambda_.3} parent=0 // pred_check
    _
  $region27: #{_lambda_.3} parent=0 // pred_check_branch
    %1009 = sbr.rel (0) target = $region29
  $region28: #{_lambda_.3} parent=0 // pred_region
    _
  $region29: #{_lambda_.3} parent=0 // pred_fallthru
    _

// kernel: _lambda_.4
$region0: #{_lambda_.4}
  #allocation0 [shape = 'u32[]', space=smem, size = 0x4, offset = 0x4, fixed_abs, tag = 'smem constant byte address 0x4 - core index']
  #allocation1 [shape = 'u32[144,128]{1,0:T(1,128)}', space=vmem, size = 0x12000, scoped, tag = 'internal scratch']
  %s0 = inlined_call_operand.vmem [shape: f32[128,8], index: 0, kind: input, shape index: {}]
  %s1 = inlined_call_operand.vmem [shape: f32[128,8], index: 1, kind: input, shape index: {}]
  %s2 = inlined_call_operand.vmem [shape: f32[4,4], index: 2, kind: input, shape index: {}]
  %s3 = inlined_call_operand.vmem [shape: f32[1,4], index: 3, kind: input, shape index: {}]
  %s4 = inlined_call_operand.vmem [shape: f32[4,8], index: 4, kind: input, shape index: {}]
  %s5 = inlined_call_operand.vmem [shape: f32[1,8], index: 5, kind: input, shape index: {}]
  %s6 = inlined_call_operand.vmem [shape: f32[1,8], index: 6, kind: input, shape index: {}]
  %s7 = inlined_call_operand.vmem [shape: f32[128,8], index: 7, kind: output, shape index: {0}]
  %s8 = inlined_call_operand.vmem [shape: f32[8,8], index: 8, kind: output, shape index: {1}]
  %s9 = inlined_call_operand.vmem [shape: f32[8,8], index: 9, kind: output, shape index: {2}]
  %10 = xla_tuple %s7, %s8, %s9
  %s11 = sld [smem:[#allocation0]]
  $region54: #{_lambda_.4} parent=0
    _
  %s13 = ssub.s32 1, %s11
  %s14 = scalar_select 0, %s13, %s11
  // Predicated region
  $region2: #{_lambda_.4} parent=0 // pred_check
    _
  $region3: #{_lambda_.4} parent=0 // pred_check_branch
    %16 = sbr.rel (0) target = $region5
  $region4: #{_lambda_.4} parent=0 // pred_region
    _
  $region5: #{_lambda_.4} parent=0 // pred_fallthru
    _
  // Predicated region
  $region6: #{_lambda_.4} parent=0 // pred_check
    _
  $region7: #{_lambda_.4} parent=0 // pred_check_branch
    %18 = sbr.rel (0) target = $region9
  $region8: #{_lambda_.4} parent=0 // pred_region
    _
  $region9: #{_lambda_.4} parent=0 // pred_fallthru
    _
  // Predicated region
  $region10: #{_lambda_.4} parent=0 // pred_check
    _
  $region11: #{_lambda_.4} parent=0 // pred_check_branch
    %20 = sbr.rel (0) target = $region13
  $region12: #{_lambda_.4} parent=0 // pred_region
    _
  $region13: #{_lambda_.4} parent=0 // pred_fallthru
    _
  // Predicated region
  $region14: #{_lambda_.4} parent=0 // pred_check
    _
  $region15: #{_lambda_.4} parent=0 // pred_check_branch
    %22 = sbr.rel (0) target = $region17
  $region16: #{_lambda_.4} parent=0 // pred_region
    _
  $region17: #{_lambda_.4} parent=0 // pred_fallthru
    _
  // Predicated region
  $region18: #{_lambda_.4} parent=0 // pred_check
    _
  $region19: #{_lambda_.4} parent=0 // pred_check_branch
    %24 = sbr.rel (0) target = $region21
  $region20: #{_lambda_.4} parent=0 // pred_region
    _
  $region21: #{_lambda_.4} parent=0 // pred_fallthru
    _
  // Predicated region
  $region22: #{_lambda_.4} parent=0 // pred_check
    _
  $region23: #{_lambda_.4} parent=0 // pred_check_branch
    %26 = sbr.rel (0) target = $region25
  $region24: #{_lambda_.4} parent=0 // pred_region
    _
  $region25: #{_lambda_.4} parent=0 // pred_fallthru
    _
  // Predicated region
  $region26: #{_lambda_.4} parent=0 // pred_check
    _
  $region27: #{_lambda_.4} parent=0 // pred_check_branch
    %28 = sbr.rel (0) target = $region29
  $region28: #{_lambda_.4} parent=0 // pred_region
    _
  $region29: #{_lambda_.4} parent=0 // pred_fallthru
    _
  %v29 = vld [vmem:[%s2] sm:$0xf]
  %v30 = vld [vmem:[%s4] sm:$0xf]
  %v31 = vld [vmem:[%s3] sm:$0x1]
  %v32 = vld [vmem:[%s5] sm:$0x1]
  %v33 = vld [vmem:[%s0] sm:$0xff]
  %v34 = vld [vmem:[%s0 + $0x8] sm:$0xff]
  %v35 = vld [vmem:[%s0 + $0x10] sm:$0xff]
  %v36 = vld [vmem:[%s0 + $0x18] sm:$0xff]
  %v37 = vld [vmem:[%s0 + $0x20] sm:$0xff]
  %v38 = vld [vmem:[%s0 + $0x28] sm:$0xff]
  %v39 = vld [vmem:[%s0 + $0x30] sm:$0xff]
  %v40 = vld [vmem:[%s0 + $0x38] sm:$0xff]
  %v41 = vld [vmem:[%s0 + $0x40] sm:$0xff]
  %v42 = vld [vmem:[%s0 + $0x48] sm:$0xff]
  %v43 = vld [vmem:[%s0 + $0x50] sm:$0xff]
  %v44 = vld [vmem:[%s0 + $0x58] sm:$0xff]
  %v45 = vld [vmem:[%s0 + $0x60] sm:$0xff]
  %v46 = vld [vmem:[%s0 + $0x68] sm:$0xff]
  %v47 = vld [vmem:[%s0 + $0x70] sm:$0xff]
  %v48 = vld [vmem:[%s0 + $0x78] sm:$0xff]
  %v49 = vld [vmem:[%s1] sm:$0xff]
  %v50 = vld [vmem:[%s1 + $0x8] sm:$0xff]
  %v51 = vld [vmem:[%s1 + $0x10] sm:$0xff]
  %v52 = vld [vmem:[%s1 + $0x18] sm:$0xff]
  %v53 = vld [vmem:[%s1 + $0x20] sm:$0xff]
  %v54 = vld [vmem:[%s1 + $0x28] sm:$0xff]
  %v55 = vld [vmem:[%s1 + $0x30] sm:$0xff]
  %v56 = vld [vmem:[%s1 + $0x38] sm:$0xff]
  %v57 = vld [vmem:[%s1 + $0x40] sm:$0xff]
  %v58 = vld [vmem:[%s1 + $0x48] sm:$0xff]
  %v59 = vld [vmem:[%s1 + $0x50] sm:$0xff]
  %v60 = vld [vmem:[%s1 + $0x58] sm:$0xff]
  %v61 = vld [vmem:[%s1 + $0x60] sm:$0xff]
  %v62 = vld [vmem:[%s1 + $0x68] sm:$0xff]
  %v63 = vld [vmem:[%s1 + $0x70] sm:$0xff]
  %v64 = vld [vmem:[%s1 + $0x78] sm:$0xff]
  %v66 = vlaneseq
  %v67 = vshrl.u32 %v66, 7
  %v68 = vsub.s32 0, %v67
  %v69 = vrot.slane %v31, %v68
  %vm71 = vcmask 31744
  %v73 = vsel %vm71, %v33, 0
  %v76 = vsel %vm71, %v34, 0
  %v79 = vsel %vm71, %v35, 0
  %v82 = vsel %vm71, %v36, 0
  %v85 = vsel %vm71, %v37, 0
  %v88 = vsel %vm71, %v38, 0
  %v91 = vsel %vm71, %v39, 0
  %v94 = vsel %vm71, %v40, 0
  %v97 = vsel %vm71, %v41, 0
  %v100 = vsel %vm71, %v42, 0
  %v103 = vsel %vm71, %v43, 0
  %v106 = vsel %vm71, %v44, 0
  %v109 = vsel %vm71, %v45, 0
  %v112 = vsel %vm71, %v46, 0
  %v115 = vsel %vm71, %v47, 0
  %v118 = vsel %vm71, %v48, 0
  %vm120 = vcmask 1043456
  %v122 = vsel %vm120, %v29, 0
  %124 = vmatprep.subr.mxu0 0.0
  %125 = vmatpush1.msra.mxu0 %v122
  %126 = vmatprep.subr.mxu0 0.0
  %127 = vmatpush1.msra.mxu0 0.0
  %128 = vmatprep.subr.mxu0 0.0
  %129 = vmatpush1.msra.mxu0 0.0
  %130 = vmatprep.subr.mxu0 0.0
  %131 = vmatpush1.msra.mxu0 0.0
  %132 = vmatprep.subr.mxu0 0.0
  %133 = vmatpush1.msra.mxu0 0.0
  %134 = vmatprep.subr.mxu0 0.0
  %135 = vmatpush1.msra.mxu0 0.0
  %136 = vmatprep.subr.mxu0 0.0
  %137 = vmatpush1.msra.mxu0 0.0
  %138 = vmatprep.subr.mxu0 0.0
  %139 = vmatpush1.msra.mxu0 0.0
  %140 = vmatprep.subr.mxu0 0.0
  %141 = vmatpush1.msra.mxu0 0.0
  %142 = vmatprep.subr.mxu0 0.0
  %143 = vmatpush1.msra.mxu0 0.0
  %144 = vmatprep.subr.mxu0 0.0
  %145 = vmatpush1.msra.mxu0 0.0
  %146 = vmatprep.subr.mxu0 0.0
  %147 = vmatpush1.msra.mxu0 0.0
  %148 = vmatprep.subr.mxu0 0.0
  %149 = vmatpush1.msra.mxu0 0.0
  %150 = vmatprep.subr.mxu0 0.0
  %151 = vmatpush1.msra.mxu0 0.0
  %152 = vmatprep.subr.mxu0 0.0
  %153 = vmatpush1.msra.mxu0 0.0
  %154 = vmatprep.subr.mxu0 0.0
  %155 = vmatpush1.msra.mxu0 0.0
  %156 = vmatprep.subr.mxu0 0.0
  %157 = vmatpush1.msra.mxu0 0.0
  %158 = vmatprep.subr.mxu0 0.0
  %159 = vmatpush1.msra.mxu0 0.0
  %160 = vmatprep.subr.mxu0 0.0
  %161 = vmatpush1.msra.mxu0 0.0
  %162 = vmatprep.subr.mxu0 0.0
  %163 = vmatpush1.msra.mxu0 0.0
  %164 = vmatprep.subr.mxu0 0.0
  %165 = vmatpush1.msra.mxu0 0.0
  %166 = vmatprep.subr.mxu0 0.0
  %167 = vmatpush1.msra.mxu0 0.0
  %168 = vmatprep.subr.mxu0 0.0
  %169 = vmatpush1.msra.mxu0 0.0
  %170 = vmatprep.subr.mxu0 0.0
  %171 = vmatpush1.msra.mxu0 0.0
  %172 = vmatprep.subr.mxu0 0.0
  %173 = vmatpush1.msra.mxu0 0.0
  %174 = vmatprep.subr.mxu0 0.0
  %175 = vmatpush1.msra.mxu0 0.0
  %176 = vmatprep.subr.mxu0 0.0
  %177 = vmatpush1.msra.mxu0 0.0
  %178 = vmatprep.subr.mxu0 0.0
  %179 = vmatpush1.msra.mxu0 0.0
  %180 = vmatprep.subr.mxu0 0.0
  %181 = vmatpush1.msra.mxu0 0.0
  %182 = vmatprep.subr.mxu0 0.0
  %183 = vmatpush1.msra.mxu0 0.0
  %184 = vmatprep.subr.mxu0 0.0
  %185 = vmatpush1.msra.mxu0 0.0
  %186 = vmatprep.subr.mxu0 0.0
  %187 = vmatpush1.msra.mxu0 0.0
  %188 = vmatprep.mubr.f32.mxu0 0.0
  %189 = vmatmul.mubr.f32.gmra.mrb[0].mxu0 %v73
  %v190 = vpop.f32.mrb[0].mxu0
  %v191 = vadd.f32 %v69, %v190
  %v192 = vpop.f32.mrb[0].mxu0
  %193 = vmatprep.mubr.f32.mxu0 0.0
  %194 = vmatmul.mubr.f32.gmra.mrb[0].mxu0 %v76
  %v195 = vpop.f32.mrb[0].mxu0
  %v196 = vadd.f32 %v69, %v195
  %v197 = vpop.f32.mrb[0].mxu0
  %198 = vmatprep.mubr.f32.mxu0 0.0
  %199 = vmatmul.mubr.f32.gmra.mrb[0].mxu0 %v79
  %v200 = vpop.f32.mrb[0].mxu0
  %v201 = vadd.f32 %v69, %v200
  %v202 = vpop.f32.mrb[0].mxu0
  %203 = vmatprep.mubr.f32.mxu0 0.0
  %204 = vmatmul.mubr.f32.gmra.mrb[0].mxu0 %v82
  %v205 = vpop.f32.mrb[0].mxu0
  %v206 = vadd.f32 %v69, %v205
  %v207 = vpop.f32.mrb[0].mxu0
  %208 = vmatprep.mubr.f32.mxu0 0.0
  %209 = vmatmul.mubr.f32.gmra.mrb[0].mxu0 %v85
  %v210 = vpop.f32.mrb[0].mxu0
  %v211 = vadd.f32 %v69, %v210
  %v212 = vpop.f32.mrb[0].mxu0
  %213 = vmatprep.mubr.f32.mxu0 0.0
  %214 = vmatmul.mubr.f32.gmra.mrb[0].mxu0 %v88
  %v215 = vpop.f32.mrb[0].mxu0
  %v216 = vadd.f32 %v69, %v215
  %v217 = vpop.f32.mrb[0].mxu0
  %218 = vmatprep.mubr.f32.mxu0 0.0
  %219 = vmatmul.mubr.f32.gmra.mrb[0].mxu0 %v91
  %v220 = vpop.f32.mrb[0].mxu0
  %v221 = vadd.f32 %v69, %v220
  %v222 = vpop.f32.mrb[0].mxu0
  %223 = vmatprep.mubr.f32.mxu0 0.0
  %224 = vmatmul.mubr.f32.gmra.mrb[0].mxu0 %v94
  %v225 = vpop.f32.mrb[0].mxu0
  %v226 = vadd.f32 %v69, %v225
  %v227 = vpop.f32.mrb[0].mxu0
  %228 = vmatprep.mubr.f32.mxu0 0.0
  %229 = vmatmul.mubr.f32.gmra.mrb[0].mxu0 %v97
  %v230 = vpop.f32.mrb[0].mxu0
  %v231 = vadd.f32 %v69, %v230
  %v232 = vpop.f32.mrb[0].mxu0
  %233 = vmatprep.mubr.f32.mxu0 0.0
  %234 = vmatmul.mubr.f32.gmra.mrb[0].mxu0 %v100
  %v235 = vpop.f32.mrb[0].mxu0
  %v236 = vadd.f32 %v69, %v235
  %v237 = vpop.f32.mrb[0].mxu0
  %238 = vmatprep.mubr.f32.mxu0 0.0
  %239 = vmatmul.mubr.f32.gmra.mrb[0].mxu0 %v103
  %v240 = vpop.f32.mrb[0].mxu0
  %v241 = vadd.f32 %v69, %v240
  %v242 = vpop.f32.mrb[0].mxu0
  %243 = vmatprep.mubr.f32.mxu0 0.0
  %244 = vmatmul.mubr.f32.gmra.mrb[0].mxu0 %v106
  %v245 = vpop.f32.mrb[0].mxu0
  %v246 = vadd.f32 %v69, %v245
  %v247 = vpop.f32.mrb[0].mxu0
  %248 = vmatprep.mubr.f32.mxu0 0.0
  %249 = vmatmul.mubr.f32.gmra.mrb[0].mxu0 %v109
  %v250 = vpop.f32.mrb[0].mxu0
  %v251 = vadd.f32 %v69, %v250
  %v252 = vpop.f32.mrb[0].mxu0
  %253 = vmatprep.mubr.f32.mxu0 0.0
  %254 = vmatmul.mubr.f32.gmra.mrb[0].mxu0 %v112
  %v255 = vpop.f32.mrb[0].mxu0
  %v256 = vadd.f32 %v69, %v255
  %v257 = vpop.f32.mrb[0].mxu0
  %258 = vmatprep.mubr.f32.mxu0 0.0
  %259 = vmatmul.mubr.f32.gmra.mrb[0].mxu0 %v115
  %v260 = vpop.f32.mrb[0].mxu0
  %v261 = vadd.f32 %v69, %v260
  %v262 = vpop.f32.mrb[0].mxu0
  %263 = vmatprep.mubr.f32.mxu0 0.0
  %264 = vmatmul.mubr.f32.gmra.mrb[0].mxu0 %v118
  %v265 = vpop.f32.mrb[0].mxu0
  %v266 = vadd.f32 %v69, %v265
  %v267 = vpop.f32.mrb[0].mxu0
  %268 = vdwg.mxu0
  %v270 = vlaneseq
  %v271 = vshrl.u32 %v270, 7
  %v272 = vsub.s32 0, %v271
  %v273 = vrot.slane %v32, %v272
  %v276 = vsel %vm71, %v191, 0
  %v279 = vsel %vm71, %v196, 0
  %v282 = vsel %vm71, %v201, 0
  %v285 = vsel %vm71, %v206, 0
  %v288 = vsel %vm71, %v211, 0
  %v291 = vsel %vm71, %v216, 0
  %v294 = vsel %vm71, %v221, 0
  %v297 = vsel %vm71, %v226, 0
  %v300 = vsel %vm71, %v231, 0
  %v303 = vsel %vm71, %v236, 0
  %v306 = vsel %vm71, %v241, 0
  %v309 = vsel %vm71, %v246, 0
  %v312 = vsel %vm71, %v251, 0
  %v315 = vsel %vm71, %v256, 0
  %v318 = vsel %vm71, %v261, 0
  %v321 = vsel %vm71, %v266, 0
  %v324 = vsel %vm120, %v30, 0
  %326 = vmatprep.subr.mxu0 0.0
  %327 = vmatpush1.msra.mxu0 %v324
  %328 = vmatprep.subr.mxu0 0.0
  %329 = vmatpush1.msra.mxu0 0.0
  %330 = vmatprep.subr.mxu0 0.0
  %331 = vmatpush1.msra.mxu0 0.0
  %332 = vmatprep.subr.mxu0 0.0
  %333 = vmatpush1.msra.mxu0 0.0
  %334 = vmatprep.subr.mxu0 0.0
  %335 = vmatpush1.msra.mxu0 0.0
  %336 = vmatprep.subr.mxu0 0.0
  %337 = vmatpush1.msra.mxu0 0.0
  %338 = vmatprep.subr.mxu0 0.0
  %339 = vmatpush1.msra.mxu0 0.0
  %340 = vmatprep.subr.mxu0 0.0
  %341 = vmatpush1.msra.mxu0 0.0
  %342 = vmatprep.subr.mxu0 0.0
  %343 = vmatpush1.msra.mxu0 0.0
  %344 = vmatprep.subr.mxu0 0.0
  %345 = vmatpush1.msra.mxu0 0.0
  %346 = vmatprep.subr.mxu0 0.0
  %347 = vmatpush1.msra.mxu0 0.0
  %348 = vmatprep.subr.mxu0 0.0
  %349 = vmatpush1.msra.mxu0 0.0
  %350 = vmatprep.subr.mxu0 0.0
  %351 = vmatpush1.msra.mxu0 0.0
  %352 = vmatprep.subr.mxu0 0.0
  %353 = vmatpush1.msra.mxu0 0.0
  %354 = vmatprep.subr.mxu0 0.0
  %355 = vmatpush1.msra.mxu0 0.0
  %356 = vmatprep.subr.mxu0 0.0
  %357 = vmatpush1.msra.mxu0 0.0
  %358 = vmatprep.subr.mxu0 0.0
  %359 = vmatpush1.msra.mxu0 0.0
  %360 = vmatprep.subr.mxu0 0.0
  %361 = vmatpush1.msra.mxu0 0.0
  %362 = vmatprep.subr.mxu0 0.0
  %363 = vmatpush1.msra.mxu0 0.0
  %364 = vmatprep.subr.mxu0 0.0
  %365 = vmatpush1.msra.mxu0 0.0
  %366 = vmatprep.subr.mxu0 0.0
  %367 = vmatpush1.msra.mxu0 0.0
  %368 = vmatprep.subr.mxu0 0.0
  %369 = vmatpush1.msra.mxu0 0.0
  %370 = vmatprep.subr.mxu0 0.0
  %371 = vmatpush1.msra.mxu0 0.0
  %372 = vmatprep.subr.mxu0 0.0
  %373 = vmatpush1.msra.mxu0 0.0
  %374 = vmatprep.subr.mxu0 0.0
  %375 = vmatpush1.msra.mxu0 0.0
  %376 = vmatprep.subr.mxu0 0.0
  %377 = vmatpush1.msra.mxu0 0.0
  %378 = vmatprep.subr.mxu0 0.0
  %379 = vmatpush1.msra.mxu0 0.0
  %380 = vmatprep.subr.mxu0 0.0
  %381 = vmatpush1.msra.mxu0 0.0
  %382 = vmatprep.subr.mxu0 0.0
  %383 = vmatpush1.msra.mxu0 0.0
  %384 = vmatprep.subr.mxu0 0.0
  %385 = vmatpush1.msra.mxu0 0.0
  %386 = vmatprep.subr.mxu0 0.0
  %387 = vmatpush1.msra.mxu0 0.0
  %388 = vmatprep.subr.mxu0 0.0
  %389 = vmatpush1.msra.mxu0 0.0
  %390 = vmatprep.mubr.f32.mxu0 0.0
  %391 = vmatmul.mubr.f32.gmra.mrb[0].mxu0 %v276
  %v392 = vpop.f32.mrb[0].mxu0
  %v393 = vadd.f32 %v273, %v392
  %v394 = vpop.f32.mrb[0].mxu0
  %395 = vmatprep.mubr.f32.mxu0 0.0
  %396 = vmatmul.mubr.f32.gmra.mrb[0].mxu0 %v279
  %v397 = vpop.f32.mrb[0].mxu0
  %v398 = vadd.f32 %v273, %v397
  %v399 = vpop.f32.mrb[0].mxu0
  %400 = vmatprep.mubr.f32.mxu0 0.0
  %401 = vmatmul.mubr.f32.gmra.mrb[0].mxu0 %v282
  %v402 = vpop.f32.mrb[0].mxu0
  %v403 = vadd.f32 %v273, %v402
  %v404 = vpop.f32.mrb[0].mxu0
  %405 = vmatprep.mubr.f32.mxu0 0.0
  %406 = vmatmul.mubr.f32.gmra.mrb[0].mxu0 %v285
  %v407 = vpop.f32.mrb[0].mxu0
  %v408 = vadd.f32 %v273, %v407
  %v409 = vpop.f32.mrb[0].mxu0
  %410 = vmatprep.mubr.f32.mxu0 0.0
  %411 = vmatmul.mubr.f32.gmra.mrb[0].mxu0 %v288
  %v412 = vpop.f32.mrb[0].mxu0
  %v413 = vadd.f32 %v273, %v412
  %v414 = vpop.f32.mrb[0].mxu0
  %415 = vmatprep.mubr.f32.mxu0 0.0
  %416 = vmatmul.mubr.f32.gmra.mrb[0].mxu0 %v291
  %v417 = vpop.f32.mrb[0].mxu0
  %v418 = vadd.f32 %v273, %v417
  %v419 = vpop.f32.mrb[0].mxu0
  %420 = vmatprep.mubr.f32.mxu0 0.0
  %421 = vmatmul.mubr.f32.gmra.mrb[0].mxu0 %v294
  %v422 = vpop.f32.mrb[0].mxu0
  %v423 = vadd.f32 %v273, %v422
  %v424 = vpop.f32.mrb[0].mxu0
  %425 = vmatprep.mubr.f32.mxu0 0.0
  %426 = vmatmul.mubr.f32.gmra.mrb[0].mxu0 %v297
  %v427 = vpop.f32.mrb[0].mxu0
  %v428 = vadd.f32 %v273, %v427
  %v429 = vpop.f32.mrb[0].mxu0
  %430 = vmatprep.mubr.f32.mxu0 0.0
  %431 = vmatmul.mubr.f32.gmra.mrb[0].mxu0 %v300
  %v432 = vpop.f32.mrb[0].mxu0
  %v433 = vadd.f32 %v273, %v432
  %v434 = vpop.f32.mrb[0].mxu0
  %435 = vmatprep.mubr.f32.mxu0 0.0
  %436 = vmatmul.mubr.f32.gmra.mrb[0].mxu0 %v303
  %v437 = vpop.f32.mrb[0].mxu0
  %v438 = vadd.f32 %v273, %v437
  %v439 = vpop.f32.mrb[0].mxu0
  %440 = vmatprep.mubr.f32.mxu0 0.0
  %441 = vmatmul.mubr.f32.gmra.mrb[0].mxu0 %v306
  %v442 = vpop.f32.mrb[0].mxu0
  %v443 = vadd.f32 %v273, %v442
  %v444 = vpop.f32.mrb[0].mxu0
  %445 = vmatprep.mubr.f32.mxu0 0.0
  %446 = vmatmul.mubr.f32.gmra.mrb[0].mxu0 %v309
  %v447 = vpop.f32.mrb[0].mxu0
  %v448 = vadd.f32 %v273, %v447
  %v449 = vpop.f32.mrb[0].mxu0
  %450 = vmatprep.mubr.f32.mxu0 0.0
  %451 = vmatmul.mubr.f32.gmra.mrb[0].mxu0 %v312
  %v452 = vpop.f32.mrb[0].mxu0
  %v453 = vadd.f32 %v273, %v452
  %v454 = vpop.f32.mrb[0].mxu0
  %455 = vmatprep.mubr.f32.mxu0 0.0
  %456 = vmatmul.mubr.f32.gmra.mrb[0].mxu0 %v315
  %v457 = vpop.f32.mrb[0].mxu0
  %v458 = vadd.f32 %v273, %v457
  %v459 = vpop.f32.mrb[0].mxu0
  %460 = vmatprep.mubr.f32.mxu0 0.0
  %461 = vmatmul.mubr.f32.gmra.mrb[0].mxu0 %v318
  %v462 = vpop.f32.mrb[0].mxu0
  %v463 = vadd.f32 %v273, %v462
  %v464 = vpop.f32.mrb[0].mxu0
  %465 = vmatprep.mubr.f32.mxu0 0.0
  %466 = vmatmul.mubr.f32.gmra.mrb[0].mxu0 %v321
  %v467 = vpop.f32.mrb[0].mxu0
  %v468 = vadd.f32 %v273, %v467
  %v469 = vpop.f32.mrb[0].mxu0
  %470 = vdwg.mxu0
  %471 = vrot.lane.b32.xlu0 %v33, 124
  %v472 = vpop.permute.xlu0 %471
  %473 = vrot.lane.b32.xlu0 %v34, 124
  %v474 = vpop.permute.xlu0 %473
  %475 = vrot.lane.b32.xlu0 %v35, 124
  %v476 = vpop.permute.xlu0 %475
  %477 = vrot.lane.b32.xlu0 %v36, 124
  %v478 = vpop.permute.xlu0 %477
  %479 = vrot.lane.b32.xlu0 %v37, 124
  %v480 = vpop.permute.xlu0 %479
  %481 = vrot.lane.b32.xlu0 %v38, 124
  %v482 = vpop.permute.xlu0 %481
  %483 = vrot.lane.b32.xlu0 %v39, 124
  %v484 = vpop.permute.xlu0 %483
  %485 = vrot.lane.b32.xlu0 %v40, 124
  %v486 = vpop.permute.xlu0 %485
  %487 = vrot.lane.b32.xlu0 %v41, 124
  %v488 = vpop.permute.xlu0 %487
  %489 = vrot.lane.b32.xlu0 %v42, 124
  %v490 = vpop.permute.xlu0 %489
  %491 = vrot.lane.b32.xlu0 %v43, 124
  %v492 = vpop.permute.xlu0 %491
  %493 = vrot.lane.b32.xlu0 %v44, 124
  %v494 = vpop.permute.xlu0 %493
  %495 = vrot.lane.b32.xlu0 %v45, 124
  %v496 = vpop.permute.xlu0 %495
  %497 = vrot.lane.b32.xlu0 %v46, 124
  %v498 = vpop.permute.xlu0 %497
  %499 = vrot.lane.b32.xlu0 %v47, 124
  %v500 = vpop.permute.xlu0 %499
  %501 = vrot.lane.b32.xlu0 %v48, 124
  %v502 = vpop.permute.xlu0 %501
  %v503 = vsel %vm71, %v472, 0
  %v505 = vsel %vm71, %v474, 0
  %v507 = vsel %vm71, %v476, 0
  %v509 = vsel %vm71, %v478, 0
  %v511 = vsel %vm71, %v480, 0
  %v513 = vsel %vm71, %v482, 0
  %v515 = vsel %vm71, %v484, 0
  %v517 = vsel %vm71, %v486, 0
  %v519 = vsel %vm71, %v488, 0
  %v521 = vsel %vm71, %v490, 0
  %v523 = vsel %vm71, %v492, 0
  %v525 = vsel %vm71, %v494, 0
  %v527 = vsel %vm71, %v496, 0
  %v529 = vsel %vm71, %v498, 0
  %v531 = vsel %vm71, %v500, 0
  %v533 = vsel %vm71, %v502, 0
  %535 = vmatprep.subr.mxu0 0.0
  %536 = vmatpush1.msra.mxu0 %v122
  %537 = vmatprep.subr.mxu0 0.0
  %538 = vmatpush1.msra.mxu0 0.0
  %539 = vmatprep.subr.mxu0 0.0
  %540 = vmatpush1.msra.mxu0 0.0
  %541 = vmatprep.subr.mxu0 0.0
  %542 = vmatpush1.msra.mxu0 0.0
  %543 = vmatprep.subr.mxu0 0.0
  %544 = vmatpush1.msra.mxu0 0.0
  %545 = vmatprep.subr.mxu0 0.0
  %546 = vmatpush1.msra.mxu0 0.0
  %547 = vmatprep.subr.mxu0 0.0
  %548 = vmatpush1.msra.mxu0 0.0
  %549 = vmatprep.subr.mxu0 0.0
  %550 = vmatpush1.msra.mxu0 0.0
  %551 = vmatprep.subr.mxu0 0.0
  %552 = vmatpush1.msra.mxu0 0.0
  %553 = vmatprep.subr.mxu0 0.0
  %554 = vmatpush1.msra.mxu0 0.0
  %555 = vmatprep.subr.mxu0 0.0
  %556 = vmatpush1.msra.mxu0 0.0
  %557 = vmatprep.subr.mxu0 0.0
  %558 = vmatpush1.msra.mxu0 0.0
  %559 = vmatprep.subr.mxu0 0.0
  %560 = vmatpush1.msra.mxu0 0.0
  %561 = vmatprep.subr.mxu0 0.0
  %562 = vmatpush1.msra.mxu0 0.0
  %563 = vmatprep.subr.mxu0 0.0
  %564 = vmatpush1.msra.mxu0 0.0
  %565 = vmatprep.subr.mxu0 0.0
  %566 = vmatpush1.msra.mxu0 0.0
  %567 = vmatprep.subr.mxu0 0.0
  %568 = vmatpush1.msra.mxu0 0.0
  %569 = vmatprep.subr.mxu0 0.0
  %570 = vmatpush1.msra.mxu0 0.0
  %571 = vmatprep.subr.mxu0 0.0
  %572 = vmatpush1.msra.mxu0 0.0
  %573 = vmatprep.subr.mxu0 0.0
  %574 = vmatpush1.msra.mxu0 0.0
  %575 = vmatprep.subr.mxu0 0.0
  %576 = vmatpush1.msra.mxu0 0.0
  %577 = vmatprep.subr.mxu0 0.0
  %578 = vmatpush1.msra.mxu0 0.0
  %579 = vmatprep.subr.mxu0 0.0
  %580 = vmatpush1.msra.mxu0 0.0
  %581 = vmatprep.subr.mxu0 0.0
  %582 = vmatpush1.msra.mxu0 0.0
  %583 = vmatprep.subr.mxu0 0.0
  %584 = vmatpush1.msra.mxu0 0.0
  %585 = vmatprep.subr.mxu0 0.0
  %586 = vmatpush1.msra.mxu0 0.0
  %587 = vmatprep.subr.mxu0 0.0
  %588 = vmatpush1.msra.mxu0 0.0
  %589 = vmatprep.subr.mxu0 0.0
  %590 = vmatpush1.msra.mxu0 0.0
  %591 = vmatprep.subr.mxu0 0.0
  %592 = vmatpush1.msra.mxu0 0.0
  %593 = vmatprep.subr.mxu0 0.0
  %594 = vmatpush1.msra.mxu0 0.0
  %595 = vmatprep.subr.mxu0 0.0
  %596 = vmatpush1.msra.mxu0 0.0
  %597 = vmatprep.subr.mxu0 0.0
  %598 = vmatpush1.msra.mxu0 0.0
  %599 = vmatprep.mubr.f32.mxu0 0.0
  %600 = vmatmul.mubr.f32.gmra.mrb[0].mxu0 %v503
  %v601 = vpop.f32.mrb[0].mxu0
  %v602 = vadd.f32 %v69, %v601
  %v603 = vpop.f32.mrb[0].mxu0
  %604 = vmatprep.mubr.f32.mxu0 0.0
  %605 = vmatmul.mubr.f32.gmra.mrb[0].mxu0 %v505
  %v606 = vpop.f32.mrb[0].mxu0
  %v607 = vadd.f32 %v69, %v606
  %v608 = vpop.f32.mrb[0].mxu0
  %609 = vmatprep.mubr.f32.mxu0 0.0
  %610 = vmatmul.mubr.f32.gmra.mrb[0].mxu0 %v507
  %v611 = vpop.f32.mrb[0].mxu0
  %v612 = vadd.f32 %v69, %v611
  %v613 = vpop.f32.mrb[0].mxu0
  %614 = vmatprep.mubr.f32.mxu0 0.0
  %615 = vmatmul.mubr.f32.gmra.mrb[0].mxu0 %v509
  %v616 = vpop.f32.mrb[0].mxu0
  %v617 = vadd.f32 %v69, %v616
  %v618 = vpop.f32.mrb[0].mxu0
  %619 = vmatprep.mubr.f32.mxu0 0.0
  %620 = vmatmul.mubr.f32.gmra.mrb[0].mxu0 %v511
  %v621 = vpop.f32.mrb[0].mxu0
  %v622 = vadd.f32 %v69, %v621
  %v623 = vpop.f32.mrb[0].mxu0
  %624 = vmatprep.mubr.f32.mxu0 0.0
  %625 = vmatmul.mubr.f32.gmra.mrb[0].mxu0 %v513
  %v626 = vpop.f32.mrb[0].mxu0
  %v627 = vadd.f32 %v69, %v626
  %v628 = vpop.f32.mrb[0].mxu0
  %629 = vmatprep.mubr.f32.mxu0 0.0
  %630 = vmatmul.mubr.f32.gmra.mrb[0].mxu0 %v515
  %v631 = vpop.f32.mrb[0].mxu0
  %v632 = vadd.f32 %v69, %v631
  %v633 = vpop.f32.mrb[0].mxu0
  %634 = vmatprep.mubr.f32.mxu0 0.0
  %635 = vmatmul.mubr.f32.gmra.mrb[0].mxu0 %v517
  %v636 = vpop.f32.mrb[0].mxu0
  %v637 = vadd.f32 %v69, %v636
  %v638 = vpop.f32.mrb[0].mxu0
  %639 = vmatprep.mubr.f32.mxu0 0.0
  %640 = vmatmul.mubr.f32.gmra.mrb[0].mxu0 %v519
  %v641 = vpop.f32.mrb[0].mxu0
  %v642 = vadd.f32 %v69, %v641
  %v643 = vpop.f32.mrb[0].mxu0
  %644 = vmatprep.mubr.f32.mxu0 0.0
  %645 = vmatmul.mubr.f32.gmra.mrb[0].mxu0 %v521
  %v646 = vpop.f32.mrb[0].mxu0
  %v647 = vadd.f32 %v69, %v646
  %v648 = vpop.f32.mrb[0].mxu0
  %649 = vmatprep.mubr.f32.mxu0 0.0
  %650 = vmatmul.mubr.f32.gmra.mrb[0].mxu0 %v523
  %v651 = vpop.f32.mrb[0].mxu0
  %v652 = vadd.f32 %v69, %v651
  %v653 = vpop.f32.mrb[0].mxu0
  %654 = vmatprep.mubr.f32.mxu0 0.0
  %655 = vmatmul.mubr.f32.gmra.mrb[0].mxu0 %v525
  %v656 = vpop.f32.mrb[0].mxu0
  %v657 = vadd.f32 %v69, %v656
  %v658 = vpop.f32.mrb[0].mxu0
  %659 = vmatprep.mubr.f32.mxu0 0.0
  %660 = vmatmul.mubr.f32.gmra.mrb[0].mxu0 %v527
  %v661 = vpop.f32.mrb[0].mxu0
  %v662 = vadd.f32 %v69, %v661
  %v663 = vpop.f32.mrb[0].mxu0
  %664 = vmatprep.mubr.f32.mxu0 0.0
  %665 = vmatmul.mubr.f32.gmra.mrb[0].mxu0 %v529
  %v666 = vpop.f32.mrb[0].mxu0
  %v667 = vadd.f32 %v69, %v666
  %v668 = vpop.f32.mrb[0].mxu0
  %669 = vmatprep.mubr.f32.mxu0 0.0
  %670 = vmatmul.mubr.f32.gmra.mrb[0].mxu0 %v531
  %v671 = vpop.f32.mrb[0].mxu0
  %v672 = vadd.f32 %v69, %v671
  %v673 = vpop.f32.mrb[0].mxu0
  %674 = vmatprep.mubr.f32.mxu0 0.0
  %675 = vmatmul.mubr.f32.gmra.mrb[0].mxu0 %v533
  %v676 = vpop.f32.mrb[0].mxu0
  %v677 = vadd.f32 %v69, %v676
  %v678 = vpop.f32.mrb[0].mxu0
  %679 = vdwg.mxu0
  %v681 = vsel %vm71, %v602, 0
  %v684 = vsel %vm71, %v607, 0
  %v687 = vsel %vm71, %v612, 0
  %v690 = vsel %vm71, %v617, 0
  %v693 = vsel %vm71, %v622, 0
  %v696 = vsel %vm71, %v627, 0
  %v699 = vsel %vm71, %v632, 0
  %v702 = vsel %vm71, %v637, 0
  %v705 = vsel %vm71, %v642, 0
  %v708 = vsel %vm71, %v647, 0
  %v711 = vsel %vm71, %v652, 0
  %v714 = vsel %vm71, %v657, 0
  %v717 = vsel %vm71, %v662, 0
  %v720 = vsel %vm71, %v667, 0
  %v723 = vsel %vm71, %v672, 0
  %v726 = vsel %vm71, %v677, 0
  %728 = vmatprep.subr.mxu0 0.0
  %729 = vmatpush1.msra.mxu0 %v324
  %730 = vmatprep.subr.mxu0 0.0
  %731 = vmatpush1.msra.mxu0 0.0
  %732 = vmatprep.subr.mxu0 0.0
  %733 = vmatpush1.msra.mxu0 0.0
  %734 = vmatprep.subr.mxu0 0.0
  %735 = vmatpush1.msra.mxu0 0.0
  %736 = vmatprep.subr.mxu0 0.0
  %737 = vmatpush1.msra.mxu0 0.0
  %738 = vmatprep.subr.mxu0 0.0
  %739 = vmatpush1.msra.mxu0 0.0
  %740 = vmatprep.subr.mxu0 0.0
  %741 = vmatpush1.msra.mxu0 0.0
  %742 = vmatprep.subr.mxu0 0.0
  %743 = vmatpush1.msra.mxu0 0.0
  %744 = vmatprep.subr.mxu0 0.0
  %745 = vmatpush1.msra.mxu0 0.0
  %746 = vmatprep.subr.mxu0 0.0
  %747 = vmatpush1.msra.mxu0 0.0
  %748 = vmatprep.subr.mxu0 0.0
  %749 = vmatpush1.msra.mxu0 0.0
  %750 = vmatprep.subr.mxu0 0.0
  %751 = vmatpush1.msra.mxu0 0.0
  %752 = vmatprep.subr.mxu0 0.0
  %753 = vmatpush1.msra.mxu0 0.0
  %754 = vmatprep.subr.mxu0 0.0
  %755 = vmatpush1.msra.mxu0 0.0
  %756 = vmatprep.subr.mxu0 0.0
  %757 = vmatpush1.msra.mxu0 0.0
  %758 = vmatprep.subr.mxu0 0.0
  %759 = vmatpush1.msra.mxu0 0.0
  %760 = vmatprep.subr.mxu0 0.0
  %761 = vmatpush1.msra.mxu0 0.0
  %762 = vmatprep.subr.mxu0 0.0
  %763 = vmatpush1.msra.mxu0 0.0
  %764 = vmatprep.subr.mxu0 0.0
  %765 = vmatpush1.msra.mxu0 0.0
  %766 = vmatprep.subr.mxu0 0.0
  %767 = vmatpush1.msra.mxu0 0.0
  %768 = vmatprep.subr.mxu0 0.0
  %769 = vmatpush1.msra.mxu0 0.0
  %770 = vmatprep.subr.mxu0 0.0
  %771 = vmatpush1.msra.mxu0 0.0
  %772 = vmatprep.subr.mxu0 0.0
  %773 = vmatpush1.msra.mxu0 0.0
  %774 = vmatprep.subr.mxu0 0.0
  %775 = vmatpush1.msra.mxu0 0.0
  %776 = vmatprep.subr.mxu0 0.0
  %777 = vmatpush1.msra.mxu0 0.0
  %778 = vmatprep.subr.mxu0 0.0
  %779 = vmatpush1.msra.mxu0 0.0
  %780 = vmatprep.subr.mxu0 0.0
  %781 = vmatpush1.msra.mxu0 0.0
  %782 = vmatprep.subr.mxu0 0.0
  %783 = vmatpush1.msra.mxu0 0.0
  %784 = vmatprep.subr.mxu0 0.0
  %785 = vmatpush1.msra.mxu0 0.0
  %786 = vmatprep.subr.mxu0 0.0
  %787 = vmatpush1.msra.mxu0 0.0
  %788 = vmatprep.subr.mxu0 0.0
  %789 = vmatpush1.msra.mxu0 0.0
  %790 = vmatprep.subr.mxu0 0.0
  %791 = vmatpush1.msra.mxu0 0.0
  %792 = vmatprep.mubr.f32.mxu0 0.0
  %793 = vmatmul.mubr.f32.gmra.mrb[0].mxu0 %v681
  %v794 = vpop.f32.mrb[0].mxu0
  %v795 = vadd.f32 %v273, %v794
  %v796 = vpop.f32.mrb[0].mxu0
  %797 = vmatprep.mubr.f32.mxu0 0.0
  %798 = vmatmul.mubr.f32.gmra.mrb[0].mxu0 %v684
  %v799 = vpop.f32.mrb[0].mxu0
  %v800 = vadd.f32 %v273, %v799
  %v801 = vpop.f32.mrb[0].mxu0
  %802 = vmatprep.mubr.f32.mxu0 0.0
  %803 = vmatmul.mubr.f32.gmra.mrb[0].mxu0 %v687
  %v804 = vpop.f32.mrb[0].mxu0
  %v805 = vadd.f32 %v273, %v804
  %v806 = vpop.f32.mrb[0].mxu0
  %807 = vmatprep.mubr.f32.mxu0 0.0
  %808 = vmatmul.mubr.f32.gmra.mrb[0].mxu0 %v690
  %v809 = vpop.f32.mrb[0].mxu0
  %v810 = vadd.f32 %v273, %v809
  %v811 = vpop.f32.mrb[0].mxu0
  %812 = vmatprep.mubr.f32.mxu0 0.0
  %813 = vmatmul.mubr.f32.gmra.mrb[0].mxu0 %v693
  %v814 = vpop.f32.mrb[0].mxu0
  %v815 = vadd.f32 %v273, %v814
  %v816 = vpop.f32.mrb[0].mxu0
  %817 = vmatprep.mubr.f32.mxu0 0.0
  %818 = vmatmul.mubr.f32.gmra.mrb[0].mxu0 %v696
  %v819 = vpop.f32.mrb[0].mxu0
  %v820 = vadd.f32 %v273, %v819
  %v821 = vpop.f32.mrb[0].mxu0
  %822 = vmatprep.mubr.f32.mxu0 0.0
  %823 = vmatmul.mubr.f32.gmra.mrb[0].mxu0 %v699
  %v824 = vpop.f32.mrb[0].mxu0
  %v825 = vadd.f32 %v273, %v824
  %v826 = vpop.f32.mrb[0].mxu0
  %827 = vmatprep.mubr.f32.mxu0 0.0
  %828 = vmatmul.mubr.f32.gmra.mrb[0].mxu0 %v702
  %v829 = vpop.f32.mrb[0].mxu0
  %v830 = vadd.f32 %v273, %v829
  %v831 = vpop.f32.mrb[0].mxu0
  %832 = vmatprep.mubr.f32.mxu0 0.0
  %833 = vmatmul.mubr.f32.gmra.mrb[0].mxu0 %v705
  %v834 = vpop.f32.mrb[0].mxu0
  %v835 = vadd.f32 %v273, %v834
  %v836 = vpop.f32.mrb[0].mxu0
  %837 = vmatprep.mubr.f32.mxu0 0.0
  %838 = vmatmul.mubr.f32.gmra.mrb[0].mxu0 %v708
  %v839 = vpop.f32.mrb[0].mxu0
  %v840 = vadd.f32 %v273, %v839
  %v841 = vpop.f32.mrb[0].mxu0
  %842 = vmatprep.mubr.f32.mxu0 0.0
  %843 = vmatmul.mubr.f32.gmra.mrb[0].mxu0 %v711
  %v844 = vpop.f32.mrb[0].mxu0
  %v845 = vadd.f32 %v273, %v844
  %v846 = vpop.f32.mrb[0].mxu0
  %847 = vmatprep.mubr.f32.mxu0 0.0
  %848 = vmatmul.mubr.f32.gmra.mrb[0].mxu0 %v714
  %v849 = vpop.f32.mrb[0].mxu0
  %v850 = vadd.f32 %v273, %v849
  %v851 = vpop.f32.mrb[0].mxu0
  %852 = vmatprep.mubr.f32.mxu0 0.0
  %853 = vmatmul.mubr.f32.gmra.mrb[0].mxu0 %v717
  %v854 = vpop.f32.mrb[0].mxu0
  %v855 = vadd.f32 %v273, %v854
  %v856 = vpop.f32.mrb[0].mxu0
  %857 = vmatprep.mubr.f32.mxu0 0.0
  %858 = vmatmul.mubr.f32.gmra.mrb[0].mxu0 %v720
  %v859 = vpop.f32.mrb[0].mxu0
  %v860 = vadd.f32 %v273, %v859
  %v861 = vpop.f32.mrb[0].mxu0
  %862 = vmatprep.mubr.f32.mxu0 0.0
  %863 = vmatmul.mubr.f32.gmra.mrb[0].mxu0 %v723
  %v864 = vpop.f32.mrb[0].mxu0
  %v865 = vadd.f32 %v273, %v864
  %v866 = vpop.f32.mrb[0].mxu0
  %867 = vmatprep.mubr.f32.mxu0 0.0
  %868 = vmatmul.mubr.f32.gmra.mrb[0].mxu0 %v726
  %v869 = vpop.f32.mrb[0].mxu0
  %v870 = vadd.f32 %v273, %v869
  %v871 = vpop.f32.mrb[0].mxu0
  %872 = vdwg.mxu0
  %v874 = vsel %vm71, %v49, 0
  %v877 = vsel %vm71, %v50, 0
  %v880 = vsel %vm71, %v51, 0
  %v883 = vsel %vm71, %v52, 0
  %v886 = vsel %vm71, %v53, 0
  %v889 = vsel %vm71, %v54, 0
  %v892 = vsel %vm71, %v55, 0
  %v895 = vsel %vm71, %v56, 0
  %v898 = vsel %vm71, %v57, 0
  %v901 = vsel %vm71, %v58, 0
  %v904 = vsel %vm71, %v59, 0
  %v907 = vsel %vm71, %v60, 0
  %v910 = vsel %vm71, %v61, 0
  %v913 = vsel %vm71, %v62, 0
  %v916 = vsel %vm71, %v63, 0
  %v919 = vsel %vm71, %v64, 0
  %921 = vmatprep.subr.mxu0 0.0
  %922 = vmatpush1.msra.mxu0 %v122
  %923 = vmatprep.subr.mxu0 0.0
  %924 = vmatpush1.msra.mxu0 0.0
  %925 = vmatprep.subr.mxu0 0.0
  %926 = vmatpush1.msra.mxu0 0.0
  %927 = vmatprep.subr.mxu0 0.0
  %928 = vmatpush1.msra.mxu0 0.0
  %929 = vmatprep.subr.mxu0 0.0
  %930 = vmatpush1.msra.mxu0 0.0
  %931 = vmatprep.subr.mxu0 0.0
  %932 = vmatpush1.msra.mxu0 0.0
  %933 = vmatprep.subr.mxu0 0.0
  %934 = vmatpush1.msra.mxu0 0.0
  %935 = vmatprep.subr.mxu0 0.0
  %936 = vmatpush1.msra.mxu0 0.0
  %937 = vmatprep.subr.mxu0 0.0
  %938 = vmatpush1.msra.mxu0 0.0
  %939 = vmatprep.subr.mxu0 0.0
  %940 = vmatpush1.msra.mxu0 0.0
  %941 = vmatprep.subr.mxu0 0.0
  %942 = vmatpush1.msra.mxu0 0.0
  %943 = vmatprep.subr.mxu0 0.0
  %944 = vmatpush1.msra.mxu0 0.0
  %945 = vmatprep.subr.mxu0 0.0
  %946 = vmatpush1.msra.mxu0 0.0
  %947 = vmatprep.subr.mxu0 0.0
  %948 = vmatpush1.msra.mxu0 0.0
  %949 = vmatprep.subr.mxu0 0.0
  %950 = vmatpush1.msra.mxu0 0.0
  %951 = vmatprep.subr.mxu0 0.0
  %952 = vmatpush1.msra.mxu0 0.0
  %953 = vmatprep.subr.mxu0 0.0
  %954 = vmatpush1.msra.mxu0 0.0
  %955 = vmatprep.subr.mxu0 0.0
  %956 = vmatpush1.msra.mxu0 0.0
  %957 = vmatprep.subr.mxu0 0.0
  %958 = vmatpush1.msra.mxu0 0.0
  %959 = vmatprep.subr.mxu0 0.0
  %960 = vmatpush1.msra.mxu0 0.0
  %961 = vmatprep.subr.mxu0 0.0
  %962 = vmatpush1.msra.mxu0 0.0
  %963 = vmatprep.subr.mxu0 0.0
  %964 = vmatpush1.msra.mxu0 0.0
  %965 = vmatprep.subr.mxu0 0.0
  %966 = vmatpush1.msra.mxu0 0.0
  %967 = vmatprep.subr.mxu0 0.0
  %968 = vmatpush1.msra.mxu0 0.0
  %969 = vmatprep.subr.mxu0 0.0
  %970 = vmatpush1.msra.mxu0 0.0
  %971 = vmatprep.subr.mxu0 0.0
  %972 = vmatpush1.msra.mxu0 0.0
  %973 = vmatprep.subr.mxu0 0.0
  %974 = vmatpush1.msra.mxu0 0.0
  %975 = vmatprep.subr.mxu0 0.0
  %976 = vmatpush1.msra.mxu0 0.0
  %977 = vmatprep.subr.mxu0 0.0
  %978 = vmatpush1.msra.mxu0 0.0
  %979 = vmatprep.subr.mxu0 0.0
  %980 = vmatpush1.msra.mxu0 0.0
  %981 = vmatprep.subr.mxu0 0.0
  %982 = vmatpush1.msra.mxu0 0.0
  %983 = vmatprep.subr.mxu0 0.0
  %984 = vmatpush1.msra.mxu0 0.0
  %985 = vmatprep.mubr.f32.mxu0 0.0
  %986 = vmatmul.mubr.f32.gmra.mrb[0].mxu0 %v874
  %v987 = vpop.f32.mrb[0].mxu0
  %v988 = vadd.f32 %v69, %v987
  %v989 = vpop.f32.mrb[0].mxu0
  %990 = vmatprep.mubr.f32.mxu0 0.0
  %991 = vmatmul.mubr.f32.gmra.mrb[0].mxu0 %v877
  %v992 = vpop.f32.mrb[0].mxu0
  %v993 = vadd.f32 %v69, %v992
  %v994 = vpop.f32.mrb[0].mxu0
  %995 = vmatprep.mubr.f32.mxu0 0.0
  %996 = vmatmul.mubr.f32.gmra.mrb[0].mxu0 %v880
  %v997 = vpop.f32.mrb[0].mxu0
  %v998 = vadd.f32 %v69, %v997
  %v999 = vpop.f32.mrb[0].mxu0
  %1000 = vmatprep.mubr.f32.mxu0 0.0
  %1001 = vmatmul.mubr.f32.gmra.mrb[0].mxu0 %v883
  %v1002 = vpop.f32.mrb[0].mxu0
  %v1003 = vadd.f32 %v69, %v1002
  %v1004 = vpop.f32.mrb[0].mxu0
  %1005 = vmatprep.mubr.f32.mxu0 0.0
  %1006 = vmatmul.mubr.f32.gmra.mrb[0].mxu0 %v886
  %v1007 = vpop.f32.mrb[0].mxu0
  %v1008 = vadd.f32 %v69, %v1007
  %v1009 = vpop.f32.mrb[0].mxu0
  %1010 = vmatprep.mubr.f32.mxu0 0.0
  %1011 = vmatmul.mubr.f32.gmra.mrb[0].mxu0 %v889
  %v1012 = vpop.f32.mrb[0].mxu0
  %v1013 = vadd.f32 %v69, %v1012
  %v1014 = vpop.f32.mrb[0].mxu0
  %1015 = vmatprep.mubr.f32.mxu0 0.0
  %1016 = vmatmul.mubr.f32.gmra.mrb[0].mxu0 %v892
  %v1017 = vpop.f32.mrb[0].mxu0
  %v1018 = vadd.f32 %v69, %v1017
  %v1019 = vpop.f32.mrb[0].mxu0
  %1020 = vmatprep.mubr.f32.mxu0 0.0
  %1021 = vmatmul.mubr.f32.gmra.mrb[0].mxu0 %v895
  %v1022 = vpop.f32.mrb[0].mxu0
  %v1023 = vadd.f32 %v69, %v1022
  %v1024 = vpop.f32.mrb[0].mxu0
  %1025 = vmatprep.mubr.f32.mxu0 0.0
  %1026 = vmatmul.mubr.f32.gmra.mrb[0].mxu0 %v898
  %v1027 = vpop.f32.mrb[0].mxu0
  %v1028 = vadd.f32 %v69, %v1027
  %v1029 = vpop.f32.mrb[0].mxu0
  %1030 = vmatprep.mubr.f32.mxu0 0.0
  %1031 = vmatmul.mubr.f32.gmra.mrb[0].mxu0 %v901
  %v1032 = vpop.f32.mrb[0].mxu0
  %v1033 = vadd.f32 %v69, %v1032
  %v1034 = vpop.f32.mrb[0].mxu0
  %1035 = vmatprep.mubr.f32.mxu0 0.0
  %1036 = vmatmul.mubr.f32.gmra.mrb[0].mxu0 %v904
  %v1037 = vpop.f32.mrb[0].mxu0
  %v1038 = vadd.f32 %v69, %v1037
  %v1039 = vpop.f32.mrb[0].mxu0
  %1040 = vmatprep.mubr.f32.mxu0 0.0
  %1041 = vmatmul.mubr.f32.gmra.mrb[0].mxu0 %v907
  %v1042 = vpop.f32.mrb[0].mxu0
  %v1043 = vadd.f32 %v69, %v1042
  %v1044 = vpop.f32.mrb[0].mxu0
  %1045 = vmatprep.mubr.f32.mxu0 0.0
  %1046 = vmatmul.mubr.f32.gmra.mrb[0].mxu0 %v910
  %v1047 = vpop.f32.mrb[0].mxu0
  %v1048 = vadd.f32 %v69, %v1047
  %v1049 = vpop.f32.mrb[0].mxu0
  %1050 = vmatprep.mubr.f32.mxu0 0.0
  %1051 = vmatmul.mubr.f32.gmra.mrb[0].mxu0 %v913
  %v1052 = vpop.f32.mrb[0].mxu0
  %v1053 = vadd.f32 %v69, %v1052
  %v1054 = vpop.f32.mrb[0].mxu0
  %1055 = vmatprep.mubr.f32.mxu0 0.0
  %1056 = vmatmul.mubr.f32.gmra.mrb[0].mxu0 %v916
  %v1057 = vpop.f32.mrb[0].mxu0
  %v1058 = vadd.f32 %v69, %v1057
  %v1059 = vpop.f32.mrb[0].mxu0
  %1060 = vmatprep.mubr.f32.mxu0 0.0
  %1061 = vmatmul.mubr.f32.gmra.mrb[0].mxu0 %v919
  %v1062 = vpop.f32.mrb[0].mxu0
  %v1063 = vadd.f32 %v69, %v1062
  %v1064 = vpop.f32.mrb[0].mxu0
  %1065 = vdwg.mxu0
  %v1067 = vsel %vm71, %v988, 0
  %v1070 = vsel %vm71, %v993, 0
  %v1073 = vsel %vm71, %v998, 0
  %v1076 = vsel %vm71, %v1003, 0
  %v1079 = vsel %vm71, %v1008, 0
  %v1082 = vsel %vm71, %v1013, 0
  %v1085 = vsel %vm71, %v1018, 0
  %v1088 = vsel %vm71, %v1023, 0
  %v1091 = vsel %vm71, %v1028, 0
  %v1094 = vsel %vm71, %v1033, 0
  %v1097 = vsel %vm71, %v1038, 0
  %v1100 = vsel %vm71, %v1043, 0
  %v1103 = vsel %vm71, %v1048, 0
  %v1106 = vsel %vm71, %v1053, 0
  %v1109 = vsel %vm71, %v1058, 0
  %v1112 = vsel %vm71, %v1063, 0
  %1114 = vmatprep.subr.mxu0 0.0
  %1115 = vmatpush1.msra.mxu0 %v324
  %1116 = vmatprep.subr.mxu0 0.0
  %1117 = vmatpush1.msra.mxu0 0.0
  %1118 = vmatprep.subr.mxu0 0.0
  %1119 = vmatpush1.msra.mxu0 0.0
  %1120 = vmatprep.subr.mxu0 0.0
  %1121 = vmatpush1.msra.mxu0 0.0
  %1122 = vmatprep.subr.mxu0 0.0
  %1123 = vmatpush1.msra.mxu0 0.0
  %1124 = vmatprep.subr.mxu0 0.0
  %1125 = vmatpush1.msra.mxu0 0.0
  %1126 = vmatprep.subr.mxu0 0.0
  %1127 = vmatpush1.msra.mxu0 0.0
  %1128 = vmatprep.subr.mxu0 0.0
  %1129 = vmatpush1.msra.mxu0 0.0
  %1130 = vmatprep.subr.mxu0 0.0
  %1131 = vmatpush1.msra.mxu0 0.0
  %1132 = vmatprep.subr.mxu0 0.0
  %1133 = vmatpush1.msra.mxu0 0.0
  %1134 = vmatprep.subr.mxu0 0.0
  %1135 = vmatpush1.msra.mxu0 0.0
  %1136 = vmatprep.subr.mxu0 0.0
  %1137 = vmatpush1.msra.mxu0 0.0
  %1138 = vmatprep.subr.mxu0 0.0
  %1139 = vmatpush1.msra.mxu0 0.0
  %1140 = vmatprep.subr.mxu0 0.0
  %1141 = vmatpush1.msra.mxu0 0.0
  %1142 = vmatprep.subr.mxu0 0.0
  %1143 = vmatpush1.msra.mxu0 0.0
  %1144 = vmatprep.subr.mxu0 0.0
  %1145 = vmatpush1.msra.mxu0 0.0
  %1146 = vmatprep.subr.mxu0 0.0
  %1147 = vmatpush1.msra.mxu0 0.0
  %1148 = vmatprep.subr.mxu0 0.0
  %1149 = vmatpush1.msra.mxu0 0.0
  %1150 = vmatprep.subr.mxu0 0.0
  %1151 = vmatpush1.msra.mxu0 0.0
  %1152 = vmatprep.subr.mxu0 0.0
  %1153 = vmatpush1.msra.mxu0 0.0
  %1154 = vmatprep.subr.mxu0 0.0
  %1155 = vmatpush1.msra.mxu0 0.0
  %1156 = vmatprep.subr.mxu0 0.0
  %1157 = vmatpush1.msra.mxu0 0.0
  %1158 = vmatprep.subr.mxu0 0.0
  %1159 = vmatpush1.msra.mxu0 0.0
  %1160 = vmatprep.subr.mxu0 0.0
  %1161 = vmatpush1.msra.mxu0 0.0
  %1162 = vmatprep.subr.mxu0 0.0
  %1163 = vmatpush1.msra.mxu0 0.0
  %1164 = vmatprep.subr.mxu0 0.0
  %1165 = vmatpush1.msra.mxu0 0.0
  %1166 = vmatprep.subr.mxu0 0.0
  %1167 = vmatpush1.msra.mxu0 0.0
  %1168 = vmatprep.subr.mxu0 0.0
  %1169 = vmatpush1.msra.mxu0 0.0
  %1170 = vmatprep.subr.mxu0 0.0
  %1171 = vmatpush1.msra.mxu0 0.0
  %1172 = vmatprep.subr.mxu0 0.0
  %1173 = vmatpush1.msra.mxu0 0.0
  %1174 = vmatprep.subr.mxu0 0.0
  %1175 = vmatpush1.msra.mxu0 0.0
  %1176 = vmatprep.subr.mxu0 0.0
  %1177 = vmatpush1.msra.mxu0 0.0
  %1178 = vmatprep.mubr.f32.mxu0 0.0
  %1179 = vmatmul.mubr.f32.gmra.mrb[0].mxu0 %v1067
  %v1180 = vpop.f32.mrb[0].mxu0
  %v1181 = vadd.f32 %v273, %v1180
  %v1182 = vpop.f32.mrb[0].mxu0
  %1183 = vmatprep.mubr.f32.mxu0 0.0
  %1184 = vmatmul.mubr.f32.gmra.mrb[0].mxu0 %v1070
  %v1185 = vpop.f32.mrb[0].mxu0
  %v1186 = vadd.f32 %v273, %v1185
  %v1187 = vpop.f32.mrb[0].mxu0
  %1188 = vmatprep.mubr.f32.mxu0 0.0
  %1189 = vmatmul.mubr.f32.gmra.mrb[0].mxu0 %v1073
  %v1190 = vpop.f32.mrb[0].mxu0
  %v1191 = vadd.f32 %v273, %v1190
  %v1192 = vpop.f32.mrb[0].mxu0
  %1193 = vmatprep.mubr.f32.mxu0 0.0
  %1194 = vmatmul.mubr.f32.gmra.mrb[0].mxu0 %v1076
  %v1195 = vpop.f32.mrb[0].mxu0
  %v1196 = vadd.f32 %v273, %v1195
  %v1197 = vpop.f32.mrb[0].mxu0
  %1198 = vmatprep.mubr.f32.mxu0 0.0
  %1199 = vmatmul.mubr.f32.gmra.mrb[0].mxu0 %v1079
  %v1200 = vpop.f32.mrb[0].mxu0
  %v1201 = vadd.f32 %v273, %v1200
  %v1202 = vpop.f32.mrb[0].mxu0
  %1203 = vmatprep.mubr.f32.mxu0 0.0
  %1204 = vmatmul.mubr.f32.gmra.mrb[0].mxu0 %v1082
  %v1205 = vpop.f32.mrb[0].mxu0
  %v1206 = vadd.f32 %v273, %v1205
  %v1207 = vpop.f32.mrb[0].mxu0
  %1208 = vmatprep.mubr.f32.mxu0 0.0
  %1209 = vmatmul.mubr.f32.gmra.mrb[0].mxu0 %v1085
  %v1210 = vpop.f32.mrb[0].mxu0
  %v1211 = vadd.f32 %v273, %v1210
  %v1212 = vpop.f32.mrb[0].mxu0
  %1213 = vmatprep.mubr.f32.mxu0 0.0
  %1214 = vmatmul.mubr.f32.gmra.mrb[0].mxu0 %v1088
  %v1215 = vpop.f32.mrb[0].mxu0
  %v1216 = vadd.f32 %v273, %v1215
  %v1217 = vpop.f32.mrb[0].mxu0
  %1218 = vmatprep.mubr.f32.mxu0 0.0
  %1219 = vmatmul.mubr.f32.gmra.mrb[0].mxu0 %v1091
  %v1220 = vpop.f32.mrb[0].mxu0
  %v1221 = vadd.f32 %v273, %v1220
  %v1222 = vpop.f32.mrb[0].mxu0
  %1223 = vmatprep.mubr.f32.mxu0 0.0
  %1224 = vmatmul.mubr.f32.gmra.mrb[0].mxu0 %v1094
  %v1225 = vpop.f32.mrb[0].mxu0
  %v1226 = vadd.f32 %v273, %v1225
  %v1227 = vpop.f32.mrb[0].mxu0
  %1228 = vmatprep.mubr.f32.mxu0 0.0
  %1229 = vmatmul.mubr.f32.gmra.mrb[0].mxu0 %v1097
  %v1230 = vpop.f32.mrb[0].mxu0
  %v1231 = vadd.f32 %v273, %v1230
  %v1232 = vpop.f32.mrb[0].mxu0
  %1233 = vmatprep.mubr.f32.mxu0 0.0
  %1234 = vmatmul.mubr.f32.gmra.mrb[0].mxu0 %v1100
  %v1235 = vpop.f32.mrb[0].mxu0
  %v1236 = vadd.f32 %v273, %v1235
  %v1237 = vpop.f32.mrb[0].mxu0
  %1238 = vmatprep.mubr.f32.mxu0 0.0
  %1239 = vmatmul.mubr.f32.gmra.mrb[0].mxu0 %v1103
  %v1240 = vpop.f32.mrb[0].mxu0
  %v1241 = vadd.f32 %v273, %v1240
  %v1242 = vpop.f32.mrb[0].mxu0
  %1243 = vmatprep.mubr.f32.mxu0 0.0
  %1244 = vmatmul.mubr.f32.gmra.mrb[0].mxu0 %v1106
  %v1245 = vpop.f32.mrb[0].mxu0
  %v1246 = vadd.f32 %v273, %v1245
  %v1247 = vpop.f32.mrb[0].mxu0
  %1248 = vmatprep.mubr.f32.mxu0 0.0
  %1249 = vmatmul.mubr.f32.gmra.mrb[0].mxu0 %v1109
  %v1250 = vpop.f32.mrb[0].mxu0
  %v1251 = vadd.f32 %v273, %v1250
  %v1252 = vpop.f32.mrb[0].mxu0
  %1253 = vmatprep.mubr.f32.mxu0 0.0
  %1254 = vmatmul.mubr.f32.gmra.mrb[0].mxu0 %v1112
  %v1255 = vpop.f32.mrb[0].mxu0
  %v1256 = vadd.f32 %v273, %v1255
  %v1257 = vpop.f32.mrb[0].mxu0
  %1258 = vdwg.mxu0
  %1259 = vrot.lane.b32.xlu0 %v49, 124
  %v1260 = vpop.permute.xlu0 %1259
  %1261 = vrot.lane.b32.xlu0 %v50, 124
  %v1262 = vpop.permute.xlu0 %1261
  %1263 = vrot.lane.b32.xlu0 %v51, 124
  %v1264 = vpop.permute.xlu0 %1263
  %1265 = vrot.lane.b32.xlu0 %v52, 124
  %v1266 = vpop.permute.xlu0 %1265
  %1267 = vrot.lane.b32.xlu0 %v53, 124
  %v1268 = vpop.permute.xlu0 %1267
  %1269 = vrot.lane.b32.xlu0 %v54, 124
  %v1270 = vpop.permute.xlu0 %1269
  %1271 = vrot.lane.b32.xlu0 %v55, 124
  %v1272 = vpop.permute.xlu0 %1271
  %1273 = vrot.lane.b32.xlu0 %v56, 124
  %v1274 = vpop.permute.xlu0 %1273
  %1275 = vrot.lane.b32.xlu0 %v57, 124
  %v1276 = vpop.permute.xlu0 %1275
  %1277 = vrot.lane.b32.xlu0 %v58, 124
  %v1278 = vpop.permute.xlu0 %1277
  %1279 = vrot.lane.b32.xlu0 %v59, 124
  %v1280 = vpop.permute.xlu0 %1279
  %1281 = vrot.lane.b32.xlu0 %v60, 124
  %v1282 = vpop.permute.xlu0 %1281
  %1283 = vrot.lane.b32.xlu0 %v61, 124
  %v1284 = vpop.permute.xlu0 %1283
  %1285 = vrot.lane.b32.xlu0 %v62, 124
  %v1286 = vpop.permute.xlu0 %1285
  %1287 = vrot.lane.b32.xlu0 %v63, 124
  %v1288 = vpop.permute.xlu0 %1287
  %1289 = vrot.lane.b32.xlu0 %v64, 124
  %v1290 = vpop.permute.xlu0 %1289
  %v1291 = vsel %vm71, %v1260, 0
  %v1293 = vsel %vm71, %v1262, 0
  %v1295 = vsel %vm71, %v1264, 0
  %v1297 = vsel %vm71, %v1266, 0
  %v1299 = vsel %vm71, %v1268, 0
  %v1301 = vsel %vm71, %v1270, 0
  %v1303 = vsel %vm71, %v1272, 0
  %v1305 = vsel %vm71, %v1274, 0
  %v1307 = vsel %vm71, %v1276, 0
  %v1309 = vsel %vm71, %v1278, 0
  %v1311 = vsel %vm71, %v1280, 0
  %v1313 = vsel %vm71, %v1282, 0
  %v1315 = vsel %vm71, %v1284, 0
  %v1317 = vsel %vm71, %v1286, 0
  %v1319 = vsel %vm71, %v1288, 0
  %v1321 = vsel %vm71, %v1290, 0
  %1323 = vmatprep.subr.mxu0 0.0
  %1324 = vmatpush1.msra.mxu0 %v122
  %1325 = vmatprep.subr.mxu0 0.0
  %1326 = vmatpush1.msra.mxu0 0.0
  %1327 = vmatprep.subr.mxu0 0.0
  %1328 = vmatpush1.msra.mxu0 0.0
  %1329 = vmatprep.subr.mxu0 0.0
  %1330 = vmatpush1.msra.mxu0 0.0
  %1331 = vmatprep.subr.mxu0 0.0
  %1332 = vmatpush1.msra.mxu0 0.0
  %1333 = vmatprep.subr.mxu0 0.0
  %1334 = vmatpush1.msra.mxu0 0.0
  %1335 = vmatprep.subr.mxu0 0.0
  %1336 = vmatpush1.msra.mxu0 0.0
  %1337 = vmatprep.subr.mxu0 0.0
  %1338 = vmatpush1.msra.mxu0 0.0
  %1339 = vmatprep.subr.mxu0 0.0
  %1340 = vmatpush1.msra.mxu0 0.0
  %1341 = vmatprep.subr.mxu0 0.0
  %1342 = vmatpush1.msra.mxu0 0.0
  %1343 = vmatprep.subr.mxu0 0.0
  %1344 = vmatpush1.msra.mxu0 0.0
  %1345 = vmatprep.subr.mxu0 0.0
  %1346 = vmatpush1.msra.mxu0 0.0
  %1347 = vmatprep.subr.mxu0 0.0
  %1348 = vmatpush1.msra.mxu0 0.0
  %1349 = vmatprep.subr.mxu0 0.0
  %1350 = vmatpush1.msra.mxu0 0.0
  %1351 = vmatprep.subr.mxu0 0.0
  %1352 = vmatpush1.msra.mxu0 0.0
  %1353 = vmatprep.subr.mxu0 0.0
  %1354 = vmatpush1.msra.mxu0 0.0
  %1355 = vmatprep.subr.mxu0 0.0
  %1356 = vmatpush1.msra.mxu0 0.0
  %1357 = vmatprep.subr.mxu0 0.0
  %1358 = vmatpush1.msra.mxu0 0.0
  %1359 = vmatprep.subr.mxu0 0.0
  %1360 = vmatpush1.msra.mxu0 0.0
  %1361 = vmatprep.subr.mxu0 0.0
  %1362 = vmatpush1.msra.mxu0 0.0
  %1363 = vmatprep.subr.mxu0 0.0
  %1364 = vmatpush1.msra.mxu0 0.0
  %1365 = vmatprep.subr.mxu0 0.0
  %1366 = vmatpush1.msra.mxu0 0.0
  %1367 = vmatprep.subr.mxu0 0.0
  %1368 = vmatpush1.msra.mxu0 0.0
  %1369 = vmatprep.subr.mxu0 0.0
  %1370 = vmatpush1.msra.mxu0 0.0
  %1371 = vmatprep.subr.mxu0 0.0
  %1372 = vmatpush1.msra.mxu0 0.0
  %1373 = vmatprep.subr.mxu0 0.0
  %1374 = vmatpush1.msra.mxu0 0.0
  %1375 = vmatprep.subr.mxu0 0.0
  %1376 = vmatpush1.msra.mxu0 0.0
  %1377 = vmatprep.subr.mxu0 0.0
  %1378 = vmatpush1.msra.mxu0 0.0
  %1379 = vmatprep.subr.mxu0 0.0
  %1380 = vmatpush1.msra.mxu0 0.0
  %1381 = vmatprep.subr.mxu0 0.0
  %1382 = vmatpush1.msra.mxu0 0.0
  %1383 = vmatprep.subr.mxu0 0.0
  %1384 = vmatpush1.msra.mxu0 0.0
  %1385 = vmatprep.subr.mxu0 0.0
  %1386 = vmatpush1.msra.mxu0 0.0
  %1387 = vmatprep.mubr.f32.mxu0 0.0
  %1388 = vmatmul.mubr.f32.gmra.mrb[0].mxu0 %v1291
  %v1389 = vpop.f32.mrb[0].mxu0
  %v1390 = vadd.f32 %v69, %v1389
  %v1391 = vpop.f32.mrb[0].mxu0
  %1392 = vmatprep.mubr.f32.mxu0 0.0
  %1393 = vmatmul.mubr.f32.gmra.mrb[0].mxu0 %v1293
  %v1394 = vpop.f32.mrb[0].mxu0
  %v1395 = vadd.f32 %v69, %v1394
  %v1396 = vpop.f32.mrb[0].mxu0
  %1397 = vmatprep.mubr.f32.mxu0 0.0
  %1398 = vmatmul.mubr.f32.gmra.mrb[0].mxu0 %v1295
  %v1399 = vpop.f32.mrb[0].mxu0
  %v1400 = vadd.f32 %v69, %v1399
  %v1401 = vpop.f32.mrb[0].mxu0
  %1402 = vmatprep.mubr.f32.mxu0 0.0
  %1403 = vmatmul.mubr.f32.gmra.mrb[0].mxu0 %v1297
  %v1404 = vpop.f32.mrb[0].mxu0
  %v1405 = vadd.f32 %v69, %v1404
  %v1406 = vpop.f32.mrb[0].mxu0
  %1407 = vmatprep.mubr.f32.mxu0 0.0
  %1408 = vmatmul.mubr.f32.gmra.mrb[0].mxu0 %v1299
  %v1409 = vpop.f32.mrb[0].mxu0
  %v1410 = vadd.f32 %v69, %v1409
  %v1411 = vpop.f32.mrb[0].mxu0
  %1412 = vmatprep.mubr.f32.mxu0 0.0
  %1413 = vmatmul.mubr.f32.gmra.mrb[0].mxu0 %v1301
  %v1414 = vpop.f32.mrb[0].mxu0
  %v1415 = vadd.f32 %v69, %v1414
  %v1416 = vpop.f32.mrb[0].mxu0
  %1417 = vmatprep.mubr.f32.mxu0 0.0
  %1418 = vmatmul.mubr.f32.gmra.mrb[0].mxu0 %v1303
  %v1419 = vpop.f32.mrb[0].mxu0
  %v1420 = vadd.f32 %v69, %v1419
  %v1421 = vpop.f32.mrb[0].mxu0
  %1422 = vmatprep.mubr.f32.mxu0 0.0
  %1423 = vmatmul.mubr.f32.gmra.mrb[0].mxu0 %v1305
  %v1424 = vpop.f32.mrb[0].mxu0
  %v1425 = vadd.f32 %v69, %v1424
  %v1426 = vpop.f32.mrb[0].mxu0
  %1427 = vmatprep.mubr.f32.mxu0 0.0
  %1428 = vmatmul.mubr.f32.gmra.mrb[0].mxu0 %v1307
  %v1429 = vpop.f32.mrb[0].mxu0
  %v1430 = vadd.f32 %v69, %v1429
  %v1431 = vpop.f32.mrb[0].mxu0
  %1432 = vmatprep.mubr.f32.mxu0 0.0
  %1433 = vmatmul.mubr.f32.gmra.mrb[0].mxu0 %v1309
  %v1434 = vpop.f32.mrb[0].mxu0
  %v1435 = vadd.f32 %v69, %v1434
  %v1436 = vpop.f32.mrb[0].mxu0
  %1437 = vmatprep.mubr.f32.mxu0 0.0
  %1438 = vmatmul.mubr.f32.gmra.mrb[0].mxu0 %v1311
  %v1439 = vpop.f32.mrb[0].mxu0
  %v1440 = vadd.f32 %v69, %v1439
  %v1441 = vpop.f32.mrb[0].mxu0
  %1442 = vmatprep.mubr.f32.mxu0 0.0
  %1443 = vmatmul.mubr.f32.gmra.mrb[0].mxu0 %v1313
  %v1444 = vpop.f32.mrb[0].mxu0
  %v1445 = vadd.f32 %v69, %v1444
  %v1446 = vpop.f32.mrb[0].mxu0
  %1447 = vmatprep.mubr.f32.mxu0 0.0
  %1448 = vmatmul.mubr.f32.gmra.mrb[0].mxu0 %v1315
  %v1449 = vpop.f32.mrb[0].mxu0
  %v1450 = vadd.f32 %v69, %v1449
  %v1451 = vpop.f32.mrb[0].mxu0
  %1452 = vmatprep.mubr.f32.mxu0 0.0
  %1453 = vmatmul.mubr.f32.gmra.mrb[0].mxu0 %v1317
  %v1454 = vpop.f32.mrb[0].mxu0
  %v1455 = vadd.f32 %v69, %v1454
  %v1456 = vpop.f32.mrb[0].mxu0
  %1457 = vmatprep.mubr.f32.mxu0 0.0
  %1458 = vmatmul.mubr.f32.gmra.mrb[0].mxu0 %v1319
  %v1459 = vpop.f32.mrb[0].mxu0
  %v1460 = vadd.f32 %v69, %v1459
  %v1461 = vpop.f32.mrb[0].mxu0
  %1462 = vmatprep.mubr.f32.mxu0 0.0
  %1463 = vmatmul.mubr.f32.gmra.mrb[0].mxu0 %v1321
  %v1464 = vpop.f32.mrb[0].mxu0
  %v1465 = vadd.f32 %v69, %v1464
  %v1466 = vpop.f32.mrb[0].mxu0
  %1467 = vdwg.mxu0
  %v1469 = vsel %vm71, %v1390, 0
  %v1472 = vsel %vm71, %v1395, 0
  %v1475 = vsel %vm71, %v1400, 0
  %v1478 = vsel %vm71, %v1405, 0
  %v1481 = vsel %vm71, %v1410, 0
  %v1484 = vsel %vm71, %v1415, 0
  %v1487 = vsel %vm71, %v1420, 0
  %v1490 = vsel %vm71, %v1425, 0
  %v1493 = vsel %vm71, %v1430, 0
  %v1496 = vsel %vm71, %v1435, 0
  %v1499 = vsel %vm71, %v1440, 0
  %v1502 = vsel %vm71, %v1445, 0
  %v1505 = vsel %vm71, %v1450, 0
  %v1508 = vsel %vm71, %v1455, 0
  %v1511 = vsel %vm71, %v1460, 0
  %v1514 = vsel %vm71, %v1465, 0
  %1516 = vmatprep.subr.mxu0 0.0
  %1517 = vmatpush1.msra.mxu0 %v324
  %1518 = vmatprep.subr.mxu0 0.0
  %1519 = vmatpush1.msra.mxu0 0.0
  %1520 = vmatprep.subr.mxu0 0.0
  %1521 = vmatpush1.msra.mxu0 0.0
  %1522 = vmatprep.subr.mxu0 0.0
  %1523 = vmatpush1.msra.mxu0 0.0
  %1524 = vmatprep.subr.mxu0 0.0
  %1525 = vmatpush1.msra.mxu0 0.0
  %1526 = vmatprep.subr.mxu0 0.0
  %1527 = vmatpush1.msra.mxu0 0.0
  %1528 = vmatprep.subr.mxu0 0.0
  %1529 = vmatpush1.msra.mxu0 0.0
  %1530 = vmatprep.subr.mxu0 0.0
  %1531 = vmatpush1.msra.mxu0 0.0
  %1532 = vmatprep.subr.mxu0 0.0
  %1533 = vmatpush1.msra.mxu0 0.0
  %1534 = vmatprep.subr.mxu0 0.0
  %1535 = vmatpush1.msra.mxu0 0.0
  %1536 = vmatprep.subr.mxu0 0.0
  %1537 = vmatpush1.msra.mxu0 0.0
  %1538 = vmatprep.subr.mxu0 0.0
  %1539 = vmatpush1.msra.mxu0 0.0
  %1540 = vmatprep.subr.mxu0 0.0
  %1541 = vmatpush1.msra.mxu0 0.0
  %1542 = vmatprep.subr.mxu0 0.0
  %1543 = vmatpush1.msra.mxu0 0.0
  %1544 = vmatprep.subr.mxu0 0.0
  %1545 = vmatpush1.msra.mxu0 0.0
  %1546 = vmatprep.subr.mxu0 0.0
  %1547 = vmatpush1.msra.mxu0 0.0
  %1548 = vmatprep.subr.mxu0 0.0
  %1549 = vmatpush1.msra.mxu0 0.0
  %1550 = vmatprep.subr.mxu0 0.0
  %1551 = vmatpush1.msra.mxu0 0.0
  %1552 = vmatprep.subr.mxu0 0.0
  %1553 = vmatpush1.msra.mxu0 0.0
  %1554 = vmatprep.subr.mxu0 0.0
  %1555 = vmatpush1.msra.mxu0 0.0
  %1556 = vmatprep.subr.mxu0 0.0
  %1557 = vmatpush1.msra.mxu0 0.0
  %1558 = vmatprep.subr.mxu0 0.0
  %1559 = vmatpush1.msra.mxu0 0.0
  %1560 = vmatprep.subr.mxu0 0.0
  %1561 = vmatpush1.msra.mxu0 0.0
  %1562 = vmatprep.subr.mxu0 0.0
  %1563 = vmatpush1.msra.mxu0 0.0
  %1564 = vmatprep.subr.mxu0 0.0
  %1565 = vmatpush1.msra.mxu0 0.0
  %1566 = vmatprep.subr.mxu0 0.0
  %1567 = vmatpush1.msra.mxu0 0.0
  %1568 = vmatprep.subr.mxu0 0.0
  %1569 = vmatpush1.msra.mxu0 0.0
  %1570 = vmatprep.subr.mxu0 0.0
  %1571 = vmatpush1.msra.mxu0 0.0
  %1572 = vmatprep.subr.mxu0 0.0
  %1573 = vmatpush1.msra.mxu0 0.0
  %1574 = vmatprep.subr.mxu0 0.0
  %1575 = vmatpush1.msra.mxu0 0.0
  %1576 = vmatprep.subr.mxu0 0.0
  %1577 = vmatpush1.msra.mxu0 0.0
  %1578 = vmatprep.subr.mxu0 0.0
  %1579 = vmatpush1.msra.mxu0 0.0
  %1580 = vmatprep.mubr.f32.mxu0 0.0
  %1581 = vmatmul.mubr.f32.gmra.mrb[0].mxu0 %v1469
  %v1582 = vpop.f32.mrb[0].mxu0
  %v1583 = vadd.f32 %v273, %v1582
  %v1584 = vpop.f32.mrb[0].mxu0
  %1585 = vmatprep.mubr.f32.mxu0 0.0
  %1586 = vmatmul.mubr.f32.gmra.mrb[0].mxu0 %v1472
  %v1587 = vpop.f32.mrb[0].mxu0
  %v1588 = vadd.f32 %v273, %v1587
  %v1589 = vpop.f32.mrb[0].mxu0
  %1590 = vmatprep.mubr.f32.mxu0 0.0
  %1591 = vmatmul.mubr.f32.gmra.mrb[0].mxu0 %v1475
  %v1592 = vpop.f32.mrb[0].mxu0
  %v1593 = vadd.f32 %v273, %v1592
  %v1594 = vpop.f32.mrb[0].mxu0
  %1595 = vmatprep.mubr.f32.mxu0 0.0
  %1596 = vmatmul.mubr.f32.gmra.mrb[0].mxu0 %v1478
  %v1597 = vpop.f32.mrb[0].mxu0
  %v1598 = vadd.f32 %v273, %v1597
  %v1599 = vpop.f32.mrb[0].mxu0
  %1600 = vmatprep.mubr.f32.mxu0 0.0
  %1601 = vmatmul.mubr.f32.gmra.mrb[0].mxu0 %v1481
  %v1602 = vpop.f32.mrb[0].mxu0
  %v1603 = vadd.f32 %v273, %v1602
  %v1604 = vpop.f32.mrb[0].mxu0
  %1605 = vmatprep.mubr.f32.mxu0 0.0
  %1606 = vmatmul.mubr.f32.gmra.mrb[0].mxu0 %v1484
  %v1607 = vpop.f32.mrb[0].mxu0
  %v1608 = vadd.f32 %v273, %v1607
  %v1609 = vpop.f32.mrb[0].mxu0
  %1610 = vmatprep.mubr.f32.mxu0 0.0
  %1611 = vmatmul.mubr.f32.gmra.mrb[0].mxu0 %v1487
  %v1612 = vpop.f32.mrb[0].mxu0
  %v1613 = vadd.f32 %v273, %v1612
  %v1614 = vpop.f32.mrb[0].mxu0
  %1615 = vmatprep.mubr.f32.mxu0 0.0
  %1616 = vmatmul.mubr.f32.gmra.mrb[0].mxu0 %v1490
  %v1617 = vpop.f32.mrb[0].mxu0
  %v1618 = vadd.f32 %v273, %v1617
  %v1619 = vpop.f32.mrb[0].mxu0
  %1620 = vmatprep.mubr.f32.mxu0 0.0
  %1621 = vmatmul.mubr.f32.gmra.mrb[0].mxu0 %v1493
  %v1622 = vpop.f32.mrb[0].mxu0
  %v1623 = vadd.f32 %v273, %v1622
  %v1624 = vpop.f32.mrb[0].mxu0
  %1625 = vmatprep.mubr.f32.mxu0 0.0
  %1626 = vmatmul.mubr.f32.gmra.mrb[0].mxu0 %v1496
  %v1627 = vpop.f32.mrb[0].mxu0
  %v1628 = vadd.f32 %v273, %v1627
  %v1629 = vpop.f32.mrb[0].mxu0
  %1630 = vmatprep.mubr.f32.mxu0 0.0
  %1631 = vmatmul.mubr.f32.gmra.mrb[0].mxu0 %v1499
  %v1632 = vpop.f32.mrb[0].mxu0
  %v1633 = vadd.f32 %v273, %v1632
  %v1634 = vpop.f32.mrb[0].mxu0
  %1635 = vmatprep.mubr.f32.mxu0 0.0
  %1636 = vmatmul.mubr.f32.gmra.mrb[0].mxu0 %v1502
  %v1637 = vpop.f32.mrb[0].mxu0
  %v1638 = vadd.f32 %v273, %v1637
  %v1639 = vpop.f32.mrb[0].mxu0
  %1640 = vmatprep.mubr.f32.mxu0 0.0
  %1641 = vmatmul.mubr.f32.gmra.mrb[0].mxu0 %v1505
  %v1642 = vpop.f32.mrb[0].mxu0
  %v1643 = vadd.f32 %v273, %v1642
  %v1644 = vpop.f32.mrb[0].mxu0
  %1645 = vmatprep.mubr.f32.mxu0 0.0
  %1646 = vmatmul.mubr.f32.gmra.mrb[0].mxu0 %v1508
  %v1647 = vpop.f32.mrb[0].mxu0
  %v1648 = vadd.f32 %v273, %v1647
  %v1649 = vpop.f32.mrb[0].mxu0
  %1650 = vmatprep.mubr.f32.mxu0 0.0
  %1651 = vmatmul.mubr.f32.gmra.mrb[0].mxu0 %v1511
  %v1652 = vpop.f32.mrb[0].mxu0
  %v1653 = vadd.f32 %v273, %v1652
  %v1654 = vpop.f32.mrb[0].mxu0
  %1655 = vmatprep.mubr.f32.mxu0 0.0
  %1656 = vmatmul.mubr.f32.gmra.mrb[0].mxu0 %v1514
  %v1657 = vpop.f32.mrb[0].mxu0
  %v1658 = vadd.f32 %v273, %v1657
  %v1659 = vpop.f32.mrb[0].mxu0
  %1660 = vdwg.mxu0
  %v1661 = vmax.f32 %v393, %v795
  %v1662 = vmax.f32 %v398, %v800
  %v1663 = vmax.f32 %v403, %v805
  %v1664 = vmax.f32 %v408, %v810
  %v1665 = vmax.f32 %v413, %v815
  %v1666 = vmax.f32 %v418, %v820
  %v1667 = vmax.f32 %v423, %v825
  %v1668 = vmax.f32 %v428, %v830
  %v1669 = vmax.f32 %v433, %v835
  %v1670 = vmax.f32 %v438, %v840
  %v1671 = vmax.f32 %v443, %v845
  %v1672 = vmax.f32 %v448, %v850
  %v1673 = vmax.f32 %v453, %v855
  %v1674 = vmax.f32 %v458, %v860
  %v1675 = vmax.f32 %v463, %v865
  %v1676 = vmax.f32 %v468, %v870
  %v1677 = vmax.f32 %v1181, %v1583
  %v1678 = vmax.f32 %v1186, %v1588
  %v1679 = vmax.f32 %v1191, %v1593
  %v1680 = vmax.f32 %v1196, %v1598
  %v1681 = vmax.f32 %v1201, %v1603
  %v1682 = vmax.f32 %v1206, %v1608
  %v1683 = vmax.f32 %v1211, %v1613
  %v1684 = vmax.f32 %v1216, %v1618
  %v1685 = vmax.f32 %v1221, %v1623
  %v1686 = vmax.f32 %v1226, %v1628
  %v1687 = vmax.f32 %v1231, %v1633
  %v1688 = vmax.f32 %v1236, %v1638
  %v1689 = vmax.f32 %v1241, %v1643
  %v1690 = vmax.f32 %v1246, %v1648
  %v1691 = vmax.f32 %v1251, %v1653
  %v1692 = vmax.f32 %v1256, %v1658
  %v1693 = vmax.f32 %v1661, %v1677
  %v1694 = vmax.f32 %v1662, %v1678
  %v1695 = vmax.f32 %v1663, %v1679
  %v1696 = vmax.f32 %v1664, %v1680
  %v1697 = vmax.f32 %v1665, %v1681
  %v1698 = vmax.f32 %v1666, %v1682
  %v1699 = vmax.f32 %v1667, %v1683
  %v1700 = vmax.f32 %v1668, %v1684
  %v1701 = vmax.f32 %v1669, %v1685
  %v1702 = vmax.f32 %v1670, %v1686
  %v1703 = vmax.f32 %v1671, %v1687
  %v1704 = vmax.f32 %v1672, %v1688
  %v1705 = vmax.f32 %v1673, %v1689
  %v1706 = vmax.f32 %v1674, %v1690
  %v1707 = vmax.f32 %v1675, %v1691
  %v1708 = vmax.f32 %v1676, %v1692
  %v1709 = vmin.f32 %v393, %v795
  %v1710 = vmin.f32 %v398, %v800
  %v1711 = vmin.f32 %v403, %v805
  %v1712 = vmin.f32 %v408, %v810
  %v1713 = vmin.f32 %v413, %v815
  %v1714 = vmin.f32 %v418, %v820
  %v1715 = vmin.f32 %v423, %v825
  %v1716 = vmin.f32 %v428, %v830
  %v1717 = vmin.f32 %v433, %v835
  %v1718 = vmin.f32 %v438, %v840
  %v1719 = vmin.f32 %v443, %v845
  %v1720 = vmin.f32 %v448, %v850
  %v1721 = vmin.f32 %v453, %v855
  %v1722 = vmin.f32 %v458, %v860
  %v1723 = vmin.f32 %v463, %v865
  %v1724 = vmin.f32 %v468, %v870
  %v1725 = vmin.f32 %v1181, %v1583
  %v1726 = vmin.f32 %v1186, %v1588
  %v1727 = vmin.f32 %v1191, %v1593
  %v1728 = vmin.f32 %v1196, %v1598
  %v1729 = vmin.f32 %v1201, %v1603
  %v1730 = vmin.f32 %v1206, %v1608
  %v1731 = vmin.f32 %v1211, %v1613
  %v1732 = vmin.f32 %v1216, %v1618
  %v1733 = vmin.f32 %v1221, %v1623
  %v1734 = vmin.f32 %v1226, %v1628
  %v1735 = vmin.f32 %v1231, %v1633
  %v1736 = vmin.f32 %v1236, %v1638
  %v1737 = vmin.f32 %v1241, %v1643
  %v1738 = vmin.f32 %v1246, %v1648
  %v1739 = vmin.f32 %v1251, %v1653
  %v1740 = vmin.f32 %v1256, %v1658
  %v1741 = vmin.f32 %v1709, %v1725
  %v1742 = vmin.f32 %v1710, %v1726
  %v1743 = vmin.f32 %v1711, %v1727
  %v1744 = vmin.f32 %v1712, %v1728
  %v1745 = vmin.f32 %v1713, %v1729
  %v1746 = vmin.f32 %v1714, %v1730
  %v1747 = vmin.f32 %v1715, %v1731
  %v1748 = vmin.f32 %v1716, %v1732
  %v1749 = vmin.f32 %v1717, %v1733
  %v1750 = vmin.f32 %v1718, %v1734
  %v1751 = vmin.f32 %v1719, %v1735
  %v1752 = vmin.f32 %v1720, %v1736
  %v1753 = vmin.f32 %v1721, %v1737
  %v1754 = vmin.f32 %v1722, %v1738
  %v1755 = vmin.f32 %v1723, %v1739
  %v1756 = vmin.f32 %v1724, %v1740
  %v1757 = vld [vmem:[%s6] sm:$0x1]
  %vm1758 = vcmp.ge.f32.partialorder %v1757, 0.0
  %v1759 = vsel %vm1758, 1, 0
  %v1760 = vlaneseq
  %v1761 = vshrl.u32 %v1760, 7
  %v1762 = vsub.s32 0, %v1761
  %v1763 = vrot.slane %v1759, %v1762
  %vm1764 = vcmp.eq.s32.totalorder %v1763, 1
  %v1765 = vsel %vm1764, %v1693, %v1741
  %v1766 = vsel %vm1764, %v1694, %v1742
  %v1767 = vsel %vm1764, %v1695, %v1743
  %v1768 = vsel %vm1764, %v1696, %v1744
  %v1769 = vsel %vm1764, %v1697, %v1745
  %v1770 = vsel %vm1764, %v1698, %v1746
  %v1771 = vsel %vm1764, %v1699, %v1747
  %v1772 = vsel %vm1764, %v1700, %v1748
  %v1773 = vsel %vm1764, %v1701, %v1749
  %v1774 = vsel %vm1764, %v1702, %v1750
  %v1775 = vsel %vm1764, %v1703, %v1751
  %v1776 = vsel %vm1764, %v1704, %v1752
  %v1777 = vsel %vm1764, %v1705, %v1753
  %v1778 = vsel %vm1764, %v1706, %v1754
  %v1779 = vsel %vm1764, %v1707, %v1755
  %v1780 = vsel %vm1764, %v1708, %v1756
  %vm1781 = vcmask 64512
  %1782 = vst.msk [vmem:[%s7] sm:$0xff] %vm1781, %v1765
  %1783 = vst.msk [vmem:[%s7 + $0x8] sm:$0xff] %vm1781, %v1766
  %1784 = vst.msk [vmem:[%s7 + $0x10] sm:$0xff] %vm1781, %v1767
  %1785 = vst.msk [vmem:[%s7 + $0x18] sm:$0xff] %vm1781, %v1768
  %1786 = vst.msk [vmem:[%s7 + $0x20] sm:$0xff] %vm1781, %v1769
  %1787 = vst.msk [vmem:[%s7 + $0x28] sm:$0xff] %vm1781, %v1770
  %1788 = vst.msk [vmem:[%s7 + $0x30] sm:$0xff] %vm1781, %v1771
  %1789 = vst.msk [vmem:[%s7 + $0x38] sm:$0xff] %vm1781, %v1772
  %1790 = vst.msk [vmem:[%s7 + $0x40] sm:$0xff] %vm1781, %v1773
  %1791 = vst.msk [vmem:[%s7 + $0x48] sm:$0xff] %vm1781, %v1774
  %1792 = vst.msk [vmem:[%s7 + $0x50] sm:$0xff] %vm1781, %v1775
  %1793 = vst.msk [vmem:[%s7 + $0x58] sm:$0xff] %vm1781, %v1776
  %1794 = vst.msk [vmem:[%s7 + $0x60] sm:$0xff] %vm1781, %v1777
  %1795 = vst.msk [vmem:[%s7 + $0x68] sm:$0xff] %vm1781, %v1778
  %1796 = vst.msk [vmem:[%s7 + $0x70] sm:$0xff] %vm1781, %v1779
  %1797 = vst.msk [vmem:[%s7 + $0x78] sm:$0xff] %vm1781, %v1780
  %v1798 = vadd.f32 %v393, %v795
  %v1799 = vadd.f32 %v398, %v800
  %v1800 = vadd.f32 %v403, %v805
  %v1801 = vadd.f32 %v408, %v810
  %v1802 = vadd.f32 %v413, %v815
  %v1803 = vadd.f32 %v418, %v820
  %v1804 = vadd.f32 %v423, %v825
  %v1805 = vadd.f32 %v428, %v830
  %v1806 = vadd.f32 %v433, %v835
  %v1807 = vadd.f32 %v438, %v840
  %v1808 = vadd.f32 %v443, %v845
  %v1809 = vadd.f32 %v448, %v850
  %v1810 = vadd.f32 %v453, %v855
  %v1811 = vadd.f32 %v458, %v860
  %v1812 = vadd.f32 %v463, %v865
  %v1813 = vadd.f32 %v468, %v870
  %v1814 = vadd.f32 %v1181, %v1583
  %v1815 = vadd.f32 %v1186, %v1588
  %v1816 = vadd.f32 %v1191, %v1593
  %v1817 = vadd.f32 %v1196, %v1598
  %v1818 = vadd.f32 %v1201, %v1603
  %v1819 = vadd.f32 %v1206, %v1608
  %v1820 = vadd.f32 %v1211, %v1613
  %v1821 = vadd.f32 %v1216, %v1618
  %v1822 = vadd.f32 %v1221, %v1623
  %v1823 = vadd.f32 %v1226, %v1628
  %v1824 = vadd.f32 %v1231, %v1633
  %v1825 = vadd.f32 %v1236, %v1638
  %v1826 = vadd.f32 %v1241, %v1643
  %v1827 = vadd.f32 %v1246, %v1648
  %v1828 = vadd.f32 %v1251, %v1653
  %v1829 = vadd.f32 %v1256, %v1658
  %v1830 = vadd.f32 %v1798, %v1814
  %v1831 = vadd.f32 %v1799, %v1815
  %v1832 = vadd.f32 %v1800, %v1816
  %v1833 = vadd.f32 %v1801, %v1817
  %v1834 = vadd.f32 %v1802, %v1818
  %v1835 = vadd.f32 %v1803, %v1819
  %v1836 = vadd.f32 %v1804, %v1820
  %v1837 = vadd.f32 %v1805, %v1821
  %v1838 = vadd.f32 %v1806, %v1822
  %v1839 = vadd.f32 %v1807, %v1823
  %v1840 = vadd.f32 %v1808, %v1824
  %v1841 = vadd.f32 %v1809, %v1825
  %v1842 = vadd.f32 %v1810, %v1826
  %v1843 = vadd.f32 %v1811, %v1827
  %v1844 = vadd.f32 %v1812, %v1828
  %v1845 = vadd.f32 %v1813, %v1829
  %v1846 = vsel %vm1781, %v1830, 0.0
  %v1847 = vsel %vm1781, %v1831, 0.0
  %v1848 = vadd.f32 %v1846, %v1847
  %v1849 = vsel %vm1781, %v1832, 0.0
  %v1850 = vadd.f32 %v1848, %v1849
  %v1851 = vsel %vm1781, %v1833, 0.0
  %v1852 = vadd.f32 %v1850, %v1851
  %v1853 = vsel %vm1781, %v1834, 0.0
  %v1854 = vadd.f32 %v1852, %v1853
  %v1855 = vsel %vm1781, %v1835, 0.0
  %v1856 = vadd.f32 %v1854, %v1855
  %v1857 = vsel %vm1781, %v1836, 0.0
  %v1858 = vadd.f32 %v1856, %v1857
  %v1859 = vsel %vm1781, %v1837, 0.0
  %v1860 = vadd.f32 %v1858, %v1859
  %v1861 = vsel %vm1781, %v1838, 0.0
  %v1862 = vadd.f32 %v1860, %v1861
  %v1863 = vsel %vm1781, %v1839, 0.0
  %v1864 = vadd.f32 %v1862, %v1863
  %v1865 = vsel %vm1781, %v1840, 0.0
  %v1866 = vadd.f32 %v1864, %v1865
  %v1867 = vsel %vm1781, %v1841, 0.0
  %v1868 = vadd.f32 %v1866, %v1867
  %v1869 = vsel %vm1781, %v1842, 0.0
  %v1870 = vadd.f32 %v1868, %v1869
  %v1871 = vsel %vm1781, %v1843, 0.0
  %v1872 = vadd.f32 %v1870, %v1871
  %v1873 = vsel %vm1781, %v1844, 0.0
  %v1874 = vadd.f32 %v1872, %v1873
  %v1875 = vsel %vm1781, %v1845, 0.0
  %v1876 = vadd.f32 %v1874, %v1875
  %v1877 = vrot.slane %v1876, 4
  %v1878 = vadd.f32 %v1876, %v1877
  %v1879 = vrot.slane %v1878, 2
  %v1880 = vadd.f32 %v1878, %v1879
  %v1881 = vrot.slane %v1880, 1
  %v1882 = vadd.f32 %v1880, %v1881
  %v1883 = vmul.f32 %v393, %v393
  %v1884 = vmul.f32 %v398, %v398
  %v1885 = vmul.f32 %v403, %v403
  %v1886 = vmul.f32 %v408, %v408
  %v1887 = vmul.f32 %v413, %v413
  %v1888 = vmul.f32 %v418, %v418
  %v1889 = vmul.f32 %v423, %v423
  %v1890 = vmul.f32 %v428, %v428
  %v1891 = vmul.f32 %v433, %v433
  %v1892 = vmul.f32 %v438, %v438
  %v1893 = vmul.f32 %v443, %v443
  %v1894 = vmul.f32 %v448, %v448
  %v1895 = vmul.f32 %v453, %v453
  %v1896 = vmul.f32 %v458, %v458
  %v1897 = vmul.f32 %v463, %v463
  %v1898 = vmul.f32 %v468, %v468
  %v1899 = vmul.f32 %v795, %v795
  %v1900 = vmul.f32 %v800, %v800
  %v1901 = vmul.f32 %v805, %v805
  %v1902 = vmul.f32 %v810, %v810
  %v1903 = vmul.f32 %v815, %v815
  %v1904 = vmul.f32 %v820, %v820
  %v1905 = vmul.f32 %v825, %v825
  %v1906 = vmul.f32 %v830, %v830
  %v1907 = vmul.f32 %v835, %v835
  %v1908 = vmul.f32 %v840, %v840
  %v1909 = vmul.f32 %v845, %v845
  %v1910 = vmul.f32 %v850, %v850
  %v1911 = vmul.f32 %v855, %v855
  %v1912 = vmul.f32 %v860, %v860
  %v1913 = vmul.f32 %v865, %v865
  %v1914 = vmul.f32 %v870, %v870
  %v1915 = vadd.f32 %v1883, %v1899
  %v1916 = vadd.f32 %v1884, %v1900
  %v1917 = vadd.f32 %v1885, %v1901
  %v1918 = vadd.f32 %v1886, %v1902
  %v1919 = vadd.f32 %v1887, %v1903
  %v1920 = vadd.f32 %v1888, %v1904
  %v1921 = vadd.f32 %v1889, %v1905
  %v1922 = vadd.f32 %v1890, %v1906
  %v1923 = vadd.f32 %v1891, %v1907
  %v1924 = vadd.f32 %v1892, %v1908
  %v1925 = vadd.f32 %v1893, %v1909
  %v1926 = vadd.f32 %v1894, %v1910
  %v1927 = vadd.f32 %v1895, %v1911
  %v1928 = vadd.f32 %v1896, %v1912
  %v1929 = vadd.f32 %v1897, %v1913
  %v1930 = vadd.f32 %v1898, %v1914
  %v1931 = vmul.f32 %v1181, %v1181
  %v1932 = vmul.f32 %v1186, %v1186
  %v1933 = vmul.f32 %v1191, %v1191
  %v1934 = vmul.f32 %v1196, %v1196
  %v1935 = vmul.f32 %v1201, %v1201
  %v1936 = vmul.f32 %v1206, %v1206
  %v1937 = vmul.f32 %v1211, %v1211
  %v1938 = vmul.f32 %v1216, %v1216
  %v1939 = vmul.f32 %v1221, %v1221
  %v1940 = vmul.f32 %v1226, %v1226
  %v1941 = vmul.f32 %v1231, %v1231
  %v1942 = vmul.f32 %v1236, %v1236
  %v1943 = vmul.f32 %v1241, %v1241
  %v1944 = vmul.f32 %v1246, %v1246
  %v1945 = vmul.f32 %v1251, %v1251
  %v1946 = vmul.f32 %v1256, %v1256
  %v1947 = vmul.f32 %v1583, %v1583
  %v1948 = vmul.f32 %v1588, %v1588
  %v1949 = vmul.f32 %v1593, %v1593
  %v1950 = vmul.f32 %v1598, %v1598
  %v1951 = vmul.f32 %v1603, %v1603
  %v1952 = vmul.f32 %v1608, %v1608
  %v1953 = vmul.f32 %v1613, %v1613
  %v1954 = vmul.f32 %v1618, %v1618
  %v1955 = vmul.f32 %v1623, %v1623
  %v1956 = vmul.f32 %v1628, %v1628
  %v1957 = vmul.f32 %v1633, %v1633
  %v1958 = vmul.f32 %v1638, %v1638
  %v1959 = vmul.f32 %v1643, %v1643
  %v1960 = vmul.f32 %v1648, %v1648
  %v1961 = vmul.f32 %v1653, %v1653
  %v1962 = vmul.f32 %v1658, %v1658
  %v1963 = vadd.f32 %v1931, %v1947
  %v1964 = vadd.f32 %v1932, %v1948
  %v1965 = vadd.f32 %v1933, %v1949
  %v1966 = vadd.f32 %v1934, %v1950
  %v1967 = vadd.f32 %v1935, %v1951
  %v1968 = vadd.f32 %v1936, %v1952
  %v1969 = vadd.f32 %v1937, %v1953
  %v1970 = vadd.f32 %v1938, %v1954
  %v1971 = vadd.f32 %v1939, %v1955
  %v1972 = vadd.f32 %v1940, %v1956
  %v1973 = vadd.f32 %v1941, %v1957
  %v1974 = vadd.f32 %v1942, %v1958
  %v1975 = vadd.f32 %v1943, %v1959
  %v1976 = vadd.f32 %v1944, %v1960
  %v1977 = vadd.f32 %v1945, %v1961
  %v1978 = vadd.f32 %v1946, %v1962
  %v1979 = vadd.f32 %v1915, %v1963
  %v1980 = vadd.f32 %v1916, %v1964
  %v1981 = vadd.f32 %v1917, %v1965
  %v1982 = vadd.f32 %v1918, %v1966
  %v1983 = vadd.f32 %v1919, %v1967
  %v1984 = vadd.f32 %v1920, %v1968
  %v1985 = vadd.f32 %v1921, %v1969
  %v1986 = vadd.f32 %v1922, %v1970
  %v1987 = vadd.f32 %v1923, %v1971
  %v1988 = vadd.f32 %v1924, %v1972
  %v1989 = vadd.f32 %v1925, %v1973
  %v1990 = vadd.f32 %v1926, %v1974
  %v1991 = vadd.f32 %v1927, %v1975
  %v1992 = vadd.f32 %v1928, %v1976
  %v1993 = vadd.f32 %v1929, %v1977
  %v1994 = vadd.f32 %v1930, %v1978
  %v1995 = vsel %vm1781, %v1979, 0.0
  %v1996 = vsel %vm1781, %v1980, 0.0
  %v1997 = vadd.f32 %v1995, %v1996
  %v1998 = vsel %vm1781, %v1981, 0.0
  %v1999 = vadd.f32 %v1997, %v1998
  %v2000 = vsel %vm1781, %v1982, 0.0
  %v2001 = vadd.f32 %v1999, %v2000
  %v2002 = vsel %vm1781, %v1983, 0.0
  %v2003 = vadd.f32 %v2001, %v2002
  %v2004 = vsel %vm1781, %v1984, 0.0
  %v2005 = vadd.f32 %v2003, %v2004
  %v2006 = vsel %vm1781, %v1985, 0.0
  %v2007 = vadd.f32 %v2005, %v2006
  %v2008 = vsel %vm1781, %v1986, 0.0
  %v2009 = vadd.f32 %v2007, %v2008
  %v2010 = vsel %vm1781, %v1987, 0.0
  %v2011 = vadd.f32 %v2009, %v2010
  %v2012 = vsel %vm1781, %v1988, 0.0
  %v2013 = vadd.f32 %v2011, %v2012
  %v2014 = vsel %vm1781, %v1989, 0.0
  %v2015 = vadd.f32 %v2013, %v2014
  %v2016 = vsel %vm1781, %v1990, 0.0
  %v2017 = vadd.f32 %v2015, %v2016
  %v2018 = vsel %vm1781, %v1991, 0.0
  %v2019 = vadd.f32 %v2017, %v2018
  %v2020 = vsel %vm1781, %v1992, 0.0
  %v2021 = vadd.f32 %v2019, %v2020
  %v2022 = vsel %vm1781, %v1993, 0.0
  %v2023 = vadd.f32 %v2021, %v2022
  %v2024 = vsel %vm1781, %v1994, 0.0
  %v2025 = vadd.f32 %v2023, %v2024
  %v2026 = vrot.slane %v2025, 4
  %v2027 = vadd.f32 %v2025, %v2026
  %v2028 = vrot.slane %v2027, 2
  %v2029 = vadd.f32 %v2027, %v2028
  %v2030 = vrot.slane %v2029, 1
  %v2031 = vadd.f32 %v2029, %v2030
  %2032 = vst.msk [vmem:[%s8] sm:$0xff] %vm1781, %v1882
  %2033 = vst.msk [vmem:[%s9] sm:$0xff] %vm1781, %v2031
  // Predicated region
  $region30: #{_lambda_.4} parent=0 // pred_check
    _
  $region31: #{_lambda_.4} parent=0 // pred_check_branch
    %2035 = sbr.rel (0) target = $region33
  $region32: #{_lambda_.4} parent=0 // pred_region
    _
  $region33: #{_lambda_.4} parent=0 // pred_fallthru
    _
  // Predicated region
  $region34: #{_lambda_.4} parent=0 // pred_check
    _
  $region35: #{_lambda_.4} parent=0 // pred_check_branch
    %2037 = sbr.rel (0) target = $region37
  $region36: #{_lambda_.4} parent=0 // pred_region
    _
  $region37: #{_lambda_.4} parent=0 // pred_fallthru
    _
  // Predicated region
  $region38: #{_lambda_.4} parent=0 // pred_check
    _
  $region39: #{_lambda_.4} parent=0 // pred_check_branch
    %2039 = sbr.rel (0) target = $region41
  $region40: #{_lambda_.4} parent=0 // pred_region
    _
  $region41: #{_lambda_.4} parent=0 // pred_fallthru
    _
  // Predicated region
  $region42: #{_lambda_.4} parent=0 // pred_check
    _
  $region43: #{_lambda_.4} parent=0 // pred_check_branch
    %2041 = sbr.rel (0) target = $region45
  $region44: #{_lambda_.4} parent=0 // pred_region
    _
  $region45: #{_lambda_.4} parent=0 // pred_fallthru
    _
  // Predicated region
  $region46: #{_lambda_.4} parent=0 // pred_check
    _
  $region47: #{_lambda_.4} parent=0 // pred_check_branch
    %2043 = sbr.rel (0) target = $region49
  $region48: #{_lambda_.4} parent=0 // pred_region
    _
  $region49: #{_lambda_.4} parent=0 // pred_fallthru
    _
  // Predicated region
  $region50: #{_lambda_.4} parent=0 // pred_check
    _
  $region51: #{_lambda_.4} parent=0 // pred_check_branch
    %2045 = sbr.rel (0) target = $region53
  $region52: #{_lambda_.4} parent=0 // pred_region
    _
  $region53: #{_lambda_.4} parent=0 // pred_fallthru
    _

// kernel: _lambda_.5
$region0: #{_lambda_.5}
  #allocation0 [shape = 'u32[]', space=smem, size = 0x4, offset = 0x4, fixed_abs, tag = 'smem constant byte address 0x4 - core index']
  #allocation1 [shape = 'u32[144,128]{1,0:T(1,128)}', space=vmem, size = 0x12000, scoped, tag = 'internal scratch']
  #allocation2 [shape = 'f32[2,14,19,8]{3,2,1,0:T(8,128)}', space=vmem, size = 0x54000, scoped, tag = 'scratch operand']
  %s0 = inlined_call_operand.vmem [shape: f32[2,8,8,8], index: 0, kind: input, shape index: {}]
  %s1 = inlined_call_operand.vmem [shape: f32[1,8], index: 1, kind: input, shape index: {}]
  %s2 = inlined_call_operand.vmem [shape: f32[1,8], index: 2, kind: input, shape index: {}]
  %s3 = inlined_call_operand.vmem [shape: f32[49,8], index: 3, kind: input, shape index: {}]
  %s4 = inlined_call_operand.vmem [shape: f32[1,8], index: 4, kind: input, shape index: {}]
  %s5 = inlined_call_operand.vmem [shape: f32[1,8], index: 5, kind: input, shape index: {}]
  %s6 = inlined_call_operand.vmem [shape: f32[2,8,8,8], index: 6, kind: output, shape index: {}]
  %s7 = sld [smem:[#allocation0]]
  $region34: #{_lambda_.5} parent=0
    _
  %s9 = ssub.s32 1, %s7
  %s10 = scalar_select 0, %s9, %s7
  // Predicated region
  $region2: #{_lambda_.5} parent=0 // pred_check
    _
  $region3: #{_lambda_.5} parent=0 // pred_check_branch
    %12 = sbr.rel (0) target = $region5
  $region4: #{_lambda_.5} parent=0 // pred_region
    _
  $region5: #{_lambda_.5} parent=0 // pred_fallthru
    _
  // Predicated region
  $region6: #{_lambda_.5} parent=0 // pred_check
    _
  $region7: #{_lambda_.5} parent=0 // pred_check_branch
    %14 = sbr.rel (0) target = $region9
  $region8: #{_lambda_.5} parent=0 // pred_region
    _
  $region9: #{_lambda_.5} parent=0 // pred_fallthru
    _
  // Predicated region
  $region10: #{_lambda_.5} parent=0 // pred_check
    _
  $region11: #{_lambda_.5} parent=0 // pred_check_branch
    %16 = sbr.rel (0) target = $region13
  $region12: #{_lambda_.5} parent=0 // pred_region
    _
  $region13: #{_lambda_.5} parent=0 // pred_fallthru
    _
  // Predicated region
  $region14: #{_lambda_.5} parent=0 // pred_check
    _
  $region15: #{_lambda_.5} parent=0 // pred_check_branch
    %18 = sbr.rel (0) target = $region17
  $region16: #{_lambda_.5} parent=0 // pred_region
    _
  $region17: #{_lambda_.5} parent=0 // pred_fallthru
    _
  // Predicated region
  $region18: #{_lambda_.5} parent=0 // pred_check
    _
  $region19: #{_lambda_.5} parent=0 // pred_check_branch
    %20 = sbr.rel (0) target = $region21
  $region20: #{_lambda_.5} parent=0 // pred_region
    _
  $region21: #{_lambda_.5} parent=0 // pred_fallthru
    _
  // Predicated region
  $region22: #{_lambda_.5} parent=0 // pred_check
    _
  $region23: #{_lambda_.5} parent=0 // pred_check_branch
    %22 = sbr.rel (0) target = $region25
  $region24: #{_lambda_.5} parent=0 // pred_region
    _
  $region25: #{_lambda_.5} parent=0 // pred_fallthru
    _
  %v23 = vld [vmem:[%s0] sm:$0xff]
  %v24 = vld [vmem:[%s0 + $0x8] sm:$0xff]
  %v25 = vld [vmem:[%s0 + $0x10] sm:$0xff]
  %v26 = vld [vmem:[%s0 + $0x18] sm:$0xff]
  %v27 = vld [vmem:[%s0 + $0x20] sm:$0xff]
  %v28 = vld [vmem:[%s0 + $0x28] sm:$0xff]
  %v29 = vld [vmem:[%s0 + $0x30] sm:$0xff]
  %v30 = vld [vmem:[%s0 + $0x38] sm:$0xff]
  %v31 = vld [vmem:[%s0 + $0x40] sm:$0xff]
  %v32 = vld [vmem:[%s0 + $0x48] sm:$0xff]
  %v33 = vld [vmem:[%s0 + $0x50] sm:$0xff]
  %v34 = vld [vmem:[%s0 + $0x58] sm:$0xff]
  %v35 = vld [vmem:[%s0 + $0x60] sm:$0xff]
  %v36 = vld [vmem:[%s0 + $0x68] sm:$0xff]
  %v37 = vld [vmem:[%s0 + $0x70] sm:$0xff]
  %v38 = vld [vmem:[%s0 + $0x78] sm:$0xff]
  %v39 = vld [vmem:[%s1] sm:$0x1]
  %v41 = vlaneseq
  %v42 = vshrl.u32 %v41, 7
  %v43 = vsub.s32 0, %v42
  %v44 = vrot.slane %v39, %v43
  %v46 = vmul.f32 %v23, %v44
  %v47 = vmul.f32 %v24, %v44
  %v48 = vmul.f32 %v25, %v44
  %v49 = vmul.f32 %v26, %v44
  %v50 = vmul.f32 %v27, %v44
  %v51 = vmul.f32 %v28, %v44
  %v52 = vmul.f32 %v29, %v44
  %v53 = vmul.f32 %v30, %v44
  %v54 = vmul.f32 %v31, %v44
  %v55 = vmul.f32 %v32, %v44
  %v56 = vmul.f32 %v33, %v44
  %v57 = vmul.f32 %v34, %v44
  %v58 = vmul.f32 %v35, %v44
  %v59 = vmul.f32 %v36, %v44
  %v60 = vmul.f32 %v37, %v44
  %v61 = vmul.f32 %v38, %v44
  %v62 = vld [vmem:[%s2] sm:$0x1]
  %v64 = vlaneseq
  %v65 = vshrl.u32 %v64, 7
  %v66 = vsub.s32 0, %v65
  %v67 = vrot.slane %v62, %v66
  %v69 = vadd.f32 %v46, %v67
  %v70 = vadd.f32 %v47, %v67
  %v71 = vadd.f32 %v48, %v67
  %v72 = vadd.f32 %v49, %v67
  %v73 = vadd.f32 %v50, %v67
  %v74 = vadd.f32 %v51, %v67
  %v75 = vadd.f32 %v52, %v67
  %v76 = vadd.f32 %v53, %v67
  %v77 = vadd.f32 %v54, %v67
  %v78 = vadd.f32 %v55, %v67
  %v79 = vadd.f32 %v56, %v67
  %v80 = vadd.f32 %v57, %v67
  %v81 = vadd.f32 %v58, %v67
  %v82 = vadd.f32 %v59, %v67
  %v83 = vadd.f32 %v60, %v67
  %v84 = vadd.f32 %v61, %v67
  %v85 = vmax.f32 %v69, 0.0
  %v86 = vmax.f32 %v70, 0.0
  %v87 = vmax.f32 %v71, 0.0
  %v88 = vmax.f32 %v72, 0.0
  %v89 = vmax.f32 %v73, 0.0
  %v90 = vmax.f32 %v74, 0.0
  %v91 = vmax.f32 %v75, 0.0
  %v92 = vmax.f32 %v76, 0.0
  %v93 = vmax.f32 %v77, 0.0
  %v94 = vmax.f32 %v78, 0.0
  %v95 = vmax.f32 %v79, 0.0
  %v96 = vmax.f32 %v80, 0.0
  %v97 = vmax.f32 %v81, 0.0
  %v98 = vmax.f32 %v82, 0.0
  %v99 = vmax.f32 %v83, 0.0
  %v100 = vmax.f32 %v84, 0.0
  %vm101 = vcmask 64512
  %102 = vst.msk [vmem:[#allocation2] sm:$0xff] %vm101, 0.0
  %103 = vst.msk [vmem:[#allocation2 + $0x8] sm:$0xff] %vm101, 0.0
  %vm104 = vcmask 59392
  %105 = vst.msk [vmem:[#allocation2 + $0x10] sm:$0x7] %vm104, 0.0
  %106 = vst.msk [vmem:[#allocation2 + $0x18] sm:$0xff] %vm101, 0.0
  %107 = vst.msk [vmem:[#allocation2 + $0x20] sm:$0xff] %vm101, 0.0
  %108 = vst.msk [vmem:[#allocation2 + $0x28] sm:$0x7] %vm104, 0.0
  %109 = vst.msk [vmem:[#allocation2 + $0x30] sm:$0xff] %vm101, 0.0
  %110 = vst.msk [vmem:[#allocation2 + $0x38] sm:$0xff] %vm101, 0.0
  %111 = vst.msk [vmem:[#allocation2 + $0x40] sm:$0x7] %vm104, 0.0
  %112 = vst.msk [vmem:[#allocation2 + $0x48] sm:$0xff] %vm101, 0.0
  %113 = vst.msk [vmem:[#allocation2 + $0x50] sm:$0xff] %vm101, 0.0
  %114 = vst.msk [vmem:[#allocation2 + $0x58] sm:$0x7] %vm104, 0.0
  %115 = vst.msk [vmem:[#allocation2 + $0x60] sm:$0xff] %vm101, 0.0
  %116 = vst.msk [vmem:[#allocation2 + $0x68] sm:$0xff] %vm101, 0.0
  %117 = vst.msk [vmem:[#allocation2 + $0x70] sm:$0x7] %vm104, 0.0
  %118 = vst.msk [vmem:[#allocation2 + $0x78] sm:$0xff] %vm101, 0.0
  %119 = vst.msk [vmem:[#allocation2 + $0x80] sm:$0xff] %vm101, 0.0
  %120 = vst.msk [vmem:[#allocation2 + $0x88] sm:$0x7] %vm104, 0.0
  %121 = vst.msk [vmem:[#allocation2 + $0x90] sm:$0xff] %vm101, 0.0
  %122 = vst.msk [vmem:[#allocation2 + $0x98] sm:$0xff] %vm101, 0.0
  %123 = vst.msk [vmem:[#allocation2 + $0xa0] sm:$0x7] %vm104, 0.0
  %124 = vst.msk [vmem:[#allocation2 + $0xa8] sm:$0xff] %vm101, 0.0
  %125 = vst.msk [vmem:[#allocation2 + $0xb0] sm:$0xff] %vm101, 0.0
  %126 = vst.msk [vmem:[#allocation2 + $0xb8] sm:$0x7] %vm104, 0.0
  %127 = vst.msk [vmem:[#allocation2 + $0xc0] sm:$0xff] %vm101, 0.0
  %128 = vst.msk [vmem:[#allocation2 + $0xc8] sm:$0xff] %vm101, 0.0
  %129 = vst.msk [vmem:[#allocation2 + $0xd0] sm:$0x7] %vm104, 0.0
  %130 = vst.msk [vmem:[#allocation2 + $0xd8] sm:$0xff] %vm101, 0.0
  %131 = vst.msk [vmem:[#allocation2 + $0xe0] sm:$0xff] %vm101, 0.0
  %132 = vst.msk [vmem:[#allocation2 + $0xe8] sm:$0x7] %vm104, 0.0
  %133 = vst.msk [vmem:[#allocation2 + $0xf0] sm:$0xff] %vm101, 0.0
  %134 = vst.msk [vmem:[#allocation2 + $0xf8] sm:$0xff] %vm101, 0.0
  %135 = vst.msk [vmem:[#allocation2 + $0x100] sm:$0x7] %vm104, 0.0
  %136 = vst.msk [vmem:[#allocation2 + $0x108] sm:$0xff] %vm101, 0.0
  %137 = vst.msk [vmem:[#allocation2 + $0x110] sm:$0xff] %vm101, 0.0
  %138 = vst.msk [vmem:[#allocation2 + $0x118] sm:$0x7] %vm104, 0.0
  %139 = vst.msk [vmem:[#allocation2 + $0x120] sm:$0xff] %vm101, 0.0
  %140 = vst.msk [vmem:[#allocation2 + $0x128] sm:$0xff] %vm101, 0.0
  %141 = vst.msk [vmem:[#allocation2 + $0x130] sm:$0x7] %vm104, 0.0
  %142 = vst.msk [vmem:[#allocation2 + $0x138] sm:$0xff] %vm101, 0.0
  %143 = vst.msk [vmem:[#allocation2 + $0x140] sm:$0xff] %vm101, 0.0
  %144 = vst.msk [vmem:[#allocation2 + $0x148] sm:$0x7] %vm104, 0.0
  %145 = vst.msk [vmem:[#allocation2 + $0x150] sm:$0xff] %vm101, 0.0
  %146 = vst.msk [vmem:[#allocation2 + $0x158] sm:$0xff] %vm101, 0.0
  %147 = vst.msk [vmem:[#allocation2 + $0x160] sm:$0x7] %vm104, 0.0
  %148 = vst.msk [vmem:[#allocation2 + $0x168] sm:$0xff] %vm101, 0.0
  %149 = vst.msk [vmem:[#allocation2 + $0x170] sm:$0xff] %vm101, 0.0
  %150 = vst.msk [vmem:[#allocation2 + $0x178] sm:$0x7] %vm104, 0.0
  %151 = vst.msk [vmem:[#allocation2 + $0x180] sm:$0xff] %vm101, 0.0
  %152 = vst.msk [vmem:[#allocation2 + $0x188] sm:$0xff] %vm101, 0.0
  %153 = vst.msk [vmem:[#allocation2 + $0x190] sm:$0x7] %vm104, 0.0
  %154 = vst.msk [vmem:[#allocation2 + $0x198] sm:$0xff] %vm101, 0.0
  %155 = vst.msk [vmem:[#allocation2 + $0x1a0] sm:$0xff] %vm101, 0.0
  %156 = vst.msk [vmem:[#allocation2 + $0x1a8] sm:$0x7] %vm104, 0.0
  %157 = vst.msk [vmem:[#allocation2 + $0x1b0] sm:$0xff] %vm101, 0.0
  %158 = vst.msk [vmem:[#allocation2 + $0x1b8] sm:$0xff] %vm101, 0.0
  %159 = vst.msk [vmem:[#allocation2 + $0x1c0] sm:$0x7] %vm104, 0.0
  %160 = vst.msk [vmem:[#allocation2 + $0x1c8] sm:$0xff] %vm101, 0.0
  %161 = vst.msk [vmem:[#allocation2 + $0x1d0] sm:$0xff] %vm101, 0.0
  %162 = vst.msk [vmem:[#allocation2 + $0x1d8] sm:$0x7] %vm104, 0.0
  %163 = vst.msk [vmem:[#allocation2 + $0x1e0] sm:$0xff] %vm101, 0.0
  %164 = vst.msk [vmem:[#allocation2 + $0x1e8] sm:$0xff] %vm101, 0.0
  %165 = vst.msk [vmem:[#allocation2 + $0x1f0] sm:$0x7] %vm104, 0.0
  %166 = vst.msk [vmem:[#allocation2 + $0x1f8] sm:$0xff] %vm101, 0.0
  %167 = vst.msk [vmem:[#allocation2 + $0x200] sm:$0xff] %vm101, 0.0
  %168 = vst.msk [vmem:[#allocation2 + $0x208] sm:$0x7] %vm104, 0.0
  %169 = vst.msk [vmem:[#allocation2 + $0x210] sm:$0xff] %vm101, 0.0
  %170 = vst.msk [vmem:[#allocation2 + $0x218] sm:$0xff] %vm101, 0.0
  %171 = vst.msk [vmem:[#allocation2 + $0x220] sm:$0x7] %vm104, 0.0
  %172 = vst.msk [vmem:[#allocation2 + $0x228] sm:$0xff] %vm101, 0.0
  %173 = vst.msk [vmem:[#allocation2 + $0x230] sm:$0xff] %vm101, 0.0
  %174 = vst.msk [vmem:[#allocation2 + $0x238] sm:$0x7] %vm104, 0.0
  %175 = vst.msk [vmem:[#allocation2 + $0x240] sm:$0xff] %vm101, 0.0
  %176 = vst.msk [vmem:[#allocation2 + $0x248] sm:$0xff] %vm101, 0.0
  %177 = vst.msk [vmem:[#allocation2 + $0x250] sm:$0x7] %vm104, 0.0
  %178 = vst.msk [vmem:[#allocation2 + $0x258] sm:$0xff] %vm101, 0.0
  %179 = vst.msk [vmem:[#allocation2 + $0x260] sm:$0xff] %vm101, 0.0
  %180 = vst.msk [vmem:[#allocation2 + $0x268] sm:$0x7] %vm104, 0.0
  %181 = vst.msk [vmem:[#allocation2 + $0x270] sm:$0xff] %vm101, 0.0
  %182 = vst.msk [vmem:[#allocation2 + $0x278] sm:$0xff] %vm101, 0.0
  %183 = vst.msk [vmem:[#allocation2 + $0x280] sm:$0x7] %vm104, 0.0
  %184 = vst.msk [vmem:[#allocation2 + $0x288] sm:$0xff] %vm101, 0.0
  %185 = vst.msk [vmem:[#allocation2 + $0x290] sm:$0xff] %vm101, 0.0
  %186 = vst.msk [vmem:[#allocation2 + $0x298] sm:$0x7] %vm104, 0.0
  %s187 = scalar_lea.vmem [#allocation2], 72
  %188 = vst.msk [vmem:[%s187 + $0x8] sm:$0xff] %vm101, %v85
  %189 = vst.msk [vmem:[%s187 + $0x20] sm:$0xff] %vm101, %v86
  %190 = vst.msk [vmem:[%s187 + $0x38] sm:$0xff] %vm101, %v87
  %191 = vst.msk [vmem:[%s187 + $0x50] sm:$0xff] %vm101, %v88
  %192 = vst.msk [vmem:[%s187 + $0x68] sm:$0xff] %vm101, %v89
  %193 = vst.msk [vmem:[%s187 + $0x80] sm:$0xff] %vm101, %v90
  %194 = vst.msk [vmem:[%s187 + $0x98] sm:$0xff] %vm101, %v91
  %195 = vst.msk [vmem:[%s187 + $0xb0] sm:$0xff] %vm101, %v92
  %196 = vst.msk [vmem:[%s187 + $0x158] sm:$0xff] %vm101, %v93
  %197 = vst.msk [vmem:[%s187 + $0x170] sm:$0xff] %vm101, %v94
  %198 = vst.msk [vmem:[%s187 + $0x188] sm:$0xff] %vm101, %v95
  %199 = vst.msk [vmem:[%s187 + $0x1a0] sm:$0xff] %vm101, %v96
  %200 = vst.msk [vmem:[%s187 + $0x1b8] sm:$0xff] %vm101, %v97
  %201 = vst.msk [vmem:[%s187 + $0x1d0] sm:$0xff] %vm101, %v98
  %202 = vst.msk [vmem:[%s187 + $0x1e8] sm:$0xff] %vm101, %v99
  %203 = vst.msk [vmem:[%s187 + $0x200] sm:$0xff] %vm101, %v100
  %v204 = vld [vmem:[%s3] sm:$0xff]
  %v205 = vld [vmem:[%s3 + $0x8] sm:$0xff]
  %v206 = vld [vmem:[%s3 + $0x10] sm:$0xff]
  %v207 = vld [vmem:[%s3 + $0x18] sm:$0xff]
  %v208 = vld [vmem:[%s3 + $0x20] sm:$0xff]
  %v209 = vld [vmem:[%s3 + $0x28] sm:$0xff]
  %v210 = vld [vmem:[%s3 + $0x30] sm:$0x1]
  %v211 = vld [vmem:[#allocation2 + $0x5] sm:$0xff]
  %v212 = vld [vmem:[#allocation2 + $0x1d] sm:$0xff]
  %v213 = vld [vmem:[#allocation2 + $0x35] sm:$0xff]
  %v214 = vld [vmem:[#allocation2 + $0x4d] sm:$0xff]
  %v215 = vld [vmem:[#allocation2 + $0x65] sm:$0xff]
  %v216 = vld [vmem:[#allocation2 + $0x7d] sm:$0xff]
  %v217 = vld [vmem:[#allocation2 + $0x95] sm:$0xff]
  %v218 = vld [vmem:[#allocation2 + $0xad] sm:$0xff]
  %v219 = vld [vmem:[#allocation2 + $0x155] sm:$0xff]
  %v220 = vld [vmem:[#allocation2 + $0x16d] sm:$0xff]
  %v221 = vld [vmem:[#allocation2 + $0x185] sm:$0xff]
  %v222 = vld [vmem:[#allocation2 + $0x19d] sm:$0xff]
  %v223 = vld [vmem:[#allocation2 + $0x1b5] sm:$0xff]
  %v224 = vld [vmem:[#allocation2 + $0x1cd] sm:$0xff]
  %v225 = vld [vmem:[#allocation2 + $0x1e5] sm:$0xff]
  %v226 = vld [vmem:[#allocation2 + $0x1fd] sm:$0xff]
  %v227 = vlaneseq
  %v228 = vshrl.u32 %v227, 7
  %v229 = vsub.s32 0, %v228
  %v230 = vrot.slane %v204, %v229
  %v231 = vmul.f32 %v211, %v230
  %v232 = vmul.f32 %v212, %v230
  %v233 = vmul.f32 %v213, %v230
  %v234 = vmul.f32 %v214, %v230
  %v235 = vmul.f32 %v215, %v230
  %v236 = vmul.f32 %v216, %v230
  %v237 = vmul.f32 %v217, %v230
  %v238 = vmul.f32 %v218, %v230
  %v239 = vmul.f32 %v219, %v230
  %v240 = vmul.f32 %v220, %v230
  %v241 = vmul.f32 %v221, %v230
  %v242 = vmul.f32 %v222, %v230
  %v243 = vmul.f32 %v223, %v230
  %v244 = vmul.f32 %v224, %v230
  %v245 = vmul.f32 %v225, %v230
  %v246 = vmul.f32 %v226, %v230
  %v247 = vadd.f32 %v231, 0.0
  %v248 = vadd.f32 %v232, 0.0
  %v249 = vadd.f32 %v233, 0.0
  %v250 = vadd.f32 %v234, 0.0
  %v251 = vadd.f32 %v235, 0.0
  %v252 = vadd.f32 %v236, 0.0
  %v253 = vadd.f32 %v237, 0.0
  %v254 = vadd.f32 %v238, 0.0
  %v255 = vadd.f32 %v239, 0.0
  %v256 = vadd.f32 %v240, 0.0
  %v257 = vadd.f32 %v241, 0.0
  %v258 = vadd.f32 %v242, 0.0
  %v259 = vadd.f32 %v243, 0.0
  %v260 = vadd.f32 %v244, 0.0
  %v261 = vadd.f32 %v245, 0.0
  %v262 = vadd.f32 %v246, 0.0
  %v263 = vld [vmem:[#allocation2 + $0x6] sm:$0xff]
  %v264 = vld [vmem:[#allocation2 + $0x1e] sm:$0xff]
  %v265 = vld [vmem:[#allocation2 + $0x36] sm:$0xff]
  %v266 = vld [vmem:[#allocation2 + $0x4e] sm:$0xff]
  %v267 = vld [vmem:[#allocation2 + $0x66] sm:$0xff]
  %v268 = vld [vmem:[#allocation2 + $0x7e] sm:$0xff]
  %v269 = vld [vmem:[#allocation2 + $0x96] sm:$0xff]
  %v270 = vld [vmem:[#allocation2 + $0xae] sm:$0xff]
  %v271 = vld [vmem:[#allocation2 + $0x156] sm:$0xff]
  %v272 = vld [vmem:[#allocation2 + $0x16e] sm:$0xff]
  %v273 = vld [vmem:[#allocation2 + $0x186] sm:$0xff]
  %v274 = vld [vmem:[#allocation2 + $0x19e] sm:$0xff]
  %v275 = vld [vmem:[#allocation2 + $0x1b6] sm:$0xff]
  %v276 = vld [vmem:[#allocation2 + $0x1ce] sm:$0xff]
  %v277 = vld [vmem:[#allocation2 + $0x1e6] sm:$0xff]
  %v278 = vld [vmem:[#allocation2 + $0x1fe] sm:$0xff]
  %v279 = vlaneseq
  %v280 = vshrl.u32 %v279, 7
  %v281 = vsub.s32 1, %v280
  %v282 = vrot.slane %v204, %v281
  %v283 = vmul.f32 %v263, %v282
  %v284 = vmul.f32 %v264, %v282
  %v285 = vmul.f32 %v265, %v282
  %v286 = vmul.f32 %v266, %v282
  %v287 = vmul.f32 %v267, %v282
  %v288 = vmul.f32 %v268, %v282
  %v289 = vmul.f32 %v269, %v282
  %v290 = vmul.f32 %v270, %v282
  %v291 = vmul.f32 %v271, %v282
  %v292 = vmul.f32 %v272, %v282
  %v293 = vmul.f32 %v273, %v282
  %v294 = vmul.f32 %v274, %v282
  %v295 = vmul.f32 %v275, %v282
  %v296 = vmul.f32 %v276, %v282
  %v297 = vmul.f32 %v277, %v282
  %v298 = vmul.f32 %v278, %v282
  %v299 = vadd.f32 %v283, 0.0
  %v300 = vadd.f32 %v284, 0.0
  %v301 = vadd.f32 %v285, 0.0
  %v302 = vadd.f32 %v286, 0.0
  %v303 = vadd.f32 %v287, 0.0
  %v304 = vadd.f32 %v288, 0.0
  %v305 = vadd.f32 %v289, 0.0
  %v306 = vadd.f32 %v290, 0.0
  %v307 = vadd.f32 %v291, 0.0
  %v308 = vadd.f32 %v292, 0.0
  %v309 = vadd.f32 %v293, 0.0
  %v310 = vadd.f32 %v294, 0.0
  %v311 = vadd.f32 %v295, 0.0
  %v312 = vadd.f32 %v296, 0.0
  %v313 = vadd.f32 %v297, 0.0
  %v314 = vadd.f32 %v298, 0.0
  %v315 = vld [vmem:[#allocation2 + $0x7] sm:$0xff]
  %v316 = vld [vmem:[#allocation2 + $0x1f] sm:$0xff]
  %v317 = vld [vmem:[#allocation2 + $0x37] sm:$0xff]
  %v318 = vld [vmem:[#allocation2 + $0x4f] sm:$0xff]
  %v319 = vld [vmem:[#allocation2 + $0x67] sm:$0xff]
  %v320 = vld [vmem:[#allocation2 + $0x7f] sm:$0xff]
  %v321 = vld [vmem:[#allocation2 + $0x97] sm:$0xff]
  %v322 = vld [vmem:[#allocation2 + $0xaf] sm:$0xff]
  %v323 = vld [vmem:[#allocation2 + $0x157] sm:$0xff]
  %v324 = vld [vmem:[#allocation2 + $0x16f] sm:$0xff]
  %v325 = vld [vmem:[#allocation2 + $0x187] sm:$0xff]
  %v326 = vld [vmem:[#allocation2 + $0x19f] sm:$0xff]
  %v327 = vld [vmem:[#allocation2 + $0x1b7] sm:$0xff]
  %v328 = vld [vmem:[#allocation2 + $0x1cf] sm:$0xff]
  %v329 = vld [vmem:[#allocation2 + $0x1e7] sm:$0xff]
  %v330 = vld [vmem:[#allocation2 + $0x1ff] sm:$0xff]
  %v331 = vlaneseq
  %v332 = vshrl.u32 %v331, 7
  %v333 = vsub.s32 2, %v332
  %v334 = vrot.slane %v204, %v333
  %v335 = vmul.f32 %v315, %v334
  %v336 = vmul.f32 %v316, %v334
  %v337 = vmul.f32 %v317, %v334
  %v338 = vmul.f32 %v318, %v334
  %v339 = vmul.f32 %v319, %v334
  %v340 = vmul.f32 %v320, %v334
  %v341 = vmul.f32 %v321, %v334
  %v342 = vmul.f32 %v322, %v334
  %v343 = vmul.f32 %v323, %v334
  %v344 = vmul.f32 %v324, %v334
  %v345 = vmul.f32 %v325, %v334
  %v346 = vmul.f32 %v326, %v334
  %v347 = vmul.f32 %v327, %v334
  %v348 = vmul.f32 %v328, %v334
  %v349 = vmul.f32 %v329, %v334
  %v350 = vmul.f32 %v330, %v334
  %v351 = vadd.f32 %v335, 0.0
  %v352 = vadd.f32 %v336, 0.0
  %v353 = vadd.f32 %v337, 0.0
  %v354 = vadd.f32 %v338, 0.0
  %v355 = vadd.f32 %v339, 0.0
  %v356 = vadd.f32 %v340, 0.0
  %v357 = vadd.f32 %v341, 0.0
  %v358 = vadd.f32 %v342, 0.0
  %v359 = vadd.f32 %v343, 0.0
  %v360 = vadd.f32 %v344, 0.0
  %v361 = vadd.f32 %v345, 0.0
  %v362 = vadd.f32 %v346, 0.0
  %v363 = vadd.f32 %v347, 0.0
  %v364 = vadd.f32 %v348, 0.0
  %v365 = vadd.f32 %v349, 0.0
  %v366 = vadd.f32 %v350, 0.0
  %v367 = vld [vmem:[#allocation2 + $0x8] sm:$0xff]
  %v368 = vld [vmem:[#allocation2 + $0x20] sm:$0xff]
  %v369 = vld [vmem:[#allocation2 + $0x38] sm:$0xff]
  %v370 = vld [vmem:[#allocation2 + $0x50] sm:$0xff]
  %v371 = vld [vmem:[#allocation2 + $0x68] sm:$0xff]
  %v372 = vld [vmem:[#allocation2 + $0x80] sm:$0xff]
  %v373 = vld [vmem:[#allocation2 + $0x98] sm:$0xff]
  %v374 = vld [vmem:[#allocation2 + $0xb0] sm:$0xff]
  %v375 = vld [vmem:[#allocation2 + $0x158] sm:$0xff]
  %v376 = vld [vmem:[#allocation2 + $0x170] sm:$0xff]
  %v377 = vld [vmem:[#allocation2 + $0x188] sm:$0xff]
  %v378 = vld [vmem:[#allocation2 + $0x1a0] sm:$0xff]
  %v379 = vld [vmem:[#allocation2 + $0x1b8] sm:$0xff]
  %v380 = vld [vmem:[#allocation2 + $0x1d0] sm:$0xff]
  %v381 = vld [vmem:[#allocation2 + $0x1e8] sm:$0xff]
  %v382 = vld [vmem:[#allocation2 + $0x200] sm:$0xff]
  %v383 = vlaneseq
  %v384 = vshrl.u32 %v383, 7
  %v385 = vsub.s32 3, %v384
  %v386 = vrot.slane %v204, %v385
  %v387 = vmul.f32 %v367, %v386
  %v388 = vmul.f32 %v368, %v386
  %v389 = vmul.f32 %v369, %v386
  %v390 = vmul.f32 %v370, %v386
  %v391 = vmul.f32 %v371, %v386
  %v392 = vmul.f32 %v372, %v386
  %v393 = vmul.f32 %v373, %v386
  %v394 = vmul.f32 %v374, %v386
  %v395 = vmul.f32 %v375, %v386
  %v396 = vmul.f32 %v376, %v386
  %v397 = vmul.f32 %v377, %v386
  %v398 = vmul.f32 %v378, %v386
  %v399 = vmul.f32 %v379, %v386
  %v400 = vmul.f32 %v380, %v386
  %v401 = vmul.f32 %v381, %v386
  %v402 = vmul.f32 %v382, %v386
  %v403 = vadd.f32 %v387, 0.0
  %v404 = vadd.f32 %v388, 0.0
  %v405 = vadd.f32 %v389, 0.0
  %v406 = vadd.f32 %v390, 0.0
  %v407 = vadd.f32 %v391, 0.0
  %v408 = vadd.f32 %v392, 0.0
  %v409 = vadd.f32 %v393, 0.0
  %v410 = vadd.f32 %v394, 0.0
  %v411 = vadd.f32 %v395, 0.0
  %v412 = vadd.f32 %v396, 0.0
  %v413 = vadd.f32 %v397, 0.0
  %v414 = vadd.f32 %v398, 0.0
  %v415 = vadd.f32 %v399, 0.0
  %v416 = vadd.f32 %v400, 0.0
  %v417 = vadd.f32 %v401, 0.0
  %v418 = vadd.f32 %v402, 0.0
  %v419 = vld [vmem:[#allocation2 + $0x9] sm:$0xff]
  %v420 = vld [vmem:[#allocation2 + $0x21] sm:$0xff]
  %v421 = vld [vmem:[#allocation2 + $0x39] sm:$0xff]
  %v422 = vld [vmem:[#allocation2 + $0x51] sm:$0xff]
  %v423 = vld [vmem:[#allocation2 + $0x69] sm:$0xff]
  %v424 = vld [vmem:[#allocation2 + $0x81] sm:$0xff]
  %v425 = vld [vmem:[#allocation2 + $0x99] sm:$0xff]
  %v426 = vld [vmem:[#allocation2 + $0xb1] sm:$0xff]
  %v427 = vld [vmem:[#allocation2 + $0x159] sm:$0xff]
  %v428 = vld [vmem:[#allocation2 + $0x171] sm:$0xff]
  %v429 = vld [vmem:[#allocation2 + $0x189] sm:$0xff]
  %v430 = vld [vmem:[#allocation2 + $0x1a1] sm:$0xff]
  %v431 = vld [vmem:[#allocation2 + $0x1b9] sm:$0xff]
  %v432 = vld [vmem:[#allocation2 + $0x1d1] sm:$0xff]
  %v433 = vld [vmem:[#allocation2 + $0x1e9] sm:$0xff]
  %v434 = vld [vmem:[#allocation2 + $0x201] sm:$0xff]
  %v435 = vlaneseq
  %v436 = vshrl.u32 %v435, 7
  %v437 = vsub.s32 4, %v436
  %v438 = vrot.slane %v204, %v437
  %v439 = vmul.f32 %v419, %v438
  %v440 = vmul.f32 %v420, %v438
  %v441 = vmul.f32 %v421, %v438
  %v442 = vmul.f32 %v422, %v438
  %v443 = vmul.f32 %v423, %v438
  %v444 = vmul.f32 %v424, %v438
  %v445 = vmul.f32 %v425, %v438
  %v446 = vmul.f32 %v426, %v438
  %v447 = vmul.f32 %v427, %v438
  %v448 = vmul.f32 %v428, %v438
  %v449 = vmul.f32 %v429, %v438
  %v450 = vmul.f32 %v430, %v438
  %v451 = vmul.f32 %v431, %v438
  %v452 = vmul.f32 %v432, %v438
  %v453 = vmul.f32 %v433, %v438
  %v454 = vmul.f32 %v434, %v438
  %v455 = vadd.f32 %v247, %v439
  %v456 = vadd.f32 %v248, %v440
  %v457 = vadd.f32 %v249, %v441
  %v458 = vadd.f32 %v250, %v442
  %v459 = vadd.f32 %v251, %v443
  %v460 = vadd.f32 %v252, %v444
  %v461 = vadd.f32 %v253, %v445
  %v462 = vadd.f32 %v254, %v446
  %v463 = vadd.f32 %v255, %v447
  %v464 = vadd.f32 %v256, %v448
  %v465 = vadd.f32 %v257, %v449
  %v466 = vadd.f32 %v258, %v450
  %v467 = vadd.f32 %v259, %v451
  %v468 = vadd.f32 %v260, %v452
  %v469 = vadd.f32 %v261, %v453
  %v470 = vadd.f32 %v262, %v454
  %v471 = vld [vmem:[#allocation2 + $0xa] sm:$0xff]
  %v472 = vld [vmem:[#allocation2 + $0x22] sm:$0xff]
  %v473 = vld [vmem:[#allocation2 + $0x3a] sm:$0xff]
  %v474 = vld [vmem:[#allocation2 + $0x52] sm:$0xff]
  %v475 = vld [vmem:[#allocation2 + $0x6a] sm:$0xff]
  %v476 = vld [vmem:[#allocation2 + $0x82] sm:$0xff]
  %v477 = vld [vmem:[#allocation2 + $0x9a] sm:$0xff]
  %v478 = vld [vmem:[#allocation2 + $0xb2] sm:$0xff]
  %v479 = vld [vmem:[#allocation2 + $0x15a] sm:$0xff]
  %v480 = vld [vmem:[#allocation2 + $0x172] sm:$0xff]
  %v481 = vld [vmem:[#allocation2 + $0x18a] sm:$0xff]
  %v482 = vld [vmem:[#allocation2 + $0x1a2] sm:$0xff]
  %v483 = vld [vmem:[#allocation2 + $0x1ba] sm:$0xff]
  %v484 = vld [vmem:[#allocation2 + $0x1d2] sm:$0xff]
  %v485 = vld [vmem:[#allocation2 + $0x1ea] sm:$0xff]
  %v486 = vld [vmem:[#allocation2 + $0x202] sm:$0xff]
  %v487 = vlaneseq
  %v488 = vshrl.u32 %v487, 7
  %v489 = vsub.s32 5, %v488
  %v490 = vrot.slane %v204, %v489
  %v491 = vmul.f32 %v471, %v490
  %v492 = vmul.f32 %v472, %v490
  %v493 = vmul.f32 %v473, %v490
  %v494 = vmul.f32 %v474, %v490
  %v495 = vmul.f32 %v475, %v490
  %v496 = vmul.f32 %v476, %v490
  %v497 = vmul.f32 %v477, %v490
  %v498 = vmul.f32 %v478, %v490
  %v499 = vmul.f32 %v479, %v490
  %v500 = vmul.f32 %v480, %v490
  %v501 = vmul.f32 %v481, %v490
  %v502 = vmul.f32 %v482, %v490
  %v503 = vmul.f32 %v483, %v490
  %v504 = vmul.f32 %v484, %v490
  %v505 = vmul.f32 %v485, %v490
  %v506 = vmul.f32 %v486, %v490
  %v507 = vadd.f32 %v299, %v491
  %v508 = vadd.f32 %v300, %v492
  %v509 = vadd.f32 %v301, %v493
  %v510 = vadd.f32 %v302, %v494
  %v511 = vadd.f32 %v303, %v495
  %v512 = vadd.f32 %v304, %v496
  %v513 = vadd.f32 %v305, %v497
  %v514 = vadd.f32 %v306, %v498
  %v515 = vadd.f32 %v307, %v499
  %v516 = vadd.f32 %v308, %v500
  %v517 = vadd.f32 %v309, %v501
  %v518 = vadd.f32 %v310, %v502
  %v519 = vadd.f32 %v311, %v503
  %v520 = vadd.f32 %v312, %v504
  %v521 = vadd.f32 %v313, %v505
  %v522 = vadd.f32 %v314, %v506
  %v523 = vld [vmem:[#allocation2 + $0xb] sm:$0xff]
  %v524 = vld [vmem:[#allocation2 + $0x23] sm:$0xff]
  %v525 = vld [vmem:[#allocation2 + $0x3b] sm:$0xff]
  %v526 = vld [vmem:[#allocation2 + $0x53] sm:$0xff]
  %v527 = vld [vmem:[#allocation2 + $0x6b] sm:$0xff]
  %v528 = vld [vmem:[#allocation2 + $0x83] sm:$0xff]
  %v529 = vld [vmem:[#allocation2 + $0x9b] sm:$0xff]
  %v530 = vld [vmem:[#allocation2 + $0xb3] sm:$0xff]
  %v531 = vld [vmem:[#allocation2 + $0x15b] sm:$0xff]
  %v532 = vld [vmem:[#allocation2 + $0x173] sm:$0xff]
  %v533 = vld [vmem:[#allocation2 + $0x18b] sm:$0xff]
  %v534 = vld [vmem:[#allocation2 + $0x1a3] sm:$0xff]
  %v535 = vld [vmem:[#allocation2 + $0x1bb] sm:$0xff]
  %v536 = vld [vmem:[#allocation2 + $0x1d3] sm:$0xff]
  %v537 = vld [vmem:[#allocation2 + $0x1eb] sm:$0xff]
  %v538 = vld [vmem:[#allocation2 + $0x203] sm:$0xff]
  %v539 = vlaneseq
  %v540 = vshrl.u32 %v539, 7
  %v541 = vsub.s32 6, %v540
  %v542 = vrot.slane %v204, %v541
  %v543 = vmul.f32 %v523, %v542
  %v544 = vmul.f32 %v524, %v542
  %v545 = vmul.f32 %v525, %v542
  %v546 = vmul.f32 %v526, %v542
  %v547 = vmul.f32 %v527, %v542
  %v548 = vmul.f32 %v528, %v542
  %v549 = vmul.f32 %v529, %v542
  %v550 = vmul.f32 %v530, %v542
  %v551 = vmul.f32 %v531, %v542
  %v552 = vmul.f32 %v532, %v542
  %v553 = vmul.f32 %v533, %v542
  %v554 = vmul.f32 %v534, %v542
  %v555 = vmul.f32 %v535, %v542
  %v556 = vmul.f32 %v536, %v542
  %v557 = vmul.f32 %v537, %v542
  %v558 = vmul.f32 %v538, %v542
  %v559 = vadd.f32 %v351, %v543
  %v560 = vadd.f32 %v352, %v544
  %v561 = vadd.f32 %v353, %v545
  %v562 = vadd.f32 %v354, %v546
  %v563 = vadd.f32 %v355, %v547
  %v564 = vadd.f32 %v356, %v548
  %v565 = vadd.f32 %v357, %v549
  %v566 = vadd.f32 %v358, %v550
  %v567 = vadd.f32 %v359, %v551
  %v568 = vadd.f32 %v360, %v552
  %v569 = vadd.f32 %v361, %v553
  %v570 = vadd.f32 %v362, %v554
  %v571 = vadd.f32 %v363, %v555
  %v572 = vadd.f32 %v364, %v556
  %v573 = vadd.f32 %v365, %v557
  %v574 = vadd.f32 %v366, %v558
  %s575 = scalar_lea.vmem [#allocation2], 24
  %v576 = vld [vmem:[%s575 + $0x5] sm:$0xff]
  %v577 = vld [vmem:[%s575 + $0x1d] sm:$0xff]
  %v578 = vld [vmem:[%s575 + $0x35] sm:$0xff]
  %v579 = vld [vmem:[%s575 + $0x4d] sm:$0xff]
  %v580 = vld [vmem:[%s575 + $0x65] sm:$0xff]
  %v581 = vld [vmem:[%s575 + $0x7d] sm:$0xff]
  %v582 = vld [vmem:[%s575 + $0x95] sm:$0xff]
  %v583 = vld [vmem:[%s575 + $0xad] sm:$0xff]
  %v584 = vld [vmem:[%s575 + $0x155] sm:$0xff]
  %v585 = vld [vmem:[%s575 + $0x16d] sm:$0xff]
  %v586 = vld [vmem:[%s575 + $0x185] sm:$0xff]
  %v587 = vld [vmem:[%s575 + $0x19d] sm:$0xff]
  %v588 = vld [vmem:[%s575 + $0x1b5] sm:$0xff]
  %v589 = vld [vmem:[%s575 + $0x1cd] sm:$0xff]
  %v590 = vld [vmem:[%s575 + $0x1e5] sm:$0xff]
  %v591 = vld [vmem:[%s575 + $0x1fd] sm:$0xff]
  %v592 = vlaneseq
  %v593 = vshrl.u32 %v592, 7
  %v594 = vsub.s32 7, %v593
  %v595 = vrot.slane %v204, %v594
  %v596 = vmul.f32 %v576, %v595
  %v597 = vmul.f32 %v577, %v595
  %v598 = vmul.f32 %v578, %v595
  %v599 = vmul.f32 %v579, %v595
  %v600 = vmul.f32 %v580, %v595
  %v601 = vmul.f32 %v581, %v595
  %v602 = vmul.f32 %v582, %v595
  %v603 = vmul.f32 %v583, %v595
  %v604 = vmul.f32 %v584, %v595
  %v605 = vmul.f32 %v585, %v595
  %v606 = vmul.f32 %v586, %v595
  %v607 = vmul.f32 %v587, %v595
  %v608 = vmul.f32 %v588, %v595
  %v609 = vmul.f32 %v589, %v595
  %v610 = vmul.f32 %v590, %v595
  %v611 = vmul.f32 %v591, %v595
  %v612 = vadd.f32 %v403, %v596
  %v613 = vadd.f32 %v404, %v597
  %v614 = vadd.f32 %v405, %v598
  %v615 = vadd.f32 %v406, %v599
  %v616 = vadd.f32 %v407, %v600
  %v617 = vadd.f32 %v408, %v601
  %v618 = vadd.f32 %v409, %v602
  %v619 = vadd.f32 %v410, %v603
  %v620 = vadd.f32 %v411, %v604
  %v621 = vadd.f32 %v412, %v605
  %v622 = vadd.f32 %v413, %v606
  %v623 = vadd.f32 %v414, %v607
  %v624 = vadd.f32 %v415, %v608
  %v625 = vadd.f32 %v416, %v609
  %v626 = vadd.f32 %v417, %v610
  %v627 = vadd.f32 %v418, %v611
  %v628 = vld [vmem:[%s575 + $0x6] sm:$0xff]
  %v629 = vld [vmem:[%s575 + $0x1e] sm:$0xff]
  %v630 = vld [vmem:[%s575 + $0x36] sm:$0xff]
  %v631 = vld [vmem:[%s575 + $0x4e] sm:$0xff]
  %v632 = vld [vmem:[%s575 + $0x66] sm:$0xff]
  %v633 = vld [vmem:[%s575 + $0x7e] sm:$0xff]
  %v634 = vld [vmem:[%s575 + $0x96] sm:$0xff]
  %v635 = vld [vmem:[%s575 + $0xae] sm:$0xff]
  %v636 = vld [vmem:[%s575 + $0x156] sm:$0xff]
  %v637 = vld [vmem:[%s575 + $0x16e] sm:$0xff]
  %v638 = vld [vmem:[%s575 + $0x186] sm:$0xff]
  %v639 = vld [vmem:[%s575 + $0x19e] sm:$0xff]
  %v640 = vld [vmem:[%s575 + $0x1b6] sm:$0xff]
  %v641 = vld [vmem:[%s575 + $0x1ce] sm:$0xff]
  %v642 = vld [vmem:[%s575 + $0x1e6] sm:$0xff]
  %v643 = vld [vmem:[%s575 + $0x1fe] sm:$0xff]
  %v644 = vlaneseq
  %v645 = vshrl.u32 %v644, 7
  %v646 = vsub.s32 0, %v645
  %v647 = vrot.slane %v205, %v646
  %v648 = vmul.f32 %v628, %v647
  %v649 = vmul.f32 %v629, %v647
  %v650 = vmul.f32 %v630, %v647
  %v651 = vmul.f32 %v631, %v647
  %v652 = vmul.f32 %v632, %v647
  %v653 = vmul.f32 %v633, %v647
  %v654 = vmul.f32 %v634, %v647
  %v655 = vmul.f32 %v635, %v647
  %v656 = vmul.f32 %v636, %v647
  %v657 = vmul.f32 %v637, %v647
  %v658 = vmul.f32 %v638, %v647
  %v659 = vmul.f32 %v639, %v647
  %v660 = vmul.f32 %v640, %v647
  %v661 = vmul.f32 %v641, %v647
  %v662 = vmul.f32 %v642, %v647
  %v663 = vmul.f32 %v643, %v647
  %v664 = vadd.f32 %v455, %v648
  %v665 = vadd.f32 %v456, %v649
  %v666 = vadd.f32 %v457, %v650
  %v667 = vadd.f32 %v458, %v651
  %v668 = vadd.f32 %v459, %v652
  %v669 = vadd.f32 %v460, %v653
  %v670 = vadd.f32 %v461, %v654
  %v671 = vadd.f32 %v462, %v655
  %v672 = vadd.f32 %v463, %v656
  %v673 = vadd.f32 %v464, %v657
  %v674 = vadd.f32 %v465, %v658
  %v675 = vadd.f32 %v466, %v659
  %v676 = vadd.f32 %v467, %v660
  %v677 = vadd.f32 %v468, %v661
  %v678 = vadd.f32 %v469, %v662
  %v679 = vadd.f32 %v470, %v663
  %v680 = vld [vmem:[%s575 + $0x7] sm:$0xff]
  %v681 = vld [vmem:[%s575 + $0x1f] sm:$0xff]
  %v682 = vld [vmem:[%s575 + $0x37] sm:$0xff]
  %v683 = vld [vmem:[%s575 + $0x4f] sm:$0xff]
  %v684 = vld [vmem:[%s575 + $0x67] sm:$0xff]
  %v685 = vld [vmem:[%s575 + $0x7f] sm:$0xff]
  %v686 = vld [vmem:[%s575 + $0x97] sm:$0xff]
  %v687 = vld [vmem:[%s575 + $0xaf] sm:$0xff]
  %v688 = vld [vmem:[%s575 + $0x157] sm:$0xff]
  %v689 = vld [vmem:[%s575 + $0x16f] sm:$0xff]
  %v690 = vld [vmem:[%s575 + $0x187] sm:$0xff]
  %v691 = vld [vmem:[%s575 + $0x19f] sm:$0xff]
  %v692 = vld [vmem:[%s575 + $0x1b7] sm:$0xff]
  %v693 = vld [vmem:[%s575 + $0x1cf] sm:$0xff]
  %v694 = vld [vmem:[%s575 + $0x1e7] sm:$0xff]
  %v695 = vld [vmem:[%s575 + $0x1ff] sm:$0xff]
  %v696 = vlaneseq
  %v697 = vshrl.u32 %v696, 7
  %v698 = vsub.s32 1, %v697
  %v699 = vrot.slane %v205, %v698
  %v700 = vmul.f32 %v680, %v699
  %v701 = vmul.f32 %v681, %v699
  %v702 = vmul.f32 %v682, %v699
  %v703 = vmul.f32 %v683, %v699
  %v704 = vmul.f32 %v684, %v699
  %v705 = vmul.f32 %v685, %v699
  %v706 = vmul.f32 %v686, %v699
  %v707 = vmul.f32 %v687, %v699
  %v708 = vmul.f32 %v688, %v699
  %v709 = vmul.f32 %v689, %v699
  %v710 = vmul.f32 %v690, %v699
  %v711 = vmul.f32 %v691, %v699
  %v712 = vmul.f32 %v692, %v699
  %v713 = vmul.f32 %v693, %v699
  %v714 = vmul.f32 %v694, %v699
  %v715 = vmul.f32 %v695, %v699
  %v716 = vadd.f32 %v507, %v700
  %v717 = vadd.f32 %v508, %v701
  %v718 = vadd.f32 %v509, %v702
  %v719 = vadd.f32 %v510, %v703
  %v720 = vadd.f32 %v511, %v704
  %v721 = vadd.f32 %v512, %v705
  %v722 = vadd.f32 %v513, %v706
  %v723 = vadd.f32 %v514, %v707
  %v724 = vadd.f32 %v515, %v708
  %v725 = vadd.f32 %v516, %v709
  %v726 = vadd.f32 %v517, %v710
  %v727 = vadd.f32 %v518, %v711
  %v728 = vadd.f32 %v519, %v712
  %v729 = vadd.f32 %v520, %v713
  %v730 = vadd.f32 %v521, %v714
  %v731 = vadd.f32 %v522, %v715
  %v732 = vld [vmem:[%s575 + $0x8] sm:$0xff]
  %v733 = vld [vmem:[%s575 + $0x20] sm:$0xff]
  %v734 = vld [vmem:[%s575 + $0x38] sm:$0xff]
  %v735 = vld [vmem:[%s575 + $0x50] sm:$0xff]
  %v736 = vld [vmem:[%s575 + $0x68] sm:$0xff]
  %v737 = vld [vmem:[%s575 + $0x80] sm:$0xff]
  %v738 = vld [vmem:[%s575 + $0x98] sm:$0xff]
  %v739 = vld [vmem:[%s575 + $0xb0] sm:$0xff]
  %v740 = vld [vmem:[%s575 + $0x158] sm:$0xff]
  %v741 = vld [vmem:[%s575 + $0x170] sm:$0xff]
  %v742 = vld [vmem:[%s575 + $0x188] sm:$0xff]
  %v743 = vld [vmem:[%s575 + $0x1a0] sm:$0xff]
  %v744 = vld [vmem:[%s575 + $0x1b8] sm:$0xff]
  %v745 = vld [vmem:[%s575 + $0x1d0] sm:$0xff]
  %v746 = vld [vmem:[%s575 + $0x1e8] sm:$0xff]
  %v747 = vld [vmem:[%s575 + $0x200] sm:$0xff]
  %v748 = vlaneseq
  %v749 = vshrl.u32 %v748, 7
  %v750 = vsub.s32 2, %v749
  %v751 = vrot.slane %v205, %v750
  %v752 = vmul.f32 %v732, %v751
  %v753 = vmul.f32 %v733, %v751
  %v754 = vmul.f32 %v734, %v751
  %v755 = vmul.f32 %v735, %v751
  %v756 = vmul.f32 %v736, %v751
  %v757 = vmul.f32 %v737, %v751
  %v758 = vmul.f32 %v738, %v751
  %v759 = vmul.f32 %v739, %v751
  %v760 = vmul.f32 %v740, %v751
  %v761 = vmul.f32 %v741, %v751
  %v762 = vmul.f32 %v742, %v751
  %v763 = vmul.f32 %v743, %v751
  %v764 = vmul.f32 %v744, %v751
  %v765 = vmul.f32 %v745, %v751
  %v766 = vmul.f32 %v746, %v751
  %v767 = vmul.f32 %v747, %v751
  %v768 = vadd.f32 %v559, %v752
  %v769 = vadd.f32 %v560, %v753
  %v770 = vadd.f32 %v561, %v754
  %v771 = vadd.f32 %v562, %v755
  %v772 = vadd.f32 %v563, %v756
  %v773 = vadd.f32 %v564, %v757
  %v774 = vadd.f32 %v565, %v758
  %v775 = vadd.f32 %v566, %v759
  %v776 = vadd.f32 %v567, %v760
  %v777 = vadd.f32 %v568, %v761
  %v778 = vadd.f32 %v569, %v762
  %v779 = vadd.f32 %v570, %v763
  %v780 = vadd.f32 %v571, %v764
  %v781 = vadd.f32 %v572, %v765
  %v782 = vadd.f32 %v573, %v766
  %v783 = vadd.f32 %v574, %v767
  %v784 = vld [vmem:[%s575 + $0x9] sm:$0xff]
  %v785 = vld [vmem:[%s575 + $0x21] sm:$0xff]
  %v786 = vld [vmem:[%s575 + $0x39] sm:$0xff]
  %v787 = vld [vmem:[%s575 + $0x51] sm:$0xff]
  %v788 = vld [vmem:[%s575 + $0x69] sm:$0xff]
  %v789 = vld [vmem:[%s575 + $0x81] sm:$0xff]
  %v790 = vld [vmem:[%s575 + $0x99] sm:$0xff]
  %v791 = vld [vmem:[%s575 + $0xb1] sm:$0xff]
  %v792 = vld [vmem:[%s575 + $0x159] sm:$0xff]
  %v793 = vld [vmem:[%s575 + $0x171] sm:$0xff]
  %v794 = vld [vmem:[%s575 + $0x189] sm:$0xff]
  %v795 = vld [vmem:[%s575 + $0x1a1] sm:$0xff]
  %v796 = vld [vmem:[%s575 + $0x1b9] sm:$0xff]
  %v797 = vld [vmem:[%s575 + $0x1d1] sm:$0xff]
  %v798 = vld [vmem:[%s575 + $0x1e9] sm:$0xff]
  %v799 = vld [vmem:[%s575 + $0x201] sm:$0xff]
  %v800 = vlaneseq
  %v801 = vshrl.u32 %v800, 7
  %v802 = vsub.s32 3, %v801
  %v803 = vrot.slane %v205, %v802
  %v804 = vmul.f32 %v784, %v803
  %v805 = vmul.f32 %v785, %v803
  %v806 = vmul.f32 %v786, %v803
  %v807 = vmul.f32 %v787, %v803
  %v808 = vmul.f32 %v788, %v803
  %v809 = vmul.f32 %v789, %v803
  %v810 = vmul.f32 %v790, %v803
  %v811 = vmul.f32 %v791, %v803
  %v812 = vmul.f32 %v792, %v803
  %v813 = vmul.f32 %v793, %v803
  %v814 = vmul.f32 %v794, %v803
  %v815 = vmul.f32 %v795, %v803
  %v816 = vmul.f32 %v796, %v803
  %v817 = vmul.f32 %v797, %v803
  %v818 = vmul.f32 %v798, %v803
  %v819 = vmul.f32 %v799, %v803
  %v820 = vadd.f32 %v612, %v804
  %v821 = vadd.f32 %v613, %v805
  %v822 = vadd.f32 %v614, %v806
  %v823 = vadd.f32 %v615, %v807
  %v824 = vadd.f32 %v616, %v808
  %v825 = vadd.f32 %v617, %v809
  %v826 = vadd.f32 %v618, %v810
  %v827 = vadd.f32 %v619, %v811
  %v828 = vadd.f32 %v620, %v812
  %v829 = vadd.f32 %v621, %v813
  %v830 = vadd.f32 %v622, %v814
  %v831 = vadd.f32 %v623, %v815
  %v832 = vadd.f32 %v624, %v816
  %v833 = vadd.f32 %v625, %v817
  %v834 = vadd.f32 %v626, %v818
  %v835 = vadd.f32 %v627, %v819
  %v836 = vld [vmem:[%s575 + $0xa] sm:$0xff]
  %v837 = vld [vmem:[%s575 + $0x22] sm:$0xff]
  %v838 = vld [vmem:[%s575 + $0x3a] sm:$0xff]
  %v839 = vld [vmem:[%s575 + $0x52] sm:$0xff]
  %v840 = vld [vmem:[%s575 + $0x6a] sm:$0xff]
  %v841 = vld [vmem:[%s575 + $0x82] sm:$0xff]
  %v842 = vld [vmem:[%s575 + $0x9a] sm:$0xff]
  %v843 = vld [vmem:[%s575 + $0xb2] sm:$0xff]
  %v844 = vld [vmem:[%s575 + $0x15a] sm:$0xff]
  %v845 = vld [vmem:[%s575 + $0x172] sm:$0xff]
  %v846 = vld [vmem:[%s575 + $0x18a] sm:$0xff]
  %v847 = vld [vmem:[%s575 + $0x1a2] sm:$0xff]
  %v848 = vld [vmem:[%s575 + $0x1ba] sm:$0xff]
  %v849 = vld [vmem:[%s575 + $0x1d2] sm:$0xff]
  %v850 = vld [vmem:[%s575 + $0x1ea] sm:$0xff]
  %v851 = vld [vmem:[%s575 + $0x202] sm:$0xff]
  %v852 = vlaneseq
  %v853 = vshrl.u32 %v852, 7
  %v854 = vsub.s32 4, %v853
  %v855 = vrot.slane %v205, %v854
  %v856 = vmul.f32 %v836, %v855
  %v857 = vmul.f32 %v837, %v855
  %v858 = vmul.f32 %v838, %v855
  %v859 = vmul.f32 %v839, %v855
  %v860 = vmul.f32 %v840, %v855
  %v861 = vmul.f32 %v841, %v855
  %v862 = vmul.f32 %v842, %v855
  %v863 = vmul.f32 %v843, %v855
  %v864 = vmul.f32 %v844, %v855
  %v865 = vmul.f32 %v845, %v855
  %v866 = vmul.f32 %v846, %v855
  %v867 = vmul.f32 %v847, %v855
  %v868 = vmul.f32 %v848, %v855
  %v869 = vmul.f32 %v849, %v855
  %v870 = vmul.f32 %v850, %v855
  %v871 = vmul.f32 %v851, %v855
  %v872 = vadd.f32 %v664, %v856
  %v873 = vadd.f32 %v665, %v857
  %v874 = vadd.f32 %v666, %v858
  %v875 = vadd.f32 %v667, %v859
  %v876 = vadd.f32 %v668, %v860
  %v877 = vadd.f32 %v669, %v861
  %v878 = vadd.f32 %v670, %v862
  %v879 = vadd.f32 %v671, %v863
  %v880 = vadd.f32 %v672, %v864
  %v881 = vadd.f32 %v673, %v865
  %v882 = vadd.f32 %v674, %v866
  %v883 = vadd.f32 %v675, %v867
  %v884 = vadd.f32 %v676, %v868
  %v885 = vadd.f32 %v677, %v869
  %v886 = vadd.f32 %v678, %v870
  %v887 = vadd.f32 %v679, %v871
  %v888 = vld [vmem:[%s575 + $0xb] sm:$0xff]
  %v889 = vld [vmem:[%s575 + $0x23] sm:$0xff]
  %v890 = vld [vmem:[%s575 + $0x3b] sm:$0xff]
  %v891 = vld [vmem:[%s575 + $0x53] sm:$0xff]
  %v892 = vld [vmem:[%s575 + $0x6b] sm:$0xff]
  %v893 = vld [vmem:[%s575 + $0x83] sm:$0xff]
  %v894 = vld [vmem:[%s575 + $0x9b] sm:$0xff]
  %v895 = vld [vmem:[%s575 + $0xb3] sm:$0xff]
  %v896 = vld [vmem:[%s575 + $0x15b] sm:$0xff]
  %v897 = vld [vmem:[%s575 + $0x173] sm:$0xff]
  %v898 = vld [vmem:[%s575 + $0x18b] sm:$0xff]
  %v899 = vld [vmem:[%s575 + $0x1a3] sm:$0xff]
  %v900 = vld [vmem:[%s575 + $0x1bb] sm:$0xff]
  %v901 = vld [vmem:[%s575 + $0x1d3] sm:$0xff]
  %v902 = vld [vmem:[%s575 + $0x1eb] sm:$0xff]
  %v903 = vld [vmem:[%s575 + $0x203] sm:$0xff]
  %v904 = vlaneseq
  %v905 = vshrl.u32 %v904, 7
  %v906 = vsub.s32 5, %v905
  %v907 = vrot.slane %v205, %v906
  %v908 = vmul.f32 %v888, %v907
  %v909 = vmul.f32 %v889, %v907
  %v910 = vmul.f32 %v890, %v907
  %v911 = vmul.f32 %v891, %v907
  %v912 = vmul.f32 %v892, %v907
  %v913 = vmul.f32 %v893, %v907
  %v914 = vmul.f32 %v894, %v907
  %v915 = vmul.f32 %v895, %v907
  %v916 = vmul.f32 %v896, %v907
  %v917 = vmul.f32 %v897, %v907
  %v918 = vmul.f32 %v898, %v907
  %v919 = vmul.f32 %v899, %v907
  %v920 = vmul.f32 %v900, %v907
  %v921 = vmul.f32 %v901, %v907
  %v922 = vmul.f32 %v902, %v907
  %v923 = vmul.f32 %v903, %v907
  %v924 = vadd.f32 %v716, %v908
  %v925 = vadd.f32 %v717, %v909
  %v926 = vadd.f32 %v718, %v910
  %v927 = vadd.f32 %v719, %v911
  %v928 = vadd.f32 %v720, %v912
  %v929 = vadd.f32 %v721, %v913
  %v930 = vadd.f32 %v722, %v914
  %v931 = vadd.f32 %v723, %v915
  %v932 = vadd.f32 %v724, %v916
  %v933 = vadd.f32 %v725, %v917
  %v934 = vadd.f32 %v726, %v918
  %v935 = vadd.f32 %v727, %v919
  %v936 = vadd.f32 %v728, %v920
  %v937 = vadd.f32 %v729, %v921
  %v938 = vadd.f32 %v730, %v922
  %v939 = vadd.f32 %v731, %v923
  %s940 = scalar_lea.vmem [#allocation2], 48
  %v941 = vld [vmem:[%s940 + $0x5] sm:$0xff]
  %v942 = vld [vmem:[%s940 + $0x1d] sm:$0xff]
  %v943 = vld [vmem:[%s940 + $0x35] sm:$0xff]
  %v944 = vld [vmem:[%s940 + $0x4d] sm:$0xff]
  %v945 = vld [vmem:[%s940 + $0x65] sm:$0xff]
  %v946 = vld [vmem:[%s940 + $0x7d] sm:$0xff]
  %v947 = vld [vmem:[%s940 + $0x95] sm:$0xff]
  %v948 = vld [vmem:[%s940 + $0xad] sm:$0xff]
  %v949 = vld [vmem:[%s940 + $0x155] sm:$0xff]
  %v950 = vld [vmem:[%s940 + $0x16d] sm:$0xff]
  %v951 = vld [vmem:[%s940 + $0x185] sm:$0xff]
  %v952 = vld [vmem:[%s940 + $0x19d] sm:$0xff]
  %v953 = vld [vmem:[%s940 + $0x1b5] sm:$0xff]
  %v954 = vld [vmem:[%s940 + $0x1cd] sm:$0xff]
  %v955 = vld [vmem:[%s940 + $0x1e5] sm:$0xff]
  %v956 = vld [vmem:[%s940 + $0x1fd] sm:$0xff]
  %v957 = vlaneseq
  %v958 = vshrl.u32 %v957, 7
  %v959 = vsub.s32 6, %v958
  %v960 = vrot.slane %v205, %v959
  %v961 = vmul.f32 %v941, %v960
  %v962 = vmul.f32 %v942, %v960
  %v963 = vmul.f32 %v943, %v960
  %v964 = vmul.f32 %v944, %v960
  %v965 = vmul.f32 %v945, %v960
  %v966 = vmul.f32 %v946, %v960
  %v967 = vmul.f32 %v947, %v960
  %v968 = vmul.f32 %v948, %v960
  %v969 = vmul.f32 %v949, %v960
  %v970 = vmul.f32 %v950, %v960
  %v971 = vmul.f32 %v951, %v960
  %v972 = vmul.f32 %v952, %v960
  %v973 = vmul.f32 %v953, %v960
  %v974 = vmul.f32 %v954, %v960
  %v975 = vmul.f32 %v955, %v960
  %v976 = vmul.f32 %v956, %v960
  %v977 = vadd.f32 %v768, %v961
  %v978 = vadd.f32 %v769, %v962
  %v979 = vadd.f32 %v770, %v963
  %v980 = vadd.f32 %v771, %v964
  %v981 = vadd.f32 %v772, %v965
  %v982 = vadd.f32 %v773, %v966
  %v983 = vadd.f32 %v774, %v967
  %v984 = vadd.f32 %v775, %v968
  %v985 = vadd.f32 %v776, %v969
  %v986 = vadd.f32 %v777, %v970
  %v987 = vadd.f32 %v778, %v971
  %v988 = vadd.f32 %v779, %v972
  %v989 = vadd.f32 %v780, %v973
  %v990 = vadd.f32 %v781, %v974
  %v991 = vadd.f32 %v782, %v975
  %v992 = vadd.f32 %v783, %v976
  %v993 = vld [vmem:[%s940 + $0x6] sm:$0xff]
  %v994 = vld [vmem:[%s940 + $0x1e] sm:$0xff]
  %v995 = vld [vmem:[%s940 + $0x36] sm:$0xff]
  %v996 = vld [vmem:[%s940 + $0x4e] sm:$0xff]
  %v997 = vld [vmem:[%s940 + $0x66] sm:$0xff]
  %v998 = vld [vmem:[%s940 + $0x7e] sm:$0xff]
  %v999 = vld [vmem:[%s940 + $0x96] sm:$0xff]
  %v1000 = vld [vmem:[%s940 + $0xae] sm:$0xff]
  %v1001 = vld [vmem:[%s940 + $0x156] sm:$0xff]
  %v1002 = vld [vmem:[%s940 + $0x16e] sm:$0xff]
  %v1003 = vld [vmem:[%s940 + $0x186] sm:$0xff]
  %v1004 = vld [vmem:[%s940 + $0x19e] sm:$0xff]
  %v1005 = vld [vmem:[%s940 + $0x1b6] sm:$0xff]
  %v1006 = vld [vmem:[%s940 + $0x1ce] sm:$0xff]
  %v1007 = vld [vmem:[%s940 + $0x1e6] sm:$0xff]
  %v1008 = vld [vmem:[%s940 + $0x1fe] sm:$0xff]
  %v1009 = vlaneseq
  %v1010 = vshrl.u32 %v1009, 7
  %v1011 = vsub.s32 7, %v1010
  %v1012 = vrot.slane %v205, %v1011
  %v1013 = vmul.f32 %v993, %v1012
  %v1014 = vmul.f32 %v994, %v1012
  %v1015 = vmul.f32 %v995, %v1012
  %v1016 = vmul.f32 %v996, %v1012
  %v1017 = vmul.f32 %v997, %v1012
  %v1018 = vmul.f32 %v998, %v1012
  %v1019 = vmul.f32 %v999, %v1012
  %v1020 = vmul.f32 %v1000, %v1012
  %v1021 = vmul.f32 %v1001, %v1012
  %v1022 = vmul.f32 %v1002, %v1012
  %v1023 = vmul.f32 %v1003, %v1012
  %v1024 = vmul.f32 %v1004, %v1012
  %v1025 = vmul.f32 %v1005, %v1012
  %v1026 = vmul.f32 %v1006, %v1012
  %v1027 = vmul.f32 %v1007, %v1012
  %v1028 = vmul.f32 %v1008, %v1012
  %v1029 = vadd.f32 %v820, %v1013
  %v1030 = vadd.f32 %v821, %v1014
  %v1031 = vadd.f32 %v822, %v1015
  %v1032 = vadd.f32 %v823, %v1016
  %v1033 = vadd.f32 %v824, %v1017
  %v1034 = vadd.f32 %v825, %v1018
  %v1035 = vadd.f32 %v826, %v1019
  %v1036 = vadd.f32 %v827, %v1020
  %v1037 = vadd.f32 %v828, %v1021
  %v1038 = vadd.f32 %v829, %v1022
  %v1039 = vadd.f32 %v830, %v1023
  %v1040 = vadd.f32 %v831, %v1024
  %v1041 = vadd.f32 %v832, %v1025
  %v1042 = vadd.f32 %v833, %v1026
  %v1043 = vadd.f32 %v834, %v1027
  %v1044 = vadd.f32 %v835, %v1028
  %v1045 = vld [vmem:[%s940 + $0x7] sm:$0xff]
  %v1046 = vld [vmem:[%s940 + $0x1f] sm:$0xff]
  %v1047 = vld [vmem:[%s940 + $0x37] sm:$0xff]
  %v1048 = vld [vmem:[%s940 + $0x4f] sm:$0xff]
  %v1049 = vld [vmem:[%s940 + $0x67] sm:$0xff]
  %v1050 = vld [vmem:[%s940 + $0x7f] sm:$0xff]
  %v1051 = vld [vmem:[%s940 + $0x97] sm:$0xff]
  %v1052 = vld [vmem:[%s940 + $0xaf] sm:$0xff]
  %v1053 = vld [vmem:[%s940 + $0x157] sm:$0xff]
  %v1054 = vld [vmem:[%s940 + $0x16f] sm:$0xff]
  %v1055 = vld [vmem:[%s940 + $0x187] sm:$0xff]
  %v1056 = vld [vmem:[%s940 + $0x19f] sm:$0xff]
  %v1057 = vld [vmem:[%s940 + $0x1b7] sm:$0xff]
  %v1058 = vld [vmem:[%s940 + $0x1cf] sm:$0xff]
  %v1059 = vld [vmem:[%s940 + $0x1e7] sm:$0xff]
  %v1060 = vld [vmem:[%s940 + $0x1ff] sm:$0xff]
  %v1061 = vlaneseq
  %v1062 = vshrl.u32 %v1061, 7
  %v1063 = vsub.s32 0, %v1062
  %v1064 = vrot.slane %v206, %v1063
  %v1065 = vmul.f32 %v1045, %v1064
  %v1066 = vmul.f32 %v1046, %v1064
  %v1067 = vmul.f32 %v1047, %v1064
  %v1068 = vmul.f32 %v1048, %v1064
  %v1069 = vmul.f32 %v1049, %v1064
  %v1070 = vmul.f32 %v1050, %v1064
  %v1071 = vmul.f32 %v1051, %v1064
  %v1072 = vmul.f32 %v1052, %v1064
  %v1073 = vmul.f32 %v1053, %v1064
  %v1074 = vmul.f32 %v1054, %v1064
  %v1075 = vmul.f32 %v1055, %v1064
  %v1076 = vmul.f32 %v1056, %v1064
  %v1077 = vmul.f32 %v1057, %v1064
  %v1078 = vmul.f32 %v1058, %v1064
  %v1079 = vmul.f32 %v1059, %v1064
  %v1080 = vmul.f32 %v1060, %v1064
  %v1081 = vadd.f32 %v872, %v1065
  %v1082 = vadd.f32 %v873, %v1066
  %v1083 = vadd.f32 %v874, %v1067
  %v1084 = vadd.f32 %v875, %v1068
  %v1085 = vadd.f32 %v876, %v1069
  %v1086 = vadd.f32 %v877, %v1070
  %v1087 = vadd.f32 %v878, %v1071
  %v1088 = vadd.f32 %v879, %v1072
  %v1089 = vadd.f32 %v880, %v1073
  %v1090 = vadd.f32 %v881, %v1074
  %v1091 = vadd.f32 %v882, %v1075
  %v1092 = vadd.f32 %v883, %v1076
  %v1093 = vadd.f32 %v884, %v1077
  %v1094 = vadd.f32 %v885, %v1078
  %v1095 = vadd.f32 %v886, %v1079
  %v1096 = vadd.f32 %v887, %v1080
  %v1097 = vld [vmem:[%s940 + $0x8] sm:$0xff]
  %v1098 = vld [vmem:[%s940 + $0x20] sm:$0xff]
  %v1099 = vld [vmem:[%s940 + $0x38] sm:$0xff]
  %v1100 = vld [vmem:[%s940 + $0x50] sm:$0xff]
  %v1101 = vld [vmem:[%s940 + $0x68] sm:$0xff]
  %v1102 = vld [vmem:[%s940 + $0x80] sm:$0xff]
  %v1103 = vld [vmem:[%s940 + $0x98] sm:$0xff]
  %v1104 = vld [vmem:[%s940 + $0xb0] sm:$0xff]
  %v1105 = vld [vmem:[%s940 + $0x158] sm:$0xff]
  %v1106 = vld [vmem:[%s940 + $0x170] sm:$0xff]
  %v1107 = vld [vmem:[%s940 + $0x188] sm:$0xff]
  %v1108 = vld [vmem:[%s940 + $0x1a0] sm:$0xff]
  %v1109 = vld [vmem:[%s940 + $0x1b8] sm:$0xff]
  %v1110 = vld [vmem:[%s940 + $0x1d0] sm:$0xff]
  %v1111 = vld [vmem:[%s940 + $0x1e8] sm:$0xff]
  %v1112 = vld [vmem:[%s940 + $0x200] sm:$0xff]
  %v1113 = vlaneseq
  %v1114 = vshrl.u32 %v1113, 7
  %v1115 = vsub.s32 1, %v1114
  %v1116 = vrot.slane %v206, %v1115
  %v1117 = vmul.f32 %v1097, %v1116
  %v1118 = vmul.f32 %v1098, %v1116
  %v1119 = vmul.f32 %v1099, %v1116
  %v1120 = vmul.f32 %v1100, %v1116
  %v1121 = vmul.f32 %v1101, %v1116
  %v1122 = vmul.f32 %v1102, %v1116
  %v1123 = vmul.f32 %v1103, %v1116
  %v1124 = vmul.f32 %v1104, %v1116
  %v1125 = vmul.f32 %v1105, %v1116
  %v1126 = vmul.f32 %v1106, %v1116
  %v1127 = vmul.f32 %v1107, %v1116
  %v1128 = vmul.f32 %v1108, %v1116
  %v1129 = vmul.f32 %v1109, %v1116
  %v1130 = vmul.f32 %v1110, %v1116
  %v1131 = vmul.f32 %v1111, %v1116
  %v1132 = vmul.f32 %v1112, %v1116
  %v1133 = vadd.f32 %v924, %v1117
  %v1134 = vadd.f32 %v925, %v1118
  %v1135 = vadd.f32 %v926, %v1119
  %v1136 = vadd.f32 %v927, %v1120
  %v1137 = vadd.f32 %v928, %v1121
  %v1138 = vadd.f32 %v929, %v1122
  %v1139 = vadd.f32 %v930, %v1123
  %v1140 = vadd.f32 %v931, %v1124
  %v1141 = vadd.f32 %v932, %v1125
  %v1142 = vadd.f32 %v933, %v1126
  %v1143 = vadd.f32 %v934, %v1127
  %v1144 = vadd.f32 %v935, %v1128
  %v1145 = vadd.f32 %v936, %v1129
  %v1146 = vadd.f32 %v937, %v1130
  %v1147 = vadd.f32 %v938, %v1131
  %v1148 = vadd.f32 %v939, %v1132
  %v1149 = vld [vmem:[%s940 + $0x9] sm:$0xff]
  %v1150 = vld [vmem:[%s940 + $0x21] sm:$0xff]
  %v1151 = vld [vmem:[%s940 + $0x39] sm:$0xff]
  %v1152 = vld [vmem:[%s940 + $0x51] sm:$0xff]
  %v1153 = vld [vmem:[%s940 + $0x69] sm:$0xff]
  %v1154 = vld [vmem:[%s940 + $0x81] sm:$0xff]
  %v1155 = vld [vmem:[%s940 + $0x99] sm:$0xff]
  %v1156 = vld [vmem:[%s940 + $0xb1] sm:$0xff]
  %v1157 = vld [vmem:[%s940 + $0x159] sm:$0xff]
  %v1158 = vld [vmem:[%s940 + $0x171] sm:$0xff]
  %v1159 = vld [vmem:[%s940 + $0x189] sm:$0xff]
  %v1160 = vld [vmem:[%s940 + $0x1a1] sm:$0xff]
  %v1161 = vld [vmem:[%s940 + $0x1b9] sm:$0xff]
  %v1162 = vld [vmem:[%s940 + $0x1d1] sm:$0xff]
  %v1163 = vld [vmem:[%s940 + $0x1e9] sm:$0xff]
  %v1164 = vld [vmem:[%s940 + $0x201] sm:$0xff]
  %v1165 = vlaneseq
  %v1166 = vshrl.u32 %v1165, 7
  %v1167 = vsub.s32 2, %v1166
  %v1168 = vrot.slane %v206, %v1167
  %v1169 = vmul.f32 %v1149, %v1168
  %v1170 = vmul.f32 %v1150, %v1168
  %v1171 = vmul.f32 %v1151, %v1168
  %v1172 = vmul.f32 %v1152, %v1168
  %v1173 = vmul.f32 %v1153, %v1168
  %v1174 = vmul.f32 %v1154, %v1168
  %v1175 = vmul.f32 %v1155, %v1168
  %v1176 = vmul.f32 %v1156, %v1168
  %v1177 = vmul.f32 %v1157, %v1168
  %v1178 = vmul.f32 %v1158, %v1168
  %v1179 = vmul.f32 %v1159, %v1168
  %v1180 = vmul.f32 %v1160, %v1168
  %v1181 = vmul.f32 %v1161, %v1168
  %v1182 = vmul.f32 %v1162, %v1168
  %v1183 = vmul.f32 %v1163, %v1168
  %v1184 = vmul.f32 %v1164, %v1168
  %v1185 = vadd.f32 %v977, %v1169
  %v1186 = vadd.f32 %v978, %v1170
  %v1187 = vadd.f32 %v979, %v1171
  %v1188 = vadd.f32 %v980, %v1172
  %v1189 = vadd.f32 %v981, %v1173
  %v1190 = vadd.f32 %v982, %v1174
  %v1191 = vadd.f32 %v983, %v1175
  %v1192 = vadd.f32 %v984, %v1176
  %v1193 = vadd.f32 %v985, %v1177
  %v1194 = vadd.f32 %v986, %v1178
  %v1195 = vadd.f32 %v987, %v1179
  %v1196 = vadd.f32 %v988, %v1180
  %v1197 = vadd.f32 %v989, %v1181
  %v1198 = vadd.f32 %v990, %v1182
  %v1199 = vadd.f32 %v991, %v1183
  %v1200 = vadd.f32 %v992, %v1184
  %v1201 = vld [vmem:[%s940 + $0xa] sm:$0xff]
  %v1202 = vld [vmem:[%s940 + $0x22] sm:$0xff]
  %v1203 = vld [vmem:[%s940 + $0x3a] sm:$0xff]
  %v1204 = vld [vmem:[%s940 + $0x52] sm:$0xff]
  %v1205 = vld [vmem:[%s940 + $0x6a] sm:$0xff]
  %v1206 = vld [vmem:[%s940 + $0x82] sm:$0xff]
  %v1207 = vld [vmem:[%s940 + $0x9a] sm:$0xff]
  %v1208 = vld [vmem:[%s940 + $0xb2] sm:$0xff]
  %v1209 = vld [vmem:[%s940 + $0x15a] sm:$0xff]
  %v1210 = vld [vmem:[%s940 + $0x172] sm:$0xff]
  %v1211 = vld [vmem:[%s940 + $0x18a] sm:$0xff]
  %v1212 = vld [vmem:[%s940 + $0x1a2] sm:$0xff]
  %v1213 = vld [vmem:[%s940 + $0x1ba] sm:$0xff]
  %v1214 = vld [vmem:[%s940 + $0x1d2] sm:$0xff]
  %v1215 = vld [vmem:[%s940 + $0x1ea] sm:$0xff]
  %v1216 = vld [vmem:[%s940 + $0x202] sm:$0xff]
  %v1217 = vlaneseq
  %v1218 = vshrl.u32 %v1217, 7
  %v1219 = vsub.s32 3, %v1218
  %v1220 = vrot.slane %v206, %v1219
  %v1221 = vmul.f32 %v1201, %v1220
  %v1222 = vmul.f32 %v1202, %v1220
  %v1223 = vmul.f32 %v1203, %v1220
  %v1224 = vmul.f32 %v1204, %v1220
  %v1225 = vmul.f32 %v1205, %v1220
  %v1226 = vmul.f32 %v1206, %v1220
  %v1227 = vmul.f32 %v1207, %v1220
  %v1228 = vmul.f32 %v1208, %v1220
  %v1229 = vmul.f32 %v1209, %v1220
  %v1230 = vmul.f32 %v1210, %v1220
  %v1231 = vmul.f32 %v1211, %v1220
  %v1232 = vmul.f32 %v1212, %v1220
  %v1233 = vmul.f32 %v1213, %v1220
  %v1234 = vmul.f32 %v1214, %v1220
  %v1235 = vmul.f32 %v1215, %v1220
  %v1236 = vmul.f32 %v1216, %v1220
  %v1237 = vadd.f32 %v1029, %v1221
  %v1238 = vadd.f32 %v1030, %v1222
  %v1239 = vadd.f32 %v1031, %v1223
  %v1240 = vadd.f32 %v1032, %v1224
  %v1241 = vadd.f32 %v1033, %v1225
  %v1242 = vadd.f32 %v1034, %v1226
  %v1243 = vadd.f32 %v1035, %v1227
  %v1244 = vadd.f32 %v1036, %v1228
  %v1245 = vadd.f32 %v1037, %v1229
  %v1246 = vadd.f32 %v1038, %v1230
  %v1247 = vadd.f32 %v1039, %v1231
  %v1248 = vadd.f32 %v1040, %v1232
  %v1249 = vadd.f32 %v1041, %v1233
  %v1250 = vadd.f32 %v1042, %v1234
  %v1251 = vadd.f32 %v1043, %v1235
  %v1252 = vadd.f32 %v1044, %v1236
  %v1253 = vld [vmem:[%s940 + $0xb] sm:$0xff]
  %v1254 = vld [vmem:[%s940 + $0x23] sm:$0xff]
  %v1255 = vld [vmem:[%s940 + $0x3b] sm:$0xff]
  %v1256 = vld [vmem:[%s940 + $0x53] sm:$0xff]
  %v1257 = vld [vmem:[%s940 + $0x6b] sm:$0xff]
  %v1258 = vld [vmem:[%s940 + $0x83] sm:$0xff]
  %v1259 = vld [vmem:[%s940 + $0x9b] sm:$0xff]
  %v1260 = vld [vmem:[%s940 + $0xb3] sm:$0xff]
  %v1261 = vld [vmem:[%s940 + $0x15b] sm:$0xff]
  %v1262 = vld [vmem:[%s940 + $0x173] sm:$0xff]
  %v1263 = vld [vmem:[%s940 + $0x18b] sm:$0xff]
  %v1264 = vld [vmem:[%s940 + $0x1a3] sm:$0xff]
  %v1265 = vld [vmem:[%s940 + $0x1bb] sm:$0xff]
  %v1266 = vld [vmem:[%s940 + $0x1d3] sm:$0xff]
  %v1267 = vld [vmem:[%s940 + $0x1eb] sm:$0xff]
  %v1268 = vld [vmem:[%s940 + $0x203] sm:$0xff]
  %v1269 = vlaneseq
  %v1270 = vshrl.u32 %v1269, 7
  %v1271 = vsub.s32 4, %v1270
  %v1272 = vrot.slane %v206, %v1271
  %v1273 = vmul.f32 %v1253, %v1272
  %v1274 = vmul.f32 %v1254, %v1272
  %v1275 = vmul.f32 %v1255, %v1272
  %v1276 = vmul.f32 %v1256, %v1272
  %v1277 = vmul.f32 %v1257, %v1272
  %v1278 = vmul.f32 %v1258, %v1272
  %v1279 = vmul.f32 %v1259, %v1272
  %v1280 = vmul.f32 %v1260, %v1272
  %v1281 = vmul.f32 %v1261, %v1272
  %v1282 = vmul.f32 %v1262, %v1272
  %v1283 = vmul.f32 %v1263, %v1272
  %v1284 = vmul.f32 %v1264, %v1272
  %v1285 = vmul.f32 %v1265, %v1272
  %v1286 = vmul.f32 %v1266, %v1272
  %v1287 = vmul.f32 %v1267, %v1272
  %v1288 = vmul.f32 %v1268, %v1272
  %v1289 = vadd.f32 %v1081, %v1273
  %v1290 = vadd.f32 %v1082, %v1274
  %v1291 = vadd.f32 %v1083, %v1275
  %v1292 = vadd.f32 %v1084, %v1276
  %v1293 = vadd.f32 %v1085, %v1277
  %v1294 = vadd.f32 %v1086, %v1278
  %v1295 = vadd.f32 %v1087, %v1279
  %v1296 = vadd.f32 %v1088, %v1280
  %v1297 = vadd.f32 %v1089, %v1281
  %v1298 = vadd.f32 %v1090, %v1282
  %v1299 = vadd.f32 %v1091, %v1283
  %v1300 = vadd.f32 %v1092, %v1284
  %v1301 = vadd.f32 %v1093, %v1285
  %v1302 = vadd.f32 %v1094, %v1286
  %v1303 = vadd.f32 %v1095, %v1287
  %v1304 = vadd.f32 %v1096, %v1288
  %v1305 = vld [vmem:[%s187 + $0x5] sm:$0xff]
  %v1306 = vld [vmem:[%s187 + $0x1d] sm:$0xff]
  %v1307 = vld [vmem:[%s187 + $0x35] sm:$0xff]
  %v1308 = vld [vmem:[%s187 + $0x4d] sm:$0xff]
  %v1309 = vld [vmem:[%s187 + $0x65] sm:$0xff]
  %v1310 = vld [vmem:[%s187 + $0x7d] sm:$0xff]
  %v1311 = vld [vmem:[%s187 + $0x95] sm:$0xff]
  %v1312 = vld [vmem:[%s187 + $0xad] sm:$0xff]
  %v1313 = vld [vmem:[%s187 + $0x155] sm:$0xff]
  %v1314 = vld [vmem:[%s187 + $0x16d] sm:$0xff]
  %v1315 = vld [vmem:[%s187 + $0x185] sm:$0xff]
  %v1316 = vld [vmem:[%s187 + $0x19d] sm:$0xff]
  %v1317 = vld [vmem:[%s187 + $0x1b5] sm:$0xff]
  %v1318 = vld [vmem:[%s187 + $0x1cd] sm:$0xff]
  %v1319 = vld [vmem:[%s187 + $0x1e5] sm:$0xff]
  %v1320 = vld [vmem:[%s187 + $0x1fd] sm:$0xff]
  %v1321 = vlaneseq
  %v1322 = vshrl.u32 %v1321, 7
  %v1323 = vsub.s32 5, %v1322
  %v1324 = vrot.slane %v206, %v1323
  %v1325 = vmul.f32 %v1305, %v1324
  %v1326 = vmul.f32 %v1306, %v1324
  %v1327 = vmul.f32 %v1307, %v1324
  %v1328 = vmul.f32 %v1308, %v1324
  %v1329 = vmul.f32 %v1309, %v1324
  %v1330 = vmul.f32 %v1310, %v1324
  %v1331 = vmul.f32 %v1311, %v1324
  %v1332 = vmul.f32 %v1312, %v1324
  %v1333 = vmul.f32 %v1313, %v1324
  %v1334 = vmul.f32 %v1314, %v1324
  %v1335 = vmul.f32 %v1315, %v1324
  %v1336 = vmul.f32 %v1316, %v1324
  %v1337 = vmul.f32 %v1317, %v1324
  %v1338 = vmul.f32 %v1318, %v1324
  %v1339 = vmul.f32 %v1319, %v1324
  %v1340 = vmul.f32 %v1320, %v1324
  %v1341 = vadd.f32 %v1133, %v1325
  %v1342 = vadd.f32 %v1134, %v1326
  %v1343 = vadd.f32 %v1135, %v1327
  %v1344 = vadd.f32 %v1136, %v1328
  %v1345 = vadd.f32 %v1137, %v1329
  %v1346 = vadd.f32 %v1138, %v1330
  %v1347 = vadd.f32 %v1139, %v1331
  %v1348 = vadd.f32 %v1140, %v1332
  %v1349 = vadd.f32 %v1141, %v1333
  %v1350 = vadd.f32 %v1142, %v1334
  %v1351 = vadd.f32 %v1143, %v1335
  %v1352 = vadd.f32 %v1144, %v1336
  %v1353 = vadd.f32 %v1145, %v1337
  %v1354 = vadd.f32 %v1146, %v1338
  %v1355 = vadd.f32 %v1147, %v1339
  %v1356 = vadd.f32 %v1148, %v1340
  %v1357 = vld [vmem:[%s187 + $0x6] sm:$0xff]
  %v1358 = vld [vmem:[%s187 + $0x1e] sm:$0xff]
  %v1359 = vld [vmem:[%s187 + $0x36] sm:$0xff]
  %v1360 = vld [vmem:[%s187 + $0x4e] sm:$0xff]
  %v1361 = vld [vmem:[%s187 + $0x66] sm:$0xff]
  %v1362 = vld [vmem:[%s187 + $0x7e] sm:$0xff]
  %v1363 = vld [vmem:[%s187 + $0x96] sm:$0xff]
  %v1364 = vld [vmem:[%s187 + $0xae] sm:$0xff]
  %v1365 = vld [vmem:[%s187 + $0x156] sm:$0xff]
  %v1366 = vld [vmem:[%s187 + $0x16e] sm:$0xff]
  %v1367 = vld [vmem:[%s187 + $0x186] sm:$0xff]
  %v1368 = vld [vmem:[%s187 + $0x19e] sm:$0xff]
  %v1369 = vld [vmem:[%s187 + $0x1b6] sm:$0xff]
  %v1370 = vld [vmem:[%s187 + $0x1ce] sm:$0xff]
  %v1371 = vld [vmem:[%s187 + $0x1e6] sm:$0xff]
  %v1372 = vld [vmem:[%s187 + $0x1fe] sm:$0xff]
  %v1373 = vlaneseq
  %v1374 = vshrl.u32 %v1373, 7
  %v1375 = vsub.s32 6, %v1374
  %v1376 = vrot.slane %v206, %v1375
  %v1377 = vmul.f32 %v1357, %v1376
  %v1378 = vmul.f32 %v1358, %v1376
  %v1379 = vmul.f32 %v1359, %v1376
  %v1380 = vmul.f32 %v1360, %v1376
  %v1381 = vmul.f32 %v1361, %v1376
  %v1382 = vmul.f32 %v1362, %v1376
  %v1383 = vmul.f32 %v1363, %v1376
  %v1384 = vmul.f32 %v1364, %v1376
  %v1385 = vmul.f32 %v1365, %v1376
  %v1386 = vmul.f32 %v1366, %v1376
  %v1387 = vmul.f32 %v1367, %v1376
  %v1388 = vmul.f32 %v1368, %v1376
  %v1389 = vmul.f32 %v1369, %v1376
  %v1390 = vmul.f32 %v1370, %v1376
  %v1391 = vmul.f32 %v1371, %v1376
  %v1392 = vmul.f32 %v1372, %v1376
  %v1393 = vadd.f32 %v1185, %v1377
  %v1394 = vadd.f32 %v1186, %v1378
  %v1395 = vadd.f32 %v1187, %v1379
  %v1396 = vadd.f32 %v1188, %v1380
  %v1397 = vadd.f32 %v1189, %v1381
  %v1398 = vadd.f32 %v1190, %v1382
  %v1399 = vadd.f32 %v1191, %v1383
  %v1400 = vadd.f32 %v1192, %v1384
  %v1401 = vadd.f32 %v1193, %v1385
  %v1402 = vadd.f32 %v1194, %v1386
  %v1403 = vadd.f32 %v1195, %v1387
  %v1404 = vadd.f32 %v1196, %v1388
  %v1405 = vadd.f32 %v1197, %v1389
  %v1406 = vadd.f32 %v1198, %v1390
  %v1407 = vadd.f32 %v1199, %v1391
  %v1408 = vadd.f32 %v1200, %v1392
  %v1409 = vld [vmem:[%s187 + $0x7] sm:$0xff]
  %v1410 = vld [vmem:[%s187 + $0x1f] sm:$0xff]
  %v1411 = vld [vmem:[%s187 + $0x37] sm:$0xff]
  %v1412 = vld [vmem:[%s187 + $0x4f] sm:$0xff]
  %v1413 = vld [vmem:[%s187 + $0x67] sm:$0xff]
  %v1414 = vld [vmem:[%s187 + $0x7f] sm:$0xff]
  %v1415 = vld [vmem:[%s187 + $0x97] sm:$0xff]
  %v1416 = vld [vmem:[%s187 + $0xaf] sm:$0xff]
  %v1417 = vld [vmem:[%s187 + $0x157] sm:$0xff]
  %v1418 = vld [vmem:[%s187 + $0x16f] sm:$0xff]
  %v1419 = vld [vmem:[%s187 + $0x187] sm:$0xff]
  %v1420 = vld [vmem:[%s187 + $0x19f] sm:$0xff]
  %v1421 = vld [vmem:[%s187 + $0x1b7] sm:$0xff]
  %v1422 = vld [vmem:[%s187 + $0x1cf] sm:$0xff]
  %v1423 = vld [vmem:[%s187 + $0x1e7] sm:$0xff]
  %v1424 = vld [vmem:[%s187 + $0x1ff] sm:$0xff]
  %v1425 = vlaneseq
  %v1426 = vshrl.u32 %v1425, 7
  %v1427 = vsub.s32 7, %v1426
  %v1428 = vrot.slane %v206, %v1427
  %v1429 = vmul.f32 %v1409, %v1428
  %v1430 = vmul.f32 %v1410, %v1428
  %v1431 = vmul.f32 %v1411, %v1428
  %v1432 = vmul.f32 %v1412, %v1428
  %v1433 = vmul.f32 %v1413, %v1428
  %v1434 = vmul.f32 %v1414, %v1428
  %v1435 = vmul.f32 %v1415, %v1428
  %v1436 = vmul.f32 %v1416, %v1428
  %v1437 = vmul.f32 %v1417, %v1428
  %v1438 = vmul.f32 %v1418, %v1428
  %v1439 = vmul.f32 %v1419, %v1428
  %v1440 = vmul.f32 %v1420, %v1428
  %v1441 = vmul.f32 %v1421, %v1428
  %v1442 = vmul.f32 %v1422, %v1428
  %v1443 = vmul.f32 %v1423, %v1428
  %v1444 = vmul.f32 %v1424, %v1428
  %v1445 = vadd.f32 %v1237, %v1429
  %v1446 = vadd.f32 %v1238, %v1430
  %v1447 = vadd.f32 %v1239, %v1431
  %v1448 = vadd.f32 %v1240, %v1432
  %v1449 = vadd.f32 %v1241, %v1433
  %v1450 = vadd.f32 %v1242, %v1434
  %v1451 = vadd.f32 %v1243, %v1435
  %v1452 = vadd.f32 %v1244, %v1436
  %v1453 = vadd.f32 %v1245, %v1437
  %v1454 = vadd.f32 %v1246, %v1438
  %v1455 = vadd.f32 %v1247, %v1439
  %v1456 = vadd.f32 %v1248, %v1440
  %v1457 = vadd.f32 %v1249, %v1441
  %v1458 = vadd.f32 %v1250, %v1442
  %v1459 = vadd.f32 %v1251, %v1443
  %v1460 = vadd.f32 %v1252, %v1444
  %v1461 = vld [vmem:[%s187 + $0x8] sm:$0xff]
  %v1462 = vld [vmem:[%s187 + $0x20] sm:$0xff]
  %v1463 = vld [vmem:[%s187 + $0x38] sm:$0xff]
  %v1464 = vld [vmem:[%s187 + $0x50] sm:$0xff]
  %v1465 = vld [vmem:[%s187 + $0x68] sm:$0xff]
  %v1466 = vld [vmem:[%s187 + $0x80] sm:$0xff]
  %v1467 = vld [vmem:[%s187 + $0x98] sm:$0xff]
  %v1468 = vld [vmem:[%s187 + $0xb0] sm:$0xff]
  %v1469 = vld [vmem:[%s187 + $0x158] sm:$0xff]
  %v1470 = vld [vmem:[%s187 + $0x170] sm:$0xff]
  %v1471 = vld [vmem:[%s187 + $0x188] sm:$0xff]
  %v1472 = vld [vmem:[%s187 + $0x1a0] sm:$0xff]
  %v1473 = vld [vmem:[%s187 + $0x1b8] sm:$0xff]
  %v1474 = vld [vmem:[%s187 + $0x1d0] sm:$0xff]
  %v1475 = vld [vmem:[%s187 + $0x1e8] sm:$0xff]
  %v1476 = vld [vmem:[%s187 + $0x200] sm:$0xff]
  %v1477 = vlaneseq
  %v1478 = vshrl.u32 %v1477, 7
  %v1479 = vsub.s32 0, %v1478
  %v1480 = vrot.slane %v207, %v1479
  %v1481 = vmul.f32 %v1461, %v1480
  %v1482 = vmul.f32 %v1462, %v1480
  %v1483 = vmul.f32 %v1463, %v1480
  %v1484 = vmul.f32 %v1464, %v1480
  %v1485 = vmul.f32 %v1465, %v1480
  %v1486 = vmul.f32 %v1466, %v1480
  %v1487 = vmul.f32 %v1467, %v1480
  %v1488 = vmul.f32 %v1468, %v1480
  %v1489 = vmul.f32 %v1469, %v1480
  %v1490 = vmul.f32 %v1470, %v1480
  %v1491 = vmul.f32 %v1471, %v1480
  %v1492 = vmul.f32 %v1472, %v1480
  %v1493 = vmul.f32 %v1473, %v1480
  %v1494 = vmul.f32 %v1474, %v1480
  %v1495 = vmul.f32 %v1475, %v1480
  %v1496 = vmul.f32 %v1476, %v1480
  %v1497 = vadd.f32 %v1289, %v1481
  %v1498 = vadd.f32 %v1290, %v1482
  %v1499 = vadd.f32 %v1291, %v1483
  %v1500 = vadd.f32 %v1292, %v1484
  %v1501 = vadd.f32 %v1293, %v1485
  %v1502 = vadd.f32 %v1294, %v1486
  %v1503 = vadd.f32 %v1295, %v1487
  %v1504 = vadd.f32 %v1296, %v1488
  %v1505 = vadd.f32 %v1297, %v1489
  %v1506 = vadd.f32 %v1298, %v1490
  %v1507 = vadd.f32 %v1299, %v1491
  %v1508 = vadd.f32 %v1300, %v1492
  %v1509 = vadd.f32 %v1301, %v1493
  %v1510 = vadd.f32 %v1302, %v1494
  %v1511 = vadd.f32 %v1303, %v1495
  %v1512 = vadd.f32 %v1304, %v1496
  %v1513 = vld [vmem:[%s187 + $0x9] sm:$0xff]
  %v1514 = vld [vmem:[%s187 + $0x21] sm:$0xff]
  %v1515 = vld [vmem:[%s187 + $0x39] sm:$0xff]
  %v1516 = vld [vmem:[%s187 + $0x51] sm:$0xff]
  %v1517 = vld [vmem:[%s187 + $0x69] sm:$0xff]
  %v1518 = vld [vmem:[%s187 + $0x81] sm:$0xff]
  %v1519 = vld [vmem:[%s187 + $0x99] sm:$0xff]
  %v1520 = vld [vmem:[%s187 + $0xb1] sm:$0xff]
  %v1521 = vld [vmem:[%s187 + $0x159] sm:$0xff]
  %v1522 = vld [vmem:[%s187 + $0x171] sm:$0xff]
  %v1523 = vld [vmem:[%s187 + $0x189] sm:$0xff]
  %v1524 = vld [vmem:[%s187 + $0x1a1] sm:$0xff]
  %v1525 = vld [vmem:[%s187 + $0x1b9] sm:$0xff]
  %v1526 = vld [vmem:[%s187 + $0x1d1] sm:$0xff]
  %v1527 = vld [vmem:[%s187 + $0x1e9] sm:$0xff]
  %v1528 = vld [vmem:[%s187 + $0x201] sm:$0xff]
  %v1529 = vlaneseq
  %v1530 = vshrl.u32 %v1529, 7
  %v1531 = vsub.s32 1, %v1530
  %v1532 = vrot.slane %v207, %v1531
  %v1533 = vmul.f32 %v1513, %v1532
  %v1534 = vmul.f32 %v1514, %v1532
  %v1535 = vmul.f32 %v1515, %v1532
  %v1536 = vmul.f32 %v1516, %v1532
  %v1537 = vmul.f32 %v1517, %v1532
  %v1538 = vmul.f32 %v1518, %v1532
  %v1539 = vmul.f32 %v1519, %v1532
  %v1540 = vmul.f32 %v1520, %v1532
  %v1541 = vmul.f32 %v1521, %v1532
  %v1542 = vmul.f32 %v1522, %v1532
  %v1543 = vmul.f32 %v1523, %v1532
  %v1544 = vmul.f32 %v1524, %v1532
  %v1545 = vmul.f32 %v1525, %v1532
  %v1546 = vmul.f32 %v1526, %v1532
  %v1547 = vmul.f32 %v1527, %v1532
  %v1548 = vmul.f32 %v1528, %v1532
  %v1549 = vadd.f32 %v1341, %v1533
  %v1550 = vadd.f32 %v1342, %v1534
  %v1551 = vadd.f32 %v1343, %v1535
  %v1552 = vadd.f32 %v1344, %v1536
  %v1553 = vadd.f32 %v1345, %v1537
  %v1554 = vadd.f32 %v1346, %v1538
  %v1555 = vadd.f32 %v1347, %v1539
  %v1556 = vadd.f32 %v1348, %v1540
  %v1557 = vadd.f32 %v1349, %v1541
  %v1558 = vadd.f32 %v1350, %v1542
  %v1559 = vadd.f32 %v1351, %v1543
  %v1560 = vadd.f32 %v1352, %v1544
  %v1561 = vadd.f32 %v1353, %v1545
  %v1562 = vadd.f32 %v1354, %v1546
  %v1563 = vadd.f32 %v1355, %v1547
  %v1564 = vadd.f32 %v1356, %v1548
  %v1565 = vld [vmem:[%s187 + $0xa] sm:$0xff]
  %v1566 = vld [vmem:[%s187 + $0x22] sm:$0xff]
  %v1567 = vld [vmem:[%s187 + $0x3a] sm:$0xff]
  %v1568 = vld [vmem:[%s187 + $0x52] sm:$0xff]
  %v1569 = vld [vmem:[%s187 + $0x6a] sm:$0xff]
  %v1570 = vld [vmem:[%s187 + $0x82] sm:$0xff]
  %v1571 = vld [vmem:[%s187 + $0x9a] sm:$0xff]
  %v1572 = vld [vmem:[%s187 + $0xb2] sm:$0xff]
  %v1573 = vld [vmem:[%s187 + $0x15a] sm:$0xff]
  %v1574 = vld [vmem:[%s187 + $0x172] sm:$0xff]
  %v1575 = vld [vmem:[%s187 + $0x18a] sm:$0xff]
  %v1576 = vld [vmem:[%s187 + $0x1a2] sm:$0xff]
  %v1577 = vld [vmem:[%s187 + $0x1ba] sm:$0xff]
  %v1578 = vld [vmem:[%s187 + $0x1d2] sm:$0xff]
  %v1579 = vld [vmem:[%s187 + $0x1ea] sm:$0xff]
  %v1580 = vld [vmem:[%s187 + $0x202] sm:$0xff]
  %v1581 = vlaneseq
  %v1582 = vshrl.u32 %v1581, 7
  %v1583 = vsub.s32 2, %v1582
  %v1584 = vrot.slane %v207, %v1583
  %v1585 = vmul.f32 %v1565, %v1584
  %v1586 = vmul.f32 %v1566, %v1584
  %v1587 = vmul.f32 %v1567, %v1584
  %v1588 = vmul.f32 %v1568, %v1584
  %v1589 = vmul.f32 %v1569, %v1584
  %v1590 = vmul.f32 %v1570, %v1584
  %v1591 = vmul.f32 %v1571, %v1584
  %v1592 = vmul.f32 %v1572, %v1584
  %v1593 = vmul.f32 %v1573, %v1584
  %v1594 = vmul.f32 %v1574, %v1584
  %v1595 = vmul.f32 %v1575, %v1584
  %v1596 = vmul.f32 %v1576, %v1584
  %v1597 = vmul.f32 %v1577, %v1584
  %v1598 = vmul.f32 %v1578, %v1584
  %v1599 = vmul.f32 %v1579, %v1584
  %v1600 = vmul.f32 %v1580, %v1584
  %v1601 = vadd.f32 %v1393, %v1585
  %v1602 = vadd.f32 %v1394, %v1586
  %v1603 = vadd.f32 %v1395, %v1587
  %v1604 = vadd.f32 %v1396, %v1588
  %v1605 = vadd.f32 %v1397, %v1589
  %v1606 = vadd.f32 %v1398, %v1590
  %v1607 = vadd.f32 %v1399, %v1591
  %v1608 = vadd.f32 %v1400, %v1592
  %v1609 = vadd.f32 %v1401, %v1593
  %v1610 = vadd.f32 %v1402, %v1594
  %v1611 = vadd.f32 %v1403, %v1595
  %v1612 = vadd.f32 %v1404, %v1596
  %v1613 = vadd.f32 %v1405, %v1597
  %v1614 = vadd.f32 %v1406, %v1598
  %v1615 = vadd.f32 %v1407, %v1599
  %v1616 = vadd.f32 %v1408, %v1600
  %v1617 = vld [vmem:[%s187 + $0xb] sm:$0xff]
  %v1618 = vld [vmem:[%s187 + $0x23] sm:$0xff]
  %v1619 = vld [vmem:[%s187 + $0x3b] sm:$0xff]
  %v1620 = vld [vmem:[%s187 + $0x53] sm:$0xff]
  %v1621 = vld [vmem:[%s187 + $0x6b] sm:$0xff]
  %v1622 = vld [vmem:[%s187 + $0x83] sm:$0xff]
  %v1623 = vld [vmem:[%s187 + $0x9b] sm:$0xff]
  %v1624 = vld [vmem:[%s187 + $0xb3] sm:$0xff]
  %v1625 = vld [vmem:[%s187 + $0x15b] sm:$0xff]
  %v1626 = vld [vmem:[%s187 + $0x173] sm:$0xff]
  %v1627 = vld [vmem:[%s187 + $0x18b] sm:$0xff]
  %v1628 = vld [vmem:[%s187 + $0x1a3] sm:$0xff]
  %v1629 = vld [vmem:[%s187 + $0x1bb] sm:$0xff]
  %v1630 = vld [vmem:[%s187 + $0x1d3] sm:$0xff]
  %v1631 = vld [vmem:[%s187 + $0x1eb] sm:$0xff]
  %v1632 = vld [vmem:[%s187 + $0x203] sm:$0xff]
  %v1633 = vlaneseq
  %v1634 = vshrl.u32 %v1633, 7
  %v1635 = vsub.s32 3, %v1634
  %v1636 = vrot.slane %v207, %v1635
  %v1637 = vmul.f32 %v1617, %v1636
  %v1638 = vmul.f32 %v1618, %v1636
  %v1639 = vmul.f32 %v1619, %v1636
  %v1640 = vmul.f32 %v1620, %v1636
  %v1641 = vmul.f32 %v1621, %v1636
  %v1642 = vmul.f32 %v1622, %v1636
  %v1643 = vmul.f32 %v1623, %v1636
  %v1644 = vmul.f32 %v1624, %v1636
  %v1645 = vmul.f32 %v1625, %v1636
  %v1646 = vmul.f32 %v1626, %v1636
  %v1647 = vmul.f32 %v1627, %v1636
  %v1648 = vmul.f32 %v1628, %v1636
  %v1649 = vmul.f32 %v1629, %v1636
  %v1650 = vmul.f32 %v1630, %v1636
  %v1651 = vmul.f32 %v1631, %v1636
  %v1652 = vmul.f32 %v1632, %v1636
  %v1653 = vadd.f32 %v1445, %v1637
  %v1654 = vadd.f32 %v1446, %v1638
  %v1655 = vadd.f32 %v1447, %v1639
  %v1656 = vadd.f32 %v1448, %v1640
  %v1657 = vadd.f32 %v1449, %v1641
  %v1658 = vadd.f32 %v1450, %v1642
  %v1659 = vadd.f32 %v1451, %v1643
  %v1660 = vadd.f32 %v1452, %v1644
  %v1661 = vadd.f32 %v1453, %v1645
  %v1662 = vadd.f32 %v1454, %v1646
  %v1663 = vadd.f32 %v1455, %v1647
  %v1664 = vadd.f32 %v1456, %v1648
  %v1665 = vadd.f32 %v1457, %v1649
  %v1666 = vadd.f32 %v1458, %v1650
  %v1667 = vadd.f32 %v1459, %v1651
  %v1668 = vadd.f32 %v1460, %v1652
  %s1669 = scalar_lea.vmem [#allocation2], 96
  %v1670 = vld [vmem:[%s1669 + $0x5] sm:$0xff]
  %v1671 = vld [vmem:[%s1669 + $0x1d] sm:$0xff]
  %v1672 = vld [vmem:[%s1669 + $0x35] sm:$0xff]
  %v1673 = vld [vmem:[%s1669 + $0x4d] sm:$0xff]
  %v1674 = vld [vmem:[%s1669 + $0x65] sm:$0xff]
  %v1675 = vld [vmem:[%s1669 + $0x7d] sm:$0xff]
  %v1676 = vld [vmem:[%s1669 + $0x95] sm:$0xff]
  %v1677 = vld [vmem:[%s1669 + $0xad] sm:$0xff]
  %v1678 = vld [vmem:[%s1669 + $0x155] sm:$0xff]
  %v1679 = vld [vmem:[%s1669 + $0x16d] sm:$0xff]
  %v1680 = vld [vmem:[%s1669 + $0x185] sm:$0xff]
  %v1681 = vld [vmem:[%s1669 + $0x19d] sm:$0xff]
  %v1682 = vld [vmem:[%s1669 + $0x1b5] sm:$0xff]
  %v1683 = vld [vmem:[%s1669 + $0x1cd] sm:$0xff]
  %v1684 = vld [vmem:[%s1669 + $0x1e5] sm:$0xff]
  %v1685 = vld [vmem:[%s1669 + $0x1fd] sm:$0xff]
  %v1686 = vlaneseq
  %v1687 = vshrl.u32 %v1686, 7
  %v1688 = vsub.s32 4, %v1687
  %v1689 = vrot.slane %v207, %v1688
  %v1690 = vmul.f32 %v1670, %v1689
  %v1691 = vmul.f32 %v1671, %v1689
  %v1692 = vmul.f32 %v1672, %v1689
  %v1693 = vmul.f32 %v1673, %v1689
  %v1694 = vmul.f32 %v1674, %v1689
  %v1695 = vmul.f32 %v1675, %v1689
  %v1696 = vmul.f32 %v1676, %v1689
  %v1697 = vmul.f32 %v1677, %v1689
  %v1698 = vmul.f32 %v1678, %v1689
  %v1699 = vmul.f32 %v1679, %v1689
  %v1700 = vmul.f32 %v1680, %v1689
  %v1701 = vmul.f32 %v1681, %v1689
  %v1702 = vmul.f32 %v1682, %v1689
  %v1703 = vmul.f32 %v1683, %v1689
  %v1704 = vmul.f32 %v1684, %v1689
  %v1705 = vmul.f32 %v1685, %v1689
  %v1706 = vadd.f32 %v1497, %v1690
  %v1707 = vadd.f32 %v1498, %v1691
  %v1708 = vadd.f32 %v1499, %v1692
  %v1709 = vadd.f32 %v1500, %v1693
  %v1710 = vadd.f32 %v1501, %v1694
  %v1711 = vadd.f32 %v1502, %v1695
  %v1712 = vadd.f32 %v1503, %v1696
  %v1713 = vadd.f32 %v1504, %v1697
  %v1714 = vadd.f32 %v1505, %v1698
  %v1715 = vadd.f32 %v1506, %v1699
  %v1716 = vadd.f32 %v1507, %v1700
  %v1717 = vadd.f32 %v1508, %v1701
  %v1718 = vadd.f32 %v1509, %v1702
  %v1719 = vadd.f32 %v1510, %v1703
  %v1720 = vadd.f32 %v1511, %v1704
  %v1721 = vadd.f32 %v1512, %v1705
  %v1722 = vld [vmem:[%s1669 + $0x6] sm:$0xff]
  %v1723 = vld [vmem:[%s1669 + $0x1e] sm:$0xff]
  %v1724 = vld [vmem:[%s1669 + $0x36] sm:$0xff]
  %v1725 = vld [vmem:[%s1669 + $0x4e] sm:$0xff]
  %v1726 = vld [vmem:[%s1669 + $0x66] sm:$0xff]
  %v1727 = vld [vmem:[%s1669 + $0x7e] sm:$0xff]
  %v1728 = vld [vmem:[%s1669 + $0x96] sm:$0xff]
  %v1729 = vld [vmem:[%s1669 + $0xae] sm:$0xff]
  %v1730 = vld [vmem:[%s1669 + $0x156] sm:$0xff]
  %v1731 = vld [vmem:[%s1669 + $0x16e] sm:$0xff]
  %v1732 = vld [vmem:[%s1669 + $0x186] sm:$0xff]
  %v1733 = vld [vmem:[%s1669 + $0x19e] sm:$0xff]
  %v1734 = vld [vmem:[%s1669 + $0x1b6] sm:$0xff]
  %v1735 = vld [vmem:[%s1669 + $0x1ce] sm:$0xff]
  %v1736 = vld [vmem:[%s1669 + $0x1e6] sm:$0xff]
  %v1737 = vld [vmem:[%s1669 + $0x1fe] sm:$0xff]
  %v1738 = vlaneseq
  %v1739 = vshrl.u32 %v1738, 7
  %v1740 = vsub.s32 5, %v1739
  %v1741 = vrot.slane %v207, %v1740
  %v1742 = vmul.f32 %v1722, %v1741
  %v1743 = vmul.f32 %v1723, %v1741
  %v1744 = vmul.f32 %v1724, %v1741
  %v1745 = vmul.f32 %v1725, %v1741
  %v1746 = vmul.f32 %v1726, %v1741
  %v1747 = vmul.f32 %v1727, %v1741
  %v1748 = vmul.f32 %v1728, %v1741
  %v1749 = vmul.f32 %v1729, %v1741
  %v1750 = vmul.f32 %v1730, %v1741
  %v1751 = vmul.f32 %v1731, %v1741
  %v1752 = vmul.f32 %v1732, %v1741
  %v1753 = vmul.f32 %v1733, %v1741
  %v1754 = vmul.f32 %v1734, %v1741
  %v1755 = vmul.f32 %v1735, %v1741
  %v1756 = vmul.f32 %v1736, %v1741
  %v1757 = vmul.f32 %v1737, %v1741
  %v1758 = vadd.f32 %v1549, %v1742
  %v1759 = vadd.f32 %v1550, %v1743
  %v1760 = vadd.f32 %v1551, %v1744
  %v1761 = vadd.f32 %v1552, %v1745
  %v1762 = vadd.f32 %v1553, %v1746
  %v1763 = vadd.f32 %v1554, %v1747
  %v1764 = vadd.f32 %v1555, %v1748
  %v1765 = vadd.f32 %v1556, %v1749
  %v1766 = vadd.f32 %v1557, %v1750
  %v1767 = vadd.f32 %v1558, %v1751
  %v1768 = vadd.f32 %v1559, %v1752
  %v1769 = vadd.f32 %v1560, %v1753
  %v1770 = vadd.f32 %v1561, %v1754
  %v1771 = vadd.f32 %v1562, %v1755
  %v1772 = vadd.f32 %v1563, %v1756
  %v1773 = vadd.f32 %v1564, %v1757
  %v1774 = vld [vmem:[%s1669 + $0x7] sm:$0xff]
  %v1775 = vld [vmem:[%s1669 + $0x1f] sm:$0xff]
  %v1776 = vld [vmem:[%s1669 + $0x37] sm:$0xff]
  %v1777 = vld [vmem:[%s1669 + $0x4f] sm:$0xff]
  %v1778 = vld [vmem:[%s1669 + $0x67] sm:$0xff]
  %v1779 = vld [vmem:[%s1669 + $0x7f] sm:$0xff]
  %v1780 = vld [vmem:[%s1669 + $0x97] sm:$0xff]
  %v1781 = vld [vmem:[%s1669 + $0xaf] sm:$0xff]
  %v1782 = vld [vmem:[%s1669 + $0x157] sm:$0xff]
  %v1783 = vld [vmem:[%s1669 + $0x16f] sm:$0xff]
  %v1784 = vld [vmem:[%s1669 + $0x187] sm:$0xff]
  %v1785 = vld [vmem:[%s1669 + $0x19f] sm:$0xff]
  %v1786 = vld [vmem:[%s1669 + $0x1b7] sm:$0xff]
  %v1787 = vld [vmem:[%s1669 + $0x1cf] sm:$0xff]
  %v1788 = vld [vmem:[%s1669 + $0x1e7] sm:$0xff]
  %v1789 = vld [vmem:[%s1669 + $0x1ff] sm:$0xff]
  %v1790 = vlaneseq
  %v1791 = vshrl.u32 %v1790, 7
  %v1792 = vsub.s32 6, %v1791
  %v1793 = vrot.slane %v207, %v1792
  %v1794 = vmul.f32 %v1774, %v1793
  %v1795 = vmul.f32 %v1775, %v1793
  %v1796 = vmul.f32 %v1776, %v1793
  %v1797 = vmul.f32 %v1777, %v1793
  %v1798 = vmul.f32 %v1778, %v1793
  %v1799 = vmul.f32 %v1779, %v1793
  %v1800 = vmul.f32 %v1780, %v1793
  %v1801 = vmul.f32 %v1781, %v1793
  %v1802 = vmul.f32 %v1782, %v1793
  %v1803 = vmul.f32 %v1783, %v1793
  %v1804 = vmul.f32 %v1784, %v1793
  %v1805 = vmul.f32 %v1785, %v1793
  %v1806 = vmul.f32 %v1786, %v1793
  %v1807 = vmul.f32 %v1787, %v1793
  %v1808 = vmul.f32 %v1788, %v1793
  %v1809 = vmul.f32 %v1789, %v1793
  %v1810 = vadd.f32 %v1601, %v1794
  %v1811 = vadd.f32 %v1602, %v1795
  %v1812 = vadd.f32 %v1603, %v1796
  %v1813 = vadd.f32 %v1604, %v1797
  %v1814 = vadd.f32 %v1605, %v1798
  %v1815 = vadd.f32 %v1606, %v1799
  %v1816 = vadd.f32 %v1607, %v1800
  %v1817 = vadd.f32 %v1608, %v1801
  %v1818 = vadd.f32 %v1609, %v1802
  %v1819 = vadd.f32 %v1610, %v1803
  %v1820 = vadd.f32 %v1611, %v1804
  %v1821 = vadd.f32 %v1612, %v1805
  %v1822 = vadd.f32 %v1613, %v1806
  %v1823 = vadd.f32 %v1614, %v1807
  %v1824 = vadd.f32 %v1615, %v1808
  %v1825 = vadd.f32 %v1616, %v1809
  %v1826 = vld [vmem:[%s1669 + $0x8] sm:$0xff]
  %v1827 = vld [vmem:[%s1669 + $0x20] sm:$0xff]
  %v1828 = vld [vmem:[%s1669 + $0x38] sm:$0xff]
  %v1829 = vld [vmem:[%s1669 + $0x50] sm:$0xff]
  %v1830 = vld [vmem:[%s1669 + $0x68] sm:$0xff]
  %v1831 = vld [vmem:[%s1669 + $0x80] sm:$0xff]
  %v1832 = vld [vmem:[%s1669 + $0x98] sm:$0xff]
  %v1833 = vld [vmem:[%s1669 + $0xb0] sm:$0xff]
  %v1834 = vld [vmem:[%s1669 + $0x158] sm:$0xff]
  %v1835 = vld [vmem:[%s1669 + $0x170] sm:$0xff]
  %v1836 = vld [vmem:[%s1669 + $0x188] sm:$0xff]
  %v1837 = vld [vmem:[%s1669 + $0x1a0] sm:$0xff]
  %v1838 = vld [vmem:[%s1669 + $0x1b8] sm:$0xff]
  %v1839 = vld [vmem:[%s1669 + $0x1d0] sm:$0xff]
  %v1840 = vld [vmem:[%s1669 + $0x1e8] sm:$0xff]
  %v1841 = vld [vmem:[%s1669 + $0x200] sm:$0xff]
  %v1842 = vlaneseq
  %v1843 = vshrl.u32 %v1842, 7
  %v1844 = vsub.s32 7, %v1843
  %v1845 = vrot.slane %v207, %v1844
  %v1846 = vmul.f32 %v1826, %v1845
  %v1847 = vmul.f32 %v1827, %v1845
  %v1848 = vmul.f32 %v1828, %v1845
  %v1849 = vmul.f32 %v1829, %v1845
  %v1850 = vmul.f32 %v1830, %v1845
  %v1851 = vmul.f32 %v1831, %v1845
  %v1852 = vmul.f32 %v1832, %v1845
  %v1853 = vmul.f32 %v1833, %v1845
  %v1854 = vmul.f32 %v1834, %v1845
  %v1855 = vmul.f32 %v1835, %v1845
  %v1856 = vmul.f32 %v1836, %v1845
  %v1857 = vmul.f32 %v1837, %v1845
  %v1858 = vmul.f32 %v1838, %v1845
  %v1859 = vmul.f32 %v1839, %v1845
  %v1860 = vmul.f32 %v1840, %v1845
  %v1861 = vmul.f32 %v1841, %v1845
  %v1862 = vadd.f32 %v1653, %v1846
  %v1863 = vadd.f32 %v1654, %v1847
  %v1864 = vadd.f32 %v1655, %v1848
  %v1865 = vadd.f32 %v1656, %v1849
  %v1866 = vadd.f32 %v1657, %v1850
  %v1867 = vadd.f32 %v1658, %v1851
  %v1868 = vadd.f32 %v1659, %v1852
  %v1869 = vadd.f32 %v1660, %v1853
  %v1870 = vadd.f32 %v1661, %v1854
  %v1871 = vadd.f32 %v1662, %v1855
  %v1872 = vadd.f32 %v1663, %v1856
  %v1873 = vadd.f32 %v1664, %v1857
  %v1874 = vadd.f32 %v1665, %v1858
  %v1875 = vadd.f32 %v1666, %v1859
  %v1876 = vadd.f32 %v1667, %v1860
  %v1877 = vadd.f32 %v1668, %v1861
  %v1878 = vld [vmem:[%s1669 + $0x9] sm:$0xff]
  %v1879 = vld [vmem:[%s1669 + $0x21] sm:$0xff]
  %v1880 = vld [vmem:[%s1669 + $0x39] sm:$0xff]
  %v1881 = vld [vmem:[%s1669 + $0x51] sm:$0xff]
  %v1882 = vld [vmem:[%s1669 + $0x69] sm:$0xff]
  %v1883 = vld [vmem:[%s1669 + $0x81] sm:$0xff]
  %v1884 = vld [vmem:[%s1669 + $0x99] sm:$0xff]
  %v1885 = vld [vmem:[%s1669 + $0xb1] sm:$0xff]
  %v1886 = vld [vmem:[%s1669 + $0x159] sm:$0xff]
  %v1887 = vld [vmem:[%s1669 + $0x171] sm:$0xff]
  %v1888 = vld [vmem:[%s1669 + $0x189] sm:$0xff]
  %v1889 = vld [vmem:[%s1669 + $0x1a1] sm:$0xff]
  %v1890 = vld [vmem:[%s1669 + $0x1b9] sm:$0xff]
  %v1891 = vld [vmem:[%s1669 + $0x1d1] sm:$0xff]
  %v1892 = vld [vmem:[%s1669 + $0x1e9] sm:$0xff]
  %v1893 = vld [vmem:[%s1669 + $0x201] sm:$0xff]
  %v1894 = vlaneseq
  %v1895 = vshrl.u32 %v1894, 7
  %v1896 = vsub.s32 0, %v1895
  %v1897 = vrot.slane %v208, %v1896
  %v1898 = vmul.f32 %v1878, %v1897
  %v1899 = vmul.f32 %v1879, %v1897
  %v1900 = vmul.f32 %v1880, %v1897
  %v1901 = vmul.f32 %v1881, %v1897
  %v1902 = vmul.f32 %v1882, %v1897
  %v1903 = vmul.f32 %v1883, %v1897
  %v1904 = vmul.f32 %v1884, %v1897
  %v1905 = vmul.f32 %v1885, %v1897
  %v1906 = vmul.f32 %v1886, %v1897
  %v1907 = vmul.f32 %v1887, %v1897
  %v1908 = vmul.f32 %v1888, %v1897
  %v1909 = vmul.f32 %v1889, %v1897
  %v1910 = vmul.f32 %v1890, %v1897
  %v1911 = vmul.f32 %v1891, %v1897
  %v1912 = vmul.f32 %v1892, %v1897
  %v1913 = vmul.f32 %v1893, %v1897
  %v1914 = vadd.f32 %v1706, %v1898
  %v1915 = vadd.f32 %v1707, %v1899
  %v1916 = vadd.f32 %v1708, %v1900
  %v1917 = vadd.f32 %v1709, %v1901
  %v1918 = vadd.f32 %v1710, %v1902
  %v1919 = vadd.f32 %v1711, %v1903
  %v1920 = vadd.f32 %v1712, %v1904
  %v1921 = vadd.f32 %v1713, %v1905
  %v1922 = vadd.f32 %v1714, %v1906
  %v1923 = vadd.f32 %v1715, %v1907
  %v1924 = vadd.f32 %v1716, %v1908
  %v1925 = vadd.f32 %v1717, %v1909
  %v1926 = vadd.f32 %v1718, %v1910
  %v1927 = vadd.f32 %v1719, %v1911
  %v1928 = vadd.f32 %v1720, %v1912
  %v1929 = vadd.f32 %v1721, %v1913
  %v1930 = vld [vmem:[%s1669 + $0xa] sm:$0xff]
  %v1931 = vld [vmem:[%s1669 + $0x22] sm:$0xff]
  %v1932 = vld [vmem:[%s1669 + $0x3a] sm:$0xff]
  %v1933 = vld [vmem:[%s1669 + $0x52] sm:$0xff]
  %v1934 = vld [vmem:[%s1669 + $0x6a] sm:$0xff]
  %v1935 = vld [vmem:[%s1669 + $0x82] sm:$0xff]
  %v1936 = vld [vmem:[%s1669 + $0x9a] sm:$0xff]
  %v1937 = vld [vmem:[%s1669 + $0xb2] sm:$0xff]
  %v1938 = vld [vmem:[%s1669 + $0x15a] sm:$0xff]
  %v1939 = vld [vmem:[%s1669 + $0x172] sm:$0xff]
  %v1940 = vld [vmem:[%s1669 + $0x18a] sm:$0xff]
  %v1941 = vld [vmem:[%s1669 + $0x1a2] sm:$0xff]
  %v1942 = vld [vmem:[%s1669 + $0x1ba] sm:$0xff]
  %v1943 = vld [vmem:[%s1669 + $0x1d2] sm:$0xff]
  %v1944 = vld [vmem:[%s1669 + $0x1ea] sm:$0xff]
  %v1945 = vld [vmem:[%s1669 + $0x202] sm:$0xff]
  %v1946 = vlaneseq
  %v1947 = vshrl.u32 %v1946, 7
  %v1948 = vsub.s32 1, %v1947
  %v1949 = vrot.slane %v208, %v1948
  %v1950 = vmul.f32 %v1930, %v1949
  %v1951 = vmul.f32 %v1931, %v1949
  %v1952 = vmul.f32 %v1932, %v1949
  %v1953 = vmul.f32 %v1933, %v1949
  %v1954 = vmul.f32 %v1934, %v1949
  %v1955 = vmul.f32 %v1935, %v1949
  %v1956 = vmul.f32 %v1936, %v1949
  %v1957 = vmul.f32 %v1937, %v1949
  %v1958 = vmul.f32 %v1938, %v1949
  %v1959 = vmul.f32 %v1939, %v1949
  %v1960 = vmul.f32 %v1940, %v1949
  %v1961 = vmul.f32 %v1941, %v1949
  %v1962 = vmul.f32 %v1942, %v1949
  %v1963 = vmul.f32 %v1943, %v1949
  %v1964 = vmul.f32 %v1944, %v1949
  %v1965 = vmul.f32 %v1945, %v1949
  %v1966 = vadd.f32 %v1758, %v1950
  %v1967 = vadd.f32 %v1759, %v1951
  %v1968 = vadd.f32 %v1760, %v1952
  %v1969 = vadd.f32 %v1761, %v1953
  %v1970 = vadd.f32 %v1762, %v1954
  %v1971 = vadd.f32 %v1763, %v1955
  %v1972 = vadd.f32 %v1764, %v1956
  %v1973 = vadd.f32 %v1765, %v1957
  %v1974 = vadd.f32 %v1766, %v1958
  %v1975 = vadd.f32 %v1767, %v1959
  %v1976 = vadd.f32 %v1768, %v1960
  %v1977 = vadd.f32 %v1769, %v1961
  %v1978 = vadd.f32 %v1770, %v1962
  %v1979 = vadd.f32 %v1771, %v1963
  %v1980 = vadd.f32 %v1772, %v1964
  %v1981 = vadd.f32 %v1773, %v1965
  %v1982 = vld [vmem:[%s1669 + $0xb] sm:$0xff]
  %v1983 = vld [vmem:[%s1669 + $0x23] sm:$0xff]
  %v1984 = vld [vmem:[%s1669 + $0x3b] sm:$0xff]
  %v1985 = vld [vmem:[%s1669 + $0x53] sm:$0xff]
  %v1986 = vld [vmem:[%s1669 + $0x6b] sm:$0xff]
  %v1987 = vld [vmem:[%s1669 + $0x83] sm:$0xff]
  %v1988 = vld [vmem:[%s1669 + $0x9b] sm:$0xff]
  %v1989 = vld [vmem:[%s1669 + $0xb3] sm:$0xff]
  %v1990 = vld [vmem:[%s1669 + $0x15b] sm:$0xff]
  %v1991 = vld [vmem:[%s1669 + $0x173] sm:$0xff]
  %v1992 = vld [vmem:[%s1669 + $0x18b] sm:$0xff]
  %v1993 = vld [vmem:[%s1669 + $0x1a3] sm:$0xff]
  %v1994 = vld [vmem:[%s1669 + $0x1bb] sm:$0xff]
  %v1995 = vld [vmem:[%s1669 + $0x1d3] sm:$0xff]
  %v1996 = vld [vmem:[%s1669 + $0x1eb] sm:$0xff]
  %v1997 = vld [vmem:[%s1669 + $0x203] sm:$0xff]
  %v1998 = vlaneseq
  %v1999 = vshrl.u32 %v1998, 7
  %v2000 = vsub.s32 2, %v1999
  %v2001 = vrot.slane %v208, %v2000
  %v2002 = vmul.f32 %v1982, %v2001
  %v2003 = vmul.f32 %v1983, %v2001
  %v2004 = vmul.f32 %v1984, %v2001
  %v2005 = vmul.f32 %v1985, %v2001
  %v2006 = vmul.f32 %v1986, %v2001
  %v2007 = vmul.f32 %v1987, %v2001
  %v2008 = vmul.f32 %v1988, %v2001
  %v2009 = vmul.f32 %v1989, %v2001
  %v2010 = vmul.f32 %v1990, %v2001
  %v2011 = vmul.f32 %v1991, %v2001
  %v2012 = vmul.f32 %v1992, %v2001
  %v2013 = vmul.f32 %v1993, %v2001
  %v2014 = vmul.f32 %v1994, %v2001
  %v2015 = vmul.f32 %v1995, %v2001
  %v2016 = vmul.f32 %v1996, %v2001
  %v2017 = vmul.f32 %v1997, %v2001
  %v2018 = vadd.f32 %v1810, %v2002
  %v2019 = vadd.f32 %v1811, %v2003
  %v2020 = vadd.f32 %v1812, %v2004
  %v2021 = vadd.f32 %v1813, %v2005
  %v2022 = vadd.f32 %v1814, %v2006
  %v2023 = vadd.f32 %v1815, %v2007
  %v2024 = vadd.f32 %v1816, %v2008
  %v2025 = vadd.f32 %v1817, %v2009
  %v2026 = vadd.f32 %v1818, %v2010
  %v2027 = vadd.f32 %v1819, %v2011
  %v2028 = vadd.f32 %v1820, %v2012
  %v2029 = vadd.f32 %v1821, %v2013
  %v2030 = vadd.f32 %v1822, %v2014
  %v2031 = vadd.f32 %v1823, %v2015
  %v2032 = vadd.f32 %v1824, %v2016
  %v2033 = vadd.f32 %v1825, %v2017
  %s2034 = scalar_lea.vmem [#allocation2], 120
  %v2035 = vld [vmem:[%s2034 + $0x5] sm:$0xff]
  %v2036 = vld [vmem:[%s2034 + $0x1d] sm:$0xff]
  %v2037 = vld [vmem:[%s2034 + $0x35] sm:$0xff]
  %v2038 = vld [vmem:[%s2034 + $0x4d] sm:$0xff]
  %v2039 = vld [vmem:[%s2034 + $0x65] sm:$0xff]
  %v2040 = vld [vmem:[%s2034 + $0x7d] sm:$0xff]
  %v2041 = vld [vmem:[%s2034 + $0x95] sm:$0xff]
  %v2042 = vld [vmem:[%s2034 + $0xad] sm:$0xff]
  %v2043 = vld [vmem:[%s2034 + $0x155] sm:$0xff]
  %v2044 = vld [vmem:[%s2034 + $0x16d] sm:$0xff]
  %v2045 = vld [vmem:[%s2034 + $0x185] sm:$0xff]
  %v2046 = vld [vmem:[%s2034 + $0x19d] sm:$0xff]
  %v2047 = vld [vmem:[%s2034 + $0x1b5] sm:$0xff]
  %v2048 = vld [vmem:[%s2034 + $0x1cd] sm:$0xff]
  %v2049 = vld [vmem:[%s2034 + $0x1e5] sm:$0xff]
  %v2050 = vld [vmem:[%s2034 + $0x1fd] sm:$0xff]
  %v2051 = vlaneseq
  %v2052 = vshrl.u32 %v2051, 7
  %v2053 = vsub.s32 3, %v2052
  %v2054 = vrot.slane %v208, %v2053
  %v2055 = vmul.f32 %v2035, %v2054
  %v2056 = vmul.f32 %v2036, %v2054
  %v2057 = vmul.f32 %v2037, %v2054
  %v2058 = vmul.f32 %v2038, %v2054
  %v2059 = vmul.f32 %v2039, %v2054
  %v2060 = vmul.f32 %v2040, %v2054
  %v2061 = vmul.f32 %v2041, %v2054
  %v2062 = vmul.f32 %v2042, %v2054
  %v2063 = vmul.f32 %v2043, %v2054
  %v2064 = vmul.f32 %v2044, %v2054
  %v2065 = vmul.f32 %v2045, %v2054
  %v2066 = vmul.f32 %v2046, %v2054
  %v2067 = vmul.f32 %v2047, %v2054
  %v2068 = vmul.f32 %v2048, %v2054
  %v2069 = vmul.f32 %v2049, %v2054
  %v2070 = vmul.f32 %v2050, %v2054
  %v2071 = vadd.f32 %v1862, %v2055
  %v2072 = vadd.f32 %v1863, %v2056
  %v2073 = vadd.f32 %v1864, %v2057
  %v2074 = vadd.f32 %v1865, %v2058
  %v2075 = vadd.f32 %v1866, %v2059
  %v2076 = vadd.f32 %v1867, %v2060
  %v2077 = vadd.f32 %v1868, %v2061
  %v2078 = vadd.f32 %v1869, %v2062
  %v2079 = vadd.f32 %v1870, %v2063
  %v2080 = vadd.f32 %v1871, %v2064
  %v2081 = vadd.f32 %v1872, %v2065
  %v2082 = vadd.f32 %v1873, %v2066
  %v2083 = vadd.f32 %v1874, %v2067
  %v2084 = vadd.f32 %v1875, %v2068
  %v2085 = vadd.f32 %v1876, %v2069
  %v2086 = vadd.f32 %v1877, %v2070
  %v2087 = vld [vmem:[%s2034 + $0x6] sm:$0xff]
  %v2088 = vld [vmem:[%s2034 + $0x1e] sm:$0xff]
  %v2089 = vld [vmem:[%s2034 + $0x36] sm:$0xff]
  %v2090 = vld [vmem:[%s2034 + $0x4e] sm:$0xff]
  %v2091 = vld [vmem:[%s2034 + $0x66] sm:$0xff]
  %v2092 = vld [vmem:[%s2034 + $0x7e] sm:$0xff]
  %v2093 = vld [vmem:[%s2034 + $0x96] sm:$0xff]
  %v2094 = vld [vmem:[%s2034 + $0xae] sm:$0xff]
  %v2095 = vld [vmem:[%s2034 + $0x156] sm:$0xff]
  %v2096 = vld [vmem:[%s2034 + $0x16e] sm:$0xff]
  %v2097 = vld [vmem:[%s2034 + $0x186] sm:$0xff]
  %v2098 = vld [vmem:[%s2034 + $0x19e] sm:$0xff]
  %v2099 = vld [vmem:[%s2034 + $0x1b6] sm:$0xff]
  %v2100 = vld [vmem:[%s2034 + $0x1ce] sm:$0xff]
  %v2101 = vld [vmem:[%s2034 + $0x1e6] sm:$0xff]
  %v2102 = vld [vmem:[%s2034 + $0x1fe] sm:$0xff]
  %v2103 = vlaneseq
  %v2104 = vshrl.u32 %v2103, 7
  %v2105 = vsub.s32 4, %v2104
  %v2106 = vrot.slane %v208, %v2105
  %v2107 = vmul.f32 %v2087, %v2106
  %v2108 = vmul.f32 %v2088, %v2106
  %v2109 = vmul.f32 %v2089, %v2106
  %v2110 = vmul.f32 %v2090, %v2106
  %v2111 = vmul.f32 %v2091, %v2106
  %v2112 = vmul.f32 %v2092, %v2106
  %v2113 = vmul.f32 %v2093, %v2106
  %v2114 = vmul.f32 %v2094, %v2106
  %v2115 = vmul.f32 %v2095, %v2106
  %v2116 = vmul.f32 %v2096, %v2106
  %v2117 = vmul.f32 %v2097, %v2106
  %v2118 = vmul.f32 %v2098, %v2106
  %v2119 = vmul.f32 %v2099, %v2106
  %v2120 = vmul.f32 %v2100, %v2106
  %v2121 = vmul.f32 %v2101, %v2106
  %v2122 = vmul.f32 %v2102, %v2106
  %v2123 = vadd.f32 %v1914, %v2107
  %v2124 = vadd.f32 %v1915, %v2108
  %v2125 = vadd.f32 %v1916, %v2109
  %v2126 = vadd.f32 %v1917, %v2110
  %v2127 = vadd.f32 %v1918, %v2111
  %v2128 = vadd.f32 %v1919, %v2112
  %v2129 = vadd.f32 %v1920, %v2113
  %v2130 = vadd.f32 %v1921, %v2114
  %v2131 = vadd.f32 %v1922, %v2115
  %v2132 = vadd.f32 %v1923, %v2116
  %v2133 = vadd.f32 %v1924, %v2117
  %v2134 = vadd.f32 %v1925, %v2118
  %v2135 = vadd.f32 %v1926, %v2119
  %v2136 = vadd.f32 %v1927, %v2120
  %v2137 = vadd.f32 %v1928, %v2121
  %v2138 = vadd.f32 %v1929, %v2122
  %v2139 = vld [vmem:[%s2034 + $0x7] sm:$0xff]
  %v2140 = vld [vmem:[%s2034 + $0x1f] sm:$0xff]
  %v2141 = vld [vmem:[%s2034 + $0x37] sm:$0xff]
  %v2142 = vld [vmem:[%s2034 + $0x4f] sm:$0xff]
  %v2143 = vld [vmem:[%s2034 + $0x67] sm:$0xff]
  %v2144 = vld [vmem:[%s2034 + $0x7f] sm:$0xff]
  %v2145 = vld [vmem:[%s2034 + $0x97] sm:$0xff]
  %v2146 = vld [vmem:[%s2034 + $0xaf] sm:$0xff]
  %v2147 = vld [vmem:[%s2034 + $0x157] sm:$0xff]
  %v2148 = vld [vmem:[%s2034 + $0x16f] sm:$0xff]
  %v2149 = vld [vmem:[%s2034 + $0x187] sm:$0xff]
  %v2150 = vld [vmem:[%s2034 + $0x19f] sm:$0xff]
  %v2151 = vld [vmem:[%s2034 + $0x1b7] sm:$0xff]
  %v2152 = vld [vmem:[%s2034 + $0x1cf] sm:$0xff]
  %v2153 = vld [vmem:[%s2034 + $0x1e7] sm:$0xff]
  %v2154 = vld [vmem:[%s2034 + $0x1ff] sm:$0xff]
  %v2155 = vlaneseq
  %v2156 = vshrl.u32 %v2155, 7
  %v2157 = vsub.s32 5, %v2156
  %v2158 = vrot.slane %v208, %v2157
  %v2159 = vmul.f32 %v2139, %v2158
  %v2160 = vmul.f32 %v2140, %v2158
  %v2161 = vmul.f32 %v2141, %v2158
  %v2162 = vmul.f32 %v2142, %v2158
  %v2163 = vmul.f32 %v2143, %v2158
  %v2164 = vmul.f32 %v2144, %v2158
  %v2165 = vmul.f32 %v2145, %v2158
  %v2166 = vmul.f32 %v2146, %v2158
  %v2167 = vmul.f32 %v2147, %v2158
  %v2168 = vmul.f32 %v2148, %v2158
  %v2169 = vmul.f32 %v2149, %v2158
  %v2170 = vmul.f32 %v2150, %v2158
  %v2171 = vmul.f32 %v2151, %v2158
  %v2172 = vmul.f32 %v2152, %v2158
  %v2173 = vmul.f32 %v2153, %v2158
  %v2174 = vmul.f32 %v2154, %v2158
  %v2175 = vadd.f32 %v1966, %v2159
  %v2176 = vadd.f32 %v1967, %v2160
  %v2177 = vadd.f32 %v1968, %v2161
  %v2178 = vadd.f32 %v1969, %v2162
  %v2179 = vadd.f32 %v1970, %v2163
  %v2180 = vadd.f32 %v1971, %v2164
  %v2181 = vadd.f32 %v1972, %v2165
  %v2182 = vadd.f32 %v1973, %v2166
  %v2183 = vadd.f32 %v1974, %v2167
  %v2184 = vadd.f32 %v1975, %v2168
  %v2185 = vadd.f32 %v1976, %v2169
  %v2186 = vadd.f32 %v1977, %v2170
  %v2187 = vadd.f32 %v1978, %v2171
  %v2188 = vadd.f32 %v1979, %v2172
  %v2189 = vadd.f32 %v1980, %v2173
  %v2190 = vadd.f32 %v1981, %v2174
  %v2191 = vld [vmem:[%s2034 + $0x8] sm:$0xff]
  %v2192 = vld [vmem:[%s2034 + $0x20] sm:$0xff]
  %v2193 = vld [vmem:[%s2034 + $0x38] sm:$0xff]
  %v2194 = vld [vmem:[%s2034 + $0x50] sm:$0xff]
  %v2195 = vld [vmem:[%s2034 + $0x68] sm:$0xff]
  %v2196 = vld [vmem:[%s2034 + $0x80] sm:$0xff]
  %v2197 = vld [vmem:[%s2034 + $0x98] sm:$0xff]
  %v2198 = vld [vmem:[%s2034 + $0xb0] sm:$0xff]
  %v2199 = vld [vmem:[%s2034 + $0x158] sm:$0xff]
  %v2200 = vld [vmem:[%s2034 + $0x170] sm:$0xff]
  %v2201 = vld [vmem:[%s2034 + $0x188] sm:$0xff]
  %v2202 = vld [vmem:[%s2034 + $0x1a0] sm:$0xff]
  %v2203 = vld [vmem:[%s2034 + $0x1b8] sm:$0xff]
  %v2204 = vld [vmem:[%s2034 + $0x1d0] sm:$0xff]
  %v2205 = vld [vmem:[%s2034 + $0x1e8] sm:$0xff]
  %v2206 = vld [vmem:[%s2034 + $0x200] sm:$0xff]
  %v2207 = vlaneseq
  %v2208 = vshrl.u32 %v2207, 7
  %v2209 = vsub.s32 6, %v2208
  %v2210 = vrot.slane %v208, %v2209
  %v2211 = vmul.f32 %v2191, %v2210
  %v2212 = vmul.f32 %v2192, %v2210
  %v2213 = vmul.f32 %v2193, %v2210
  %v2214 = vmul.f32 %v2194, %v2210
  %v2215 = vmul.f32 %v2195, %v2210
  %v2216 = vmul.f32 %v2196, %v2210
  %v2217 = vmul.f32 %v2197, %v2210
  %v2218 = vmul.f32 %v2198, %v2210
  %v2219 = vmul.f32 %v2199, %v2210
  %v2220 = vmul.f32 %v2200, %v2210
  %v2221 = vmul.f32 %v2201, %v2210
  %v2222 = vmul.f32 %v2202, %v2210
  %v2223 = vmul.f32 %v2203, %v2210
  %v2224 = vmul.f32 %v2204, %v2210
  %v2225 = vmul.f32 %v2205, %v2210
  %v2226 = vmul.f32 %v2206, %v2210
  %v2227 = vadd.f32 %v2018, %v2211
  %v2228 = vadd.f32 %v2019, %v2212
  %v2229 = vadd.f32 %v2020, %v2213
  %v2230 = vadd.f32 %v2021, %v2214
  %v2231 = vadd.f32 %v2022, %v2215
  %v2232 = vadd.f32 %v2023, %v2216
  %v2233 = vadd.f32 %v2024, %v2217
  %v2234 = vadd.f32 %v2025, %v2218
  %v2235 = vadd.f32 %v2026, %v2219
  %v2236 = vadd.f32 %v2027, %v2220
  %v2237 = vadd.f32 %v2028, %v2221
  %v2238 = vadd.f32 %v2029, %v2222
  %v2239 = vadd.f32 %v2030, %v2223
  %v2240 = vadd.f32 %v2031, %v2224
  %v2241 = vadd.f32 %v2032, %v2225
  %v2242 = vadd.f32 %v2033, %v2226
  %v2243 = vld [vmem:[%s2034 + $0x9] sm:$0xff]
  %v2244 = vld [vmem:[%s2034 + $0x21] sm:$0xff]
  %v2245 = vld [vmem:[%s2034 + $0x39] sm:$0xff]
  %v2246 = vld [vmem:[%s2034 + $0x51] sm:$0xff]
  %v2247 = vld [vmem:[%s2034 + $0x69] sm:$0xff]
  %v2248 = vld [vmem:[%s2034 + $0x81] sm:$0xff]
  %v2249 = vld [vmem:[%s2034 + $0x99] sm:$0xff]
  %v2250 = vld [vmem:[%s2034 + $0xb1] sm:$0xff]
  %v2251 = vld [vmem:[%s2034 + $0x159] sm:$0xff]
  %v2252 = vld [vmem:[%s2034 + $0x171] sm:$0xff]
  %v2253 = vld [vmem:[%s2034 + $0x189] sm:$0xff]
  %v2254 = vld [vmem:[%s2034 + $0x1a1] sm:$0xff]
  %v2255 = vld [vmem:[%s2034 + $0x1b9] sm:$0xff]
  %v2256 = vld [vmem:[%s2034 + $0x1d1] sm:$0xff]
  %v2257 = vld [vmem:[%s2034 + $0x1e9] sm:$0xff]
  %v2258 = vld [vmem:[%s2034 + $0x201] sm:$0xff]
  %v2259 = vlaneseq
  %v2260 = vshrl.u32 %v2259, 7
  %v2261 = vsub.s32 7, %v2260
  %v2262 = vrot.slane %v208, %v2261
  %v2263 = vmul.f32 %v2243, %v2262
  %v2264 = vmul.f32 %v2244, %v2262
  %v2265 = vmul.f32 %v2245, %v2262
  %v2266 = vmul.f32 %v2246, %v2262
  %v2267 = vmul.f32 %v2247, %v2262
  %v2268 = vmul.f32 %v2248, %v2262
  %v2269 = vmul.f32 %v2249, %v2262
  %v2270 = vmul.f32 %v2250, %v2262
  %v2271 = vmul.f32 %v2251, %v2262
  %v2272 = vmul.f32 %v2252, %v2262
  %v2273 = vmul.f32 %v2253, %v2262
  %v2274 = vmul.f32 %v2254, %v2262
  %v2275 = vmul.f32 %v2255, %v2262
  %v2276 = vmul.f32 %v2256, %v2262
  %v2277 = vmul.f32 %v2257, %v2262
  %v2278 = vmul.f32 %v2258, %v2262
  %v2279 = vadd.f32 %v2071, %v2263
  %v2280 = vadd.f32 %v2072, %v2264
  %v2281 = vadd.f32 %v2073, %v2265
  %v2282 = vadd.f32 %v2074, %v2266
  %v2283 = vadd.f32 %v2075, %v2267
  %v2284 = vadd.f32 %v2076, %v2268
  %v2285 = vadd.f32 %v2077, %v2269
  %v2286 = vadd.f32 %v2078, %v2270
  %v2287 = vadd.f32 %v2079, %v2271
  %v2288 = vadd.f32 %v2080, %v2272
  %v2289 = vadd.f32 %v2081, %v2273
  %v2290 = vadd.f32 %v2082, %v2274
  %v2291 = vadd.f32 %v2083, %v2275
  %v2292 = vadd.f32 %v2084, %v2276
  %v2293 = vadd.f32 %v2085, %v2277
  %v2294 = vadd.f32 %v2086, %v2278
  %v2295 = vld [vmem:[%s2034 + $0xa] sm:$0xff]
  %v2296 = vld [vmem:[%s2034 + $0x22] sm:$0xff]
  %v2297 = vld [vmem:[%s2034 + $0x3a] sm:$0xff]
  %v2298 = vld [vmem:[%s2034 + $0x52] sm:$0xff]
  %v2299 = vld [vmem:[%s2034 + $0x6a] sm:$0xff]
  %v2300 = vld [vmem:[%s2034 + $0x82] sm:$0xff]
  %v2301 = vld [vmem:[%s2034 + $0x9a] sm:$0xff]
  %v2302 = vld [vmem:[%s2034 + $0xb2] sm:$0xff]
  %v2303 = vld [vmem:[%s2034 + $0x15a] sm:$0xff]
  %v2304 = vld [vmem:[%s2034 + $0x172] sm:$0xff]
  %v2305 = vld [vmem:[%s2034 + $0x18a] sm:$0xff]
  %v2306 = vld [vmem:[%s2034 + $0x1a2] sm:$0xff]
  %v2307 = vld [vmem:[%s2034 + $0x1ba] sm:$0xff]
  %v2308 = vld [vmem:[%s2034 + $0x1d2] sm:$0xff]
  %v2309 = vld [vmem:[%s2034 + $0x1ea] sm:$0xff]
  %v2310 = vld [vmem:[%s2034 + $0x202] sm:$0xff]
  %v2311 = vlaneseq
  %v2312 = vshrl.u32 %v2311, 7
  %v2313 = vsub.s32 0, %v2312
  %v2314 = vrot.slane %v209, %v2313
  %v2315 = vmul.f32 %v2295, %v2314
  %v2316 = vmul.f32 %v2296, %v2314
  %v2317 = vmul.f32 %v2297, %v2314
  %v2318 = vmul.f32 %v2298, %v2314
  %v2319 = vmul.f32 %v2299, %v2314
  %v2320 = vmul.f32 %v2300, %v2314
  %v2321 = vmul.f32 %v2301, %v2314
  %v2322 = vmul.f32 %v2302, %v2314
  %v2323 = vmul.f32 %v2303, %v2314
  %v2324 = vmul.f32 %v2304, %v2314
  %v2325 = vmul.f32 %v2305, %v2314
  %v2326 = vmul.f32 %v2306, %v2314
  %v2327 = vmul.f32 %v2307, %v2314
  %v2328 = vmul.f32 %v2308, %v2314
  %v2329 = vmul.f32 %v2309, %v2314
  %v2330 = vmul.f32 %v2310, %v2314
  %v2331 = vadd.f32 %v2123, %v2315
  %v2332 = vadd.f32 %v2124, %v2316
  %v2333 = vadd.f32 %v2125, %v2317
  %v2334 = vadd.f32 %v2126, %v2318
  %v2335 = vadd.f32 %v2127, %v2319
  %v2336 = vadd.f32 %v2128, %v2320
  %v2337 = vadd.f32 %v2129, %v2321
  %v2338 = vadd.f32 %v2130, %v2322
  %v2339 = vadd.f32 %v2131, %v2323
  %v2340 = vadd.f32 %v2132, %v2324
  %v2341 = vadd.f32 %v2133, %v2325
  %v2342 = vadd.f32 %v2134, %v2326
  %v2343 = vadd.f32 %v2135, %v2327
  %v2344 = vadd.f32 %v2136, %v2328
  %v2345 = vadd.f32 %v2137, %v2329
  %v2346 = vadd.f32 %v2138, %v2330
  %v2347 = vld [vmem:[%s2034 + $0xb] sm:$0xff]
  %v2348 = vld [vmem:[%s2034 + $0x23] sm:$0xff]
  %v2349 = vld [vmem:[%s2034 + $0x3b] sm:$0xff]
  %v2350 = vld [vmem:[%s2034 + $0x53] sm:$0xff]
  %v2351 = vld [vmem:[%s2034 + $0x6b] sm:$0xff]
  %v2352 = vld [vmem:[%s2034 + $0x83] sm:$0xff]
  %v2353 = vld [vmem:[%s2034 + $0x9b] sm:$0xff]
  %v2354 = vld [vmem:[%s2034 + $0xb3] sm:$0xff]
  %v2355 = vld [vmem:[%s2034 + $0x15b] sm:$0xff]
  %v2356 = vld [vmem:[%s2034 + $0x173] sm:$0xff]
  %v2357 = vld [vmem:[%s2034 + $0x18b] sm:$0xff]
  %v2358 = vld [vmem:[%s2034 + $0x1a3] sm:$0xff]
  %v2359 = vld [vmem:[%s2034 + $0x1bb] sm:$0xff]
  %v2360 = vld [vmem:[%s2034 + $0x1d3] sm:$0xff]
  %v2361 = vld [vmem:[%s2034 + $0x1eb] sm:$0xff]
  %v2362 = vld [vmem:[%s2034 + $0x203] sm:$0xff]
  %v2363 = vlaneseq
  %v2364 = vshrl.u32 %v2363, 7
  %v2365 = vsub.s32 1, %v2364
  %v2366 = vrot.slane %v209, %v2365
  %v2367 = vmul.f32 %v2347, %v2366
  %v2368 = vmul.f32 %v2348, %v2366
  %v2369 = vmul.f32 %v2349, %v2366
  %v2370 = vmul.f32 %v2350, %v2366
  %v2371 = vmul.f32 %v2351, %v2366
  %v2372 = vmul.f32 %v2352, %v2366
  %v2373 = vmul.f32 %v2353, %v2366
  %v2374 = vmul.f32 %v2354, %v2366
  %v2375 = vmul.f32 %v2355, %v2366
  %v2376 = vmul.f32 %v2356, %v2366
  %v2377 = vmul.f32 %v2357, %v2366
  %v2378 = vmul.f32 %v2358, %v2366
  %v2379 = vmul.f32 %v2359, %v2366
  %v2380 = vmul.f32 %v2360, %v2366
  %v2381 = vmul.f32 %v2361, %v2366
  %v2382 = vmul.f32 %v2362, %v2366
  %v2383 = vadd.f32 %v2175, %v2367
  %v2384 = vadd.f32 %v2176, %v2368
  %v2385 = vadd.f32 %v2177, %v2369
  %v2386 = vadd.f32 %v2178, %v2370
  %v2387 = vadd.f32 %v2179, %v2371
  %v2388 = vadd.f32 %v2180, %v2372
  %v2389 = vadd.f32 %v2181, %v2373
  %v2390 = vadd.f32 %v2182, %v2374
  %v2391 = vadd.f32 %v2183, %v2375
  %v2392 = vadd.f32 %v2184, %v2376
  %v2393 = vadd.f32 %v2185, %v2377
  %v2394 = vadd.f32 %v2186, %v2378
  %v2395 = vadd.f32 %v2187, %v2379
  %v2396 = vadd.f32 %v2188, %v2380
  %v2397 = vadd.f32 %v2189, %v2381
  %v2398 = vadd.f32 %v2190, %v2382
  %s2399 = scalar_lea.vmem [#allocation2], 144
  %v2400 = vld [vmem:[%s2399 + $0x5] sm:$0xff]
  %v2401 = vld [vmem:[%s2399 + $0x1d] sm:$0xff]
  %v2402 = vld [vmem:[%s2399 + $0x35] sm:$0xff]
  %v2403 = vld [vmem:[%s2399 + $0x4d] sm:$0xff]
  %v2404 = vld [vmem:[%s2399 + $0x65] sm:$0xff]
  %v2405 = vld [vmem:[%s2399 + $0x7d] sm:$0xff]
  %v2406 = vld [vmem:[%s2399 + $0x95] sm:$0xff]
  %v2407 = vld [vmem:[%s2399 + $0xad] sm:$0xff]
  %v2408 = vld [vmem:[%s2399 + $0x155] sm:$0xff]
  %v2409 = vld [vmem:[%s2399 + $0x16d] sm:$0xff]
  %v2410 = vld [vmem:[%s2399 + $0x185] sm:$0xff]
  %v2411 = vld [vmem:[%s2399 + $0x19d] sm:$0xff]
  %v2412 = vld [vmem:[%s2399 + $0x1b5] sm:$0xff]
  %v2413 = vld [vmem:[%s2399 + $0x1cd] sm:$0xff]
  %v2414 = vld [vmem:[%s2399 + $0x1e5] sm:$0xff]
  %v2415 = vld [vmem:[%s2399 + $0x1fd] sm:$0xff]
  %v2416 = vlaneseq
  %v2417 = vshrl.u32 %v2416, 7
  %v2418 = vsub.s32 2, %v2417
  %v2419 = vrot.slane %v209, %v2418
  %v2420 = vmul.f32 %v2400, %v2419
  %v2421 = vmul.f32 %v2401, %v2419
  %v2422 = vmul.f32 %v2402, %v2419
  %v2423 = vmul.f32 %v2403, %v2419
  %v2424 = vmul.f32 %v2404, %v2419
  %v2425 = vmul.f32 %v2405, %v2419
  %v2426 = vmul.f32 %v2406, %v2419
  %v2427 = vmul.f32 %v2407, %v2419
  %v2428 = vmul.f32 %v2408, %v2419
  %v2429 = vmul.f32 %v2409, %v2419
  %v2430 = vmul.f32 %v2410, %v2419
  %v2431 = vmul.f32 %v2411, %v2419
  %v2432 = vmul.f32 %v2412, %v2419
  %v2433 = vmul.f32 %v2413, %v2419
  %v2434 = vmul.f32 %v2414, %v2419
  %v2435 = vmul.f32 %v2415, %v2419
  %v2436 = vadd.f32 %v2227, %v2420
  %v2437 = vadd.f32 %v2228, %v2421
  %v2438 = vadd.f32 %v2229, %v2422
  %v2439 = vadd.f32 %v2230, %v2423
  %v2440 = vadd.f32 %v2231, %v2424
  %v2441 = vadd.f32 %v2232, %v2425
  %v2442 = vadd.f32 %v2233, %v2426
  %v2443 = vadd.f32 %v2234, %v2427
  %v2444 = vadd.f32 %v2235, %v2428
  %v2445 = vadd.f32 %v2236, %v2429
  %v2446 = vadd.f32 %v2237, %v2430
  %v2447 = vadd.f32 %v2238, %v2431
  %v2448 = vadd.f32 %v2239, %v2432
  %v2449 = vadd.f32 %v2240, %v2433
  %v2450 = vadd.f32 %v2241, %v2434
  %v2451 = vadd.f32 %v2242, %v2435
  %v2452 = vld [vmem:[%s2399 + $0x6] sm:$0xff]
  %v2453 = vld [vmem:[%s2399 + $0x1e] sm:$0xff]
  %v2454 = vld [vmem:[%s2399 + $0x36] sm:$0xff]
  %v2455 = vld [vmem:[%s2399 + $0x4e] sm:$0xff]
  %v2456 = vld [vmem:[%s2399 + $0x66] sm:$0xff]
  %v2457 = vld [vmem:[%s2399 + $0x7e] sm:$0xff]
  %v2458 = vld [vmem:[%s2399 + $0x96] sm:$0xff]
  %v2459 = vld [vmem:[%s2399 + $0xae] sm:$0xff]
  %v2460 = vld [vmem:[%s2399 + $0x156] sm:$0xff]
  %v2461 = vld [vmem:[%s2399 + $0x16e] sm:$0xff]
  %v2462 = vld [vmem:[%s2399 + $0x186] sm:$0xff]
  %v2463 = vld [vmem:[%s2399 + $0x19e] sm:$0xff]
  %v2464 = vld [vmem:[%s2399 + $0x1b6] sm:$0xff]
  %v2465 = vld [vmem:[%s2399 + $0x1ce] sm:$0xff]
  %v2466 = vld [vmem:[%s2399 + $0x1e6] sm:$0xff]
  %v2467 = vld [vmem:[%s2399 + $0x1fe] sm:$0xff]
  %v2468 = vlaneseq
  %v2469 = vshrl.u32 %v2468, 7
  %v2470 = vsub.s32 3, %v2469
  %v2471 = vrot.slane %v209, %v2470
  %v2472 = vmul.f32 %v2452, %v2471
  %v2473 = vmul.f32 %v2453, %v2471
  %v2474 = vmul.f32 %v2454, %v2471
  %v2475 = vmul.f32 %v2455, %v2471
  %v2476 = vmul.f32 %v2456, %v2471
  %v2477 = vmul.f32 %v2457, %v2471
  %v2478 = vmul.f32 %v2458, %v2471
  %v2479 = vmul.f32 %v2459, %v2471
  %v2480 = vmul.f32 %v2460, %v2471
  %v2481 = vmul.f32 %v2461, %v2471
  %v2482 = vmul.f32 %v2462, %v2471
  %v2483 = vmul.f32 %v2463, %v2471
  %v2484 = vmul.f32 %v2464, %v2471
  %v2485 = vmul.f32 %v2465, %v2471
  %v2486 = vmul.f32 %v2466, %v2471
  %v2487 = vmul.f32 %v2467, %v2471
  %v2488 = vadd.f32 %v2279, %v2472
  %v2489 = vadd.f32 %v2280, %v2473
  %v2490 = vadd.f32 %v2281, %v2474
  %v2491 = vadd.f32 %v2282, %v2475
  %v2492 = vadd.f32 %v2283, %v2476
  %v2493 = vadd.f32 %v2284, %v2477
  %v2494 = vadd.f32 %v2285, %v2478
  %v2495 = vadd.f32 %v2286, %v2479
  %v2496 = vadd.f32 %v2287, %v2480
  %v2497 = vadd.f32 %v2288, %v2481
  %v2498 = vadd.f32 %v2289, %v2482
  %v2499 = vadd.f32 %v2290, %v2483
  %v2500 = vadd.f32 %v2291, %v2484
  %v2501 = vadd.f32 %v2292, %v2485
  %v2502 = vadd.f32 %v2293, %v2486
  %v2503 = vadd.f32 %v2294, %v2487
  %v2504 = vld [vmem:[%s2399 + $0x7] sm:$0xff]
  %v2505 = vld [vmem:[%s2399 + $0x1f] sm:$0xff]
  %v2506 = vld [vmem:[%s2399 + $0x37] sm:$0xff]
  %v2507 = vld [vmem:[%s2399 + $0x4f] sm:$0xff]
  %v2508 = vld [vmem:[%s2399 + $0x67] sm:$0xff]
  %v2509 = vld [vmem:[%s2399 + $0x7f] sm:$0xff]
  %v2510 = vld [vmem:[%s2399 + $0x97] sm:$0xff]
  %v2511 = vld [vmem:[%s2399 + $0xaf] sm:$0xff]
  %v2512 = vld [vmem:[%s2399 + $0x157] sm:$0xff]
  %v2513 = vld [vmem:[%s2399 + $0x16f] sm:$0xff]
  %v2514 = vld [vmem:[%s2399 + $0x187] sm:$0xff]
  %v2515 = vld [vmem:[%s2399 + $0x19f] sm:$0xff]
  %v2516 = vld [vmem:[%s2399 + $0x1b7] sm:$0xff]
  %v2517 = vld [vmem:[%s2399 + $0x1cf] sm:$0xff]
  %v2518 = vld [vmem:[%s2399 + $0x1e7] sm:$0xff]
  %v2519 = vld [vmem:[%s2399 + $0x1ff] sm:$0xff]
  %v2520 = vlaneseq
  %v2521 = vshrl.u32 %v2520, 7
  %v2522 = vsub.s32 4, %v2521
  %v2523 = vrot.slane %v209, %v2522
  %v2524 = vmul.f32 %v2504, %v2523
  %v2525 = vmul.f32 %v2505, %v2523
  %v2526 = vmul.f32 %v2506, %v2523
  %v2527 = vmul.f32 %v2507, %v2523
  %v2528 = vmul.f32 %v2508, %v2523
  %v2529 = vmul.f32 %v2509, %v2523
  %v2530 = vmul.f32 %v2510, %v2523
  %v2531 = vmul.f32 %v2511, %v2523
  %v2532 = vmul.f32 %v2512, %v2523
  %v2533 = vmul.f32 %v2513, %v2523
  %v2534 = vmul.f32 %v2514, %v2523
  %v2535 = vmul.f32 %v2515, %v2523
  %v2536 = vmul.f32 %v2516, %v2523
  %v2537 = vmul.f32 %v2517, %v2523
  %v2538 = vmul.f32 %v2518, %v2523
  %v2539 = vmul.f32 %v2519, %v2523
  %v2540 = vadd.f32 %v2331, %v2524
  %v2541 = vadd.f32 %v2332, %v2525
  %v2542 = vadd.f32 %v2333, %v2526
  %v2543 = vadd.f32 %v2334, %v2527
  %v2544 = vadd.f32 %v2335, %v2528
  %v2545 = vadd.f32 %v2336, %v2529
  %v2546 = vadd.f32 %v2337, %v2530
  %v2547 = vadd.f32 %v2338, %v2531
  %v2548 = vadd.f32 %v2339, %v2532
  %v2549 = vadd.f32 %v2340, %v2533
  %v2550 = vadd.f32 %v2341, %v2534
  %v2551 = vadd.f32 %v2342, %v2535
  %v2552 = vadd.f32 %v2343, %v2536
  %v2553 = vadd.f32 %v2344, %v2537
  %v2554 = vadd.f32 %v2345, %v2538
  %v2555 = vadd.f32 %v2346, %v2539
  %v2556 = vld [vmem:[%s2399 + $0x8] sm:$0xff]
  %v2557 = vld [vmem:[%s2399 + $0x20] sm:$0xff]
  %v2558 = vld [vmem:[%s2399 + $0x38] sm:$0xff]
  %v2559 = vld [vmem:[%s2399 + $0x50] sm:$0xff]
  %v2560 = vld [vmem:[%s2399 + $0x68] sm:$0xff]
  %v2561 = vld [vmem:[%s2399 + $0x80] sm:$0xff]
  %v2562 = vld [vmem:[%s2399 + $0x98] sm:$0xff]
  %v2563 = vld [vmem:[%s2399 + $0xb0] sm:$0xff]
  %v2564 = vld [vmem:[%s2399 + $0x158] sm:$0xff]
  %v2565 = vld [vmem:[%s2399 + $0x170] sm:$0xff]
  %v2566 = vld [vmem:[%s2399 + $0x188] sm:$0xff]
  %v2567 = vld [vmem:[%s2399 + $0x1a0] sm:$0xff]
  %v2568 = vld [vmem:[%s2399 + $0x1b8] sm:$0xff]
  %v2569 = vld [vmem:[%s2399 + $0x1d0] sm:$0xff]
  %v2570 = vld [vmem:[%s2399 + $0x1e8] sm:$0xff]
  %v2571 = vld [vmem:[%s2399 + $0x200] sm:$0xff]
  %v2572 = vlaneseq
  %v2573 = vshrl.u32 %v2572, 7
  %v2574 = vsub.s32 5, %v2573
  %v2575 = vrot.slane %v209, %v2574
  %v2576 = vmul.f32 %v2556, %v2575
  %v2577 = vmul.f32 %v2557, %v2575
  %v2578 = vmul.f32 %v2558, %v2575
  %v2579 = vmul.f32 %v2559, %v2575
  %v2580 = vmul.f32 %v2560, %v2575
  %v2581 = vmul.f32 %v2561, %v2575
  %v2582 = vmul.f32 %v2562, %v2575
  %v2583 = vmul.f32 %v2563, %v2575
  %v2584 = vmul.f32 %v2564, %v2575
  %v2585 = vmul.f32 %v2565, %v2575
  %v2586 = vmul.f32 %v2566, %v2575
  %v2587 = vmul.f32 %v2567, %v2575
  %v2588 = vmul.f32 %v2568, %v2575
  %v2589 = vmul.f32 %v2569, %v2575
  %v2590 = vmul.f32 %v2570, %v2575
  %v2591 = vmul.f32 %v2571, %v2575
  %v2592 = vadd.f32 %v2383, %v2576
  %v2593 = vadd.f32 %v2384, %v2577
  %v2594 = vadd.f32 %v2385, %v2578
  %v2595 = vadd.f32 %v2386, %v2579
  %v2596 = vadd.f32 %v2387, %v2580
  %v2597 = vadd.f32 %v2388, %v2581
  %v2598 = vadd.f32 %v2389, %v2582
  %v2599 = vadd.f32 %v2390, %v2583
  %v2600 = vadd.f32 %v2391, %v2584
  %v2601 = vadd.f32 %v2392, %v2585
  %v2602 = vadd.f32 %v2393, %v2586
  %v2603 = vadd.f32 %v2394, %v2587
  %v2604 = vadd.f32 %v2395, %v2588
  %v2605 = vadd.f32 %v2396, %v2589
  %v2606 = vadd.f32 %v2397, %v2590
  %v2607 = vadd.f32 %v2398, %v2591
  %v2608 = vld [vmem:[%s2399 + $0x9] sm:$0xff]
  %v2609 = vld [vmem:[%s2399 + $0x21] sm:$0xff]
  %v2610 = vld [vmem:[%s2399 + $0x39] sm:$0xff]
  %v2611 = vld [vmem:[%s2399 + $0x51] sm:$0xff]
  %v2612 = vld [vmem:[%s2399 + $0x69] sm:$0xff]
  %v2613 = vld [vmem:[%s2399 + $0x81] sm:$0xff]
  %v2614 = vld [vmem:[%s2399 + $0x99] sm:$0xff]
  %v2615 = vld [vmem:[%s2399 + $0xb1] sm:$0xff]
  %v2616 = vld [vmem:[%s2399 + $0x159] sm:$0xff]
  %v2617 = vld [vmem:[%s2399 + $0x171] sm:$0xff]
  %v2618 = vld [vmem:[%s2399 + $0x189] sm:$0xff]
  %v2619 = vld [vmem:[%s2399 + $0x1a1] sm:$0xff]
  %v2620 = vld [vmem:[%s2399 + $0x1b9] sm:$0xff]
  %v2621 = vld [vmem:[%s2399 + $0x1d1] sm:$0xff]
  %v2622 = vld [vmem:[%s2399 + $0x1e9] sm:$0xff]
  %v2623 = vld [vmem:[%s2399 + $0x201] sm:$0xff]
  %v2624 = vlaneseq
  %v2625 = vshrl.u32 %v2624, 7
  %v2626 = vsub.s32 6, %v2625
  %v2627 = vrot.slane %v209, %v2626
  %v2628 = vmul.f32 %v2608, %v2627
  %v2629 = vmul.f32 %v2609, %v2627
  %v2630 = vmul.f32 %v2610, %v2627
  %v2631 = vmul.f32 %v2611, %v2627
  %v2632 = vmul.f32 %v2612, %v2627
  %v2633 = vmul.f32 %v2613, %v2627
  %v2634 = vmul.f32 %v2614, %v2627
  %v2635 = vmul.f32 %v2615, %v2627
  %v2636 = vmul.f32 %v2616, %v2627
  %v2637 = vmul.f32 %v2617, %v2627
  %v2638 = vmul.f32 %v2618, %v2627
  %v2639 = vmul.f32 %v2619, %v2627
  %v2640 = vmul.f32 %v2620, %v2627
  %v2641 = vmul.f32 %v2621, %v2627
  %v2642 = vmul.f32 %v2622, %v2627
  %v2643 = vmul.f32 %v2623, %v2627
  %v2644 = vadd.f32 %v2436, %v2628
  %v2645 = vadd.f32 %v2437, %v2629
  %v2646 = vadd.f32 %v2438, %v2630
  %v2647 = vadd.f32 %v2439, %v2631
  %v2648 = vadd.f32 %v2440, %v2632
  %v2649 = vadd.f32 %v2441, %v2633
  %v2650 = vadd.f32 %v2442, %v2634
  %v2651 = vadd.f32 %v2443, %v2635
  %v2652 = vadd.f32 %v2444, %v2636
  %v2653 = vadd.f32 %v2445, %v2637
  %v2654 = vadd.f32 %v2446, %v2638
  %v2655 = vadd.f32 %v2447, %v2639
  %v2656 = vadd.f32 %v2448, %v2640
  %v2657 = vadd.f32 %v2449, %v2641
  %v2658 = vadd.f32 %v2450, %v2642
  %v2659 = vadd.f32 %v2451, %v2643
  %v2660 = vld [vmem:[%s2399 + $0xa] sm:$0xff]
  %v2661 = vld [vmem:[%s2399 + $0x22] sm:$0xff]
  %v2662 = vld [vmem:[%s2399 + $0x3a] sm:$0xff]
  %v2663 = vld [vmem:[%s2399 + $0x52] sm:$0xff]
  %v2664 = vld [vmem:[%s2399 + $0x6a] sm:$0xff]
  %v2665 = vld [vmem:[%s2399 + $0x82] sm:$0xff]
  %v2666 = vld [vmem:[%s2399 + $0x9a] sm:$0xff]
  %v2667 = vld [vmem:[%s2399 + $0xb2] sm:$0xff]
  %v2668 = vld [vmem:[%s2399 + $0x15a] sm:$0xff]
  %v2669 = vld [vmem:[%s2399 + $0x172] sm:$0xff]
  %v2670 = vld [vmem:[%s2399 + $0x18a] sm:$0xff]
  %v2671 = vld [vmem:[%s2399 + $0x1a2] sm:$0xff]
  %v2672 = vld [vmem:[%s2399 + $0x1ba] sm:$0xff]
  %v2673 = vld [vmem:[%s2399 + $0x1d2] sm:$0xff]
  %v2674 = vld [vmem:[%s2399 + $0x1ea] sm:$0xff]
  %v2675 = vld [vmem:[%s2399 + $0x202] sm:$0xff]
  %v2676 = vlaneseq
  %v2677 = vshrl.u32 %v2676, 7
  %v2678 = vsub.s32 7, %v2677
  %v2679 = vrot.slane %v209, %v2678
  %v2680 = vmul.f32 %v2660, %v2679
  %v2681 = vmul.f32 %v2661, %v2679
  %v2682 = vmul.f32 %v2662, %v2679
  %v2683 = vmul.f32 %v2663, %v2679
  %v2684 = vmul.f32 %v2664, %v2679
  %v2685 = vmul.f32 %v2665, %v2679
  %v2686 = vmul.f32 %v2666, %v2679
  %v2687 = vmul.f32 %v2667, %v2679
  %v2688 = vmul.f32 %v2668, %v2679
  %v2689 = vmul.f32 %v2669, %v2679
  %v2690 = vmul.f32 %v2670, %v2679
  %v2691 = vmul.f32 %v2671, %v2679
  %v2692 = vmul.f32 %v2672, %v2679
  %v2693 = vmul.f32 %v2673, %v2679
  %v2694 = vmul.f32 %v2674, %v2679
  %v2695 = vmul.f32 %v2675, %v2679
  %v2696 = vadd.f32 %v2488, %v2680
  %v2697 = vadd.f32 %v2489, %v2681
  %v2698 = vadd.f32 %v2490, %v2682
  %v2699 = vadd.f32 %v2491, %v2683
  %v2700 = vadd.f32 %v2492, %v2684
  %v2701 = vadd.f32 %v2493, %v2685
  %v2702 = vadd.f32 %v2494, %v2686
  %v2703 = vadd.f32 %v2495, %v2687
  %v2704 = vadd.f32 %v2496, %v2688
  %v2705 = vadd.f32 %v2497, %v2689
  %v2706 = vadd.f32 %v2498, %v2690
  %v2707 = vadd.f32 %v2499, %v2691
  %v2708 = vadd.f32 %v2500, %v2692
  %v2709 = vadd.f32 %v2501, %v2693
  %v2710 = vadd.f32 %v2502, %v2694
  %v2711 = vadd.f32 %v2503, %v2695
  %v2712 = vld [vmem:[%s2399 + $0xb] sm:$0xff]
  %v2713 = vld [vmem:[%s2399 + $0x23] sm:$0xff]
  %v2714 = vld [vmem:[%s2399 + $0x3b] sm:$0xff]
  %v2715 = vld [vmem:[%s2399 + $0x53] sm:$0xff]
  %v2716 = vld [vmem:[%s2399 + $0x6b] sm:$0xff]
  %v2717 = vld [vmem:[%s2399 + $0x83] sm:$0xff]
  %v2718 = vld [vmem:[%s2399 + $0x9b] sm:$0xff]
  %v2719 = vld [vmem:[%s2399 + $0xb3] sm:$0xff]
  %v2720 = vld [vmem:[%s2399 + $0x15b] sm:$0xff]
  %v2721 = vld [vmem:[%s2399 + $0x173] sm:$0xff]
  %v2722 = vld [vmem:[%s2399 + $0x18b] sm:$0xff]
  %v2723 = vld [vmem:[%s2399 + $0x1a3] sm:$0xff]
  %v2724 = vld [vmem:[%s2399 + $0x1bb] sm:$0xff]
  %v2725 = vld [vmem:[%s2399 + $0x1d3] sm:$0xff]
  %v2726 = vld [vmem:[%s2399 + $0x1eb] sm:$0xff]
  %v2727 = vld [vmem:[%s2399 + $0x203] sm:$0xff]
  %v2728 = vlaneseq
  %v2729 = vshrl.u32 %v2728, 7
  %v2730 = vsub.s32 0, %v2729
  %v2731 = vrot.slane %v210, %v2730
  %v2732 = vmul.f32 %v2712, %v2731
  %v2733 = vmul.f32 %v2713, %v2731
  %v2734 = vmul.f32 %v2714, %v2731
  %v2735 = vmul.f32 %v2715, %v2731
  %v2736 = vmul.f32 %v2716, %v2731
  %v2737 = vmul.f32 %v2717, %v2731
  %v2738 = vmul.f32 %v2718, %v2731
  %v2739 = vmul.f32 %v2719, %v2731
  %v2740 = vmul.f32 %v2720, %v2731
  %v2741 = vmul.f32 %v2721, %v2731
  %v2742 = vmul.f32 %v2722, %v2731
  %v2743 = vmul.f32 %v2723, %v2731
  %v2744 = vmul.f32 %v2724, %v2731
  %v2745 = vmul.f32 %v2725, %v2731
  %v2746 = vmul.f32 %v2726, %v2731
  %v2747 = vmul.f32 %v2727, %v2731
  %v2748 = vadd.f32 %v2540, %v2732
  %v2749 = vadd.f32 %v2541, %v2733
  %v2750 = vadd.f32 %v2542, %v2734
  %v2751 = vadd.f32 %v2543, %v2735
  %v2752 = vadd.f32 %v2544, %v2736
  %v2753 = vadd.f32 %v2545, %v2737
  %v2754 = vadd.f32 %v2546, %v2738
  %v2755 = vadd.f32 %v2547, %v2739
  %v2756 = vadd.f32 %v2548, %v2740
  %v2757 = vadd.f32 %v2549, %v2741
  %v2758 = vadd.f32 %v2550, %v2742
  %v2759 = vadd.f32 %v2551, %v2743
  %v2760 = vadd.f32 %v2552, %v2744
  %v2761 = vadd.f32 %v2553, %v2745
  %v2762 = vadd.f32 %v2554, %v2746
  %v2763 = vadd.f32 %v2555, %v2747
  %v2764 = vadd.f32 %v2748, %v2592
  %v2765 = vadd.f32 %v2749, %v2593
  %v2766 = vadd.f32 %v2750, %v2594
  %v2767 = vadd.f32 %v2751, %v2595
  %v2768 = vadd.f32 %v2752, %v2596
  %v2769 = vadd.f32 %v2753, %v2597
  %v2770 = vadd.f32 %v2754, %v2598
  %v2771 = vadd.f32 %v2755, %v2599
  %v2772 = vadd.f32 %v2756, %v2600
  %v2773 = vadd.f32 %v2757, %v2601
  %v2774 = vadd.f32 %v2758, %v2602
  %v2775 = vadd.f32 %v2759, %v2603
  %v2776 = vadd.f32 %v2760, %v2604
  %v2777 = vadd.f32 %v2761, %v2605
  %v2778 = vadd.f32 %v2762, %v2606
  %v2779 = vadd.f32 %v2763, %v2607
  %v2780 = vadd.f32 %v2644, %v2696
  %v2781 = vadd.f32 %v2645, %v2697
  %v2782 = vadd.f32 %v2646, %v2698
  %v2783 = vadd.f32 %v2647, %v2699
  %v2784 = vadd.f32 %v2648, %v2700
  %v2785 = vadd.f32 %v2649, %v2701
  %v2786 = vadd.f32 %v2650, %v2702
  %v2787 = vadd.f32 %v2651, %v2703
  %v2788 = vadd.f32 %v2652, %v2704
  %v2789 = vadd.f32 %v2653, %v2705
  %v2790 = vadd.f32 %v2654, %v2706
  %v2791 = vadd.f32 %v2655, %v2707
  %v2792 = vadd.f32 %v2656, %v2708
  %v2793 = vadd.f32 %v2657, %v2709
  %v2794 = vadd.f32 %v2658, %v2710
  %v2795 = vadd.f32 %v2659, %v2711
  %v2796 = vadd.f32 %v2764, %v2780
  %v2797 = vadd.f32 %v2765, %v2781
  %v2798 = vadd.f32 %v2766, %v2782
  %v2799 = vadd.f32 %v2767, %v2783
  %v2800 = vadd.f32 %v2768, %v2784
  %v2801 = vadd.f32 %v2769, %v2785
  %v2802 = vadd.f32 %v2770, %v2786
  %v2803 = vadd.f32 %v2771, %v2787
  %v2804 = vadd.f32 %v2772, %v2788
  %v2805 = vadd.f32 %v2773, %v2789
  %v2806 = vadd.f32 %v2774, %v2790
  %v2807 = vadd.f32 %v2775, %v2791
  %v2808 = vadd.f32 %v2776, %v2792
  %v2809 = vadd.f32 %v2777, %v2793
  %v2810 = vadd.f32 %v2778, %v2794
  %v2811 = vadd.f32 %v2779, %v2795
  %v2812 = vsel %vm101, %v2796, 0.0
  %v2813 = vrot.slane %v2812, 4
  %v2814 = vadd.f32 %v2812, %v2813
  %v2815 = vrot.slane %v2814, 2
  %v2816 = vadd.f32 %v2814, %v2815
  %v2817 = vrot.slane %v2816, 1
  %v2818 = vadd.f32 %v2816, %v2817
  %v2819 = vsel %vm101, %v2797, 0.0
  %v2820 = vrot.slane %v2819, 4
  %v2821 = vadd.f32 %v2819, %v2820
  %v2822 = vrot.slane %v2821, 2
  %v2823 = vadd.f32 %v2821, %v2822
  %v2824 = vrot.slane %v2823, 1
  %v2825 = vadd.f32 %v2823, %v2824
  %v2826 = vsel %vm101, %v2798, 0.0
  %v2827 = vrot.slane %v2826, 4
  %v2828 = vadd.f32 %v2826, %v2827
  %v2829 = vrot.slane %v2828, 2
  %v2830 = vadd.f32 %v2828, %v2829
  %v2831 = vrot.slane %v2830, 1
  %v2832 = vadd.f32 %v2830, %v2831
  %v2833 = vsel %vm101, %v2799, 0.0
  %v2834 = vrot.slane %v2833, 4
  %v2835 = vadd.f32 %v2833, %v2834
  %v2836 = vrot.slane %v2835, 2
  %v2837 = vadd.f32 %v2835, %v2836
  %v2838 = vrot.slane %v2837, 1
  %v2839 = vadd.f32 %v2837, %v2838
  %v2840 = vsel %vm101, %v2800, 0.0
  %v2841 = vrot.slane %v2840, 4
  %v2842 = vadd.f32 %v2840, %v2841
  %v2843 = vrot.slane %v2842, 2
  %v2844 = vadd.f32 %v2842, %v2843
  %v2845 = vrot.slane %v2844, 1
  %v2846 = vadd.f32 %v2844, %v2845
  %v2847 = vsel %vm101, %v2801, 0.0
  %v2848 = vrot.slane %v2847, 4
  %v2849 = vadd.f32 %v2847, %v2848
  %v2850 = vrot.slane %v2849, 2
  %v2851 = vadd.f32 %v2849, %v2850
  %v2852 = vrot.slane %v2851, 1
  %v2853 = vadd.f32 %v2851, %v2852
  %v2854 = vsel %vm101, %v2802, 0.0
  %v2855 = vrot.slane %v2854, 4
  %v2856 = vadd.f32 %v2854, %v2855
  %v2857 = vrot.slane %v2856, 2
  %v2858 = vadd.f32 %v2856, %v2857
  %v2859 = vrot.slane %v2858, 1
  %v2860 = vadd.f32 %v2858, %v2859
  %v2861 = vsel %vm101, %v2803, 0.0
  %v2862 = vrot.slane %v2861, 4
  %v2863 = vadd.f32 %v2861, %v2862
  %v2864 = vrot.slane %v2863, 2
  %v2865 = vadd.f32 %v2863, %v2864
  %v2866 = vrot.slane %v2865, 1
  %v2867 = vadd.f32 %v2865, %v2866
  %v2868 = vsel %vm101, %v2804, 0.0
  %v2869 = vrot.slane %v2868, 4
  %v2870 = vadd.f32 %v2868, %v2869
  %v2871 = vrot.slane %v2870, 2
  %v2872 = vadd.f32 %v2870, %v2871
  %v2873 = vrot.slane %v2872, 1
  %v2874 = vadd.f32 %v2872, %v2873
  %v2875 = vsel %vm101, %v2805, 0.0
  %v2876 = vrot.slane %v2875, 4
  %v2877 = vadd.f32 %v2875, %v2876
  %v2878 = vrot.slane %v2877, 2
  %v2879 = vadd.f32 %v2877, %v2878
  %v2880 = vrot.slane %v2879, 1
  %v2881 = vadd.f32 %v2879, %v2880
  %v2882 = vsel %vm101, %v2806, 0.0
  %v2883 = vrot.slane %v2882, 4
  %v2884 = vadd.f32 %v2882, %v2883
  %v2885 = vrot.slane %v2884, 2
  %v2886 = vadd.f32 %v2884, %v2885
  %v2887 = vrot.slane %v2886, 1
  %v2888 = vadd.f32 %v2886, %v2887
  %v2889 = vsel %vm101, %v2807, 0.0
  %v2890 = vrot.slane %v2889, 4
  %v2891 = vadd.f32 %v2889, %v2890
  %v2892 = vrot.slane %v2891, 2
  %v2893 = vadd.f32 %v2891, %v2892
  %v2894 = vrot.slane %v2893, 1
  %v2895 = vadd.f32 %v2893, %v2894
  %v2896 = vsel %vm101, %v2808, 0.0
  %v2897 = vrot.slane %v2896, 4
  %v2898 = vadd.f32 %v2896, %v2897
  %v2899 = vrot.slane %v2898, 2
  %v2900 = vadd.f32 %v2898, %v2899
  %v2901 = vrot.slane %v2900, 1
  %v2902 = vadd.f32 %v2900, %v2901
  %v2903 = vsel %vm101, %v2809, 0.0
  %v2904 = vrot.slane %v2903, 4
  %v2905 = vadd.f32 %v2903, %v2904
  %v2906 = vrot.slane %v2905, 2
  %v2907 = vadd.f32 %v2905, %v2906
  %v2908 = vrot.slane %v2907, 1
  %v2909 = vadd.f32 %v2907, %v2908
  %v2910 = vsel %vm101, %v2810, 0.0
  %v2911 = vrot.slane %v2910, 4
  %v2912 = vadd.f32 %v2910, %v2911
  %v2913 = vrot.slane %v2912, 2
  %v2914 = vadd.f32 %v2912, %v2913
  %v2915 = vrot.slane %v2914, 1
  %v2916 = vadd.f32 %v2914, %v2915
  %v2917 = vsel %vm101, %v2811, 0.0
  %v2918 = vrot.slane %v2917, 4
  %v2919 = vadd.f32 %v2917, %v2918
  %v2920 = vrot.slane %v2919, 2
  %v2921 = vadd.f32 %v2919, %v2920
  %v2922 = vrot.slane %v2921, 1
  %v2923 = vadd.f32 %v2921, %v2922
  %v2924 = vsel %vm101, %v2818, 0.0
  %v2925 = vsel %vm101, %v2825, 0.0
  %v2926 = vadd.f32 %v2924, %v2925
  %v2927 = vsel %vm101, %v2832, 0.0
  %v2928 = vadd.f32 %v2926, %v2927
  %v2929 = vsel %vm101, %v2839, 0.0
  %v2930 = vadd.f32 %v2928, %v2929
  %v2931 = vsel %vm101, %v2846, 0.0
  %v2932 = vadd.f32 %v2930, %v2931
  %v2933 = vsel %vm101, %v2853, 0.0
  %v2934 = vadd.f32 %v2932, %v2933
  %v2935 = vsel %vm101, %v2860, 0.0
  %v2936 = vadd.f32 %v2934, %v2935
  %v2937 = vsel %vm101, %v2867, 0.0
  %v2938 = vadd.f32 %v2936, %v2937
  %v2939 = vsel %vm101, %v2874, 0.0
  %v2940 = vsel %vm101, %v2881, 0.0
  %v2941 = vadd.f32 %v2939, %v2940
  %v2942 = vsel %vm101, %v2888, 0.0
  %v2943 = vadd.f32 %v2941, %v2942
  %v2944 = vsel %vm101, %v2895, 0.0
  %v2945 = vadd.f32 %v2943, %v2944
  %v2946 = vsel %vm101, %v2902, 0.0
  %v2947 = vadd.f32 %v2945, %v2946
  %v2948 = vsel %vm101, %v2909, 0.0
  %v2949 = vadd.f32 %v2947, %v2948
  %v2950 = vsel %vm101, %v2916, 0.0
  %v2951 = vadd.f32 %v2949, %v2950
  %v2952 = vsel %vm101, %v2923, 0.0
  %v2953 = vadd.f32 %v2951, %v2952
  %v2954 = vsel %vm101, %v2938, 0.0
  %v2955 = vsel %vm101, %v2953, 0.0
  %v2956 = vadd.f32 %v2954, %v2955
  %v2957 = vrcp.pop 128.0
  %v2958 = vmul.f32 %v2956, %v2957
  %v2959 = vsub.f32 %v2796, %v2958
  %v2960 = vsub.f32 %v2797, %v2958
  %v2961 = vsub.f32 %v2798, %v2958
  %v2962 = vsub.f32 %v2799, %v2958
  %v2963 = vsub.f32 %v2800, %v2958
  %v2964 = vsub.f32 %v2801, %v2958
  %v2965 = vsub.f32 %v2802, %v2958
  %v2966 = vsub.f32 %v2803, %v2958
  %v2967 = vsub.f32 %v2804, %v2958
  %v2968 = vsub.f32 %v2805, %v2958
  %v2969 = vsub.f32 %v2806, %v2958
  %v2970 = vsub.f32 %v2807, %v2958
  %v2971 = vsub.f32 %v2808, %v2958
  %v2972 = vsub.f32 %v2809, %v2958
  %v2973 = vsub.f32 %v2810, %v2958
  %v2974 = vsub.f32 %v2811, %v2958
  %v2975 = vmul.f32 %v2959, %v2959
  %v2976 = vmul.f32 %v2960, %v2960
  %v2977 = vmul.f32 %v2961, %v2961
  %v2978 = vmul.f32 %v2962, %v2962
  %v2979 = vmul.f32 %v2963, %v2963
  %v2980 = vmul.f32 %v2964, %v2964
  %v2981 = vmul.f32 %v2965, %v2965
  %v2982 = vmul.f32 %v2966, %v2966
  %v2983 = vmul.f32 %v2967, %v2967
  %v2984 = vmul.f32 %v2968, %v2968
  %v2985 = vmul.f32 %v2969, %v2969
  %v2986 = vmul.f32 %v2970, %v2970
  %v2987 = vmul.f32 %v2971, %v2971
  %v2988 = vmul.f32 %v2972, %v2972
  %v2989 = vmul.f32 %v2973, %v2973
  %v2990 = vmul.f32 %v2974, %v2974
  %v2991 = vsel %vm101, %v2975, 0.0
  %v2992 = vrot.slane %v2991, 4
  %v2993 = vadd.f32 %v2991, %v2992
  %v2994 = vrot.slane %v2993, 2
  %v2995 = vadd.f32 %v2993, %v2994
  %v2996 = vrot.slane %v2995, 1
  %v2997 = vadd.f32 %v2995, %v2996
  %v2998 = vsel %vm101, %v2976, 0.0
  %v2999 = vrot.slane %v2998, 4
  %v3000 = vadd.f32 %v2998, %v2999
  %v3001 = vrot.slane %v3000, 2
  %v3002 = vadd.f32 %v3000, %v3001
  %v3003 = vrot.slane %v3002, 1
  %v3004 = vadd.f32 %v3002, %v3003
  %v3005 = vsel %vm101, %v2977, 0.0
  %v3006 = vrot.slane %v3005, 4
  %v3007 = vadd.f32 %v3005, %v3006
  %v3008 = vrot.slane %v3007, 2
  %v3009 = vadd.f32 %v3007, %v3008
  %v3010 = vrot.slane %v3009, 1
  %v3011 = vadd.f32 %v3009, %v3010
  %v3012 = vsel %vm101, %v2978, 0.0
  %v3013 = vrot.slane %v3012, 4
  %v3014 = vadd.f32 %v3012, %v3013
  %v3015 = vrot.slane %v3014, 2
  %v3016 = vadd.f32 %v3014, %v3015
  %v3017 = vrot.slane %v3016, 1
  %v3018 = vadd.f32 %v3016, %v3017
  %v3019 = vsel %vm101, %v2979, 0.0
  %v3020 = vrot.slane %v3019, 4
  %v3021 = vadd.f32 %v3019, %v3020
  %v3022 = vrot.slane %v3021, 2
  %v3023 = vadd.f32 %v3021, %v3022
  %v3024 = vrot.slane %v3023, 1
  %v3025 = vadd.f32 %v3023, %v3024
  %v3026 = vsel %vm101, %v2980, 0.0
  %v3027 = vrot.slane %v3026, 4
  %v3028 = vadd.f32 %v3026, %v3027
  %v3029 = vrot.slane %v3028, 2
  %v3030 = vadd.f32 %v3028, %v3029
  %v3031 = vrot.slane %v3030, 1
  %v3032 = vadd.f32 %v3030, %v3031
  %v3033 = vsel %vm101, %v2981, 0.0
  %v3034 = vrot.slane %v3033, 4
  %v3035 = vadd.f32 %v3033, %v3034
  %v3036 = vrot.slane %v3035, 2
  %v3037 = vadd.f32 %v3035, %v3036
  %v3038 = vrot.slane %v3037, 1
  %v3039 = vadd.f32 %v3037, %v3038
  %v3040 = vsel %vm101, %v2982, 0.0
  %v3041 = vrot.slane %v3040, 4
  %v3042 = vadd.f32 %v3040, %v3041
  %v3043 = vrot.slane %v3042, 2
  %v3044 = vadd.f32 %v3042, %v3043
  %v3045 = vrot.slane %v3044, 1
  %v3046 = vadd.f32 %v3044, %v3045
  %v3047 = vsel %vm101, %v2983, 0.0
  %v3048 = vrot.slane %v3047, 4
  %v3049 = vadd.f32 %v3047, %v3048
  %v3050 = vrot.slane %v3049, 2
  %v3051 = vadd.f32 %v3049, %v3050
  %v3052 = vrot.slane %v3051, 1
  %v3053 = vadd.f32 %v3051, %v3052
  %v3054 = vsel %vm101, %v2984, 0.0
  %v3055 = vrot.slane %v3054, 4
  %v3056 = vadd.f32 %v3054, %v3055
  %v3057 = vrot.slane %v3056, 2
  %v3058 = vadd.f32 %v3056, %v3057
  %v3059 = vrot.slane %v3058, 1
  %v3060 = vadd.f32 %v3058, %v3059
  %v3061 = vsel %vm101, %v2985, 0.0
  %v3062 = vrot.slane %v3061, 4
  %v3063 = vadd.f32 %v3061, %v3062
  %v3064 = vrot.slane %v3063, 2
  %v3065 = vadd.f32 %v3063, %v3064
  %v3066 = vrot.slane %v3065, 1
  %v3067 = vadd.f32 %v3065, %v3066
  %v3068 = vsel %vm101, %v2986, 0.0
  %v3069 = vrot.slane %v3068, 4
  %v3070 = vadd.f32 %v3068, %v3069
  %v3071 = vrot.slane %v3070, 2
  %v3072 = vadd.f32 %v3070, %v3071
  %v3073 = vrot.slane %v3072, 1
  %v3074 = vadd.f32 %v3072, %v3073
  %v3075 = vsel %vm101, %v2987, 0.0
  %v3076 = vrot.slane %v3075, 4
  %v3077 = vadd.f32 %v3075, %v3076
  %v3078 = vrot.slane %v3077, 2
  %v3079 = vadd.f32 %v3077, %v3078
  %v3080 = vrot.slane %v3079, 1
  %v3081 = vadd.f32 %v3079, %v3080
  %v3082 = vsel %vm101, %v2988, 0.0
  %v3083 = vrot.slane %v3082, 4
  %v3084 = vadd.f32 %v3082, %v3083
  %v3085 = vrot.slane %v3084, 2
  %v3086 = vadd.f32 %v3084, %v3085
  %v3087 = vrot.slane %v3086, 1
  %v3088 = vadd.f32 %v3086, %v3087
  %v3089 = vsel %vm101, %v2989, 0.0
  %v3090 = vrot.slane %v3089, 4
  %v3091 = vadd.f32 %v3089, %v3090
  %v3092 = vrot.slane %v3091, 2
  %v3093 = vadd.f32 %v3091, %v3092
  %v3094 = vrot.slane %v3093, 1
  %v3095 = vadd.f32 %v3093, %v3094
  %v3096 = vsel %vm101, %v2990, 0.0
  %v3097 = vrot.slane %v3096, 4
  %v3098 = vadd.f32 %v3096, %v3097
  %v3099 = vrot.slane %v3098, 2
  %v3100 = vadd.f32 %v3098, %v3099
  %v3101 = vrot.slane %v3100, 1
  %v3102 = vadd.f32 %v3100, %v3101
  %v3103 = vsel %vm101, %v2997, 0.0
  %v3104 = vsel %vm101, %v3004, 0.0
  %v3105 = vadd.f32 %v3103, %v3104
  %v3106 = vsel %vm101, %v3011, 0.0
  %v3107 = vadd.f32 %v3105, %v3106
  %v3108 = vsel %vm101, %v3018, 0.0
  %v3109 = vadd.f32 %v3107, %v3108
  %v3110 = vsel %vm101, %v3025, 0.0
  %v3111 = vadd.f32 %v3109, %v3110
  %v3112 = vsel %vm101, %v3032, 0.0
  %v3113 = vadd.f32 %v3111, %v3112
  %v3114 = vsel %vm101, %v3039, 0.0
  %v3115 = vadd.f32 %v3113, %v3114
  %v3116 = vsel %vm101, %v3046, 0.0
  %v3117 = vadd.f32 %v3115, %v3116
  %v3118 = vsel %vm101, %v3053, 0.0
  %v3119 = vsel %vm101, %v3060, 0.0
  %v3120 = vadd.f32 %v3118, %v3119
  %v3121 = vsel %vm101, %v3067, 0.0
  %v3122 = vadd.f32 %v3120, %v3121
  %v3123 = vsel %vm101, %v3074, 0.0
  %v3124 = vadd.f32 %v3122, %v3123
  %v3125 = vsel %vm101, %v3081, 0.0
  %v3126 = vadd.f32 %v3124, %v3125
  %v3127 = vsel %vm101, %v3088, 0.0
  %v3128 = vadd.f32 %v3126, %v3127
  %v3129 = vsel %vm101, %v3095, 0.0
  %v3130 = vadd.f32 %v3128, %v3129
  %v3131 = vsel %vm101, %v3102, 0.0
  %v3132 = vadd.f32 %v3130, %v3131
  %v3133 = vsel %vm101, %v3117, 0.0
  %v3134 = vsel %vm101, %v3132, 0.0
  %v3135 = vadd.f32 %v3133, %v3134
  %v3136 = vmul.f32 %v3135, %v2957
  %v3137 = vld [vmem:[%s4] sm:$0x1]
  %v3139 = vlaneseq
  %v3140 = vshrl.u32 %v3139, 7
  %v3141 = vsub.s32 0, %v3140
  %v3142 = vrot.slane %v3137, %v3141
  %v3144 = vmul.f32 %v3142, %v2959
  %v3145 = vmul.f32 %v3142, %v2960
  %v3146 = vmul.f32 %v3142, %v2961
  %v3147 = vmul.f32 %v3142, %v2962
  %v3148 = vmul.f32 %v3142, %v2963
  %v3149 = vmul.f32 %v3142, %v2964
  %v3150 = vmul.f32 %v3142, %v2965
  %v3151 = vmul.f32 %v3142, %v2966
  %v3152 = vmul.f32 %v3142, %v2967
  %v3153 = vmul.f32 %v3142, %v2968
  %v3154 = vmul.f32 %v3142, %v2969
  %v3155 = vmul.f32 %v3142, %v2970
  %v3156 = vmul.f32 %v3142, %v2971
  %v3157 = vmul.f32 %v3142, %v2972
  %v3158 = vmul.f32 %v3142, %v2973
  %v3159 = vmul.f32 %v3142, %v2974
  %v3160 = vadd.f32 %v3136, 1e-06
  %v3161 = vrsqrt.pop %v3160
  %v3162 = vmul.f32 %v3144, %v3161
  %v3163 = vmul.f32 %v3145, %v3161
  %v3164 = vmul.f32 %v3146, %v3161
  %v3165 = vmul.f32 %v3147, %v3161
  %v3166 = vmul.f32 %v3148, %v3161
  %v3167 = vmul.f32 %v3149, %v3161
  %v3168 = vmul.f32 %v3150, %v3161
  %v3169 = vmul.f32 %v3151, %v3161
  %v3170 = vmul.f32 %v3152, %v3161
  %v3171 = vmul.f32 %v3153, %v3161
  %v3172 = vmul.f32 %v3154, %v3161
  %v3173 = vmul.f32 %v3155, %v3161
  %v3174 = vmul.f32 %v3156, %v3161
  %v3175 = vmul.f32 %v3157, %v3161
  %v3176 = vmul.f32 %v3158, %v3161
  %v3177 = vmul.f32 %v3159, %v3161
  %v3178 = vld [vmem:[%s5] sm:$0x1]
  %v3180 = vlaneseq
  %v3181 = vshrl.u32 %v3180, 7
  %v3182 = vsub.s32 0, %v3181
  %v3183 = vrot.slane %v3178, %v3182
  %v3185 = vadd.f32 %v3162, %v3183
  %v3186 = vadd.f32 %v3163, %v3183
  %v3187 = vadd.f32 %v3164, %v3183
  %v3188 = vadd.f32 %v3165, %v3183
  %v3189 = vadd.f32 %v3166, %v3183
  %v3190 = vadd.f32 %v3167, %v3183
  %v3191 = vadd.f32 %v3168, %v3183
  %v3192 = vadd.f32 %v3169, %v3183
  %v3193 = vadd.f32 %v3170, %v3183
  %v3194 = vadd.f32 %v3171, %v3183
  %v3195 = vadd.f32 %v3172, %v3183
  %v3196 = vadd.f32 %v3173, %v3183
  %v3197 = vadd.f32 %v3174, %v3183
  %v3198 = vadd.f32 %v3175, %v3183
  %v3199 = vadd.f32 %v3176, %v3183
  %v3200 = vadd.f32 %v3177, %v3183
  %3201 = vst.msk [vmem:[%s6] sm:$0xff] %vm101, %v3185
  %3202 = vst.msk [vmem:[%s6 + $0x8] sm:$0xff] %vm101, %v3186
  %3203 = vst.msk [vmem:[%s6 + $0x10] sm:$0xff] %vm101, %v3187
  %3204 = vst.msk [vmem:[%s6 + $0x18] sm:$0xff] %vm101, %v3188
  %3205 = vst.msk [vmem:[%s6 + $0x20] sm:$0xff] %vm101, %v3189
  %3206 = vst.msk [vmem:[%s6 + $0x28] sm:$0xff] %vm101, %v3190
  %3207 = vst.msk [vmem:[%s6 + $0x30] sm:$0xff] %vm101, %v3191
  %3208 = vst.msk [vmem:[%s6 + $0x38] sm:$0xff] %vm101, %v3192
  %3209 = vst.msk [vmem:[%s6 + $0x40] sm:$0xff] %vm101, %v3193
  %3210 = vst.msk [vmem:[%s6 + $0x48] sm:$0xff] %vm101, %v3194
  %3211 = vst.msk [vmem:[%s6 + $0x50] sm:$0xff] %vm101, %v3195
  %3212 = vst.msk [vmem:[%s6 + $0x58] sm:$0xff] %vm101, %v3196
  %3213 = vst.msk [vmem:[%s6 + $0x60] sm:$0xff] %vm101, %v3197
  %3214 = vst.msk [vmem:[%s6 + $0x68] sm:$0xff] %vm101, %v3198
  %3215 = vst.msk [vmem:[%s6 + $0x70] sm:$0xff] %vm101, %v3199
  %3216 = vst.msk [vmem:[%s6 + $0x78] sm:$0xff] %vm101, %v3200
  // Predicated region
  $region26: #{_lambda_.5} parent=0 // pred_check
    _
  $region27: #{_lambda_.5} parent=0 // pred_check_branch
    %3218 = sbr.rel (0) target = $region29
  $region28: #{_lambda_.5} parent=0 // pred_region
    _
  $region29: #{_lambda_.5} parent=0 // pred_fallthru
    _
  // Predicated region
  $region30: #{_lambda_.5} parent=0 // pred_check
    _
  $region31: #{_lambda_.5} parent=0 // pred_check_branch
    %3220 = sbr.rel (0) target = $region33
  $region32: #{_lambda_.5} parent=0 // pred_region
    _
  $region33: #{_lambda_.5} parent=0 // pred_fallthru
    _

</llo_original>
